<compile_context>
chip_gen: v5e
topology: v5e:2x2
jax: 0.10.0
libtpu: 0.0.40
codegen_flags: <defaults>
</compile_context>

<pallas_src>
import functools

import numpy as np
import jax
import jax.numpy as jnp
from jax.experimental import pallas as pl
from jax.experimental.pallas import tpu as pltpu


# ----------------------------------------------------------------------------
# Pallas kernels
# ----------------------------------------------------------------------------

def _conv3x3_chain_kernel(xf_ref, w_ref, b_ref, m_ref, o_ref, *, H, Wp):
    """3x3 same-conv + folded-BN bias + ReLU, flat-padded in -> flat-padded out.

    xf_ref : (1, L, Cin)  bf16, flat padded layout (borders zero)
    w_ref  : (9, Cin, Cout) bf16 (BN scale pre-folded), tap t = 3*di + dj
    b_ref  : (1, Cout) f32
    m_ref  : (H*Wp, 1) f32 mask (1 on valid columns, 0 on the Wp-W junk cols)
    o_ref  : (1, L, Cout) bf16, same flat padded layout (consumable by next conv)
    """
    HWp = H * Wp
    head = Wp + 1
    L = o_ref.shape[1]
    cout = o_ref.shape[2]
    acc = jnp.zeros((HWp, cout), jnp.float32)
    for t in range(9):
        di, dj = divmod(t, 3)
        off = di * Wp + dj
        acc = acc + jnp.dot(xf_ref[0, off:off + HWp, :], w_ref[t],
                            preferred_element_type=jnp.float32)
    y = jnp.maximum(acc + b_ref[...], 0.0) * m_ref[...]
    # zero the whole block (borders of the next conv), then place the result
    # at the padded offset so the buffer is directly the next conv's input.
    o_ref[0] = jnp.zeros((L, cout), o_ref.dtype)
    o_ref[0, head:head + HWp, :] = y.astype(o_ref.dtype)


def _updown_kernel(xf_ref, w_ref, b_ref, m_ref, up_ref, dn_ref, *, H, Wp, bw):
    """upconv + downconv fused: one matmul with concatenated output channels.

    up_ref : (1, H*Wp, bw) bf16  -- dense conv-output layout (junk cols kept,
                                    sliced away in JAX at the very end)
    dn_ref : (1, L, bw)   bf16  -- flat padded layout, feeds downconv2 directly
    """
    HWp = H * Wp
    head = Wp + 1
    L = dn_ref.shape[1]
    acc = jnp.zeros((HWp, 2 * bw), jnp.float32)
    for t in range(9):
        di, dj = divmod(t, 3)
        off = di * Wp + dj
        acc = acc + jnp.dot(xf_ref[0, off:off + HWp, :], w_ref[t],
                            preferred_element_type=jnp.float32)
    y = jnp.maximum(acc + b_ref[...], 0.0)
    up_ref[0] = y[:, :bw].astype(up_ref.dtype)
    dn = y[:, bw:] * m_ref[...]
    dn_ref[0] = jnp.zeros((L, bw), dn_ref.dtype)
    dn_ref[0, head:head + HWp, :] = dn.astype(dn_ref.dtype)


def _down2_concat_kernel(up_ref, dnf_ref, w_ref, b_ref, o_ref, *, H, Wp):
    """downconv2 fused with the final channel concat (passthrough of `up`).

    o_ref : (1, 2, H*Wp, bw) f32 ; group 0 = up, group 1 = downconv2(down).
    """
    HWp = H * Wp
    bw = w_ref.shape[2]
    acc = jnp.zeros((HWp, bw), jnp.float32)
    for t in range(9):
        di, dj = divmod(t, 3)
        off = di * Wp + dj
        acc = acc + jnp.dot(dnf_ref[0, off:off + HWp, :], w_ref[t],
                            preferred_element_type=jnp.float32)
    d2 = jnp.maximum(acc + b_ref[...], 0.0)
    o_ref[0, 0] = up_ref[0].astype(o_ref.dtype)
    o_ref[0, 1] = d2.astype(o_ref.dtype)


# ----------------------------------------------------------------------------
# pallas_call wrappers
# ----------------------------------------------------------------------------

def _conv_chain(xf, w, b, mask, *, H, Wp):
    N, L, cin = xf.shape
    cout = w.shape[2]
    kern = functools.partial(_conv3x3_chain_kernel, H=H, Wp=Wp)
    return pl.pallas_call(
        kern,
        grid=(N,),
        in_specs=[
            pl.BlockSpec((1, L, cin), lambda n: (n, 0, 0)),
            pl.BlockSpec((9, cin, cout), lambda n: (0, 0, 0)),
            pl.BlockSpec((1, cout), lambda n: (0, 0)),
            pl.BlockSpec((H * Wp, 1), lambda n: (0, 0)),
        ],
        out_specs=pl.BlockSpec((1, L, cout), lambda n: (n, 0, 0)),
        out_shape=jax.ShapeDtypeStruct((N, L, cout), jnp.bfloat16),
        compiler_params=pltpu.CompilerParams(dimension_semantics=("parallel",)),
    )(xf, w, b, mask)


def _updown(xf, w, b, mask, *, H, Wp, bw):
    N, L, cin = xf.shape
    kern = functools.partial(_updown_kernel, H=H, Wp=Wp, bw=bw)
    return pl.pallas_call(
        kern,
        grid=(N,),
        in_specs=[
            pl.BlockSpec((1, L, cin), lambda n: (n, 0, 0)),
            pl.BlockSpec((9, cin, 2 * bw), lambda n: (0, 0, 0)),
            pl.BlockSpec((1, 2 * bw), lambda n: (0, 0)),
            pl.BlockSpec((H * Wp, 1), lambda n: (0, 0)),
        ],
        out_specs=[
            pl.BlockSpec((1, H * Wp, bw), lambda n: (n, 0, 0)),
            pl.BlockSpec((1, L, bw), lambda n: (n, 0, 0)),
        ],
        out_shape=(jax.ShapeDtypeStruct((N, H * Wp, bw), jnp.bfloat16),
                   jax.ShapeDtypeStruct((N, L, bw), jnp.bfloat16)),
        compiler_params=pltpu.CompilerParams(dimension_semantics=("parallel",)),
    )(xf, w, b, mask)


def _down2_concat(up, dnf, w, b, *, H, Wp):
    N, HWp, bw = up.shape
    L = dnf.shape[1]
    kern = functools.partial(_down2_concat_kernel, H=H, Wp=Wp)
    return pl.pallas_call(
        kern,
        grid=(N,),
        in_specs=[
            pl.BlockSpec((1, HWp, bw), lambda n: (n, 0, 0)),
            pl.BlockSpec((1, L, bw), lambda n: (n, 0, 0)),
            pl.BlockSpec((9, bw, bw), lambda n: (0, 0, 0)),
            pl.BlockSpec((1, bw), lambda n: (0, 0)),
        ],
        out_specs=pl.BlockSpec((1, 2, HWp, bw), lambda n: (n, 0, 0, 0)),
        out_shape=jax.ShapeDtypeStruct((N, 2, HWp, bw), jnp.float32),
        compiler_params=pltpu.CompilerParams(dimension_semantics=("parallel",)),
    )(up, dnf, w, b)


# ----------------------------------------------------------------------------
# Parameters (synthetic, deterministic) — BN folded in eval mode
# ----------------------------------------------------------------------------

def _init_cba(key, cin, cout, std=0.05):
    kw, kg, kb = jax.random.split(key, 3)
    w = std * jax.random.normal(kw, (9, cin, cout), jnp.float32)
    gamma = 1.0 + 0.1 * jax.random.normal(kg, (cout,), jnp.float32)
    beta = 0.1 * jax.random.normal(kb, (cout,), jnp.float32)
    # eval-mode BatchNorm (running_mean=0, running_var=1, eps=1e-5) folded:
    scale = gamma / np.sqrt(1.0 + 1e-5)
    w = w * scale[None, None, :]                  # fold BN scale into weights
    return w.astype(jnp.bfloat16), beta.reshape(1, cout).astype(jnp.float32)


def init_context_module(key, in_channels):
    assert in_channels % 4 == 0
    bw = in_channels // 4
    k1, k2, k3, k4 = jax.random.split(key, 4)
    w_in, b_in = _init_cba(k1, in_channels, bw)
    w_up, b_up = _init_cba(k2, bw, bw)
    w_dn, b_dn = _init_cba(k3, bw, bw)
    w_d2, b_d2 = _init_cba(k4, bw, bw)
    # upconv & downconv share their input: concatenate output channels so they
    # run as a single matmul (fills more of the MXU N dimension).
    w_ud = jnp.concatenate([w_up, w_dn], axis=2)
    b_ud = jnp.concatenate([b_up, b_dn], axis=1)
    return dict(bw=bw, w_in=w_in, b_in=b_in, w_ud=w_ud, b_ud=b_ud,
                w_d2=w_d2, b_d2=b_d2)


# ----------------------------------------------------------------------------
# Forward (Pallas) and pure-JAX reference
# ----------------------------------------------------------------------------

def context_module_forward(params, x_nchw):
    N, C, H, W = x_nchw.shape
    bw = params["bw"]
    Wp = W + 2
    HWp = H * Wp
    L = (H + 3) * Wp

    # NCHW -> NHWC, zero-pad (1 top, 2 bottom, 1 left, 1 right), flatten rows
    # into the flat-padded layout, store bf16.
    x = jnp.transpose(x_nchw, (0, 2, 3, 1)).astype(jnp.float32)
    xf = jnp.pad(x, ((0, 0), (1, 2), (1, 1), (0, 0))).reshape(N, L, C)
    xf = xf.astype(jnp.bfloat16)
    mask = jnp.asarray((np.arange(HWp) % Wp < W)
                       .astype(np.float32).reshape(HWp, 1))

    x1 = _conv_chain(xf, params["w_in"], params["b_in"], mask, H=H, Wp=Wp)
    up, dnf = _updown(x1, params["w_ud"], params["b_ud"], mask,
                      H=H, Wp=Wp, bw=bw)
    y = _down2_concat(up, dnf, params["w_d2"], params["b_d2"], H=H, Wp=Wp)

    # (N, 2, H*Wp, bw) -> drop junk columns -> NCHW with channels [up | down2]
    y = y.reshape(N, 2, H, Wp, bw)[:, :, :, :W, :]
    y = jnp.transpose(y, (0, 1, 4, 2, 3)).reshape(N, 2 * bw, H, W)
    return y


def _ref_conv(x, w9, b):
    N, H, W, _ = x.shape
    xp = jnp.pad(x, ((0, 0), (1, 1), (1, 1), (0, 0)))
    out = None
    for t in range(9):
        di, dj = divmod(t, 3)
        c = jnp.einsum("nhwc,cd->nhwd", xp[:, di:di + H, dj:dj + W, :],
                       w9[t].astype(jnp.float32),
                       precision=jax.lax.Precision.HIGHEST)
        out = c if out is None else out + c
    return jnp.maximum(out + b.astype(jnp.float32), 0.0)


def context_module_reference(params, x_nchw):
    bw = params["bw"]
    rb = lambda a: a.astype(jnp.bfloat16).astype(jnp.float32)  # bf16 rounding
    x = rb(jnp.transpose(x_nchw, (0, 2, 3, 1)).astype(jnp.float32))
    x1 = rb(_ref_conv(x, params["w_in"], params["b_in"]))
    ud = _ref_conv(x1, params["w_ud"], params["b_ud"])
    up = rb(ud[..., :bw])
    dn = rb(ud[..., bw:])
    d2 = _ref_conv(dn, params["w_d2"], params["b_d2"])
    y = jnp.concatenate([up, d2], axis=-1)
    return jnp.transpose(y, (0, 3, 1, 2))


# ----------------------------------------------------------------------------
# Main
# ----------------------------------------------------------------------------

if __name__ == "__main__":
    in_channels = 64        # ContextModule(in_channels=wide) as used in DBFace
    N, H, W = 2, 16, 16

    key = jax.random.PRNGKey(0)
    kp, kx = jax.random.split(key)
    params = init_context_module(kp, in_channels)
    x = jax.random.normal(kx, (N, in_channels, H, W), jnp.float32)

    fwd = jax.jit(lambda inp: context_module_forward(params, inp))
    out = fwd(x)
    jax.block_until_ready(out)

    assert out.shape == (N, in_channels // 2, H, W), out.shape
    assert bool(jnp.all(jnp.isfinite(out)))

    ref = context_module_reference(params, x)
    err = float(jnp.max(jnp.abs(out - ref)))
    assert np.isfinite(err) and err < 5e-2, f"max abs err vs reference: {err}"

    print("KERNEL_OK")
</pallas_src>

<mosaic_0001>
module attributes {stable_mosaic.version = 11 : i64} {
  func.func @_down2_concat_kernel(%arg0: i32, %arg1: memref<1x288x16xbf16, #tpu.memory_space<vmem>>, %arg2: memref<1x342x16xbf16, #tpu.memory_space<vmem>>, %arg3: memref<9x16x16xbf16, #tpu.memory_space<vmem>>, %arg4: memref<1x16xf32, #tpu.memory_space<vmem>>, %arg5: memref<1x2x288x16xf32, #tpu.memory_space<vmem>>) attributes {dimension_semantics = [#tpu.dimension_semantics<parallel>], iteration_bounds = array<i64: 2>, scalar_prefetch = 0 : i64, scratch_operands = 0 : i64, tpu.core_type = #tpu.core_type<tc>, window_params = [{transform_indices = @transform_0, window_bounds = array<i64: 1, 288, 16>}, {transform_indices = @transform_1, window_bounds = array<i64: 1, 342, 16>}, {pipeline_mode = #tpu.pipeline_mode<synchronous>, transform_indices = @transform_2, window_bounds = array<i64: 9, 16, 16>}, {pipeline_mode = #tpu.pipeline_mode<synchronous>, transform_indices = @transform_3, window_bounds = array<i64: 1, 16>}, {transform_indices = @transform_4, window_bounds = array<i64: 1, 2, 288, 16>}]} {
    %cst = arith.constant 0.000000e+00 : f32
    %0 = vector.broadcast %cst : f32 to vector<288x16xf32>
    %c0 = arith.constant 0 : index
    %c0_0 = arith.constant 0 : index
    %c0_1 = arith.constant 0 : index
    %1 = vector.load %arg2[%c0, %c0_0, %c0_1] : memref<1x342x16xbf16, #tpu.memory_space<vmem>>, vector<1x288x16xbf16>
    %2 = vector.shape_cast %1 : vector<1x288x16xbf16> to vector<288x16xbf16>
    %c0_2 = arith.constant 0 : index
    %c0_3 = arith.constant 0 : index
    %c0_4 = arith.constant 0 : index
    %3 = vector.load %arg3[%c0_2, %c0_3, %c0_4] : memref<9x16x16xbf16, #tpu.memory_space<vmem>>, vector<1x16x16xbf16>
    %4 = vector.shape_cast %3 : vector<1x16x16xbf16> to vector<16x16xbf16>
    %cst_5 = arith.constant dense<0.000000e+00> : vector<288x16xf32>
    %5 = tpu.matmul %2, %4, %cst_5 {dimension_numbers = #tpu.dot_dimension_numbers<[1], [0], [0], [1], [0, 0, 1, 1], [], []>} : vector<288x16xbf16>, vector<16x16xbf16>, vector<288x16xf32> -> vector<288x16xf32>
    %6 = arith.addf %0, %5 : vector<288x16xf32>
    %c0_6 = arith.constant 0 : index
    %c1 = arith.constant 1 : index
    %c0_7 = arith.constant 0 : index
    %7 = vector.load %arg2[%c0_6, %c1, %c0_7] : memref<1x342x16xbf16, #tpu.memory_space<vmem>>, vector<1x288x16xbf16>
    %8 = vector.shape_cast %7 : vector<1x288x16xbf16> to vector<288x16xbf16>
    %c1_8 = arith.constant 1 : index
    %c0_9 = arith.constant 0 : index
    %c0_10 = arith.constant 0 : index
    %9 = vector.load %arg3[%c1_8, %c0_9, %c0_10] : memref<9x16x16xbf16, #tpu.memory_space<vmem>>, vector<1x16x16xbf16>
    %10 = vector.shape_cast %9 : vector<1x16x16xbf16> to vector<16x16xbf16>
    %cst_11 = arith.constant dense<0.000000e+00> : vector<288x16xf32>
    %11 = tpu.matmul %8, %10, %cst_11 {dimension_numbers = #tpu.dot_dimension_numbers<[1], [0], [0], [1], [0, 0, 1, 1], [], []>} : vector<288x16xbf16>, vector<16x16xbf16>, vector<288x16xf32> -> vector<288x16xf32>
    %12 = arith.addf %6, %11 : vector<288x16xf32>
    %c0_12 = arith.constant 0 : index
    %c2 = arith.constant 2 : index
    %c0_13 = arith.constant 0 : index
    %13 = vector.load %arg2[%c0_12, %c2, %c0_13] : memref<1x342x16xbf16, #tpu.memory_space<vmem>>, vector<1x288x16xbf16>
    %14 = vector.shape_cast %13 : vector<1x288x16xbf16> to vector<288x16xbf16>
    %c2_14 = arith.constant 2 : index
    %c0_15 = arith.constant 0 : index
    %c0_16 = arith.constant 0 : index
    %15 = vector.load %arg3[%c2_14, %c0_15, %c0_16] : memref<9x16x16xbf16, #tpu.memory_space<vmem>>, vector<1x16x16xbf16>
    %16 = vector.shape_cast %15 : vector<1x16x16xbf16> to vector<16x16xbf16>
    %cst_17 = arith.constant dense<0.000000e+00> : vector<288x16xf32>
    %17 = tpu.matmul %14, %16, %cst_17 {dimension_numbers = #tpu.dot_dimension_numbers<[1], [0], [0], [1], [0, 0, 1, 1], [], []>} : vector<288x16xbf16>, vector<16x16xbf16>, vector<288x16xf32> -> vector<288x16xf32>
    %18 = arith.addf %12, %17 : vector<288x16xf32>
    %c0_18 = arith.constant 0 : index
    %c18 = arith.constant 18 : index
    %c0_19 = arith.constant 0 : index
    %19 = vector.load %arg2[%c0_18, %c18, %c0_19] : memref<1x342x16xbf16, #tpu.memory_space<vmem>>, vector<1x288x16xbf16>
    %20 = vector.shape_cast %19 : vector<1x288x16xbf16> to vector<288x16xbf16>
    %c3 = arith.constant 3 : index
    %c0_20 = arith.constant 0 : index
    %c0_21 = arith.constant 0 : index
    %21 = vector.load %arg3[%c3, %c0_20, %c0_21] : memref<9x16x16xbf16, #tpu.memory_space<vmem>>, vector<1x16x16xbf16>
    %22 = vector.shape_cast %21 : vector<1x16x16xbf16> to vector<16x16xbf16>
    %cst_22 = arith.constant dense<0.000000e+00> : vector<288x16xf32>
    %23 = tpu.matmul %20, %22, %cst_22 {dimension_numbers = #tpu.dot_dimension_numbers<[1], [0], [0], [1], [0, 0, 1, 1], [], []>} : vector<288x16xbf16>, vector<16x16xbf16>, vector<288x16xf32> -> vector<288x16xf32>
    %24 = arith.addf %18, %23 : vector<288x16xf32>
    %c0_23 = arith.constant 0 : index
    %c19 = arith.constant 19 : index
    %c0_24 = arith.constant 0 : index
    %25 = vector.load %arg2[%c0_23, %c19, %c0_24] : memref<1x342x16xbf16, #tpu.memory_space<vmem>>, vector<1x288x16xbf16>
    %26 = vector.shape_cast %25 : vector<1x288x16xbf16> to vector<288x16xbf16>
    %c4 = arith.constant 4 : index
    %c0_25 = arith.constant 0 : index
    %c0_26 = arith.constant 0 : index
    %27 = vector.load %arg3[%c4, %c0_25, %c0_26] : memref<9x16x16xbf16, #tpu.memory_space<vmem>>, vector<1x16x16xbf16>
    %28 = vector.shape_cast %27 : vector<1x16x16xbf16> to vector<16x16xbf16>
    %cst_27 = arith.constant dense<0.000000e+00> : vector<288x16xf32>
    %29 = tpu.matmul %26, %28, %cst_27 {dimension_numbers = #tpu.dot_dimension_numbers<[1], [0], [0], [1], [0, 0, 1, 1], [], []>} : vector<288x16xbf16>, vector<16x16xbf16>, vector<288x16xf32> -> vector<288x16xf32>
    %30 = arith.addf %24, %29 : vector<288x16xf32>
    %c0_28 = arith.constant 0 : index
    %c20 = arith.constant 20 : index
    %c0_29 = arith.constant 0 : index
    %31 = vector.load %arg2[%c0_28, %c20, %c0_29] : memref<1x342x16xbf16, #tpu.memory_space<vmem>>, vector<1x288x16xbf16>
    %32 = vector.shape_cast %31 : vector<1x288x16xbf16> to vector<288x16xbf16>
    %c5 = arith.constant 5 : index
    %c0_30 = arith.constant 0 : index
    %c0_31 = arith.constant 0 : index
    %33 = vector.load %arg3[%c5, %c0_30, %c0_31] : memref<9x16x16xbf16, #tpu.memory_space<vmem>>, vector<1x16x16xbf16>
    %34 = vector.shape_cast %33 : vector<1x16x16xbf16> to vector<16x16xbf16>
    %cst_32 = arith.constant dense<0.000000e+00> : vector<288x16xf32>
    %35 = tpu.matmul %32, %34, %cst_32 {dimension_numbers = #tpu.dot_dimension_numbers<[1], [0], [0], [1], [0, 0, 1, 1], [], []>} : vector<288x16xbf16>, vector<16x16xbf16>, vector<288x16xf32> -> vector<288x16xf32>
    %36 = arith.addf %30, %35 : vector<288x16xf32>
    %c0_33 = arith.constant 0 : index
    %c36 = arith.constant 36 : index
    %c0_34 = arith.constant 0 : index
    %37 = vector.load %arg2[%c0_33, %c36, %c0_34] : memref<1x342x16xbf16, #tpu.memory_space<vmem>>, vector<1x288x16xbf16>
    %38 = vector.shape_cast %37 : vector<1x288x16xbf16> to vector<288x16xbf16>
    %c6 = arith.constant 6 : index
    %c0_35 = arith.constant 0 : index
    %c0_36 = arith.constant 0 : index
    %39 = vector.load %arg3[%c6, %c0_35, %c0_36] : memref<9x16x16xbf16, #tpu.memory_space<vmem>>, vector<1x16x16xbf16>
    %40 = vector.shape_cast %39 : vector<1x16x16xbf16> to vector<16x16xbf16>
    %cst_37 = arith.constant dense<0.000000e+00> : vector<288x16xf32>
    %41 = tpu.matmul %38, %40, %cst_37 {dimension_numbers = #tpu.dot_dimension_numbers<[1], [0], [0], [1], [0, 0, 1, 1], [], []>} : vector<288x16xbf16>, vector<16x16xbf16>, vector<288x16xf32> -> vector<288x16xf32>
    %42 = arith.addf %36, %41 : vector<288x16xf32>
    %c0_38 = arith.constant 0 : index
    %c37 = arith.constant 37 : index
    %c0_39 = arith.constant 0 : index
    %43 = vector.load %arg2[%c0_38, %c37, %c0_39] : memref<1x342x16xbf16, #tpu.memory_space<vmem>>, vector<1x288x16xbf16>
    %44 = vector.shape_cast %43 : vector<1x288x16xbf16> to vector<288x16xbf16>
    %c7 = arith.constant 7 : index
    %c0_40 = arith.constant 0 : index
    %c0_41 = arith.constant 0 : index
    %45 = vector.load %arg3[%c7, %c0_40, %c0_41] : memref<9x16x16xbf16, #tpu.memory_space<vmem>>, vector<1x16x16xbf16>
    %46 = vector.shape_cast %45 : vector<1x16x16xbf16> to vector<16x16xbf16>
    %cst_42 = arith.constant dense<0.000000e+00> : vector<288x16xf32>
    %47 = tpu.matmul %44, %46, %cst_42 {dimension_numbers = #tpu.dot_dimension_numbers<[1], [0], [0], [1], [0, 0, 1, 1], [], []>} : vector<288x16xbf16>, vector<16x16xbf16>, vector<288x16xf32> -> vector<288x16xf32>
    %48 = arith.addf %42, %47 : vector<288x16xf32>
    %c0_43 = arith.constant 0 : index
    %c38 = arith.constant 38 : index
    %c0_44 = arith.constant 0 : index
    %49 = vector.load %arg2[%c0_43, %c38, %c0_44] : memref<1x342x16xbf16, #tpu.memory_space<vmem>>, vector<1x288x16xbf16>
    %50 = vector.shape_cast %49 : vector<1x288x16xbf16> to vector<288x16xbf16>
    %c8 = arith.constant 8 : index
    %c0_45 = arith.constant 0 : index
    %c0_46 = arith.constant 0 : index
    %51 = vector.load %arg3[%c8, %c0_45, %c0_46] : memref<9x16x16xbf16, #tpu.memory_space<vmem>>, vector<1x16x16xbf16>
    %52 = vector.shape_cast %51 : vector<1x16x16xbf16> to vector<16x16xbf16>
    %cst_47 = arith.constant dense<0.000000e+00> : vector<288x16xf32>
    %53 = tpu.matmul %50, %52, %cst_47 {dimension_numbers = #tpu.dot_dimension_numbers<[1], [0], [0], [1], [0, 0, 1, 1], [], []>} : vector<288x16xbf16>, vector<16x16xbf16>, vector<288x16xf32> -> vector<288x16xf32>
    %54 = arith.addf %48, %53 : vector<288x16xf32>
    %c0_48 = arith.constant 0 : index
    %c0_49 = arith.constant 0 : index
    %55 = vector.load %arg4[%c0_48, %c0_49] : memref<1x16xf32, #tpu.memory_space<vmem>>, vector<1x16xf32>
    %56 = vector.broadcast %55 : vector<1x16xf32> to vector<288x16xf32>
    %57 = arith.addf %54, %56 : vector<288x16xf32>
    %cst_50 = arith.constant 0.000000e+00 : f32
    %58 = vector.broadcast %cst_50 : f32 to vector<288x16xf32>
    %59 = arith.maximumf %57, %58 : vector<288x16xf32>
    %c0_51 = arith.constant 0 : index
    %c0_52 = arith.constant 0 : index
    %c0_53 = arith.constant 0 : index
    %60 = vector.load %arg1[%c0_51, %c0_52, %c0_53] : memref<1x288x16xbf16, #tpu.memory_space<vmem>>, vector<1x288x16xbf16>
    %61 = vector.shape_cast %60 : vector<1x288x16xbf16> to vector<288x16xbf16>
    %62 = arith.extf %61 : vector<288x16xbf16> to vector<288x16xf32>
    %c0_54 = arith.constant 0 : index
    %c0_55 = arith.constant 0 : index
    %c0_56 = arith.constant 0 : index
    %c0_57 = arith.constant 0 : index
    %63 = vector.load %arg5[%c0_54, %c0_55, %c0_56, %c0_57] : memref<1x2x288x16xf32, #tpu.memory_space<vmem>>, vector<1x1x288x16xf32>
    %64 = vector.shape_cast %63 : vector<1x1x288x16xf32> to vector<288x16xf32>
    %65 = vector.shape_cast %62 : vector<288x16xf32> to vector<1x1x288x16xf32>
    tpu.vector_store %arg5[%c0_54, %c0_55, %c0_56, %c0_57], %65 {strides = array<i32>} : memref<1x2x288x16xf32, #tpu.memory_space<vmem>>, vector<1x1x288x16xf32>,
    %c0_58 = arith.constant 0 : index
    %c1_59 = arith.constant 1 : index
    %c0_60 = arith.constant 0 : index
    %c0_61 = arith.constant 0 : index
    %66 = vector.load %arg5[%c0_58, %c1_59, %c0_60, %c0_61] : memref<1x2x288x16xf32, #tpu.memory_space<vmem>>, vector<1x1x288x16xf32>
    %67 = vector.shape_cast %66 : vector<1x1x288x16xf32> to vector<288x16xf32>
    %68 = vector.shape_cast %59 : vector<288x16xf32> to vector<1x1x288x16xf32>
    tpu.vector_store %arg5[%c0_58, %c1_59, %c0_60, %c0_61], %68 {strides = array<i32>} : memref<1x2x288x16xf32, #tpu.memory_space<vmem>>, vector<1x1x288x16xf32>,
    return
  }
  func.func @transform_0(%arg0: i32) -> (i32, i32, i32) {
    %c0_i32 = arith.constant 0 : i32
    %c0_i32_0 = arith.constant 0 : i32
    %c0_i32_1 = arith.constant 0 : i32
    return %arg0, %c0_i32, %c0_i32_0 : i32, i32, i32
  }
  func.func @transform_1(%arg0: i32) -> (i32, i32, i32) {
    %c0_i32 = arith.constant 0 : i32
    %c0_i32_0 = arith.constant 0 : i32
    %c0_i32_1 = arith.constant 0 : i32
    return %arg0, %c0_i32, %c0_i32_0 : i32, i32, i32
  }
  func.func @transform_2(%arg0: i32) -> (i32, i32, i32) {
    %c0_i32 = arith.constant 0 : i32
    %c0_i32_0 = arith.constant 0 : i32
    %c0_i32_1 = arith.constant 0 : i32
    %c0_i32_2 = arith.constant 0 : i32
    return %c0_i32, %c0_i32_0, %c0_i32_1 : i32, i32, i32
  }
  func.func @transform_3(%arg0: i32) -> (i32, i32) {
    %c0_i32 = arith.constant 0 : i32
    %c0_i32_0 = arith.constant 0 : i32
    %c0_i32_1 = arith.constant 0 : i32
    return %c0_i32, %c0_i32_0 : i32, i32
  }
  func.func @transform_4(%arg0: i32) -> (i32, i32, i32, i32) {
    %c0_i32 = arith.constant 0 : i32
    %c0_i32_0 = arith.constant 0 : i32
    %c0_i32_1 = arith.constant 0 : i32
    %c0_i32_2 = arith.constant 0 : i32
    return %arg0, %c0_i32, %c0_i32_0, %c0_i32_1 : i32, i32, i32, i32
  }
}

module attributes {stable_mosaic.version = 11 : i64} {
  func.func @_updown_kernel(%arg0: i32, %arg1: memref<1x342x16xbf16, #tpu.memory_space<vmem>>, %arg2: memref<9x16x32xbf16, #tpu.memory_space<vmem>>, %arg3: memref<1x32xf32, #tpu.memory_space<vmem>>, %arg4: memref<288x1xf32, #tpu.memory_space<vmem>>, %arg5: memref<1x288x16xbf16, #tpu.memory_space<vmem>>, %arg6: memref<1x342x16xbf16, #tpu.memory_space<vmem>>) attributes {dimension_semantics = [#tpu.dimension_semantics<parallel>], iteration_bounds = array<i64: 2>, scalar_prefetch = 0 : i64, scratch_operands = 0 : i64, tpu.core_type = #tpu.core_type<tc>, window_params = [{transform_indices = @transform_0, window_bounds = array<i64: 1, 342, 16>}, {pipeline_mode = #tpu.pipeline_mode<synchronous>, transform_indices = @transform_1, window_bounds = array<i64: 9, 16, 32>}, {pipeline_mode = #tpu.pipeline_mode<synchronous>, transform_indices = @transform_2, window_bounds = array<i64: 1, 32>}, {pipeline_mode = #tpu.pipeline_mode<synchronous>, transform_indices = @transform_3, window_bounds = array<i64: 288, 1>}, {transform_indices = @transform_4, window_bounds = array<i64: 1, 288, 16>}, {transform_indices = @transform_5, window_bounds = array<i64: 1, 342, 16>}]} {
    %cst = arith.constant 0.000000e+00 : f32
    %0 = vector.broadcast %cst : f32 to vector<288x32xf32>
    %c0 = arith.constant 0 : index
    %c0_0 = arith.constant 0 : index
    %c0_1 = arith.constant 0 : index
    %1 = vector.load %arg1[%c0, %c0_0, %c0_1] : memref<1x342x16xbf16, #tpu.memory_space<vmem>>, vector<1x288x16xbf16>
    %2 = vector.shape_cast %1 : vector<1x288x16xbf16> to vector<288x16xbf16>
    %c0_2 = arith.constant 0 : index
    %c0_3 = arith.constant 0 : index
    %c0_4 = arith.constant 0 : index
    %3 = vector.load %arg2[%c0_2, %c0_3, %c0_4] : memref<9x16x32xbf16, #tpu.memory_space<vmem>>, vector<1x16x32xbf16>
    %4 = vector.shape_cast %3 : vector<1x16x32xbf16> to vector<16x32xbf16>
    %cst_5 = arith.constant dense<0.000000e+00> : vector<288x32xf32>
    %5 = tpu.matmul %2, %4, %cst_5 {dimension_numbers = #tpu.dot_dimension_numbers<[1], [0], [0], [1], [0, 0, 1, 1], [], []>} : vector<288x16xbf16>, vector<16x32xbf16>, vector<288x32xf32> -> vector<288x32xf32>
    %6 = arith.addf %0, %5 : vector<288x32xf32>
    %c0_6 = arith.constant 0 : index
    %c1 = arith.constant 1 : index
    %c0_7 = arith.constant 0 : index
    %7 = vector.load %arg1[%c0_6, %c1, %c0_7] : memref<1x342x16xbf16, #tpu.memory_space<vmem>>, vector<1x288x16xbf16>
    %8 = vector.shape_cast %7 : vector<1x288x16xbf16> to vector<288x16xbf16>
    %c1_8 = arith.constant 1 : index
    %c0_9 = arith.constant 0 : index
    %c0_10 = arith.constant 0 : index
    %9 = vector.load %arg2[%c1_8, %c0_9, %c0_10] : memref<9x16x32xbf16, #tpu.memory_space<vmem>>, vector<1x16x32xbf16>
    %10 = vector.shape_cast %9 : vector<1x16x32xbf16> to vector<16x32xbf16>
    %cst_11 = arith.constant dense<0.000000e+00> : vector<288x32xf32>
    %11 = tpu.matmul %8, %10, %cst_11 {dimension_numbers = #tpu.dot_dimension_numbers<[1], [0], [0], [1], [0, 0, 1, 1], [], []>} : vector<288x16xbf16>, vector<16x32xbf16>, vector<288x32xf32> -> vector<288x32xf32>
    %12 = arith.addf %6, %11 : vector<288x32xf32>
    %c0_12 = arith.constant 0 : index
    %c2 = arith.constant 2 : index
    %c0_13 = arith.constant 0 : index
    %13 = vector.load %arg1[%c0_12, %c2, %c0_13] : memref<1x342x16xbf16, #tpu.memory_space<vmem>>, vector<1x288x16xbf16>
    %14 = vector.shape_cast %13 : vector<1x288x16xbf16> to vector<288x16xbf16>
    %c2_14 = arith.constant 2 : index
    %c0_15 = arith.constant 0 : index
    %c0_16 = arith.constant 0 : index
    %15 = vector.load %arg2[%c2_14, %c0_15, %c0_16] : memref<9x16x32xbf16, #tpu.memory_space<vmem>>, vector<1x16x32xbf16>
    %16 = vector.shape_cast %15 : vector<1x16x32xbf16> to vector<16x32xbf16>
    %cst_17 = arith.constant dense<0.000000e+00> : vector<288x32xf32>
    %17 = tpu.matmul %14, %16, %cst_17 {dimension_numbers = #tpu.dot_dimension_numbers<[1], [0], [0], [1], [0, 0, 1, 1], [], []>} : vector<288x16xbf16>, vector<16x32xbf16>, vector<288x32xf32> -> vector<288x32xf32>
    %18 = arith.addf %12, %17 : vector<288x32xf32>
    %c0_18 = arith.constant 0 : index
    %c18 = arith.constant 18 : index
    %c0_19 = arith.constant 0 : index
    %19 = vector.load %arg1[%c0_18, %c18, %c0_19] : memref<1x342x16xbf16, #tpu.memory_space<vmem>>, vector<1x288x16xbf16>
    %20 = vector.shape_cast %19 : vector<1x288x16xbf16> to vector<288x16xbf16>
    %c3 = arith.constant 3 : index
    %c0_20 = arith.constant 0 : index
    %c0_21 = arith.constant 0 : index
    %21 = vector.load %arg2[%c3, %c0_20, %c0_21] : memref<9x16x32xbf16, #tpu.memory_space<vmem>>, vector<1x16x32xbf16>
    %22 = vector.shape_cast %21 : vector<1x16x32xbf16> to vector<16x32xbf16>
    %cst_22 = arith.constant dense<0.000000e+00> : vector<288x32xf32>
    %23 = tpu.matmul %20, %22, %cst_22 {dimension_numbers = #tpu.dot_dimension_numbers<[1], [0], [0], [1], [0, 0, 1, 1], [], []>} : vector<288x16xbf16>, vector<16x32xbf16>, vector<288x32xf32> -> vector<288x32xf32>
    %24 = arith.addf %18, %23 : vector<288x32xf32>
    %c0_23 = arith.constant 0 : index
    %c19 = arith.constant 19 : index
    %c0_24 = arith.constant 0 : index
    %25 = vector.load %arg1[%c0_23, %c19, %c0_24] : memref<1x342x16xbf16, #tpu.memory_space<vmem>>, vector<1x288x16xbf16>
    %26 = vector.shape_cast %25 : vector<1x288x16xbf16> to vector<288x16xbf16>
    %c4 = arith.constant 4 : index
    %c0_25 = arith.constant 0 : index
    %c0_26 = arith.constant 0 : index
    %27 = vector.load %arg2[%c4, %c0_25, %c0_26] : memref<9x16x32xbf16, #tpu.memory_space<vmem>>, vector<1x16x32xbf16>
    %28 = vector.shape_cast %27 : vector<1x16x32xbf16> to vector<16x32xbf16>
    %cst_27 = arith.constant dense<0.000000e+00> : vector<288x32xf32>
    %29 = tpu.matmul %26, %28, %cst_27 {dimension_numbers = #tpu.dot_dimension_numbers<[1], [0], [0], [1], [0, 0, 1, 1], [], []>} : vector<288x16xbf16>, vector<16x32xbf16>, vector<288x32xf32> -> vector<288x32xf32>
    %30 = arith.addf %24, %29 : vector<288x32xf32>
    %c0_28 = arith.constant 0 : index
    %c20 = arith.constant 20 : index
    %c0_29 = arith.constant 0 : index
    %31 = vector.load %arg1[%c0_28, %c20, %c0_29] : memref<1x342x16xbf16, #tpu.memory_space<vmem>>, vector<1x288x16xbf16>
    %32 = vector.shape_cast %31 : vector<1x288x16xbf16> to vector<288x16xbf16>
    %c5 = arith.constant 5 : index
    %c0_30 = arith.constant 0 : index
    %c0_31 = arith.constant 0 : index
    %33 = vector.load %arg2[%c5, %c0_30, %c0_31] : memref<9x16x32xbf16, #tpu.memory_space<vmem>>, vector<1x16x32xbf16>
    %34 = vector.shape_cast %33 : vector<1x16x32xbf16> to vector<16x32xbf16>
    %cst_32 = arith.constant dense<0.000000e+00> : vector<288x32xf32>
    %35 = tpu.matmul %32, %34, %cst_32 {dimension_numbers = #tpu.dot_dimension_numbers<[1], [0], [0], [1], [0, 0, 1, 1], [], []>} : vector<288x16xbf16>, vector<16x32xbf16>, vector<288x32xf32> -> vector<288x32xf32>
    %36 = arith.addf %30, %35 : vector<288x32xf32>
    %c0_33 = arith.constant 0 : index
    %c36 = arith.constant 36 : index
    %c0_34 = arith.constant 0 : index
    %37 = vector.load %arg1[%c0_33, %c36, %c0_34] : memref<1x342x16xbf16, #tpu.memory_space<vmem>>, vector<1x288x16xbf16>
    %38 = vector.shape_cast %37 : vector<1x288x16xbf16> to vector<288x16xbf16>
    %c6 = arith.constant 6 : index
    %c0_35 = arith.constant 0 : index
    %c0_36 = arith.constant 0 : index
    %39 = vector.load %arg2[%c6, %c0_35, %c0_36] : memref<9x16x32xbf16, #tpu.memory_space<vmem>>, vector<1x16x32xbf16>
    %40 = vector.shape_cast %39 : vector<1x16x32xbf16> to vector<16x32xbf16>
    %cst_37 = arith.constant dense<0.000000e+00> : vector<288x32xf32>
    %41 = tpu.matmul %38, %40, %cst_37 {dimension_numbers = #tpu.dot_dimension_numbers<[1], [0], [0], [1], [0, 0, 1, 1], [], []>} : vector<288x16xbf16>, vector<16x32xbf16>, vector<288x32xf32> -> vector<288x32xf32>
    %42 = arith.addf %36, %41 : vector<288x32xf32>
    %c0_38 = arith.constant 0 : index
    %c37 = arith.constant 37 : index
    %c0_39 = arith.constant 0 : index
    %43 = vector.load %arg1[%c0_38, %c37, %c0_39] : memref<1x342x16xbf16, #tpu.memory_space<vmem>>, vector<1x288x16xbf16>
    %44 = vector.shape_cast %43 : vector<1x288x16xbf16> to vector<288x16xbf16>
    %c7 = arith.constant 7 : index
    %c0_40 = arith.constant 0 : index
    %c0_41 = arith.constant 0 : index
    %45 = vector.load %arg2[%c7, %c0_40, %c0_41] : memref<9x16x32xbf16, #tpu.memory_space<vmem>>, vector<1x16x32xbf16>
    %46 = vector.shape_cast %45 : vector<1x16x32xbf16> to vector<16x32xbf16>
    %cst_42 = arith.constant dense<0.000000e+00> : vector<288x32xf32>
    %47 = tpu.matmul %44, %46, %cst_42 {dimension_numbers = #tpu.dot_dimension_numbers<[1], [0], [0], [1], [0, 0, 1, 1], [], []>} : vector<288x16xbf16>, vector<16x32xbf16>, vector<288x32xf32> -> vector<288x32xf32>
    %48 = arith.addf %42, %47 : vector<288x32xf32>
    %c0_43 = arith.constant 0 : index
    %c38 = arith.constant 38 : index
    %c0_44 = arith.constant 0 : index
    %49 = vector.load %arg1[%c0_43, %c38, %c0_44] : memref<1x342x16xbf16, #tpu.memory_space<vmem>>, vector<1x288x16xbf16>
    %50 = vector.shape_cast %49 : vector<1x288x16xbf16> to vector<288x16xbf16>
    %c8 = arith.constant 8 : index
    %c0_45 = arith.constant 0 : index
    %c0_46 = arith.constant 0 : index
    %51 = vector.load %arg2[%c8, %c0_45, %c0_46] : memref<9x16x32xbf16, #tpu.memory_space<vmem>>, vector<1x16x32xbf16>
    %52 = vector.shape_cast %51 : vector<1x16x32xbf16> to vector<16x32xbf16>
    %cst_47 = arith.constant dense<0.000000e+00> : vector<288x32xf32>
    %53 = tpu.matmul %50, %52, %cst_47 {dimension_numbers = #tpu.dot_dimension_numbers<[1], [0], [0], [1], [0, 0, 1, 1], [], []>} : vector<288x16xbf16>, vector<16x32xbf16>, vector<288x32xf32> -> vector<288x32xf32>
    %54 = arith.addf %48, %53 : vector<288x32xf32>
    %c0_48 = arith.constant 0 : index
    %c0_49 = arith.constant 0 : index
    %55 = vector.load %arg3[%c0_48, %c0_49] : memref<1x32xf32, #tpu.memory_space<vmem>>, vector<1x32xf32>
    %56 = vector.broadcast %55 : vector<1x32xf32> to vector<288x32xf32>
    %57 = arith.addf %54, %56 : vector<288x32xf32>
    %cst_50 = arith.constant 0.000000e+00 : f32
    %58 = vector.broadcast %cst_50 : f32 to vector<288x32xf32>
    %59 = arith.maximumf %57, %58 : vector<288x32xf32>
    %60 = vector.extract_strided_slice %59 {offsets = [0, 0], sizes = [288, 16], strides = [1, 1]} : vector<288x32xf32> to vector<288x16xf32>
    %61 = arith.truncf %60 : vector<288x16xf32> to vector<288x16xbf16>
    %c0_51 = arith.constant 0 : index
    %c0_52 = arith.constant 0 : index
    %c0_53 = arith.constant 0 : index
    %62 = vector.load %arg5[%c0_51, %c0_52, %c0_53] : memref<1x288x16xbf16, #tpu.memory_space<vmem>>, vector<1x288x16xbf16>
    %63 = vector.shape_cast %62 : vector<1x288x16xbf16> to vector<288x16xbf16>
    %64 = vector.shape_cast %61 : vector<288x16xbf16> to vector<1x288x16xbf16>
    tpu.vector_store %arg5[%c0_51, %c0_52, %c0_53], %64 {strides = array<i32>} : memref<1x288x16xbf16, #tpu.memory_space<vmem>>, vector<1x288x16xbf16>,
    %65 = vector.extract_strided_slice %59 {offsets = [0, 16], sizes = [288, 16], strides = [1, 1]} : vector<288x32xf32> to vector<288x16xf32>
    %c0_54 = arith.constant 0 : index
    %c0_55 = arith.constant 0 : index
    %66 = vector.load %arg4[%c0_54, %c0_55] : memref<288x1xf32, #tpu.memory_space<vmem>>, vector<288x1xf32>
    %67 = vector.broadcast %66 : vector<288x1xf32> to vector<288x16xf32>
    %68 = arith.mulf %65, %67 : vector<288x16xf32>
    %cst_56 = arith.constant 0.000000e+00 : bf16
    %69 = vector.broadcast %cst_56 : bf16 to vector<342x16xbf16>
    %c0_57 = arith.constant 0 : index
    %c0_58 = arith.constant 0 : index
    %c0_59 = arith.constant 0 : index
    %70 = vector.load %arg6[%c0_57, %c0_58, %c0_59] : memref<1x342x16xbf16, #tpu.memory_space<vmem>>, vector<1x342x16xbf16>
    %71 = vector.shape_cast %70 : vector<1x342x16xbf16> to vector<342x16xbf16>
    %72 = vector.shape_cast %69 : vector<342x16xbf16> to vector<1x342x16xbf16>
    tpu.vector_store %arg6[%c0_57, %c0_58, %c0_59], %72 {strides = array<i32>} : memref<1x342x16xbf16, #tpu.memory_space<vmem>>, vector<1x342x16xbf16>,
    %73 = arith.truncf %68 : vector<288x16xf32> to vector<288x16xbf16>
    %c0_60 = arith.constant 0 : index
    %c19_61 = arith.constant 19 : index
    %c0_62 = arith.constant 0 : index
    %74 = vector.load %arg6[%c0_60, %c19_61, %c0_62] : memref<1x342x16xbf16, #tpu.memory_space<vmem>>, vector<1x288x16xbf16>
    %75 = vector.shape_cast %74 : vector<1x288x16xbf16> to vector<288x16xbf16>
    %76 = vector.shape_cast %73 : vector<288x16xbf16> to vector<1x288x16xbf16>
    tpu.vector_store %arg6[%c0_60, %c19_61, %c0_62], %76 {strides = array<i32>} : memref<1x342x16xbf16, #tpu.memory_space<vmem>>, vector<1x288x16xbf16>,
    return
  }
  func.func @transform_0(%arg0: i32) -> (i32, i32, i32) {
    %c0_i32 = arith.constant 0 : i32
    %c0_i32_0 = arith.constant 0 : i32
    %c0_i32_1 = arith.constant 0 : i32
    return %arg0, %c0_i32, %c0_i32_0 : i32, i32, i32
  }
  func.func @transform_1(%arg0: i32) -> (i32, i32, i32) {
    %c0_i32 = arith.constant 0 : i32
    %c0_i32_0 = arith.constant 0 : i32
    %c0_i32_1 = arith.constant 0 : i32
    %c0_i32_2 = arith.constant 0 : i32
    return %c0_i32, %c0_i32_0, %c0_i32_1 : i32, i32, i32
  }
  func.func @transform_2(%arg0: i32) -> (i32, i32) {
    %c0_i32 = arith.constant 0 : i32
    %c0_i32_0 = arith.constant 0 : i32
    %c0_i32_1 = arith.constant 0 : i32
    return %c0_i32, %c0_i32_0 : i32, i32
  }
  func.func @transform_3(%arg0: i32) -> (i32, i32) {
    %c0_i32 = arith.constant 0 : i32
    %c0_i32_0 = arith.constant 0 : i32
    %c0_i32_1 = arith.constant 0 : i32
    return %c0_i32, %c0_i32_0 : i32, i32
  }
  func.func @transform_4(%arg0: i32) -> (i32, i32, i32) {
    %c0_i32 = arith.constant 0 : i32
    %c0_i32_0 = arith.constant 0 : i32
    %c0_i32_1 = arith.constant 0 : i32
    return %arg0, %c0_i32, %c0_i32_0 : i32, i32, i32
  }
  func.func @transform_5(%arg0: i32) -> (i32, i32, i32) {
    %c0_i32 = arith.constant 0 : i32
    %c0_i32_0 = arith.constant 0 : i32
    %c0_i32_1 = arith.constant 0 : i32
    return %arg0, %c0_i32, %c0_i32_0 : i32, i32, i32
  }
}

module attributes {stable_mosaic.version = 11 : i64} {
  func.func @_conv3x3_chain_kernel(%arg0: i32, %arg1: memref<1x342x64xbf16, #tpu.memory_space<vmem>>, %arg2: memref<9x64x16xbf16, #tpu.memory_space<vmem>>, %arg3: memref<1x16xf32, #tpu.memory_space<vmem>>, %arg4: memref<288x1xf32, #tpu.memory_space<vmem>>, %arg5: memref<1x342x16xbf16, #tpu.memory_space<vmem>>) attributes {dimension_semantics = [#tpu.dimension_semantics<parallel>], iteration_bounds = array<i64: 2>, scalar_prefetch = 0 : i64, scratch_operands = 0 : i64, tpu.core_type = #tpu.core_type<tc>, window_params = [{transform_indices = @transform_0, window_bounds = array<i64: 1, 342, 64>}, {pipeline_mode = #tpu.pipeline_mode<synchronous>, transform_indices = @transform_1, window_bounds = array<i64: 9, 64, 16>}, {pipeline_mode = #tpu.pipeline_mode<synchronous>, transform_indices = @transform_2, window_bounds = array<i64: 1, 16>}, {pipeline_mode = #tpu.pipeline_mode<synchronous>, transform_indices = @transform_3, window_bounds = array<i64: 288, 1>}, {transform_indices = @transform_4, window_bounds = array<i64: 1, 342, 16>}]} {
    %cst = arith.constant 0.000000e+00 : f32
    %0 = vector.broadcast %cst : f32 to vector<288x16xf32>
    %c0 = arith.constant 0 : index
    %c0_0 = arith.constant 0 : index
    %c0_1 = arith.constant 0 : index
    %1 = vector.load %arg1[%c0, %c0_0, %c0_1] : memref<1x342x64xbf16, #tpu.memory_space<vmem>>, vector<1x288x64xbf16>
    %2 = vector.shape_cast %1 : vector<1x288x64xbf16> to vector<288x64xbf16>
    %c0_2 = arith.constant 0 : index
    %c0_3 = arith.constant 0 : index
    %c0_4 = arith.constant 0 : index
    %3 = vector.load %arg2[%c0_2, %c0_3, %c0_4] : memref<9x64x16xbf16, #tpu.memory_space<vmem>>, vector<1x64x16xbf16>
    %4 = vector.shape_cast %3 : vector<1x64x16xbf16> to vector<64x16xbf16>
    %cst_5 = arith.constant dense<0.000000e+00> : vector<288x16xf32>
    %5 = tpu.matmul %2, %4, %cst_5 {dimension_numbers = #tpu.dot_dimension_numbers<[1], [0], [0], [1], [0, 0, 1, 1], [], []>} : vector<288x64xbf16>, vector<64x16xbf16>, vector<288x16xf32> -> vector<288x16xf32>
    %6 = arith.addf %0, %5 : vector<288x16xf32>
    %c0_6 = arith.constant 0 : index
    %c1 = arith.constant 1 : index
    %c0_7 = arith.constant 0 : index
    %7 = vector.load %arg1[%c0_6, %c1, %c0_7] : memref<1x342x64xbf16, #tpu.memory_space<vmem>>, vector<1x288x64xbf16>
    %8 = vector.shape_cast %7 : vector<1x288x64xbf16> to vector<288x64xbf16>
    %c1_8 = arith.constant 1 : index
    %c0_9 = arith.constant 0 : index
    %c0_10 = arith.constant 0 : index
    %9 = vector.load %arg2[%c1_8, %c0_9, %c0_10] : memref<9x64x16xbf16, #tpu.memory_space<vmem>>, vector<1x64x16xbf16>
    %10 = vector.shape_cast %9 : vector<1x64x16xbf16> to vector<64x16xbf16>
    %cst_11 = arith.constant dense<0.000000e+00> : vector<288x16xf32>
    %11 = tpu.matmul %8, %10, %cst_11 {dimension_numbers = #tpu.dot_dimension_numbers<[1], [0], [0], [1], [0, 0, 1, 1], [], []>} : vector<288x64xbf16>, vector<64x16xbf16>, vector<288x16xf32> -> vector<288x16xf32>
    %12 = arith.addf %6, %11 : vector<288x16xf32>
    %c0_12 = arith.constant 0 : index
    %c2 = arith.constant 2 : index
    %c0_13 = arith.constant 0 : index
    %13 = vector.load %arg1[%c0_12, %c2, %c0_13] : memref<1x342x64xbf16, #tpu.memory_space<vmem>>, vector<1x288x64xbf16>
    %14 = vector.shape_cast %13 : vector<1x288x64xbf16> to vector<288x64xbf16>
    %c2_14 = arith.constant 2 : index
    %c0_15 = arith.constant 0 : index
    %c0_16 = arith.constant 0 : index
    %15 = vector.load %arg2[%c2_14, %c0_15, %c0_16] : memref<9x64x16xbf16, #tpu.memory_space<vmem>>, vector<1x64x16xbf16>
    %16 = vector.shape_cast %15 : vector<1x64x16xbf16> to vector<64x16xbf16>
    %cst_17 = arith.constant dense<0.000000e+00> : vector<288x16xf32>
    %17 = tpu.matmul %14, %16, %cst_17 {dimension_numbers = #tpu.dot_dimension_numbers<[1], [0], [0], [1], [0, 0, 1, 1], [], []>} : vector<288x64xbf16>, vector<64x16xbf16>, vector<288x16xf32> -> vector<288x16xf32>
    %18 = arith.addf %12, %17 : vector<288x16xf32>
    %c0_18 = arith.constant 0 : index
    %c18 = arith.constant 18 : index
    %c0_19 = arith.constant 0 : index
    %19 = vector.load %arg1[%c0_18, %c18, %c0_19] : memref<1x342x64xbf16, #tpu.memory_space<vmem>>, vector<1x288x64xbf16>
    %20 = vector.shape_cast %19 : vector<1x288x64xbf16> to vector<288x64xbf16>
    %c3 = arith.constant 3 : index
    %c0_20 = arith.constant 0 : index
    %c0_21 = arith.constant 0 : index
    %21 = vector.load %arg2[%c3, %c0_20, %c0_21] : memref<9x64x16xbf16, #tpu.memory_space<vmem>>, vector<1x64x16xbf16>
    %22 = vector.shape_cast %21 : vector<1x64x16xbf16> to vector<64x16xbf16>
    %cst_22 = arith.constant dense<0.000000e+00> : vector<288x16xf32>
    %23 = tpu.matmul %20, %22, %cst_22 {dimension_numbers = #tpu.dot_dimension_numbers<[1], [0], [0], [1], [0, 0, 1, 1], [], []>} : vector<288x64xbf16>, vector<64x16xbf16>, vector<288x16xf32> -> vector<288x16xf32>
    %24 = arith.addf %18, %23 : vector<288x16xf32>
    %c0_23 = arith.constant 0 : index
    %c19 = arith.constant 19 : index
    %c0_24 = arith.constant 0 : index
    %25 = vector.load %arg1[%c0_23, %c19, %c0_24] : memref<1x342x64xbf16, #tpu.memory_space<vmem>>, vector<1x288x64xbf16>
    %26 = vector.shape_cast %25 : vector<1x288x64xbf16> to vector<288x64xbf16>
    %c4 = arith.constant 4 : index
    %c0_25 = arith.constant 0 : index
    %c0_26 = arith.constant 0 : index
    %27 = vector.load %arg2[%c4, %c0_25, %c0_26] : memref<9x64x16xbf16, #tpu.memory_space<vmem>>, vector<1x64x16xbf16>
    %28 = vector.shape_cast %27 : vector<1x64x16xbf16> to vector<64x16xbf16>
    %cst_27 = arith.constant dense<0.000000e+00> : vector<288x16xf32>
    %29 = tpu.matmul %26, %28, %cst_27 {dimension_numbers = #tpu.dot_dimension_numbers<[1], [0], [0], [1], [0, 0, 1, 1], [], []>} : vector<288x64xbf16>, vector<64x16xbf16>, vector<288x16xf32> -> vector<288x16xf32>
    %30 = arith.addf %24, %29 : vector<288x16xf32>
    %c0_28 = arith.constant 0 : index
    %c20 = arith.constant 20 : index
    %c0_29 = arith.constant 0 : index
    %31 = vector.load %arg1[%c0_28, %c20, %c0_29] : memref<1x342x64xbf16, #tpu.memory_space<vmem>>, vector<1x288x64xbf16>
    %32 = vector.shape_cast %31 : vector<1x288x64xbf16> to vector<288x64xbf16>
    %c5 = arith.constant 5 : index
    %c0_30 = arith.constant 0 : index
    %c0_31 = arith.constant 0 : index
    %33 = vector.load %arg2[%c5, %c0_30, %c0_31] : memref<9x64x16xbf16, #tpu.memory_space<vmem>>, vector<1x64x16xbf16>
    %34 = vector.shape_cast %33 : vector<1x64x16xbf16> to vector<64x16xbf16>
    %cst_32 = arith.constant dense<0.000000e+00> : vector<288x16xf32>
    %35 = tpu.matmul %32, %34, %cst_32 {dimension_numbers = #tpu.dot_dimension_numbers<[1], [0], [0], [1], [0, 0, 1, 1], [], []>} : vector<288x64xbf16>, vector<64x16xbf16>, vector<288x16xf32> -> vector<288x16xf32>
    %36 = arith.addf %30, %35 : vector<288x16xf32>
    %c0_33 = arith.constant 0 : index
    %c36 = arith.constant 36 : index
    %c0_34 = arith.constant 0 : index
    %37 = vector.load %arg1[%c0_33, %c36, %c0_34] : memref<1x342x64xbf16, #tpu.memory_space<vmem>>, vector<1x288x64xbf16>
    %38 = vector.shape_cast %37 : vector<1x288x64xbf16> to vector<288x64xbf16>
    %c6 = arith.constant 6 : index
    %c0_35 = arith.constant 0 : index
    %c0_36 = arith.constant 0 : index
    %39 = vector.load %arg2[%c6, %c0_35, %c0_36] : memref<9x64x16xbf16, #tpu.memory_space<vmem>>, vector<1x64x16xbf16>
    %40 = vector.shape_cast %39 : vector<1x64x16xbf16> to vector<64x16xbf16>
    %cst_37 = arith.constant dense<0.000000e+00> : vector<288x16xf32>
    %41 = tpu.matmul %38, %40, %cst_37 {dimension_numbers = #tpu.dot_dimension_numbers<[1], [0], [0], [1], [0, 0, 1, 1], [], []>} : vector<288x64xbf16>, vector<64x16xbf16>, vector<288x16xf32> -> vector<288x16xf32>
    %42 = arith.addf %36, %41 : vector<288x16xf32>
    %c0_38 = arith.constant 0 : index
    %c37 = arith.constant 37 : index
    %c0_39 = arith.constant 0 : index
    %43 = vector.load %arg1[%c0_38, %c37, %c0_39] : memref<1x342x64xbf16, #tpu.memory_space<vmem>>, vector<1x288x64xbf16>
    %44 = vector.shape_cast %43 : vector<1x288x64xbf16> to vector<288x64xbf16>
    %c7 = arith.constant 7 : index
    %c0_40 = arith.constant 0 : index
    %c0_41 = arith.constant 0 : index
    %45 = vector.load %arg2[%c7, %c0_40, %c0_41] : memref<9x64x16xbf16, #tpu.memory_space<vmem>>, vector<1x64x16xbf16>
    %46 = vector.shape_cast %45 : vector<1x64x16xbf16> to vector<64x16xbf16>
    %cst_42 = arith.constant dense<0.000000e+00> : vector<288x16xf32>
    %47 = tpu.matmul %44, %46, %cst_42 {dimension_numbers = #tpu.dot_dimension_numbers<[1], [0], [0], [1], [0, 0, 1, 1], [], []>} : vector<288x64xbf16>, vector<64x16xbf16>, vector<288x16xf32> -> vector<288x16xf32>
    %48 = arith.addf %42, %47 : vector<288x16xf32>
    %c0_43 = arith.constant 0 : index
    %c38 = arith.constant 38 : index
    %c0_44 = arith.constant 0 : index
    %49 = vector.load %arg1[%c0_43, %c38, %c0_44] : memref<1x342x64xbf16, #tpu.memory_space<vmem>>, vector<1x288x64xbf16>
    %50 = vector.shape_cast %49 : vector<1x288x64xbf16> to vector<288x64xbf16>
    %c8 = arith.constant 8 : index
    %c0_45 = arith.constant 0 : index
    %c0_46 = arith.constant 0 : index
    %51 = vector.load %arg2[%c8, %c0_45, %c0_46] : memref<9x64x16xbf16, #tpu.memory_space<vmem>>, vector<1x64x16xbf16>
    %52 = vector.shape_cast %51 : vector<1x64x16xbf16> to vector<64x16xbf16>
    %cst_47 = arith.constant dense<0.000000e+00> : vector<288x16xf32>
    %53 = tpu.matmul %50, %52, %cst_47 {dimension_numbers = #tpu.dot_dimension_numbers<[1], [0], [0], [1], [0, 0, 1, 1], [], []>} : vector<288x64xbf16>, vector<64x16xbf16>, vector<288x16xf32> -> vector<288x16xf32>
    %54 = arith.addf %48, %53 : vector<288x16xf32>
    %c0_48 = arith.constant 0 : index
    %c0_49 = arith.constant 0 : index
    %55 = vector.load %arg3[%c0_48, %c0_49] : memref<1x16xf32, #tpu.memory_space<vmem>>, vector<1x16xf32>
    %56 = vector.broadcast %55 : vector<1x16xf32> to vector<288x16xf32>
    %57 = arith.addf %54, %56 : vector<288x16xf32>
    %cst_50 = arith.constant 0.000000e+00 : f32
    %58 = vector.broadcast %cst_50 : f32 to vector<288x16xf32>
    %59 = arith.maximumf %57, %58 : vector<288x16xf32>
    %c0_51 = arith.constant 0 : index
    %c0_52 = arith.constant 0 : index
    %60 = vector.load %arg4[%c0_51, %c0_52] : memref<288x1xf32, #tpu.memory_space<vmem>>, vector<288x1xf32>
    %61 = vector.broadcast %60 : vector<288x1xf32> to vector<288x16xf32>
    %62 = arith.mulf %59, %61 : vector<288x16xf32>
    %cst_53 = arith.constant 0.000000e+00 : bf16
    %63 = vector.broadcast %cst_53 : bf16 to vector<342x16xbf16>
    %c0_54 = arith.constant 0 : index
    %c0_55 = arith.constant 0 : index
    %c0_56 = arith.constant 0 : index
    %64 = vector.load %arg5[%c0_54, %c0_55, %c0_56] : memref<1x342x16xbf16, #tpu.memory_space<vmem>>, vector<1x342x16xbf16>
    %65 = vector.shape_cast %64 : vector<1x342x16xbf16> to vector<342x16xbf16>
    %66 = vector.shape_cast %63 : vector<342x16xbf16> to vector<1x342x16xbf16>
    tpu.vector_store %arg5[%c0_54, %c0_55, %c0_56], %66 {strides = array<i32>} : memref<1x342x16xbf16, #tpu.memory_space<vmem>>, vector<1x342x16xbf16>,
    %67 = arith.truncf %62 : vector<288x16xf32> to vector<288x16xbf16>
    %c0_57 = arith.constant 0 : index
    %c19_58 = arith.constant 19 : index
    %c0_59 = arith.constant 0 : index
    %68 = vector.load %arg5[%c0_57, %c19_58, %c0_59] : memref<1x342x16xbf16, #tpu.memory_space<vmem>>, vector<1x288x16xbf16>
    %69 = vector.shape_cast %68 : vector<1x288x16xbf16> to vector<288x16xbf16>
    %70 = vector.shape_cast %67 : vector<288x16xbf16> to vector<1x288x16xbf16>
    tpu.vector_store %arg5[%c0_57, %c19_58, %c0_59], %70 {strides = array<i32>} : memref<1x342x16xbf16, #tpu.memory_space<vmem>>, vector<1x288x16xbf16>,
    return
  }
  func.func @transform_0(%arg0: i32) -> (i32, i32, i32) {
    %c0_i32 = arith.constant 0 : i32
    %c0_i32_0 = arith.constant 0 : i32
    %c0_i32_1 = arith.constant 0 : i32
    return %arg0, %c0_i32, %c0_i32_0 : i32, i32, i32
  }
  func.func @transform_1(%arg0: i32) -> (i32, i32, i32) {
    %c0_i32 = arith.constant 0 : i32
    %c0_i32_0 = arith.constant 0 : i32
    %c0_i32_1 = arith.constant 0 : i32
    %c0_i32_2 = arith.constant 0 : i32
    return %c0_i32, %c0_i32_0, %c0_i32_1 : i32, i32, i32
  }
  func.func @transform_2(%arg0: i32) -> (i32, i32) {
    %c0_i32 = arith.constant 0 : i32
    %c0_i32_0 = arith.constant 0 : i32
    %c0_i32_1 = arith.constant 0 : i32
    return %c0_i32, %c0_i32_0 : i32, i32
  }
  func.func @transform_3(%arg0: i32) -> (i32, i32) {
    %c0_i32 = arith.constant 0 : i32
    %c0_i32_0 = arith.constant 0 : i32
    %c0_i32_1 = arith.constant 0 : i32
    return %c0_i32, %c0_i32_0 : i32, i32
  }
  func.func @transform_4(%arg0: i32) -> (i32, i32, i32) {
    %c0_i32 = arith.constant 0 : i32
    %c0_i32_0 = arith.constant 0 : i32
    %c0_i32_1 = arith.constant 0 : i32
    return %arg0, %c0_i32, %c0_i32_0 : i32, i32, i32
  }
}

</mosaic_0001>

<llo_original>
// kernel: _lambda_.5
$region0: #{_lambda_.5}
  #allocation0 [shape = 'u32[]', space=smem, size = 0x4, offset = 0x4, fixed_abs, tag = 'smem constant byte address 0x4 - core index']
  #allocation1 [shape = 'u32[72,128]{1,0:T(1,128)}', space=vmem, size = 0x9000, scoped, tag = 'internal scratch']
  %s0 = inlined_call_operand.vmem [shape: bf16[2,288,16], index: 0, kind: input, shape index: {}]
  %s1 = inlined_call_operand.vmem [shape: bf16[2,342,16], index: 1, kind: input, shape index: {}]
  %s2 = inlined_call_operand.vmem [shape: bf16[9,16,16], index: 2, kind: input, shape index: {}]
  %s3 = inlined_call_operand.vmem [shape: f32[1,16], index: 3, kind: input, shape index: {}]
  %s4 = inlined_call_operand.vmem [shape: f32[2,2,288,16], index: 4, kind: output, shape index: {}]
  %s5 = sld [smem:[#allocation0]]
  $region49: #{_lambda_.5} parent=0
    _
  %s7 = ssub.s32 1, %s5
  %s8 = scalar_select 0, %s7, %s5
  loop: start=0, step=1, limit=4
  $region2: #{_lambda_.5} parent=0 // loop_pre_header
    _
  $region3: #{_lambda_.5} parent=0 // loop_header
    %s10 = sphi 0, %s14
    %p11 = scmp.ge.s32.totalorder %s10, 4
    %s20 = sphi 0, %s22
    %s23 = sphi 0, %s20
    %s24 = sphi 0, %s23
    %s40 = sphi 0, %s24
    %s46 = sphi 0, %s48
    %s49 = sphi 0, %s46
    %s50 = sphi 0, %s49
    %s66 = sphi 0, %s50
    %s70 = sphi 0, %s70
    %s72 = sphi 0, %s70
    %s73 = sphi 0, %s72
    %s87 = sphi 0, %s73
    %s91 = sphi 0, %s91
    %s93 = sphi 0, %s91
    %s94 = sphi 0, %s93
    %s108 = sphi 0, %s94
    %s114 = sphi 0, %s116
    %s117 = sphi 0, %s114
    %s118 = sphi 0, %s117
    %s134 = sphi 0, %s118
  $region4: #{_lambda_.5} parent=0 // loop_header_branch
    %13 = sbr.rel (%p11) target = $region8
  $region5: #{_lambda_.5} parent=0 // loop_body
    %s15 = ssub.s32 %s10, 1
    %s16 = ssub.s32 %s10, 2
    %s17 = sadd.s32 %s10, 1
    %s18 = ssub.s32 %s10, %s17
    %p19 = scmp.eq.s32.totalorder %s18, 0
    %s21 = sadd.s32 %s20, 1
    %s22 = scalar_select %p19, %s20, %s21
    %p25 = pneg %p19
    %p26 = scmp.eq.s32.totalorder %s10, 1
    %p27 = por %p25, %p26
    %p28 = scmp.ne.s32.totalorder %s20, %s23
    %p29 = scmp.eq.s32.totalorder %s10, 0
    %p30 = por %p28, %p29
    %p31 = scmp.ne.s32.totalorder %s20, %s23
    %p32 = scmp.eq.s32.totalorder %s15, 1
    %p33 = por %p31, %p32
    %p34 = scmp.ne.s32.totalorder %s23, %s24
    %p35 = scmp.eq.s32.totalorder %s15, 0
    %p36 = por %p34, %p35
    %p37 = scmp.ne.s32.totalorder %s23, %s24
    %p38 = scmp.eq.s32.totalorder %s16, 1
    %p39 = por %p37, %p38
    %p41 = scmp.ne.s32.totalorder %s24, %s40
    %p42 = scmp.eq.s32.totalorder %s16, 0
    %p43 = por %p41, %p42
    %s44 = ssub.s32 %s10, %s17
    %p45 = scmp.eq.s32.totalorder %s44, 0
    %s47 = sadd.s32 %s46, 1
    %s48 = scalar_select %p45, %s46, %s47
    %p51 = pneg %p45
    %p52 = scmp.eq.s32.totalorder %s10, 1
    %p53 = por %p51, %p52
    %p54 = scmp.ne.s32.totalorder %s46, %s49
    %p55 = scmp.eq.s32.totalorder %s10, 0
    %p56 = por %p54, %p55
    %p57 = scmp.ne.s32.totalorder %s46, %s49
    %p58 = scmp.eq.s32.totalorder %s15, 1
    %p59 = por %p57, %p58
    %p60 = scmp.ne.s32.totalorder %s49, %s50
    %p61 = scmp.eq.s32.totalorder %s15, 0
    %p62 = por %p60, %p61
    %p63 = scmp.ne.s32.totalorder %s49, %s50
    %p64 = scmp.eq.s32.totalorder %s16, 1
    %p65 = por %p63, %p64
    %p67 = scmp.ne.s32.totalorder %s50, %s66
    %p68 = scmp.eq.s32.totalorder %s16, 0
    %p69 = por %p67, %p68
    %s71 = sadd.s32 %s70, 1
    %p74 = scmp.eq.s32.totalorder %s10, 1
    %p75 = scmp.ne.s32.totalorder %s70, %s72
    %p76 = scmp.eq.s32.totalorder %s10, 0
    %p77 = por %p75, %p76
    %p78 = scmp.ne.s32.totalorder %s70, %s72
    %p79 = scmp.eq.s32.totalorder %s15, 1
    %p80 = por %p78, %p79
    %p81 = scmp.ne.s32.totalorder %s72, %s73
    %p82 = scmp.eq.s32.totalorder %s15, 0
    %p83 = por %p81, %p82
    %p84 = scmp.ne.s32.totalorder %s72, %s73
    %p85 = scmp.eq.s32.totalorder %s16, 1
    %p86 = por %p84, %p85
    %p88 = scmp.ne.s32.totalorder %s73, %s87
    %p89 = scmp.eq.s32.totalorder %s16, 0
    %p90 = por %p88, %p89
    %s92 = sadd.s32 %s91, 1
    %p95 = scmp.eq.s32.totalorder %s10, 1
    %p96 = scmp.ne.s32.totalorder %s91, %s93
    %p97 = scmp.eq.s32.totalorder %s10, 0
    %p98 = por %p96, %p97
    %p99 = scmp.ne.s32.totalorder %s91, %s93
    %p100 = scmp.eq.s32.totalorder %s15, 1
    %p101 = por %p99, %p100
    %p102 = scmp.ne.s32.totalorder %s93, %s94
    %p103 = scmp.eq.s32.totalorder %s15, 0
    %p104 = por %p102, %p103
    %p105 = scmp.ne.s32.totalorder %s93, %s94
    %p106 = scmp.eq.s32.totalorder %s16, 1
    %p107 = por %p105, %p106
    %p109 = scmp.ne.s32.totalorder %s94, %s108
    %p110 = scmp.eq.s32.totalorder %s16, 0
    %p111 = por %p109, %p110
    %s112 = ssub.s32 %s10, %s17
    %p113 = scmp.eq.s32.totalorder %s112, 0
    %s115 = sadd.s32 %s114, 1
    %s116 = scalar_select %p113, %s114, %s115
    %p119 = pneg %p113
    %p120 = scmp.eq.s32.totalorder %s10, 1
    %p121 = por %p119, %p120
    %p122 = scmp.ne.s32.totalorder %s114, %s117
    %p123 = scmp.eq.s32.totalorder %s10, 0
    %p124 = por %p122, %p123
    %p125 = scmp.ne.s32.totalorder %s114, %s117
    %p126 = scmp.eq.s32.totalorder %s15, 1
    %p127 = por %p125, %p126
    %p128 = scmp.ne.s32.totalorder %s117, %s118
    %p129 = scmp.eq.s32.totalorder %s15, 0
    %p130 = por %p128, %p129
    %p131 = scmp.ne.s32.totalorder %s117, %s118
    %p132 = scmp.eq.s32.totalorder %s16, 1
    %p133 = por %p131, %p132
    %p135 = scmp.ne.s32.totalorder %s118, %s134
    %p136 = scmp.eq.s32.totalorder %s16, 0
    %p137 = por %p135, %p136
    %p138 = scmp.le.s32.totalorder 1, %s10
    %p139 = scmp.lt.s32.totalorder %s10, 3
    %p140 = pnand %p138, %p139
    %p141 = pneg %p140
    // Predicated region
    $region9: #{_lambda_.5} parent=5 // pred_check
      _
    $region10: #{_lambda_.5} parent=5 // pred_check_branch
      %143 = sbr.rel (%p140) target = $region12
    $region11: #{_lambda_.5} parent=5 // pred_region
      %s144 = ssub.s32 %s10, 1
      // Predicated region
      $region13: #{_lambda_.5} parent=11 // pred_check
        %p145 = pneg %p83
      $region14: #{_lambda_.5} parent=11 // pred_check_branch
        %147 = sbr.rel (%p145) target = $region16
      $region15: #{_lambda_.5} parent=11 // pred_region
        _
      $region16: #{_lambda_.5} parent=11 // pred_fallthru
        _
      // Predicated region
      $region17: #{_lambda_.5} parent=11 // pred_check
        %p148 = pneg %p104
      $region18: #{_lambda_.5} parent=11 // pred_check_branch
        %150 = sbr.rel (%p148) target = $region20
      $region19: #{_lambda_.5} parent=11 // pred_region
        _
      $region20: #{_lambda_.5} parent=11 // pred_fallthru
        _
    $region12: #{_lambda_.5} parent=5 // pred_fallthru
      _
    %p151 = scmp.lt.s32.totalorder %s10, 2
    // Predicated region
    $region21: #{_lambda_.5} parent=5 // pred_check
      %p152 = pneg %p151
    $region22: #{_lambda_.5} parent=5 // pred_check_branch
      %154 = sbr.rel (%p152) target = $region24
    $region23: #{_lambda_.5} parent=5 // pred_region
      // Predicated region
      $region25: #{_lambda_.5} parent=23 // pred_check
        %p155 = pneg %p30
      $region26: #{_lambda_.5} parent=23 // pred_check_branch
        %157 = sbr.rel (%p155) target = $region28
      $region27: #{_lambda_.5} parent=23 // pred_region
        %p158 = scmp.lt.s32.totalorder %s10, 1
        %s159 = scalar_select %p158, %s10, 1
        %s160 = smul.addr %s159, 36
        %s161 = smul.addr %s160, 4
        %s162 = scalar_lea.vmem %s0, %s161
      $region28: #{_lambda_.5} parent=23 // pred_fallthru
        _
      // Predicated region
      $region29: #{_lambda_.5} parent=23 // pred_check
        %p163 = pneg %p56
      $region30: #{_lambda_.5} parent=23 // pred_check_branch
        %165 = sbr.rel (%p163) target = $region32
      $region31: #{_lambda_.5} parent=23 // pred_region
        %p166 = scmp.lt.s32.totalorder %s10, 1
        %s167 = scalar_select %p166, %s10, 1
        %s168 = smul.addr %s167, 43
        %s169 = smul.addr %s168, 4
        %s170 = scalar_lea.vmem %s1, %s169
      $region32: #{_lambda_.5} parent=23 // pred_fallthru
        _
    $region24: #{_lambda_.5} parent=5 // pred_fallthru
      _
    %p171 = scmp.le.s32.totalorder 1, %s10
    %p172 = scmp.lt.s32.totalorder %s10, 3
    %p173 = pnand %p171, %p172
    %p174 = pneg %p173
    // Predicated region
    $region33: #{_lambda_.5} parent=5 // pred_check
      _
    $region34: #{_lambda_.5} parent=5 // pred_check_branch
      %176 = sbr.rel (%p173) target = $region36
    $region35: #{_lambda_.5} parent=5 // pred_region
      %s177 = ssub.s32 %s10, 1
      %p178 = scmp.lt.s32.totalorder %s15, 1
      %s179 = scalar_select %p178, %s15, 1
      %s180 = smul.addr %s179, 36
      %s181 = smul.addr %s180, 4
      %s182 = scalar_lea.vmem %s0, %s181
      %p183 = pneg %p36
      %p184 = pneg %p33
      %p185 = scmp.lt.s32.totalorder %s15, 1
      %s186 = scalar_select %p185, %s15, 1
      %s187 = smul.addr %s186, 43
      %s188 = smul.addr %s187, 4
      %s189 = scalar_lea.vmem %s1, %s188
      %p190 = pneg %p62
      %p191 = pneg %p59
      %p192 = pneg %p83
      %p193 = pneg %p80
      %p194 = pneg %p104
      %p195 = pneg %p101
      %p196 = pneg %p130
      %p197 = pneg %p127
      %p198 = scmp.lt.s32.totalorder %s15, 1
      %s199 = scalar_select %p198, %s15, 1
      %s200 = smul.addr %s199, 72
      %s201 = smul.addr %s200, 8
      %s202 = scalar_lea.vmem %s4, %s201
      %p203 = scmp.lt.s32.totalorder %s15, 1
      %s204 = scalar_select %p203, %s15, 1
      %s205 = smul.addr %s204, 36
      %s206 = smul.addr %s205, 4
      %s207 = scalar_lea.vmem %s0, %s206
      %p208 = scmp.lt.s32.totalorder %s15, 1
      %s209 = scalar_select %p208, %s15, 1
      %s210 = smul.addr %s209, 43
      %s211 = smul.addr %s210, 4
      %s212 = scalar_lea.vmem %s1, %s211
      %p213 = scmp.lt.s32.totalorder %s15, 1
      %s214 = scalar_select %p213, %s15, 1
      %s215 = smul.addr %s214, 72
      %s216 = smul.addr %s215, 8
      %s217 = scalar_lea.vmem %s4, %s216
      %v219 = vld [vmem:[%s212] sm:$0xf]
      %v220 = vld [vmem:[%s212 + $0x4] sm:$0xf]
      %v221 = vld [vmem:[%s212 + $0x8] sm:$0xf]
      %v222 = vld [vmem:[%s212 + $0xc] sm:$0xf]
      %v223 = vld [vmem:[%s212 + $0x10] sm:$0xf]
      %v224 = vld [vmem:[%s212 + $0x14] sm:$0xf]
      %v225 = vld [vmem:[%s212 + $0x18] sm:$0xf]
      %v226 = vld [vmem:[%s212 + $0x1c] sm:$0xf]
      %v227 = vld [vmem:[%s212 + $0x20] sm:$0xf]
      %v228 = vld [vmem:[%s212 + $0x24] sm:$0xf]
      %v229 = vld [vmem:[%s212 + $0x28] sm:$0xf]
      %v230 = vld [vmem:[%s212 + $0x2c] sm:$0xf]
      %v231 = vld [vmem:[%s212 + $0x30] sm:$0xf]
      %v232 = vld [vmem:[%s212 + $0x34] sm:$0xf]
      %v233 = vld [vmem:[%s212 + $0x38] sm:$0xf]
      %v234 = vld [vmem:[%s212 + $0x3c] sm:$0xf]
      %v235 = vld [vmem:[%s212 + $0x40] sm:$0xf]
      %v236 = vld [vmem:[%s212 + $0x44] sm:$0xf]
      %v237 = vld [vmem:[%s212 + $0x48] sm:$0xf]
      %v238 = vld [vmem:[%s212 + $0x4c] sm:$0xf]
      %v239 = vld [vmem:[%s212 + $0x50] sm:$0xf]
      %v240 = vld [vmem:[%s212 + $0x54] sm:$0xf]
      %v241 = vld [vmem:[%s212 + $0x58] sm:$0xf]
      %v242 = vld [vmem:[%s212 + $0x5c] sm:$0xf]
      %v243 = vld [vmem:[%s212 + $0x60] sm:$0xf]
      %v244 = vld [vmem:[%s212 + $0x64] sm:$0xf]
      %v245 = vld [vmem:[%s212 + $0x68] sm:$0xf]
      %v246 = vld [vmem:[%s212 + $0x6c] sm:$0xf]
      %v247 = vld [vmem:[%s212 + $0x70] sm:$0xf]
      %v248 = vld [vmem:[%s212 + $0x74] sm:$0xf]
      %v249 = vld [vmem:[%s212 + $0x78] sm:$0xf]
      %v250 = vld [vmem:[%s212 + $0x7c] sm:$0xf]
      %v251 = vld [vmem:[%s212 + $0x80] sm:$0xf]
      %v252 = vld [vmem:[%s212 + $0x84] sm:$0xf]
      %v253 = vld [vmem:[%s212 + $0x88] sm:$0xf]
      %v254 = vld [vmem:[%s212 + $0x8c] sm:$0xf]
      %v255 = vld [vmem:[%s2] sm:$0xf]
      %v256 = vld [vmem:[%s2 + $0x4] sm:$0xf]
      %v257 = vld [vmem:[%s212 + $0x90] sm:$0x1]
      %s258 = scalar_lea.vmem %s2, 8
      %v259 = vld [vmem:[%s258] sm:$0xf]
      %v260 = vld [vmem:[%s258 + $0x4] sm:$0xf]
      %v298 = vunpack.c.l.b16 %v219
      %v299 = vunpack.c.l.b16 %v220
      %v300 = vunpack.c.l.b16 %v221
      %v301 = vunpack.c.l.b16 %v222
      %v302 = vunpack.c.l.b16 %v223
      %v303 = vunpack.c.l.b16 %v224
      %v304 = vunpack.c.l.b16 %v225
      %v305 = vunpack.c.l.b16 %v226
      %v306 = vunpack.c.l.b16 %v227
      %v307 = vunpack.c.l.b16 %v228
      %v308 = vunpack.c.l.b16 %v229
      %v309 = vunpack.c.l.b16 %v230
      %v310 = vunpack.c.l.b16 %v231
      %v311 = vunpack.c.l.b16 %v232
      %v312 = vunpack.c.l.b16 %v233
      %v313 = vunpack.c.l.b16 %v234
      %v314 = vunpack.c.l.b16 %v235
      %v315 = vunpack.c.l.b16 %v236
      %v316 = vunpack.c.l.b16 %v237
      %v317 = vunpack.c.l.b16 %v238
      %v318 = vunpack.c.l.b16 %v239
      %v319 = vunpack.c.l.b16 %v240
      %v320 = vunpack.c.l.b16 %v241
      %v321 = vunpack.c.l.b16 %v242
      %v322 = vunpack.c.l.b16 %v243
      %v323 = vunpack.c.l.b16 %v244
      %v324 = vunpack.c.l.b16 %v245
      %v325 = vunpack.c.l.b16 %v246
      %v326 = vunpack.c.l.b16 %v247
      %v327 = vunpack.c.l.b16 %v248
      %v328 = vunpack.c.l.b16 %v249
      %v329 = vunpack.c.l.b16 %v250
      %v330 = vunpack.c.l.b16 %v251
      %v331 = vunpack.c.l.b16 %v252
      %v332 = vunpack.c.l.b16 %v253
      %v333 = vunpack.c.l.b16 %v254
      %v334 = vunpack.c.l.b16 %v257
      %v335 = vpack.c.b16 %v299, %v298
      %v336 = vpack.c.b16 %v301, %v300
      %v337 = vpack.c.b16 %v303, %v302
      %v338 = vpack.c.b16 %v305, %v304
      %v339 = vpack.c.b16 %v307, %v306
      %v340 = vpack.c.b16 %v309, %v308
      %v341 = vpack.c.b16 %v311, %v310
      %v342 = vpack.c.b16 %v313, %v312
      %v343 = vpack.c.b16 %v315, %v314
      %v344 = vpack.c.b16 %v317, %v316
      %v345 = vpack.c.b16 %v319, %v318
      %v346 = vpack.c.b16 %v321, %v320
      %v347 = vpack.c.b16 %v323, %v322
      %v348 = vpack.c.b16 %v325, %v324
      %v349 = vpack.c.b16 %v327, %v326
      %v350 = vpack.c.b16 %v329, %v328
      %v351 = vpack.c.b16 %v331, %v330
      %v352 = vpack.c.b16 %v333, %v332
      %v353 = vpack.c.b16 %v334, %v334
      %vm354 = vsmask.f32 7424
      %v356 = vshrl.u32 %v335, 16
      %v358 = vshll.u32 %v335, 16
      %v360 = vrot.slane %v358, 1
      %v361 = vor.u32 %v356, %v360
      %v363 = vshll.u32 %v336, 16
      %v365 = vrot.slane %v363, 1
      %v366 = vsel %vm354, %v361, %v365
      %v367 = vshrl.u32 %v336, 16
      %v369 = vor.u32 %v367, %v365
      %v371 = vshll.u32 %v337, 16
      %v373 = vrot.slane %v371, 1
      %v374 = vsel %vm354, %v369, %v373
      %v375 = vshrl.u32 %v337, 16
      %v377 = vor.u32 %v375, %v373
      %v379 = vshll.u32 %v338, 16
      %v381 = vrot.slane %v379, 1
      %v382 = vsel %vm354, %v377, %v381
      %v383 = vshrl.u32 %v338, 16
      %v385 = vor.u32 %v383, %v381
      %v387 = vshll.u32 %v339, 16
      %v389 = vrot.slane %v387, 1
      %v390 = vsel %vm354, %v385, %v389
      %v391 = vshrl.u32 %v339, 16
      %v393 = vor.u32 %v391, %v389
      %v395 = vshll.u32 %v340, 16
      %v397 = vrot.slane %v395, 1
      %v398 = vsel %vm354, %v393, %v397
      %v399 = vshrl.u32 %v340, 16
      %v401 = vor.u32 %v399, %v397
      %v403 = vshll.u32 %v341, 16
      %v405 = vrot.slane %v403, 1
      %v406 = vsel %vm354, %v401, %v405
      %v407 = vshrl.u32 %v341, 16
      %v409 = vor.u32 %v407, %v405
      %v411 = vshll.u32 %v342, 16
      %v413 = vrot.slane %v411, 1
      %v414 = vsel %vm354, %v409, %v413
      %v415 = vshrl.u32 %v342, 16
      %v417 = vor.u32 %v415, %v413
      %v419 = vshll.u32 %v343, 16
      %v421 = vrot.slane %v419, 1
      %v422 = vsel %vm354, %v417, %v421
      %v423 = vshrl.u32 %v343, 16
      %v425 = vor.u32 %v423, %v421
      %v427 = vshll.u32 %v344, 16
      %v429 = vrot.slane %v427, 1
      %v430 = vsel %vm354, %v425, %v429
      %v431 = vshrl.u32 %v344, 16
      %v433 = vor.u32 %v431, %v429
      %v435 = vshll.u32 %v345, 16
      %v437 = vrot.slane %v435, 1
      %v438 = vsel %vm354, %v433, %v437
      %v439 = vshrl.u32 %v345, 16
      %v441 = vor.u32 %v439, %v437
      %v443 = vshll.u32 %v346, 16
      %v445 = vrot.slane %v443, 1
      %v446 = vsel %vm354, %v441, %v445
      %v447 = vshrl.u32 %v346, 16
      %v449 = vor.u32 %v447, %v445
      %v451 = vshll.u32 %v347, 16
      %v453 = vrot.slane %v451, 1
      %v454 = vsel %vm354, %v449, %v453
      %v455 = vshrl.u32 %v347, 16
      %v457 = vor.u32 %v455, %v453
      %v459 = vshll.u32 %v348, 16
      %v461 = vrot.slane %v459, 1
      %v462 = vsel %vm354, %v457, %v461
      %v463 = vshrl.u32 %v348, 16
      %v465 = vor.u32 %v463, %v461
      %v467 = vshll.u32 %v349, 16
      %v469 = vrot.slane %v467, 1
      %v470 = vsel %vm354, %v465, %v469
      %v471 = vshrl.u32 %v349, 16
      %v473 = vor.u32 %v471, %v469
      %v475 = vshll.u32 %v350, 16
      %v477 = vrot.slane %v475, 1
      %v478 = vsel %vm354, %v473, %v477
      %v479 = vshrl.u32 %v350, 16
      %v481 = vor.u32 %v479, %v477
      %v483 = vshll.u32 %v351, 16
      %v485 = vrot.slane %v483, 1
      %v486 = vsel %vm354, %v481, %v485
      %v487 = vshrl.u32 %v351, 16
      %v489 = vor.u32 %v487, %v485
      %v491 = vshll.u32 %v352, 16
      %v493 = vrot.slane %v491, 1
      %v494 = vsel %vm354, %v489, %v493
      %v495 = vshrl.u32 %v352, 16
      %v497 = vor.u32 %v495, %v493
      %v499 = vshll.u32 %v353, 16
      %v501 = vrot.slane %v499, 1
      %v502 = vsel %vm354, %v497, %v501
      %v505 = vunpack.c.l.b16 %v259
      %v506 = vunpack.c.l.b16 %v260
      %v507 = vpack.c.b16 %v506, %v505
      %vm509 = vcmask 130048
      %v511 = vsel %vm509, %v366, 0
      %v514 = vsel %vm509, %v374, 0
      %v517 = vsel %vm509, %v382, 0
      %v520 = vsel %vm509, %v390, 0
      %v523 = vsel %vm509, %v398, 0
      %v526 = vsel %vm509, %v406, 0
      %v529 = vsel %vm509, %v414, 0
      %v532 = vsel %vm509, %v422, 0
      %v535 = vsel %vm509, %v430, 0
      %v538 = vsel %vm509, %v438, 0
      %v541 = vsel %vm509, %v446, 0
      %v544 = vsel %vm509, %v454, 0
      %v547 = vsel %vm509, %v462, 0
      %v550 = vsel %vm509, %v470, 0
      %v553 = vsel %vm509, %v478, 0
      %v556 = vsel %vm509, %v486, 0
      %v559 = vsel %vm509, %v494, 0
      %v562 = vsel %vm509, %v502, 0
      %564 = vmatpush.bf16.msra.mxu0 0
      %565 = vmatpush.bf16.msra.mxu0 0
      %566 = vmatpush.bf16.msra.mxu0 0
      %567 = vmatpush.bf16.msra.mxu0 0
      %568 = vmatpush.bf16.msra.mxu0 0
      %569 = vmatpush.bf16.msra.mxu0 0
      %570 = vmatpush.bf16.msra.mxu0 0
      %571 = vmatpush.bf16.msra.mxu0 %v507
      %572 = vmatmul.bf16.gmra.mxu0 %v511
      %v573 = vpop.f32.mrf.mxu0
      %v574 = vadd.f32 0.0, %v573
      %v575 = vpop.f32.mrf.mxu0
      %v576 = vadd.f32 0.0, %v575
      %577 = vmatmul.bf16.gmra.mxu0 %v514
      %v578 = vpop.f32.mrf.mxu0
      %v579 = vadd.f32 0.0, %v578
      %v580 = vpop.f32.mrf.mxu0
      %v581 = vadd.f32 0.0, %v580
      %582 = vmatmul.bf16.gmra.mxu0 %v517
      %v583 = vpop.f32.mrf.mxu0
      %v584 = vadd.f32 0.0, %v583
      %v585 = vpop.f32.mrf.mxu0
      %v586 = vadd.f32 0.0, %v585
      %587 = vmatmul.bf16.gmra.mxu0 %v520
      %v588 = vpop.f32.mrf.mxu0
      %v589 = vadd.f32 0.0, %v588
      %v590 = vpop.f32.mrf.mxu0
      %v591 = vadd.f32 0.0, %v590
      %592 = vmatmul.bf16.gmra.mxu0 %v523
      %v593 = vpop.f32.mrf.mxu0
      %v594 = vadd.f32 0.0, %v593
      %v595 = vpop.f32.mrf.mxu0
      %v596 = vadd.f32 0.0, %v595
      %597 = vmatmul.bf16.gmra.mxu0 %v526
      %v598 = vpop.f32.mrf.mxu0
      %v599 = vadd.f32 0.0, %v598
      %v600 = vpop.f32.mrf.mxu0
      %v601 = vadd.f32 0.0, %v600
      %602 = vmatmul.bf16.gmra.mxu0 %v529
      %v603 = vpop.f32.mrf.mxu0
      %v604 = vadd.f32 0.0, %v603
      %v605 = vpop.f32.mrf.mxu0
      %v606 = vadd.f32 0.0, %v605
      %607 = vmatmul.bf16.gmra.mxu0 %v532
      %v608 = vpop.f32.mrf.mxu0
      %v609 = vadd.f32 0.0, %v608
      %v610 = vpop.f32.mrf.mxu0
      %v611 = vadd.f32 0.0, %v610
      %612 = vmatmul.bf16.gmra.mxu0 %v535
      %v613 = vpop.f32.mrf.mxu0
      %v614 = vadd.f32 0.0, %v613
      %v615 = vpop.f32.mrf.mxu0
      %v616 = vadd.f32 0.0, %v615
      %617 = vmatmul.bf16.gmra.mxu0 %v538
      %v618 = vpop.f32.mrf.mxu0
      %v619 = vadd.f32 0.0, %v618
      %v620 = vpop.f32.mrf.mxu0
      %v621 = vadd.f32 0.0, %v620
      %622 = vmatmul.bf16.gmra.mxu0 %v541
      %v623 = vpop.f32.mrf.mxu0
      %v624 = vadd.f32 0.0, %v623
      %v625 = vpop.f32.mrf.mxu0
      %v626 = vadd.f32 0.0, %v625
      %627 = vmatmul.bf16.gmra.mxu0 %v544
      %v628 = vpop.f32.mrf.mxu0
      %v629 = vadd.f32 0.0, %v628
      %v630 = vpop.f32.mrf.mxu0
      %v631 = vadd.f32 0.0, %v630
      %632 = vmatmul.bf16.gmra.mxu0 %v547
      %v633 = vpop.f32.mrf.mxu0
      %v634 = vadd.f32 0.0, %v633
      %v635 = vpop.f32.mrf.mxu0
      %v636 = vadd.f32 0.0, %v635
      %637 = vmatmul.bf16.gmra.mxu0 %v550
      %v638 = vpop.f32.mrf.mxu0
      %v639 = vadd.f32 0.0, %v638
      %v640 = vpop.f32.mrf.mxu0
      %v641 = vadd.f32 0.0, %v640
      %642 = vmatmul.bf16.gmra.mxu0 %v553
      %v643 = vpop.f32.mrf.mxu0
      %v644 = vadd.f32 0.0, %v643
      %v645 = vpop.f32.mrf.mxu0
      %v646 = vadd.f32 0.0, %v645
      %647 = vmatmul.bf16.gmra.mxu0 %v556
      %v648 = vpop.f32.mrf.mxu0
      %v649 = vadd.f32 0.0, %v648
      %v650 = vpop.f32.mrf.mxu0
      %v651 = vadd.f32 0.0, %v650
      %652 = vmatmul.bf16.gmra.mxu0 %v559
      %v653 = vpop.f32.mrf.mxu0
      %v654 = vadd.f32 0.0, %v653
      %v655 = vpop.f32.mrf.mxu0
      %v656 = vadd.f32 0.0, %v655
      %657 = vmatmul.bf16.gmra.mxu0 %v562
      %v658 = vpop.f32.mrf.mxu0
      %v659 = vadd.f32 0.0, %v658
      %v660 = vpop.f32.mrf.mxu0
      %v661 = vadd.f32 0.0, %v660
      %662 = vdwg.mxu0
      %v665 = vunpack.c.l.b16 %v255
      %v666 = vunpack.c.l.b16 %v256
      %v667 = vpack.c.b16 %v666, %v665
      %v669 = vsel %vm509, %v335, 0
      %v671 = vsel %vm509, %v336, 0
      %v673 = vsel %vm509, %v337, 0
      %v675 = vsel %vm509, %v338, 0
      %v677 = vsel %vm509, %v339, 0
      %v679 = vsel %vm509, %v340, 0
      %v681 = vsel %vm509, %v341, 0
      %v683 = vsel %vm509, %v342, 0
      %v685 = vsel %vm509, %v343, 0
      %v687 = vsel %vm509, %v344, 0
      %v689 = vsel %vm509, %v345, 0
      %v691 = vsel %vm509, %v346, 0
      %v693 = vsel %vm509, %v347, 0
      %v695 = vsel %vm509, %v348, 0
      %v697 = vsel %vm509, %v349, 0
      %v699 = vsel %vm509, %v350, 0
      %v701 = vsel %vm509, %v351, 0
      %v703 = vsel %vm509, %v352, 0
      %705 = vmatpush.bf16.msra.mxu0 0
      %706 = vmatpush.bf16.msra.mxu0 0
      %707 = vmatpush.bf16.msra.mxu0 0
      %708 = vmatpush.bf16.msra.mxu0 0
      %709 = vmatpush.bf16.msra.mxu0 0
      %710 = vmatpush.bf16.msra.mxu0 0
      %711 = vmatpush.bf16.msra.mxu0 0
      %712 = vmatpush.bf16.msra.mxu0 %v667
      %713 = vmatmul.bf16.gmra.mxu0 %v669
      %v714 = vpop.f32.mrf.mxu0
      %v715 = vadd.f32 %v574, %v714
      %v716 = vpop.f32.mrf.mxu0
      %v717 = vadd.f32 %v576, %v716
      %718 = vmatmul.bf16.gmra.mxu0 %v671
      %v719 = vpop.f32.mrf.mxu0
      %v720 = vadd.f32 %v579, %v719
      %v721 = vpop.f32.mrf.mxu0
      %v722 = vadd.f32 %v581, %v721
      %723 = vmatmul.bf16.gmra.mxu0 %v673
      %v724 = vpop.f32.mrf.mxu0
      %v725 = vadd.f32 %v584, %v724
      %v726 = vpop.f32.mrf.mxu0
      %v727 = vadd.f32 %v586, %v726
      %728 = vmatmul.bf16.gmra.mxu0 %v675
      %v729 = vpop.f32.mrf.mxu0
      %v730 = vadd.f32 %v589, %v729
      %v731 = vpop.f32.mrf.mxu0
      %v732 = vadd.f32 %v591, %v731
      %733 = vmatmul.bf16.gmra.mxu0 %v677
      %v734 = vpop.f32.mrf.mxu0
      %v735 = vadd.f32 %v594, %v734
      %v736 = vpop.f32.mrf.mxu0
      %v737 = vadd.f32 %v596, %v736
      %738 = vmatmul.bf16.gmra.mxu0 %v679
      %v739 = vpop.f32.mrf.mxu0
      %v740 = vadd.f32 %v599, %v739
      %v741 = vpop.f32.mrf.mxu0
      %v742 = vadd.f32 %v601, %v741
      %743 = vmatmul.bf16.gmra.mxu0 %v681
      %v744 = vpop.f32.mrf.mxu0
      %v745 = vadd.f32 %v604, %v744
      %v746 = vpop.f32.mrf.mxu0
      %v747 = vadd.f32 %v606, %v746
      %748 = vmatmul.bf16.gmra.mxu0 %v683
      %v749 = vpop.f32.mrf.mxu0
      %v750 = vadd.f32 %v609, %v749
      %v751 = vpop.f32.mrf.mxu0
      %v752 = vadd.f32 %v611, %v751
      %753 = vmatmul.bf16.gmra.mxu0 %v685
      %v754 = vpop.f32.mrf.mxu0
      %v755 = vadd.f32 %v614, %v754
      %v756 = vpop.f32.mrf.mxu0
      %v757 = vadd.f32 %v616, %v756
      %758 = vmatmul.bf16.gmra.mxu0 %v687
      %v759 = vpop.f32.mrf.mxu0
      %v760 = vadd.f32 %v619, %v759
      %v761 = vpop.f32.mrf.mxu0
      %v762 = vadd.f32 %v621, %v761
      %763 = vmatmul.bf16.gmra.mxu0 %v689
      %v764 = vpop.f32.mrf.mxu0
      %v765 = vadd.f32 %v624, %v764
      %v766 = vpop.f32.mrf.mxu0
      %v767 = vadd.f32 %v626, %v766
      %768 = vmatmul.bf16.gmra.mxu0 %v691
      %v769 = vpop.f32.mrf.mxu0
      %v770 = vadd.f32 %v629, %v769
      %v771 = vpop.f32.mrf.mxu0
      %v772 = vadd.f32 %v631, %v771
      %773 = vmatmul.bf16.gmra.mxu0 %v693
      %v774 = vpop.f32.mrf.mxu0
      %v775 = vadd.f32 %v634, %v774
      %v776 = vpop.f32.mrf.mxu0
      %v777 = vadd.f32 %v636, %v776
      %778 = vmatmul.bf16.gmra.mxu0 %v695
      %v779 = vpop.f32.mrf.mxu0
      %v780 = vadd.f32 %v639, %v779
      %v781 = vpop.f32.mrf.mxu0
      %v782 = vadd.f32 %v641, %v781
      %783 = vmatmul.bf16.gmra.mxu0 %v697
      %v784 = vpop.f32.mrf.mxu0
      %v785 = vadd.f32 %v644, %v784
      %v786 = vpop.f32.mrf.mxu0
      %v787 = vadd.f32 %v646, %v786
      %788 = vmatmul.bf16.gmra.mxu0 %v699
      %v789 = vpop.f32.mrf.mxu0
      %v790 = vadd.f32 %v649, %v789
      %v791 = vpop.f32.mrf.mxu0
      %v792 = vadd.f32 %v651, %v791
      %793 = vmatmul.bf16.gmra.mxu0 %v701
      %v794 = vpop.f32.mrf.mxu0
      %v795 = vadd.f32 %v654, %v794
      %v796 = vpop.f32.mrf.mxu0
      %v797 = vadd.f32 %v656, %v796
      %798 = vmatmul.bf16.gmra.mxu0 %v703
      %v799 = vpop.f32.mrf.mxu0
      %v800 = vadd.f32 %v659, %v799
      %v801 = vpop.f32.mrf.mxu0
      %v802 = vadd.f32 %v661, %v801
      %803 = vdwg.mxu0
      %v804 = vld [vmem:[%s212] sm:$0xe]
      %s805 = scalar_lea.vmem %s2, 16
      %v806 = vld [vmem:[%s805] sm:$0xf]
      %v807 = vld [vmem:[%s805 + $0x4] sm:$0xf]
      %v809 = vunpack.c.l.b16 %v804
      %v810 = vpack.c.b16 %v299, %v809
      %vm811 = vcmask 1046528
      %v812 = vrot.slane %v810, 1
      %v813 = vrot.slane %v336, 1
      %v814 = vsel %vm811, %v812, %v813
      %v815 = vrot.slane %v337, 1
      %v816 = vsel %vm811, %v813, %v815
      %v817 = vrot.slane %v338, 1
      %v818 = vsel %vm811, %v815, %v817
      %v819 = vrot.slane %v339, 1
      %v820 = vsel %vm811, %v817, %v819
      %v821 = vrot.slane %v340, 1
      %v822 = vsel %vm811, %v819, %v821
      %v823 = vrot.slane %v341, 1
      %v824 = vsel %vm811, %v821, %v823
      %v825 = vrot.slane %v342, 1
      %v826 = vsel %vm811, %v823, %v825
      %v827 = vrot.slane %v343, 1
      %v828 = vsel %vm811, %v825, %v827
      %v829 = vrot.slane %v344, 1
      %v830 = vsel %vm811, %v827, %v829
      %v831 = vrot.slane %v345, 1
      %v832 = vsel %vm811, %v829, %v831
      %v833 = vrot.slane %v346, 1
      %v834 = vsel %vm811, %v831, %v833
      %v835 = vrot.slane %v347, 1
      %v836 = vsel %vm811, %v833, %v835
      %v837 = vrot.slane %v348, 1
      %v838 = vsel %vm811, %v835, %v837
      %v839 = vrot.slane %v349, 1
      %v840 = vsel %vm811, %v837, %v839
      %v841 = vrot.slane %v350, 1
      %v842 = vsel %vm811, %v839, %v841
      %v843 = vrot.slane %v351, 1
      %v844 = vsel %vm811, %v841, %v843
      %v845 = vrot.slane %v352, 1
      %v846 = vsel %vm811, %v843, %v845
      %v847 = vrot.slane %v353, 1
      %v848 = vsel %vm811, %v845, %v847
      %v851 = vunpack.c.l.b16 %v806
      %v852 = vunpack.c.l.b16 %v807
      %v853 = vpack.c.b16 %v852, %v851
      %v856 = vsel %vm509, %v814, 0
      %v859 = vsel %vm509, %v816, 0
      %v862 = vsel %vm509, %v818, 0
      %v865 = vsel %vm509, %v820, 0
      %v868 = vsel %vm509, %v822, 0
      %v871 = vsel %vm509, %v824, 0
      %v874 = vsel %vm509, %v826, 0
      %v877 = vsel %vm509, %v828, 0
      %v880 = vsel %vm509, %v830, 0
      %v883 = vsel %vm509, %v832, 0
      %v886 = vsel %vm509, %v834, 0
      %v889 = vsel %vm509, %v836, 0
      %v892 = vsel %vm509, %v838, 0
      %v895 = vsel %vm509, %v840, 0
      %v898 = vsel %vm509, %v842, 0
      %v901 = vsel %vm509, %v844, 0
      %v904 = vsel %vm509, %v846, 0
      %v907 = vsel %vm509, %v848, 0
      %909 = vmatpush.bf16.msra.mxu0 0
      %910 = vmatpush.bf16.msra.mxu0 0
      %911 = vmatpush.bf16.msra.mxu0 0
      %912 = vmatpush.bf16.msra.mxu0 0
      %913 = vmatpush.bf16.msra.mxu0 0
      %914 = vmatpush.bf16.msra.mxu0 0
      %915 = vmatpush.bf16.msra.mxu0 0
      %916 = vmatpush.bf16.msra.mxu0 %v853
      %917 = vmatmul.bf16.gmra.mxu0 %v856
      %v918 = vpop.f32.mrf.mxu0
      %v919 = vadd.f32 0.0, %v918
      %v920 = vpop.f32.mrf.mxu0
      %v921 = vadd.f32 0.0, %v920
      %922 = vmatmul.bf16.gmra.mxu0 %v859
      %v923 = vpop.f32.mrf.mxu0
      %v924 = vadd.f32 0.0, %v923
      %v925 = vpop.f32.mrf.mxu0
      %v926 = vadd.f32 0.0, %v925
      %927 = vmatmul.bf16.gmra.mxu0 %v862
      %v928 = vpop.f32.mrf.mxu0
      %v929 = vadd.f32 0.0, %v928
      %v930 = vpop.f32.mrf.mxu0
      %v931 = vadd.f32 0.0, %v930
      %932 = vmatmul.bf16.gmra.mxu0 %v865
      %v933 = vpop.f32.mrf.mxu0
      %v934 = vadd.f32 0.0, %v933
      %v935 = vpop.f32.mrf.mxu0
      %v936 = vadd.f32 0.0, %v935
      %937 = vmatmul.bf16.gmra.mxu0 %v868
      %v938 = vpop.f32.mrf.mxu0
      %v939 = vadd.f32 0.0, %v938
      %v940 = vpop.f32.mrf.mxu0
      %v941 = vadd.f32 0.0, %v940
      %942 = vmatmul.bf16.gmra.mxu0 %v871
      %v943 = vpop.f32.mrf.mxu0
      %v944 = vadd.f32 0.0, %v943
      %v945 = vpop.f32.mrf.mxu0
      %v946 = vadd.f32 0.0, %v945
      %947 = vmatmul.bf16.gmra.mxu0 %v874
      %v948 = vpop.f32.mrf.mxu0
      %v949 = vadd.f32 0.0, %v948
      %v950 = vpop.f32.mrf.mxu0
      %v951 = vadd.f32 0.0, %v950
      %952 = vmatmul.bf16.gmra.mxu0 %v877
      %v953 = vpop.f32.mrf.mxu0
      %v954 = vadd.f32 0.0, %v953
      %v955 = vpop.f32.mrf.mxu0
      %v956 = vadd.f32 0.0, %v955
      %957 = vmatmul.bf16.gmra.mxu0 %v880
      %v958 = vpop.f32.mrf.mxu0
      %v959 = vadd.f32 0.0, %v958
      %v960 = vpop.f32.mrf.mxu0
      %v961 = vadd.f32 0.0, %v960
      %962 = vmatmul.bf16.gmra.mxu0 %v883
      %v963 = vpop.f32.mrf.mxu0
      %v964 = vadd.f32 0.0, %v963
      %v965 = vpop.f32.mrf.mxu0
      %v966 = vadd.f32 0.0, %v965
      %967 = vmatmul.bf16.gmra.mxu0 %v886
      %v968 = vpop.f32.mrf.mxu0
      %v969 = vadd.f32 0.0, %v968
      %v970 = vpop.f32.mrf.mxu0
      %v971 = vadd.f32 0.0, %v970
      %972 = vmatmul.bf16.gmra.mxu0 %v889
      %v973 = vpop.f32.mrf.mxu0
      %v974 = vadd.f32 0.0, %v973
      %v975 = vpop.f32.mrf.mxu0
      %v976 = vadd.f32 0.0, %v975
      %977 = vmatmul.bf16.gmra.mxu0 %v892
      %v978 = vpop.f32.mrf.mxu0
      %v979 = vadd.f32 0.0, %v978
      %v980 = vpop.f32.mrf.mxu0
      %v981 = vadd.f32 0.0, %v980
      %982 = vmatmul.bf16.gmra.mxu0 %v895
      %v983 = vpop.f32.mrf.mxu0
      %v984 = vadd.f32 0.0, %v983
      %v985 = vpop.f32.mrf.mxu0
      %v986 = vadd.f32 0.0, %v985
      %987 = vmatmul.bf16.gmra.mxu0 %v898
      %v988 = vpop.f32.mrf.mxu0
      %v989 = vadd.f32 0.0, %v988
      %v990 = vpop.f32.mrf.mxu0
      %v991 = vadd.f32 0.0, %v990
      %992 = vmatmul.bf16.gmra.mxu0 %v901
      %v993 = vpop.f32.mrf.mxu0
      %v994 = vadd.f32 0.0, %v993
      %v995 = vpop.f32.mrf.mxu0
      %v996 = vadd.f32 0.0, %v995
      %997 = vmatmul.bf16.gmra.mxu0 %v904
      %v998 = vpop.f32.mrf.mxu0
      %v999 = vadd.f32 0.0, %v998
      %v1000 = vpop.f32.mrf.mxu0
      %v1001 = vadd.f32 0.0, %v1000
      %1002 = vmatmul.bf16.gmra.mxu0 %v907
      %v1003 = vpop.f32.mrf.mxu0
      %v1004 = vadd.f32 0.0, %v1003
      %v1005 = vpop.f32.mrf.mxu0
      %v1006 = vadd.f32 0.0, %v1005
      %1007 = vdwg.mxu0
      %v1008 = vadd.f32 %v715, %v919
      %v1009 = vadd.f32 %v717, %v921
      %v1010 = vadd.f32 %v720, %v924
      %v1011 = vadd.f32 %v722, %v926
      %v1012 = vadd.f32 %v725, %v929
      %v1013 = vadd.f32 %v727, %v931
      %v1014 = vadd.f32 %v730, %v934
      %v1015 = vadd.f32 %v732, %v936
      %v1016 = vadd.f32 %v735, %v939
      %v1017 = vadd.f32 %v737, %v941
      %v1018 = vadd.f32 %v740, %v944
      %v1019 = vadd.f32 %v742, %v946
      %v1020 = vadd.f32 %v745, %v949
      %v1021 = vadd.f32 %v747, %v951
      %v1022 = vadd.f32 %v750, %v954
      %v1023 = vadd.f32 %v752, %v956
      %v1024 = vadd.f32 %v755, %v959
      %v1025 = vadd.f32 %v757, %v961
      %v1026 = vadd.f32 %v760, %v964
      %v1027 = vadd.f32 %v762, %v966
      %v1028 = vadd.f32 %v765, %v969
      %v1029 = vadd.f32 %v767, %v971
      %v1030 = vadd.f32 %v770, %v974
      %v1031 = vadd.f32 %v772, %v976
      %v1032 = vadd.f32 %v775, %v979
      %v1033 = vadd.f32 %v777, %v981
      %v1034 = vadd.f32 %v780, %v984
      %v1035 = vadd.f32 %v782, %v986
      %v1036 = vadd.f32 %v785, %v989
      %v1037 = vadd.f32 %v787, %v991
      %v1038 = vadd.f32 %v790, %v994
      %v1039 = vadd.f32 %v792, %v996
      %v1040 = vadd.f32 %v795, %v999
      %v1041 = vadd.f32 %v797, %v1001
      %v1042 = vadd.f32 %v800, %v1004
      %v1043 = vadd.f32 %v802, %v1006
      %v1044 = vld [vmem:[%s212 + $0x8] sm:$0xe]
      %v1045 = vld [vmem:[%s212 + $0xc] sm:$0xf]
      %v1046 = vld [vmem:[%s212 + $0x10] sm:$0xf]
      %v1047 = vld [vmem:[%s212 + $0x14] sm:$0xf]
      %v1048 = vld [vmem:[%s212 + $0x18] sm:$0xf]
      %v1049 = vld [vmem:[%s212 + $0x1c] sm:$0xf]
      %v1050 = vld [vmem:[%s212 + $0x20] sm:$0xf]
      %v1051 = vld [vmem:[%s212 + $0x24] sm:$0xf]
      %v1052 = vld [vmem:[%s212 + $0x28] sm:$0xf]
      %v1053 = vld [vmem:[%s212 + $0x2c] sm:$0xf]
      %v1054 = vld [vmem:[%s212 + $0x30] sm:$0xf]
      %v1055 = vld [vmem:[%s212 + $0x34] sm:$0xf]
      %v1056 = vld [vmem:[%s212 + $0x38] sm:$0xf]
      %v1057 = vld [vmem:[%s212 + $0x3c] sm:$0xf]
      %v1058 = vld [vmem:[%s212 + $0x40] sm:$0xf]
      %v1059 = vld [vmem:[%s212 + $0x44] sm:$0xf]
      %v1060 = vld [vmem:[%s212 + $0x48] sm:$0xf]
      %v1061 = vld [vmem:[%s212 + $0x4c] sm:$0xf]
      %v1062 = vld [vmem:[%s212 + $0x50] sm:$0xf]
      %v1063 = vld [vmem:[%s212 + $0x54] sm:$0xf]
      %v1064 = vld [vmem:[%s212 + $0x58] sm:$0xf]
      %v1065 = vld [vmem:[%s212 + $0x5c] sm:$0xf]
      %v1066 = vld [vmem:[%s212 + $0x60] sm:$0xf]
      %v1067 = vld [vmem:[%s212 + $0x64] sm:$0xf]
      %v1068 = vld [vmem:[%s212 + $0x68] sm:$0xf]
      %v1069 = vld [vmem:[%s212 + $0x6c] sm:$0xf]
      %v1070 = vld [vmem:[%s212 + $0x70] sm:$0xf]
      %v1071 = vld [vmem:[%s212 + $0x74] sm:$0xf]
      %v1072 = vld [vmem:[%s212 + $0x78] sm:$0xf]
      %v1073 = vld [vmem:[%s212 + $0x7c] sm:$0xf]
      %v1074 = vld [vmem:[%s212 + $0x80] sm:$0xf]
      %v1075 = vld [vmem:[%s212 + $0x84] sm:$0xf]
      %v1076 = vld [vmem:[%s212 + $0x88] sm:$0xf]
      %v1077 = vld [vmem:[%s212 + $0x8c] sm:$0xf]
      %v1078 = vld [vmem:[%s212 + $0x90] sm:$0xf]
      %v1079 = vld [vmem:[%s212 + $0x94] sm:$0xf]
      %v1080 = vld [vmem:[%s212 + $0x98] sm:$0x1]
      %s1081 = scalar_lea.vmem %s2, 24
      %v1082 = vld [vmem:[%s1081] sm:$0xf]
      %v1083 = vld [vmem:[%s1081 + $0x4] sm:$0xf]
      %v1121 = vunpack.c.l.b16 %v1044
      %v1122 = vunpack.c.l.b16 %v1045
      %v1123 = vunpack.c.l.b16 %v1046
      %v1124 = vunpack.c.l.b16 %v1047
      %v1125 = vunpack.c.l.b16 %v1048
      %v1126 = vunpack.c.l.b16 %v1049
      %v1127 = vunpack.c.l.b16 %v1050
      %v1128 = vunpack.c.l.b16 %v1051
      %v1129 = vunpack.c.l.b16 %v1052
      %v1130 = vunpack.c.l.b16 %v1053
      %v1131 = vunpack.c.l.b16 %v1054
      %v1132 = vunpack.c.l.b16 %v1055
      %v1133 = vunpack.c.l.b16 %v1056
      %v1134 = vunpack.c.l.b16 %v1057
      %v1135 = vunpack.c.l.b16 %v1058
      %v1136 = vunpack.c.l.b16 %v1059
      %v1137 = vunpack.c.l.b16 %v1060
      %v1138 = vunpack.c.l.b16 %v1061
      %v1139 = vunpack.c.l.b16 %v1062
      %v1140 = vunpack.c.l.b16 %v1063
      %v1141 = vunpack.c.l.b16 %v1064
      %v1142 = vunpack.c.l.b16 %v1065
      %v1143 = vunpack.c.l.b16 %v1066
      %v1144 = vunpack.c.l.b16 %v1067
      %v1145 = vunpack.c.l.b16 %v1068
      %v1146 = vunpack.c.l.b16 %v1069
      %v1147 = vunpack.c.l.b16 %v1070
      %v1148 = vunpack.c.l.b16 %v1071
      %v1149 = vunpack.c.l.b16 %v1072
      %v1150 = vunpack.c.l.b16 %v1073
      %v1151 = vunpack.c.l.b16 %v1074
      %v1152 = vunpack.c.l.b16 %v1075
      %v1153 = vunpack.c.l.b16 %v1076
      %v1154 = vunpack.c.l.b16 %v1077
      %v1155 = vunpack.c.l.b16 %v1078
      %v1156 = vunpack.c.l.b16 %v1079
      %v1157 = vunpack.c.l.b16 %v1080
      %v1158 = vpack.c.b16 %v1122, %v1121
      %v1159 = vpack.c.b16 %v1124, %v1123
      %v1160 = vpack.c.b16 %v1126, %v1125
      %v1161 = vpack.c.b16 %v1128, %v1127
      %v1162 = vpack.c.b16 %v1130, %v1129
      %v1163 = vpack.c.b16 %v1132, %v1131
      %v1164 = vpack.c.b16 %v1134, %v1133
      %v1165 = vpack.c.b16 %v1136, %v1135
      %v1166 = vpack.c.b16 %v1138, %v1137
      %v1167 = vpack.c.b16 %v1140, %v1139
      %v1168 = vpack.c.b16 %v1142, %v1141
      %v1169 = vpack.c.b16 %v1144, %v1143
      %v1170 = vpack.c.b16 %v1146, %v1145
      %v1171 = vpack.c.b16 %v1148, %v1147
      %v1172 = vpack.c.b16 %v1150, %v1149
      %v1173 = vpack.c.b16 %v1152, %v1151
      %v1174 = vpack.c.b16 %v1154, %v1153
      %v1175 = vpack.c.b16 %v1156, %v1155
      %v1176 = vpack.c.b16 %v1157, %v1157
      %v1177 = vrot.slane %v1158, 1
      %v1178 = vrot.slane %v1159, 1
      %v1179 = vsel %vm811, %v1177, %v1178
      %v1180 = vrot.slane %v1160, 1
      %v1181 = vsel %vm811, %v1178, %v1180
      %v1182 = vrot.slane %v1161, 1
      %v1183 = vsel %vm811, %v1180, %v1182
      %v1184 = vrot.slane %v1162, 1
      %v1185 = vsel %vm811, %v1182, %v1184
      %v1186 = vrot.slane %v1163, 1
      %v1187 = vsel %vm811, %v1184, %v1186
      %v1188 = vrot.slane %v1164, 1
      %v1189 = vsel %vm811, %v1186, %v1188
      %v1190 = vrot.slane %v1165, 1
      %v1191 = vsel %vm811, %v1188, %v1190
      %v1192 = vrot.slane %v1166, 1
      %v1193 = vsel %vm811, %v1190, %v1192
      %v1194 = vrot.slane %v1167, 1
      %v1195 = vsel %vm811, %v1192, %v1194
      %v1196 = vrot.slane %v1168, 1
      %v1197 = vsel %vm811, %v1194, %v1196
      %v1198 = vrot.slane %v1169, 1
      %v1199 = vsel %vm811, %v1196, %v1198
      %v1200 = vrot.slane %v1170, 1
      %v1201 = vsel %vm811, %v1198, %v1200
      %v1202 = vrot.slane %v1171, 1
      %v1203 = vsel %vm811, %v1200, %v1202
      %v1204 = vrot.slane %v1172, 1
      %v1205 = vsel %vm811, %v1202, %v1204
      %v1206 = vrot.slane %v1173, 1
      %v1207 = vsel %vm811, %v1204, %v1206
      %v1208 = vrot.slane %v1174, 1
      %v1209 = vsel %vm811, %v1206, %v1208
      %v1210 = vrot.slane %v1175, 1
      %v1211 = vsel %vm811, %v1208, %v1210
      %v1212 = vrot.slane %v1176, 1
      %v1213 = vsel %vm811, %v1210, %v1212
      %v1216 = vunpack.c.l.b16 %v1082
      %v1217 = vunpack.c.l.b16 %v1083
      %v1218 = vpack.c.b16 %v1217, %v1216
      %v1221 = vsel %vm509, %v1179, 0
      %v1224 = vsel %vm509, %v1181, 0
      %v1227 = vsel %vm509, %v1183, 0
      %v1230 = vsel %vm509, %v1185, 0
      %v1233 = vsel %vm509, %v1187, 0
      %v1236 = vsel %vm509, %v1189, 0
      %v1239 = vsel %vm509, %v1191, 0
      %v1242 = vsel %vm509, %v1193, 0
      %v1245 = vsel %vm509, %v1195, 0
      %v1248 = vsel %vm509, %v1197, 0
      %v1251 = vsel %vm509, %v1199, 0
      %v1254 = vsel %vm509, %v1201, 0
      %v1257 = vsel %vm509, %v1203, 0
      %v1260 = vsel %vm509, %v1205, 0
      %v1263 = vsel %vm509, %v1207, 0
      %v1266 = vsel %vm509, %v1209, 0
      %v1269 = vsel %vm509, %v1211, 0
      %v1272 = vsel %vm509, %v1213, 0
      %1274 = vmatpush.bf16.msra.mxu0 0
      %1275 = vmatpush.bf16.msra.mxu0 0
      %1276 = vmatpush.bf16.msra.mxu0 0
      %1277 = vmatpush.bf16.msra.mxu0 0
      %1278 = vmatpush.bf16.msra.mxu0 0
      %1279 = vmatpush.bf16.msra.mxu0 0
      %1280 = vmatpush.bf16.msra.mxu0 0
      %1281 = vmatpush.bf16.msra.mxu0 %v1218
      %1282 = vmatmul.bf16.gmra.mxu0 %v1221
      %v1283 = vpop.f32.mrf.mxu0
      %v1284 = vadd.f32 0.0, %v1283
      %v1285 = vpop.f32.mrf.mxu0
      %v1286 = vadd.f32 0.0, %v1285
      %1287 = vmatmul.bf16.gmra.mxu0 %v1224
      %v1288 = vpop.f32.mrf.mxu0
      %v1289 = vadd.f32 0.0, %v1288
      %v1290 = vpop.f32.mrf.mxu0
      %v1291 = vadd.f32 0.0, %v1290
      %1292 = vmatmul.bf16.gmra.mxu0 %v1227
      %v1293 = vpop.f32.mrf.mxu0
      %v1294 = vadd.f32 0.0, %v1293
      %v1295 = vpop.f32.mrf.mxu0
      %v1296 = vadd.f32 0.0, %v1295
      %1297 = vmatmul.bf16.gmra.mxu0 %v1230
      %v1298 = vpop.f32.mrf.mxu0
      %v1299 = vadd.f32 0.0, %v1298
      %v1300 = vpop.f32.mrf.mxu0
      %v1301 = vadd.f32 0.0, %v1300
      %1302 = vmatmul.bf16.gmra.mxu0 %v1233
      %v1303 = vpop.f32.mrf.mxu0
      %v1304 = vadd.f32 0.0, %v1303
      %v1305 = vpop.f32.mrf.mxu0
      %v1306 = vadd.f32 0.0, %v1305
      %1307 = vmatmul.bf16.gmra.mxu0 %v1236
      %v1308 = vpop.f32.mrf.mxu0
      %v1309 = vadd.f32 0.0, %v1308
      %v1310 = vpop.f32.mrf.mxu0
      %v1311 = vadd.f32 0.0, %v1310
      %1312 = vmatmul.bf16.gmra.mxu0 %v1239
      %v1313 = vpop.f32.mrf.mxu0
      %v1314 = vadd.f32 0.0, %v1313
      %v1315 = vpop.f32.mrf.mxu0
      %v1316 = vadd.f32 0.0, %v1315
      %1317 = vmatmul.bf16.gmra.mxu0 %v1242
      %v1318 = vpop.f32.mrf.mxu0
      %v1319 = vadd.f32 0.0, %v1318
      %v1320 = vpop.f32.mrf.mxu0
      %v1321 = vadd.f32 0.0, %v1320
      %1322 = vmatmul.bf16.gmra.mxu0 %v1245
      %v1323 = vpop.f32.mrf.mxu0
      %v1324 = vadd.f32 0.0, %v1323
      %v1325 = vpop.f32.mrf.mxu0
      %v1326 = vadd.f32 0.0, %v1325
      %1327 = vmatmul.bf16.gmra.mxu0 %v1248
      %v1328 = vpop.f32.mrf.mxu0
      %v1329 = vadd.f32 0.0, %v1328
      %v1330 = vpop.f32.mrf.mxu0
      %v1331 = vadd.f32 0.0, %v1330
      %1332 = vmatmul.bf16.gmra.mxu0 %v1251
      %v1333 = vpop.f32.mrf.mxu0
      %v1334 = vadd.f32 0.0, %v1333
      %v1335 = vpop.f32.mrf.mxu0
      %v1336 = vadd.f32 0.0, %v1335
      %1337 = vmatmul.bf16.gmra.mxu0 %v1254
      %v1338 = vpop.f32.mrf.mxu0
      %v1339 = vadd.f32 0.0, %v1338
      %v1340 = vpop.f32.mrf.mxu0
      %v1341 = vadd.f32 0.0, %v1340
      %1342 = vmatmul.bf16.gmra.mxu0 %v1257
      %v1343 = vpop.f32.mrf.mxu0
      %v1344 = vadd.f32 0.0, %v1343
      %v1345 = vpop.f32.mrf.mxu0
      %v1346 = vadd.f32 0.0, %v1345
      %1347 = vmatmul.bf16.gmra.mxu0 %v1260
      %v1348 = vpop.f32.mrf.mxu0
      %v1349 = vadd.f32 0.0, %v1348
      %v1350 = vpop.f32.mrf.mxu0
      %v1351 = vadd.f32 0.0, %v1350
      %1352 = vmatmul.bf16.gmra.mxu0 %v1263
      %v1353 = vpop.f32.mrf.mxu0
      %v1354 = vadd.f32 0.0, %v1353
      %v1355 = vpop.f32.mrf.mxu0
      %v1356 = vadd.f32 0.0, %v1355
      %1357 = vmatmul.bf16.gmra.mxu0 %v1266
      %v1358 = vpop.f32.mrf.mxu0
      %v1359 = vadd.f32 0.0, %v1358
      %v1360 = vpop.f32.mrf.mxu0
      %v1361 = vadd.f32 0.0, %v1360
      %1362 = vmatmul.bf16.gmra.mxu0 %v1269
      %v1363 = vpop.f32.mrf.mxu0
      %v1364 = vadd.f32 0.0, %v1363
      %v1365 = vpop.f32.mrf.mxu0
      %v1366 = vadd.f32 0.0, %v1365
      %1367 = vmatmul.bf16.gmra.mxu0 %v1272
      %v1368 = vpop.f32.mrf.mxu0
      %v1369 = vadd.f32 0.0, %v1368
      %v1370 = vpop.f32.mrf.mxu0
      %v1371 = vadd.f32 0.0, %v1370
      %1372 = vdwg.mxu0
      %v1373 = vadd.f32 %v1008, %v1284
      %v1374 = vadd.f32 %v1009, %v1286
      %v1375 = vadd.f32 %v1010, %v1289
      %v1376 = vadd.f32 %v1011, %v1291
      %v1377 = vadd.f32 %v1012, %v1294
      %v1378 = vadd.f32 %v1013, %v1296
      %v1379 = vadd.f32 %v1014, %v1299
      %v1380 = vadd.f32 %v1015, %v1301
      %v1381 = vadd.f32 %v1016, %v1304
      %v1382 = vadd.f32 %v1017, %v1306
      %v1383 = vadd.f32 %v1018, %v1309
      %v1384 = vadd.f32 %v1019, %v1311
      %v1385 = vadd.f32 %v1020, %v1314
      %v1386 = vadd.f32 %v1021, %v1316
      %v1387 = vadd.f32 %v1022, %v1319
      %v1388 = vadd.f32 %v1023, %v1321
      %v1389 = vadd.f32 %v1024, %v1324
      %v1390 = vadd.f32 %v1025, %v1326
      %v1391 = vadd.f32 %v1026, %v1329
      %v1392 = vadd.f32 %v1027, %v1331
      %v1393 = vadd.f32 %v1028, %v1334
      %v1394 = vadd.f32 %v1029, %v1336
      %v1395 = vadd.f32 %v1030, %v1339
      %v1396 = vadd.f32 %v1031, %v1341
      %v1397 = vadd.f32 %v1032, %v1344
      %v1398 = vadd.f32 %v1033, %v1346
      %v1399 = vadd.f32 %v1034, %v1349
      %v1400 = vadd.f32 %v1035, %v1351
      %v1401 = vadd.f32 %v1036, %v1354
      %v1402 = vadd.f32 %v1037, %v1356
      %v1403 = vadd.f32 %v1038, %v1359
      %v1404 = vadd.f32 %v1039, %v1361
      %v1405 = vadd.f32 %v1040, %v1364
      %v1406 = vadd.f32 %v1041, %v1366
      %v1407 = vadd.f32 %v1042, %v1369
      %v1408 = vadd.f32 %v1043, %v1371
      %v1409 = vld [vmem:[%s212 + $0x98] sm:$0x3]
      %s1410 = scalar_lea.vmem %s2, 32
      %v1411 = vld [vmem:[%s1410] sm:$0xf]
      %v1412 = vld [vmem:[%s1410 + $0x4] sm:$0xf]
      %v1414 = vunpack.c.l.b16 %v1409
      %v1415 = vpack.c.b16 %v1414, %v1414
      %vm1416 = vsmask.f32 6400
      %v1418 = vshrl.u32 %v1158, 16
      %v1420 = vrot.slane %v1418, 1
      %v1421 = vshll.u32 %v1158, 16
      %v1423 = vrot.slane %v1421, 2
      %v1424 = vor.u32 %v1420, %v1423
      %v1426 = vshrl.u32 %v1159, 16
      %v1428 = vrot.slane %v1426, 1
      %v1429 = vshll.u32 %v1159, 16
      %v1431 = vrot.slane %v1429, 2
      %v1432 = vor.u32 %v1428, %v1431
      %v1433 = vsel %vm1416, %v1424, %v1432
      %v1435 = vshrl.u32 %v1160, 16
      %v1437 = vrot.slane %v1435, 1
      %v1438 = vshll.u32 %v1160, 16
      %v1440 = vrot.slane %v1438, 2
      %v1441 = vor.u32 %v1437, %v1440
      %v1442 = vsel %vm1416, %v1432, %v1441
      %v1444 = vshrl.u32 %v1161, 16
      %v1446 = vrot.slane %v1444, 1
      %v1447 = vshll.u32 %v1161, 16
      %v1449 = vrot.slane %v1447, 2
      %v1450 = vor.u32 %v1446, %v1449
      %v1451 = vsel %vm1416, %v1441, %v1450
      %v1453 = vshrl.u32 %v1162, 16
      %v1455 = vrot.slane %v1453, 1
      %v1456 = vshll.u32 %v1162, 16
      %v1458 = vrot.slane %v1456, 2
      %v1459 = vor.u32 %v1455, %v1458
      %v1460 = vsel %vm1416, %v1450, %v1459
      %v1462 = vshrl.u32 %v1163, 16
      %v1464 = vrot.slane %v1462, 1
      %v1465 = vshll.u32 %v1163, 16
      %v1467 = vrot.slane %v1465, 2
      %v1468 = vor.u32 %v1464, %v1467
      %v1469 = vsel %vm1416, %v1459, %v1468
      %v1471 = vshrl.u32 %v1164, 16
      %v1473 = vrot.slane %v1471, 1
      %v1474 = vshll.u32 %v1164, 16
      %v1476 = vrot.slane %v1474, 2
      %v1477 = vor.u32 %v1473, %v1476
      %v1478 = vsel %vm1416, %v1468, %v1477
      %v1480 = vshrl.u32 %v1165, 16
      %v1482 = vrot.slane %v1480, 1
      %v1483 = vshll.u32 %v1165, 16
      %v1485 = vrot.slane %v1483, 2
      %v1486 = vor.u32 %v1482, %v1485
      %v1487 = vsel %vm1416, %v1477, %v1486
      %v1489 = vshrl.u32 %v1166, 16
      %v1491 = vrot.slane %v1489, 1
      %v1492 = vshll.u32 %v1166, 16
      %v1494 = vrot.slane %v1492, 2
      %v1495 = vor.u32 %v1491, %v1494
      %v1496 = vsel %vm1416, %v1486, %v1495
      %v1498 = vshrl.u32 %v1167, 16
      %v1500 = vrot.slane %v1498, 1
      %v1501 = vshll.u32 %v1167, 16
      %v1503 = vrot.slane %v1501, 2
      %v1504 = vor.u32 %v1500, %v1503
      %v1505 = vsel %vm1416, %v1495, %v1504
      %v1507 = vshrl.u32 %v1168, 16
      %v1509 = vrot.slane %v1507, 1
      %v1510 = vshll.u32 %v1168, 16
      %v1512 = vrot.slane %v1510, 2
      %v1513 = vor.u32 %v1509, %v1512
      %v1514 = vsel %vm1416, %v1504, %v1513
      %v1516 = vshrl.u32 %v1169, 16
      %v1518 = vrot.slane %v1516, 1
      %v1519 = vshll.u32 %v1169, 16
      %v1521 = vrot.slane %v1519, 2
      %v1522 = vor.u32 %v1518, %v1521
      %v1523 = vsel %vm1416, %v1513, %v1522
      %v1525 = vshrl.u32 %v1170, 16
      %v1527 = vrot.slane %v1525, 1
      %v1528 = vshll.u32 %v1170, 16
      %v1530 = vrot.slane %v1528, 2
      %v1531 = vor.u32 %v1527, %v1530
      %v1532 = vsel %vm1416, %v1522, %v1531
      %v1534 = vshrl.u32 %v1171, 16
      %v1536 = vrot.slane %v1534, 1
      %v1537 = vshll.u32 %v1171, 16
      %v1539 = vrot.slane %v1537, 2
      %v1540 = vor.u32 %v1536, %v1539
      %v1541 = vsel %vm1416, %v1531, %v1540
      %v1543 = vshrl.u32 %v1172, 16
      %v1545 = vrot.slane %v1543, 1
      %v1546 = vshll.u32 %v1172, 16
      %v1548 = vrot.slane %v1546, 2
      %v1549 = vor.u32 %v1545, %v1548
      %v1550 = vsel %vm1416, %v1540, %v1549
      %v1552 = vshrl.u32 %v1173, 16
      %v1554 = vrot.slane %v1552, 1
      %v1555 = vshll.u32 %v1173, 16
      %v1557 = vrot.slane %v1555, 2
      %v1558 = vor.u32 %v1554, %v1557
      %v1559 = vsel %vm1416, %v1549, %v1558
      %v1561 = vshrl.u32 %v1174, 16
      %v1563 = vrot.slane %v1561, 1
      %v1564 = vshll.u32 %v1174, 16
      %v1566 = vrot.slane %v1564, 2
      %v1567 = vor.u32 %v1563, %v1566
      %v1568 = vsel %vm1416, %v1558, %v1567
      %v1570 = vshrl.u32 %v1175, 16
      %v1572 = vrot.slane %v1570, 1
      %v1573 = vshll.u32 %v1175, 16
      %v1575 = vrot.slane %v1573, 2
      %v1576 = vor.u32 %v1572, %v1575
      %v1577 = vsel %vm1416, %v1567, %v1576
      %v1579 = vshrl.u32 %v1415, 16
      %v1581 = vrot.slane %v1579, 1
      %v1582 = vshll.u32 %v1415, 16
      %v1584 = vrot.slane %v1582, 2
      %v1585 = vor.u32 %v1581, %v1584
      %v1586 = vsel %vm1416, %v1576, %v1585
      %v1589 = vunpack.c.l.b16 %v1411
      %v1590 = vunpack.c.l.b16 %v1412
      %v1591 = vpack.c.b16 %v1590, %v1589
      %v1594 = vsel %vm509, %v1433, 0
      %v1597 = vsel %vm509, %v1442, 0
      %v1600 = vsel %vm509, %v1451, 0
      %v1603 = vsel %vm509, %v1460, 0
      %v1606 = vsel %vm509, %v1469, 0
      %v1609 = vsel %vm509, %v1478, 0
      %v1612 = vsel %vm509, %v1487, 0
      %v1615 = vsel %vm509, %v1496, 0
      %v1618 = vsel %vm509, %v1505, 0
      %v1621 = vsel %vm509, %v1514, 0
      %v1624 = vsel %vm509, %v1523, 0
      %v1627 = vsel %vm509, %v1532, 0
      %v1630 = vsel %vm509, %v1541, 0
      %v1633 = vsel %vm509, %v1550, 0
      %v1636 = vsel %vm509, %v1559, 0
      %v1639 = vsel %vm509, %v1568, 0
      %v1642 = vsel %vm509, %v1577, 0
      %v1645 = vsel %vm509, %v1586, 0
      %1647 = vmatpush.bf16.msra.mxu0 0
      %1648 = vmatpush.bf16.msra.mxu0 0
      %1649 = vmatpush.bf16.msra.mxu0 0
      %1650 = vmatpush.bf16.msra.mxu0 0
      %1651 = vmatpush.bf16.msra.mxu0 0
      %1652 = vmatpush.bf16.msra.mxu0 0
      %1653 = vmatpush.bf16.msra.mxu0 0
      %1654 = vmatpush.bf16.msra.mxu0 %v1591
      %1655 = vmatmul.bf16.gmra.mxu0 %v1594
      %v1656 = vpop.f32.mrf.mxu0
      %v1657 = vadd.f32 0.0, %v1656
      %v1658 = vpop.f32.mrf.mxu0
      %v1659 = vadd.f32 0.0, %v1658
      %1660 = vmatmul.bf16.gmra.mxu0 %v1597
      %v1661 = vpop.f32.mrf.mxu0
      %v1662 = vadd.f32 0.0, %v1661
      %v1663 = vpop.f32.mrf.mxu0
      %v1664 = vadd.f32 0.0, %v1663
      %1665 = vmatmul.bf16.gmra.mxu0 %v1600
      %v1666 = vpop.f32.mrf.mxu0
      %v1667 = vadd.f32 0.0, %v1666
      %v1668 = vpop.f32.mrf.mxu0
      %v1669 = vadd.f32 0.0, %v1668
      %1670 = vmatmul.bf16.gmra.mxu0 %v1603
      %v1671 = vpop.f32.mrf.mxu0
      %v1672 = vadd.f32 0.0, %v1671
      %v1673 = vpop.f32.mrf.mxu0
      %v1674 = vadd.f32 0.0, %v1673
      %1675 = vmatmul.bf16.gmra.mxu0 %v1606
      %v1676 = vpop.f32.mrf.mxu0
      %v1677 = vadd.f32 0.0, %v1676
      %v1678 = vpop.f32.mrf.mxu0
      %v1679 = vadd.f32 0.0, %v1678
      %1680 = vmatmul.bf16.gmra.mxu0 %v1609
      %v1681 = vpop.f32.mrf.mxu0
      %v1682 = vadd.f32 0.0, %v1681
      %v1683 = vpop.f32.mrf.mxu0
      %v1684 = vadd.f32 0.0, %v1683
      %1685 = vmatmul.bf16.gmra.mxu0 %v1612
      %v1686 = vpop.f32.mrf.mxu0
      %v1687 = vadd.f32 0.0, %v1686
      %v1688 = vpop.f32.mrf.mxu0
      %v1689 = vadd.f32 0.0, %v1688
      %1690 = vmatmul.bf16.gmra.mxu0 %v1615
      %v1691 = vpop.f32.mrf.mxu0
      %v1692 = vadd.f32 0.0, %v1691
      %v1693 = vpop.f32.mrf.mxu0
      %v1694 = vadd.f32 0.0, %v1693
      %1695 = vmatmul.bf16.gmra.mxu0 %v1618
      %v1696 = vpop.f32.mrf.mxu0
      %v1697 = vadd.f32 0.0, %v1696
      %v1698 = vpop.f32.mrf.mxu0
      %v1699 = vadd.f32 0.0, %v1698
      %1700 = vmatmul.bf16.gmra.mxu0 %v1621
      %v1701 = vpop.f32.mrf.mxu0
      %v1702 = vadd.f32 0.0, %v1701
      %v1703 = vpop.f32.mrf.mxu0
      %v1704 = vadd.f32 0.0, %v1703
      %1705 = vmatmul.bf16.gmra.mxu0 %v1624
      %v1706 = vpop.f32.mrf.mxu0
      %v1707 = vadd.f32 0.0, %v1706
      %v1708 = vpop.f32.mrf.mxu0
      %v1709 = vadd.f32 0.0, %v1708
      %1710 = vmatmul.bf16.gmra.mxu0 %v1627
      %v1711 = vpop.f32.mrf.mxu0
      %v1712 = vadd.f32 0.0, %v1711
      %v1713 = vpop.f32.mrf.mxu0
      %v1714 = vadd.f32 0.0, %v1713
      %1715 = vmatmul.bf16.gmra.mxu0 %v1630
      %v1716 = vpop.f32.mrf.mxu0
      %v1717 = vadd.f32 0.0, %v1716
      %v1718 = vpop.f32.mrf.mxu0
      %v1719 = vadd.f32 0.0, %v1718
      %1720 = vmatmul.bf16.gmra.mxu0 %v1633
      %v1721 = vpop.f32.mrf.mxu0
      %v1722 = vadd.f32 0.0, %v1721
      %v1723 = vpop.f32.mrf.mxu0
      %v1724 = vadd.f32 0.0, %v1723
      %1725 = vmatmul.bf16.gmra.mxu0 %v1636
      %v1726 = vpop.f32.mrf.mxu0
      %v1727 = vadd.f32 0.0, %v1726
      %v1728 = vpop.f32.mrf.mxu0
      %v1729 = vadd.f32 0.0, %v1728
      %1730 = vmatmul.bf16.gmra.mxu0 %v1639
      %v1731 = vpop.f32.mrf.mxu0
      %v1732 = vadd.f32 0.0, %v1731
      %v1733 = vpop.f32.mrf.mxu0
      %v1734 = vadd.f32 0.0, %v1733
      %1735 = vmatmul.bf16.gmra.mxu0 %v1642
      %v1736 = vpop.f32.mrf.mxu0
      %v1737 = vadd.f32 0.0, %v1736
      %v1738 = vpop.f32.mrf.mxu0
      %v1739 = vadd.f32 0.0, %v1738
      %1740 = vmatmul.bf16.gmra.mxu0 %v1645
      %v1741 = vpop.f32.mrf.mxu0
      %v1742 = vadd.f32 0.0, %v1741
      %v1743 = vpop.f32.mrf.mxu0
      %v1744 = vadd.f32 0.0, %v1743
      %1745 = vdwg.mxu0
      %v1746 = vadd.f32 %v1373, %v1657
      %v1747 = vadd.f32 %v1374, %v1659
      %v1748 = vadd.f32 %v1375, %v1662
      %v1749 = vadd.f32 %v1376, %v1664
      %v1750 = vadd.f32 %v1377, %v1667
      %v1751 = vadd.f32 %v1378, %v1669
      %v1752 = vadd.f32 %v1379, %v1672
      %v1753 = vadd.f32 %v1380, %v1674
      %v1754 = vadd.f32 %v1381, %v1677
      %v1755 = vadd.f32 %v1382, %v1679
      %v1756 = vadd.f32 %v1383, %v1682
      %v1757 = vadd.f32 %v1384, %v1684
      %v1758 = vadd.f32 %v1385, %v1687
      %v1759 = vadd.f32 %v1386, %v1689
      %v1760 = vadd.f32 %v1387, %v1692
      %v1761 = vadd.f32 %v1388, %v1694
      %v1762 = vadd.f32 %v1389, %v1697
      %v1763 = vadd.f32 %v1390, %v1699
      %v1764 = vadd.f32 %v1391, %v1702
      %v1765 = vadd.f32 %v1392, %v1704
      %v1766 = vadd.f32 %v1393, %v1707
      %v1767 = vadd.f32 %v1394, %v1709
      %v1768 = vadd.f32 %v1395, %v1712
      %v1769 = vadd.f32 %v1396, %v1714
      %v1770 = vadd.f32 %v1397, %v1717
      %v1771 = vadd.f32 %v1398, %v1719
      %v1772 = vadd.f32 %v1399, %v1722
      %v1773 = vadd.f32 %v1400, %v1724
      %v1774 = vadd.f32 %v1401, %v1727
      %v1775 = vadd.f32 %v1402, %v1729
      %v1776 = vadd.f32 %v1403, %v1732
      %v1777 = vadd.f32 %v1404, %v1734
      %v1778 = vadd.f32 %v1405, %v1737
      %v1779 = vadd.f32 %v1406, %v1739
      %v1780 = vadd.f32 %v1407, %v1742
      %v1781 = vadd.f32 %v1408, %v1744
      %v1782 = vld [vmem:[%s212 + $0x8] sm:$0xc]
      %s1783 = scalar_lea.vmem %s2, 40
      %v1784 = vld [vmem:[%s1783] sm:$0xf]
      %v1785 = vld [vmem:[%s1783 + $0x4] sm:$0xf]
      %v1787 = vunpack.c.l.b16 %v1782
      %v1788 = vpack.c.b16 %v1122, %v1787
      %vm1789 = vcmask 1045504
      %v1790 = vrot.slane %v1788, 2
      %v1791 = vrot.slane %v1159, 2
      %v1792 = vsel %vm1789, %v1790, %v1791
      %v1793 = vrot.slane %v1160, 2
      %v1794 = vsel %vm1789, %v1791, %v1793
      %v1795 = vrot.slane %v1161, 2
      %v1796 = vsel %vm1789, %v1793, %v1795
      %v1797 = vrot.slane %v1162, 2
      %v1798 = vsel %vm1789, %v1795, %v1797
      %v1799 = vrot.slane %v1163, 2
      %v1800 = vsel %vm1789, %v1797, %v1799
      %v1801 = vrot.slane %v1164, 2
      %v1802 = vsel %vm1789, %v1799, %v1801
      %v1803 = vrot.slane %v1165, 2
      %v1804 = vsel %vm1789, %v1801, %v1803
      %v1805 = vrot.slane %v1166, 2
      %v1806 = vsel %vm1789, %v1803, %v1805
      %v1807 = vrot.slane %v1167, 2
      %v1808 = vsel %vm1789, %v1805, %v1807
      %v1809 = vrot.slane %v1168, 2
      %v1810 = vsel %vm1789, %v1807, %v1809
      %v1811 = vrot.slane %v1169, 2
      %v1812 = vsel %vm1789, %v1809, %v1811
      %v1813 = vrot.slane %v1170, 2
      %v1814 = vsel %vm1789, %v1811, %v1813
      %v1815 = vrot.slane %v1171, 2
      %v1816 = vsel %vm1789, %v1813, %v1815
      %v1817 = vrot.slane %v1172, 2
      %v1818 = vsel %vm1789, %v1815, %v1817
      %v1819 = vrot.slane %v1173, 2
      %v1820 = vsel %vm1789, %v1817, %v1819
      %v1821 = vrot.slane %v1174, 2
      %v1822 = vsel %vm1789, %v1819, %v1821
      %v1823 = vrot.slane %v1175, 2
      %v1824 = vsel %vm1789, %v1821, %v1823
      %v1825 = vrot.slane %v1415, 2
      %v1826 = vsel %vm1789, %v1823, %v1825
      %v1829 = vunpack.c.l.b16 %v1784
      %v1830 = vunpack.c.l.b16 %v1785
      %v1831 = vpack.c.b16 %v1830, %v1829
      %v1834 = vsel %vm509, %v1792, 0
      %v1837 = vsel %vm509, %v1794, 0
      %v1840 = vsel %vm509, %v1796, 0
      %v1843 = vsel %vm509, %v1798, 0
      %v1846 = vsel %vm509, %v1800, 0
      %v1849 = vsel %vm509, %v1802, 0
      %v1852 = vsel %vm509, %v1804, 0
      %v1855 = vsel %vm509, %v1806, 0
      %v1858 = vsel %vm509, %v1808, 0
      %v1861 = vsel %vm509, %v1810, 0
      %v1864 = vsel %vm509, %v1812, 0
      %v1867 = vsel %vm509, %v1814, 0
      %v1870 = vsel %vm509, %v1816, 0
      %v1873 = vsel %vm509, %v1818, 0
      %v1876 = vsel %vm509, %v1820, 0
      %v1879 = vsel %vm509, %v1822, 0
      %v1882 = vsel %vm509, %v1824, 0
      %v1885 = vsel %vm509, %v1826, 0
      %1887 = vmatpush.bf16.msra.mxu0 0
      %1888 = vmatpush.bf16.msra.mxu0 0
      %1889 = vmatpush.bf16.msra.mxu0 0
      %1890 = vmatpush.bf16.msra.mxu0 0
      %1891 = vmatpush.bf16.msra.mxu0 0
      %1892 = vmatpush.bf16.msra.mxu0 0
      %1893 = vmatpush.bf16.msra.mxu0 0
      %1894 = vmatpush.bf16.msra.mxu0 %v1831
      %1895 = vmatmul.bf16.gmra.mxu0 %v1834
      %v1896 = vpop.f32.mrf.mxu0
      %v1897 = vadd.f32 0.0, %v1896
      %v1898 = vpop.f32.mrf.mxu0
      %v1899 = vadd.f32 0.0, %v1898
      %1900 = vmatmul.bf16.gmra.mxu0 %v1837
      %v1901 = vpop.f32.mrf.mxu0
      %v1902 = vadd.f32 0.0, %v1901
      %v1903 = vpop.f32.mrf.mxu0
      %v1904 = vadd.f32 0.0, %v1903
      %1905 = vmatmul.bf16.gmra.mxu0 %v1840
      %v1906 = vpop.f32.mrf.mxu0
      %v1907 = vadd.f32 0.0, %v1906
      %v1908 = vpop.f32.mrf.mxu0
      %v1909 = vadd.f32 0.0, %v1908
      %1910 = vmatmul.bf16.gmra.mxu0 %v1843
      %v1911 = vpop.f32.mrf.mxu0
      %v1912 = vadd.f32 0.0, %v1911
      %v1913 = vpop.f32.mrf.mxu0
      %v1914 = vadd.f32 0.0, %v1913
      %1915 = vmatmul.bf16.gmra.mxu0 %v1846
      %v1916 = vpop.f32.mrf.mxu0
      %v1917 = vadd.f32 0.0, %v1916
      %v1918 = vpop.f32.mrf.mxu0
      %v1919 = vadd.f32 0.0, %v1918
      %1920 = vmatmul.bf16.gmra.mxu0 %v1849
      %v1921 = vpop.f32.mrf.mxu0
      %v1922 = vadd.f32 0.0, %v1921
      %v1923 = vpop.f32.mrf.mxu0
      %v1924 = vadd.f32 0.0, %v1923
      %1925 = vmatmul.bf16.gmra.mxu0 %v1852
      %v1926 = vpop.f32.mrf.mxu0
      %v1927 = vadd.f32 0.0, %v1926
      %v1928 = vpop.f32.mrf.mxu0
      %v1929 = vadd.f32 0.0, %v1928
      %1930 = vmatmul.bf16.gmra.mxu0 %v1855
      %v1931 = vpop.f32.mrf.mxu0
      %v1932 = vadd.f32 0.0, %v1931
      %v1933 = vpop.f32.mrf.mxu0
      %v1934 = vadd.f32 0.0, %v1933
      %1935 = vmatmul.bf16.gmra.mxu0 %v1858
      %v1936 = vpop.f32.mrf.mxu0
      %v1937 = vadd.f32 0.0, %v1936
      %v1938 = vpop.f32.mrf.mxu0
      %v1939 = vadd.f32 0.0, %v1938
      %1940 = vmatmul.bf16.gmra.mxu0 %v1861
      %v1941 = vpop.f32.mrf.mxu0
      %v1942 = vadd.f32 0.0, %v1941
      %v1943 = vpop.f32.mrf.mxu0
      %v1944 = vadd.f32 0.0, %v1943
      %1945 = vmatmul.bf16.gmra.mxu0 %v1864
      %v1946 = vpop.f32.mrf.mxu0
      %v1947 = vadd.f32 0.0, %v1946
      %v1948 = vpop.f32.mrf.mxu0
      %v1949 = vadd.f32 0.0, %v1948
      %1950 = vmatmul.bf16.gmra.mxu0 %v1867
      %v1951 = vpop.f32.mrf.mxu0
      %v1952 = vadd.f32 0.0, %v1951
      %v1953 = vpop.f32.mrf.mxu0
      %v1954 = vadd.f32 0.0, %v1953
      %1955 = vmatmul.bf16.gmra.mxu0 %v1870
      %v1956 = vpop.f32.mrf.mxu0
      %v1957 = vadd.f32 0.0, %v1956
      %v1958 = vpop.f32.mrf.mxu0
      %v1959 = vadd.f32 0.0, %v1958
      %1960 = vmatmul.bf16.gmra.mxu0 %v1873
      %v1961 = vpop.f32.mrf.mxu0
      %v1962 = vadd.f32 0.0, %v1961
      %v1963 = vpop.f32.mrf.mxu0
      %v1964 = vadd.f32 0.0, %v1963
      %1965 = vmatmul.bf16.gmra.mxu0 %v1876
      %v1966 = vpop.f32.mrf.mxu0
      %v1967 = vadd.f32 0.0, %v1966
      %v1968 = vpop.f32.mrf.mxu0
      %v1969 = vadd.f32 0.0, %v1968
      %1970 = vmatmul.bf16.gmra.mxu0 %v1879
      %v1971 = vpop.f32.mrf.mxu0
      %v1972 = vadd.f32 0.0, %v1971
      %v1973 = vpop.f32.mrf.mxu0
      %v1974 = vadd.f32 0.0, %v1973
      %1975 = vmatmul.bf16.gmra.mxu0 %v1882
      %v1976 = vpop.f32.mrf.mxu0
      %v1977 = vadd.f32 0.0, %v1976
      %v1978 = vpop.f32.mrf.mxu0
      %v1979 = vadd.f32 0.0, %v1978
      %1980 = vmatmul.bf16.gmra.mxu0 %v1885
      %v1981 = vpop.f32.mrf.mxu0
      %v1982 = vadd.f32 0.0, %v1981
      %v1983 = vpop.f32.mrf.mxu0
      %v1984 = vadd.f32 0.0, %v1983
      %1985 = vdwg.mxu0
      %v1986 = vadd.f32 %v1746, %v1897
      %v1987 = vadd.f32 %v1747, %v1899
      %v1988 = vadd.f32 %v1748, %v1902
      %v1989 = vadd.f32 %v1749, %v1904
      %v1990 = vadd.f32 %v1750, %v1907
      %v1991 = vadd.f32 %v1751, %v1909
      %v1992 = vadd.f32 %v1752, %v1912
      %v1993 = vadd.f32 %v1753, %v1914
      %v1994 = vadd.f32 %v1754, %v1917
      %v1995 = vadd.f32 %v1755, %v1919
      %v1996 = vadd.f32 %v1756, %v1922
      %v1997 = vadd.f32 %v1757, %v1924
      %v1998 = vadd.f32 %v1758, %v1927
      %v1999 = vadd.f32 %v1759, %v1929
      %v2000 = vadd.f32 %v1760, %v1932
      %v2001 = vadd.f32 %v1761, %v1934
      %v2002 = vadd.f32 %v1762, %v1937
      %v2003 = vadd.f32 %v1763, %v1939
      %v2004 = vadd.f32 %v1764, %v1942
      %v2005 = vadd.f32 %v1765, %v1944
      %v2006 = vadd.f32 %v1766, %v1947
      %v2007 = vadd.f32 %v1767, %v1949
      %v2008 = vadd.f32 %v1768, %v1952
      %v2009 = vadd.f32 %v1769, %v1954
      %v2010 = vadd.f32 %v1770, %v1957
      %v2011 = vadd.f32 %v1771, %v1959
      %v2012 = vadd.f32 %v1772, %v1962
      %v2013 = vadd.f32 %v1773, %v1964
      %v2014 = vadd.f32 %v1774, %v1967
      %v2015 = vadd.f32 %v1775, %v1969
      %v2016 = vadd.f32 %v1776, %v1972
      %v2017 = vadd.f32 %v1777, %v1974
      %v2018 = vadd.f32 %v1778, %v1977
      %v2019 = vadd.f32 %v1779, %v1979
      %v2020 = vadd.f32 %v1780, %v1982
      %v2021 = vadd.f32 %v1781, %v1984
      %v2022 = vld [vmem:[%s212 + $0x10] sm:$0xc]
      %v2023 = vld [vmem:[%s212 + $0x14] sm:$0xf]
      %v2024 = vld [vmem:[%s212 + $0x18] sm:$0xf]
      %v2025 = vld [vmem:[%s212 + $0x1c] sm:$0xf]
      %v2026 = vld [vmem:[%s212 + $0x20] sm:$0xf]
      %v2027 = vld [vmem:[%s212 + $0x24] sm:$0xf]
      %v2028 = vld [vmem:[%s212 + $0x28] sm:$0xf]
      %v2029 = vld [vmem:[%s212 + $0x2c] sm:$0xf]
      %v2030 = vld [vmem:[%s212 + $0x30] sm:$0xf]
      %v2031 = vld [vmem:[%s212 + $0x34] sm:$0xf]
      %v2032 = vld [vmem:[%s212 + $0x38] sm:$0xf]
      %v2033 = vld [vmem:[%s212 + $0x3c] sm:$0xf]
      %v2034 = vld [vmem:[%s212 + $0x40] sm:$0xf]
      %v2035 = vld [vmem:[%s212 + $0x44] sm:$0xf]
      %v2036 = vld [vmem:[%s212 + $0x48] sm:$0xf]
      %v2037 = vld [vmem:[%s212 + $0x4c] sm:$0xf]
      %v2038 = vld [vmem:[%s212 + $0x50] sm:$0xf]
      %v2039 = vld [vmem:[%s212 + $0x54] sm:$0xf]
      %v2040 = vld [vmem:[%s212 + $0x58] sm:$0xf]
      %v2041 = vld [vmem:[%s212 + $0x5c] sm:$0xf]
      %v2042 = vld [vmem:[%s212 + $0x60] sm:$0xf]
      %v2043 = vld [vmem:[%s212 + $0x64] sm:$0xf]
      %v2044 = vld [vmem:[%s212 + $0x68] sm:$0xf]
      %v2045 = vld [vmem:[%s212 + $0x6c] sm:$0xf]
      %v2046 = vld [vmem:[%s212 + $0x70] sm:$0xf]
      %v2047 = vld [vmem:[%s212 + $0x74] sm:$0xf]
      %v2048 = vld [vmem:[%s212 + $0x78] sm:$0xf]
      %v2049 = vld [vmem:[%s212 + $0x7c] sm:$0xf]
      %v2050 = vld [vmem:[%s212 + $0x80] sm:$0xf]
      %v2051 = vld [vmem:[%s212 + $0x84] sm:$0xf]
      %v2052 = vld [vmem:[%s212 + $0x88] sm:$0xf]
      %v2053 = vld [vmem:[%s212 + $0x8c] sm:$0xf]
      %v2054 = vld [vmem:[%s212 + $0x90] sm:$0xf]
      %v2055 = vld [vmem:[%s212 + $0x94] sm:$0xf]
      %v2056 = vld [vmem:[%s212 + $0x98] sm:$0xf]
      %v2057 = vld [vmem:[%s212 + $0x9c] sm:$0xf]
      %v2058 = vld [vmem:[%s212 + $0xa0] sm:$0x3]
      %s2059 = scalar_lea.vmem %s2, 48
      %v2060 = vld [vmem:[%s2059] sm:$0xf]
      %v2061 = vld [vmem:[%s2059 + $0x4] sm:$0xf]
      %v2099 = vunpack.c.l.b16 %v2022
      %v2100 = vunpack.c.l.b16 %v2023
      %v2101 = vunpack.c.l.b16 %v2024
      %v2102 = vunpack.c.l.b16 %v2025
      %v2103 = vunpack.c.l.b16 %v2026
      %v2104 = vunpack.c.l.b16 %v2027
      %v2105 = vunpack.c.l.b16 %v2028
      %v2106 = vunpack.c.l.b16 %v2029
      %v2107 = vunpack.c.l.b16 %v2030
      %v2108 = vunpack.c.l.b16 %v2031
      %v2109 = vunpack.c.l.b16 %v2032
      %v2110 = vunpack.c.l.b16 %v2033
      %v2111 = vunpack.c.l.b16 %v2034
      %v2112 = vunpack.c.l.b16 %v2035
      %v2113 = vunpack.c.l.b16 %v2036
      %v2114 = vunpack.c.l.b16 %v2037
      %v2115 = vunpack.c.l.b16 %v2038
      %v2116 = vunpack.c.l.b16 %v2039
      %v2117 = vunpack.c.l.b16 %v2040
      %v2118 = vunpack.c.l.b16 %v2041
      %v2119 = vunpack.c.l.b16 %v2042
      %v2120 = vunpack.c.l.b16 %v2043
      %v2121 = vunpack.c.l.b16 %v2044
      %v2122 = vunpack.c.l.b16 %v2045
      %v2123 = vunpack.c.l.b16 %v2046
      %v2124 = vunpack.c.l.b16 %v2047
      %v2125 = vunpack.c.l.b16 %v2048
      %v2126 = vunpack.c.l.b16 %v2049
      %v2127 = vunpack.c.l.b16 %v2050
      %v2128 = vunpack.c.l.b16 %v2051
      %v2129 = vunpack.c.l.b16 %v2052
      %v2130 = vunpack.c.l.b16 %v2053
      %v2131 = vunpack.c.l.b16 %v2054
      %v2132 = vunpack.c.l.b16 %v2055
      %v2133 = vunpack.c.l.b16 %v2056
      %v2134 = vunpack.c.l.b16 %v2057
      %v2135 = vunpack.c.l.b16 %v2058
      %v2136 = vpack.c.b16 %v2100, %v2099
      %v2137 = vpack.c.b16 %v2102, %v2101
      %v2138 = vpack.c.b16 %v2104, %v2103
      %v2139 = vpack.c.b16 %v2106, %v2105
      %v2140 = vpack.c.b16 %v2108, %v2107
      %v2141 = vpack.c.b16 %v2110, %v2109
      %v2142 = vpack.c.b16 %v2112, %v2111
      %v2143 = vpack.c.b16 %v2114, %v2113
      %v2144 = vpack.c.b16 %v2116, %v2115
      %v2145 = vpack.c.b16 %v2118, %v2117
      %v2146 = vpack.c.b16 %v2120, %v2119
      %v2147 = vpack.c.b16 %v2122, %v2121
      %v2148 = vpack.c.b16 %v2124, %v2123
      %v2149 = vpack.c.b16 %v2126, %v2125
      %v2150 = vpack.c.b16 %v2128, %v2127
      %v2151 = vpack.c.b16 %v2130, %v2129
      %v2152 = vpack.c.b16 %v2132, %v2131
      %v2153 = vpack.c.b16 %v2134, %v2133
      %v2154 = vpack.c.b16 %v2135, %v2135
      %v2155 = vrot.slane %v2136, 2
      %v2156 = vrot.slane %v2137, 2
      %v2157 = vsel %vm1789, %v2155, %v2156
      %v2158 = vrot.slane %v2138, 2
      %v2159 = vsel %vm1789, %v2156, %v2158
      %v2160 = vrot.slane %v2139, 2
      %v2161 = vsel %vm1789, %v2158, %v2160
      %v2162 = vrot.slane %v2140, 2
      %v2163 = vsel %vm1789, %v2160, %v2162
      %v2164 = vrot.slane %v2141, 2
      %v2165 = vsel %vm1789, %v2162, %v2164
      %v2166 = vrot.slane %v2142, 2
      %v2167 = vsel %vm1789, %v2164, %v2166
      %v2168 = vrot.slane %v2143, 2
      %v2169 = vsel %vm1789, %v2166, %v2168
      %v2170 = vrot.slane %v2144, 2
      %v2171 = vsel %vm1789, %v2168, %v2170
      %v2172 = vrot.slane %v2145, 2
      %v2173 = vsel %vm1789, %v2170, %v2172
      %v2174 = vrot.slane %v2146, 2
      %v2175 = vsel %vm1789, %v2172, %v2174
      %v2176 = vrot.slane %v2147, 2
      %v2177 = vsel %vm1789, %v2174, %v2176
      %v2178 = vrot.slane %v2148, 2
      %v2179 = vsel %vm1789, %v2176, %v2178
      %v2180 = vrot.slane %v2149, 2
      %v2181 = vsel %vm1789, %v2178, %v2180
      %v2182 = vrot.slane %v2150, 2
      %v2183 = vsel %vm1789, %v2180, %v2182
      %v2184 = vrot.slane %v2151, 2
      %v2185 = vsel %vm1789, %v2182, %v2184
      %v2186 = vrot.slane %v2152, 2
      %v2187 = vsel %vm1789, %v2184, %v2186
      %v2188 = vrot.slane %v2153, 2
      %v2189 = vsel %vm1789, %v2186, %v2188
      %v2190 = vrot.slane %v2154, 2
      %v2191 = vsel %vm1789, %v2188, %v2190
      %v2194 = vunpack.c.l.b16 %v2060
      %v2195 = vunpack.c.l.b16 %v2061
      %v2196 = vpack.c.b16 %v2195, %v2194
      %v2199 = vsel %vm509, %v2157, 0
      %v2202 = vsel %vm509, %v2159, 0
      %v2205 = vsel %vm509, %v2161, 0
      %v2208 = vsel %vm509, %v2163, 0
      %v2211 = vsel %vm509, %v2165, 0
      %v2214 = vsel %vm509, %v2167, 0
      %v2217 = vsel %vm509, %v2169, 0
      %v2220 = vsel %vm509, %v2171, 0
      %v2223 = vsel %vm509, %v2173, 0
      %v2226 = vsel %vm509, %v2175, 0
      %v2229 = vsel %vm509, %v2177, 0
      %v2232 = vsel %vm509, %v2179, 0
      %v2235 = vsel %vm509, %v2181, 0
      %v2238 = vsel %vm509, %v2183, 0
      %v2241 = vsel %vm509, %v2185, 0
      %v2244 = vsel %vm509, %v2187, 0
      %v2247 = vsel %vm509, %v2189, 0
      %v2250 = vsel %vm509, %v2191, 0
      %2252 = vmatpush.bf16.msra.mxu0 0
      %2253 = vmatpush.bf16.msra.mxu0 0
      %2254 = vmatpush.bf16.msra.mxu0 0
      %2255 = vmatpush.bf16.msra.mxu0 0
      %2256 = vmatpush.bf16.msra.mxu0 0
      %2257 = vmatpush.bf16.msra.mxu0 0
      %2258 = vmatpush.bf16.msra.mxu0 0
      %2259 = vmatpush.bf16.msra.mxu0 %v2196
      %2260 = vmatmul.bf16.gmra.mxu0 %v2199
      %v2261 = vpop.f32.mrf.mxu0
      %v2262 = vadd.f32 0.0, %v2261
      %v2263 = vpop.f32.mrf.mxu0
      %v2264 = vadd.f32 0.0, %v2263
      %2265 = vmatmul.bf16.gmra.mxu0 %v2202
      %v2266 = vpop.f32.mrf.mxu0
      %v2267 = vadd.f32 0.0, %v2266
      %v2268 = vpop.f32.mrf.mxu0
      %v2269 = vadd.f32 0.0, %v2268
      %2270 = vmatmul.bf16.gmra.mxu0 %v2205
      %v2271 = vpop.f32.mrf.mxu0
      %v2272 = vadd.f32 0.0, %v2271
      %v2273 = vpop.f32.mrf.mxu0
      %v2274 = vadd.f32 0.0, %v2273
      %2275 = vmatmul.bf16.gmra.mxu0 %v2208
      %v2276 = vpop.f32.mrf.mxu0
      %v2277 = vadd.f32 0.0, %v2276
      %v2278 = vpop.f32.mrf.mxu0
      %v2279 = vadd.f32 0.0, %v2278
      %2280 = vmatmul.bf16.gmra.mxu0 %v2211
      %v2281 = vpop.f32.mrf.mxu0
      %v2282 = vadd.f32 0.0, %v2281
      %v2283 = vpop.f32.mrf.mxu0
      %v2284 = vadd.f32 0.0, %v2283
      %2285 = vmatmul.bf16.gmra.mxu0 %v2214
      %v2286 = vpop.f32.mrf.mxu0
      %v2287 = vadd.f32 0.0, %v2286
      %v2288 = vpop.f32.mrf.mxu0
      %v2289 = vadd.f32 0.0, %v2288
      %2290 = vmatmul.bf16.gmra.mxu0 %v2217
      %v2291 = vpop.f32.mrf.mxu0
      %v2292 = vadd.f32 0.0, %v2291
      %v2293 = vpop.f32.mrf.mxu0
      %v2294 = vadd.f32 0.0, %v2293
      %2295 = vmatmul.bf16.gmra.mxu0 %v2220
      %v2296 = vpop.f32.mrf.mxu0
      %v2297 = vadd.f32 0.0, %v2296
      %v2298 = vpop.f32.mrf.mxu0
      %v2299 = vadd.f32 0.0, %v2298
      %2300 = vmatmul.bf16.gmra.mxu0 %v2223
      %v2301 = vpop.f32.mrf.mxu0
      %v2302 = vadd.f32 0.0, %v2301
      %v2303 = vpop.f32.mrf.mxu0
      %v2304 = vadd.f32 0.0, %v2303
      %2305 = vmatmul.bf16.gmra.mxu0 %v2226
      %v2306 = vpop.f32.mrf.mxu0
      %v2307 = vadd.f32 0.0, %v2306
      %v2308 = vpop.f32.mrf.mxu0
      %v2309 = vadd.f32 0.0, %v2308
      %2310 = vmatmul.bf16.gmra.mxu0 %v2229
      %v2311 = vpop.f32.mrf.mxu0
      %v2312 = vadd.f32 0.0, %v2311
      %v2313 = vpop.f32.mrf.mxu0
      %v2314 = vadd.f32 0.0, %v2313
      %2315 = vmatmul.bf16.gmra.mxu0 %v2232
      %v2316 = vpop.f32.mrf.mxu0
      %v2317 = vadd.f32 0.0, %v2316
      %v2318 = vpop.f32.mrf.mxu0
      %v2319 = vadd.f32 0.0, %v2318
      %2320 = vmatmul.bf16.gmra.mxu0 %v2235
      %v2321 = vpop.f32.mrf.mxu0
      %v2322 = vadd.f32 0.0, %v2321
      %v2323 = vpop.f32.mrf.mxu0
      %v2324 = vadd.f32 0.0, %v2323
      %2325 = vmatmul.bf16.gmra.mxu0 %v2238
      %v2326 = vpop.f32.mrf.mxu0
      %v2327 = vadd.f32 0.0, %v2326
      %v2328 = vpop.f32.mrf.mxu0
      %v2329 = vadd.f32 0.0, %v2328
      %2330 = vmatmul.bf16.gmra.mxu0 %v2241
      %v2331 = vpop.f32.mrf.mxu0
      %v2332 = vadd.f32 0.0, %v2331
      %v2333 = vpop.f32.mrf.mxu0
      %v2334 = vadd.f32 0.0, %v2333
      %2335 = vmatmul.bf16.gmra.mxu0 %v2244
      %v2336 = vpop.f32.mrf.mxu0
      %v2337 = vadd.f32 0.0, %v2336
      %v2338 = vpop.f32.mrf.mxu0
      %v2339 = vadd.f32 0.0, %v2338
      %2340 = vmatmul.bf16.gmra.mxu0 %v2247
      %v2341 = vpop.f32.mrf.mxu0
      %v2342 = vadd.f32 0.0, %v2341
      %v2343 = vpop.f32.mrf.mxu0
      %v2344 = vadd.f32 0.0, %v2343
      %2345 = vmatmul.bf16.gmra.mxu0 %v2250
      %v2346 = vpop.f32.mrf.mxu0
      %v2347 = vadd.f32 0.0, %v2346
      %v2348 = vpop.f32.mrf.mxu0
      %v2349 = vadd.f32 0.0, %v2348
      %2350 = vdwg.mxu0
      %v2351 = vadd.f32 %v1986, %v2262
      %v2352 = vadd.f32 %v1987, %v2264
      %v2353 = vadd.f32 %v1988, %v2267
      %v2354 = vadd.f32 %v1989, %v2269
      %v2355 = vadd.f32 %v1990, %v2272
      %v2356 = vadd.f32 %v1991, %v2274
      %v2357 = vadd.f32 %v1992, %v2277
      %v2358 = vadd.f32 %v1993, %v2279
      %v2359 = vadd.f32 %v1994, %v2282
      %v2360 = vadd.f32 %v1995, %v2284
      %v2361 = vadd.f32 %v1996, %v2287
      %v2362 = vadd.f32 %v1997, %v2289
      %v2363 = vadd.f32 %v1998, %v2292
      %v2364 = vadd.f32 %v1999, %v2294
      %v2365 = vadd.f32 %v2000, %v2297
      %v2366 = vadd.f32 %v2001, %v2299
      %v2367 = vadd.f32 %v2002, %v2302
      %v2368 = vadd.f32 %v2003, %v2304
      %v2369 = vadd.f32 %v2004, %v2307
      %v2370 = vadd.f32 %v2005, %v2309
      %v2371 = vadd.f32 %v2006, %v2312
      %v2372 = vadd.f32 %v2007, %v2314
      %v2373 = vadd.f32 %v2008, %v2317
      %v2374 = vadd.f32 %v2009, %v2319
      %v2375 = vadd.f32 %v2010, %v2322
      %v2376 = vadd.f32 %v2011, %v2324
      %v2377 = vadd.f32 %v2012, %v2327
      %v2378 = vadd.f32 %v2013, %v2329
      %v2379 = vadd.f32 %v2014, %v2332
      %v2380 = vadd.f32 %v2015, %v2334
      %v2381 = vadd.f32 %v2016, %v2337
      %v2382 = vadd.f32 %v2017, %v2339
      %v2383 = vadd.f32 %v2018, %v2342
      %v2384 = vadd.f32 %v2019, %v2344
      %v2385 = vadd.f32 %v2020, %v2347
      %v2386 = vadd.f32 %v2021, %v2349
      %v2387 = vld [vmem:[%s212 + $0xa0] sm:$0x7]
      %s2388 = scalar_lea.vmem %s2, 56
      %v2389 = vld [vmem:[%s2388] sm:$0xf]
      %v2390 = vld [vmem:[%s2388 + $0x4] sm:$0xf]
      %v2392 = vunpack.c.l.b16 %v2387
      %v2393 = vpack.c.b16 %v2392, %v2392
      %vm2394 = vsmask.f32 5376
      %v2396 = vshrl.u32 %v2136, 16
      %v2398 = vrot.slane %v2396, 2
      %v2399 = vshll.u32 %v2136, 16
      %v2401 = vrot.slane %v2399, 3
      %v2402 = vor.u32 %v2398, %v2401
      %v2404 = vshrl.u32 %v2137, 16
      %v2406 = vrot.slane %v2404, 2
      %v2407 = vshll.u32 %v2137, 16
      %v2409 = vrot.slane %v2407, 3
      %v2410 = vor.u32 %v2406, %v2409
      %v2411 = vsel %vm2394, %v2402, %v2410
      %v2413 = vshrl.u32 %v2138, 16
      %v2415 = vrot.slane %v2413, 2
      %v2416 = vshll.u32 %v2138, 16
      %v2418 = vrot.slane %v2416, 3
      %v2419 = vor.u32 %v2415, %v2418
      %v2420 = vsel %vm2394, %v2410, %v2419
      %v2422 = vshrl.u32 %v2139, 16
      %v2424 = vrot.slane %v2422, 2
      %v2425 = vshll.u32 %v2139, 16
      %v2427 = vrot.slane %v2425, 3
      %v2428 = vor.u32 %v2424, %v2427
      %v2429 = vsel %vm2394, %v2419, %v2428
      %v2431 = vshrl.u32 %v2140, 16
      %v2433 = vrot.slane %v2431, 2
      %v2434 = vshll.u32 %v2140, 16
      %v2436 = vrot.slane %v2434, 3
      %v2437 = vor.u32 %v2433, %v2436
      %v2438 = vsel %vm2394, %v2428, %v2437
      %v2440 = vshrl.u32 %v2141, 16
      %v2442 = vrot.slane %v2440, 2
      %v2443 = vshll.u32 %v2141, 16
      %v2445 = vrot.slane %v2443, 3
      %v2446 = vor.u32 %v2442, %v2445
      %v2447 = vsel %vm2394, %v2437, %v2446
      %v2449 = vshrl.u32 %v2142, 16
      %v2451 = vrot.slane %v2449, 2
      %v2452 = vshll.u32 %v2142, 16
      %v2454 = vrot.slane %v2452, 3
      %v2455 = vor.u32 %v2451, %v2454
      %v2456 = vsel %vm2394, %v2446, %v2455
      %v2458 = vshrl.u32 %v2143, 16
      %v2460 = vrot.slane %v2458, 2
      %v2461 = vshll.u32 %v2143, 16
      %v2463 = vrot.slane %v2461, 3
      %v2464 = vor.u32 %v2460, %v2463
      %v2465 = vsel %vm2394, %v2455, %v2464
      %v2467 = vshrl.u32 %v2144, 16
      %v2469 = vrot.slane %v2467, 2
      %v2470 = vshll.u32 %v2144, 16
      %v2472 = vrot.slane %v2470, 3
      %v2473 = vor.u32 %v2469, %v2472
      %v2474 = vsel %vm2394, %v2464, %v2473
      %v2476 = vshrl.u32 %v2145, 16
      %v2478 = vrot.slane %v2476, 2
      %v2479 = vshll.u32 %v2145, 16
      %v2481 = vrot.slane %v2479, 3
      %v2482 = vor.u32 %v2478, %v2481
      %v2483 = vsel %vm2394, %v2473, %v2482
      %v2485 = vshrl.u32 %v2146, 16
      %v2487 = vrot.slane %v2485, 2
      %v2488 = vshll.u32 %v2146, 16
      %v2490 = vrot.slane %v2488, 3
      %v2491 = vor.u32 %v2487, %v2490
      %v2492 = vsel %vm2394, %v2482, %v2491
      %v2494 = vshrl.u32 %v2147, 16
      %v2496 = vrot.slane %v2494, 2
      %v2497 = vshll.u32 %v2147, 16
      %v2499 = vrot.slane %v2497, 3
      %v2500 = vor.u32 %v2496, %v2499
      %v2501 = vsel %vm2394, %v2491, %v2500
      %v2503 = vshrl.u32 %v2148, 16
      %v2505 = vrot.slane %v2503, 2
      %v2506 = vshll.u32 %v2148, 16
      %v2508 = vrot.slane %v2506, 3
      %v2509 = vor.u32 %v2505, %v2508
      %v2510 = vsel %vm2394, %v2500, %v2509
      %v2512 = vshrl.u32 %v2149, 16
      %v2514 = vrot.slane %v2512, 2
      %v2515 = vshll.u32 %v2149, 16
      %v2517 = vrot.slane %v2515, 3
      %v2518 = vor.u32 %v2514, %v2517
      %v2519 = vsel %vm2394, %v2509, %v2518
      %v2521 = vshrl.u32 %v2150, 16
      %v2523 = vrot.slane %v2521, 2
      %v2524 = vshll.u32 %v2150, 16
      %v2526 = vrot.slane %v2524, 3
      %v2527 = vor.u32 %v2523, %v2526
      %v2528 = vsel %vm2394, %v2518, %v2527
      %v2530 = vshrl.u32 %v2151, 16
      %v2532 = vrot.slane %v2530, 2
      %v2533 = vshll.u32 %v2151, 16
      %v2535 = vrot.slane %v2533, 3
      %v2536 = vor.u32 %v2532, %v2535
      %v2537 = vsel %vm2394, %v2527, %v2536
      %v2539 = vshrl.u32 %v2152, 16
      %v2541 = vrot.slane %v2539, 2
      %v2542 = vshll.u32 %v2152, 16
      %v2544 = vrot.slane %v2542, 3
      %v2545 = vor.u32 %v2541, %v2544
      %v2546 = vsel %vm2394, %v2536, %v2545
      %v2548 = vshrl.u32 %v2153, 16
      %v2550 = vrot.slane %v2548, 2
      %v2551 = vshll.u32 %v2153, 16
      %v2553 = vrot.slane %v2551, 3
      %v2554 = vor.u32 %v2550, %v2553
      %v2555 = vsel %vm2394, %v2545, %v2554
      %v2557 = vshrl.u32 %v2393, 16
      %v2559 = vrot.slane %v2557, 2
      %v2560 = vshll.u32 %v2393, 16
      %v2562 = vrot.slane %v2560, 3
      %v2563 = vor.u32 %v2559, %v2562
      %v2564 = vsel %vm2394, %v2554, %v2563
      %v2567 = vunpack.c.l.b16 %v2389
      %v2568 = vunpack.c.l.b16 %v2390
      %v2569 = vpack.c.b16 %v2568, %v2567
      %v2572 = vsel %vm509, %v2411, 0
      %v2575 = vsel %vm509, %v2420, 0
      %v2578 = vsel %vm509, %v2429, 0
      %v2581 = vsel %vm509, %v2438, 0
      %v2584 = vsel %vm509, %v2447, 0
      %v2587 = vsel %vm509, %v2456, 0
      %v2590 = vsel %vm509, %v2465, 0
      %v2593 = vsel %vm509, %v2474, 0
      %v2596 = vsel %vm509, %v2483, 0
      %v2599 = vsel %vm509, %v2492, 0
      %v2602 = vsel %vm509, %v2501, 0
      %v2605 = vsel %vm509, %v2510, 0
      %v2608 = vsel %vm509, %v2519, 0
      %v2611 = vsel %vm509, %v2528, 0
      %v2614 = vsel %vm509, %v2537, 0
      %v2617 = vsel %vm509, %v2546, 0
      %v2620 = vsel %vm509, %v2555, 0
      %v2623 = vsel %vm509, %v2564, 0
      %2625 = vmatpush.bf16.msra.mxu0 0
      %2626 = vmatpush.bf16.msra.mxu0 0
      %2627 = vmatpush.bf16.msra.mxu0 0
      %2628 = vmatpush.bf16.msra.mxu0 0
      %2629 = vmatpush.bf16.msra.mxu0 0
      %2630 = vmatpush.bf16.msra.mxu0 0
      %2631 = vmatpush.bf16.msra.mxu0 0
      %2632 = vmatpush.bf16.msra.mxu0 %v2569
      %2633 = vmatmul.bf16.gmra.mxu0 %v2572
      %v2634 = vpop.f32.mrf.mxu0
      %v2635 = vadd.f32 0.0, %v2634
      %v2636 = vpop.f32.mrf.mxu0
      %v2637 = vadd.f32 0.0, %v2636
      %2638 = vmatmul.bf16.gmra.mxu0 %v2575
      %v2639 = vpop.f32.mrf.mxu0
      %v2640 = vadd.f32 0.0, %v2639
      %v2641 = vpop.f32.mrf.mxu0
      %v2642 = vadd.f32 0.0, %v2641
      %2643 = vmatmul.bf16.gmra.mxu0 %v2578
      %v2644 = vpop.f32.mrf.mxu0
      %v2645 = vadd.f32 0.0, %v2644
      %v2646 = vpop.f32.mrf.mxu0
      %v2647 = vadd.f32 0.0, %v2646
      %2648 = vmatmul.bf16.gmra.mxu0 %v2581
      %v2649 = vpop.f32.mrf.mxu0
      %v2650 = vadd.f32 0.0, %v2649
      %v2651 = vpop.f32.mrf.mxu0
      %v2652 = vadd.f32 0.0, %v2651
      %2653 = vmatmul.bf16.gmra.mxu0 %v2584
      %v2654 = vpop.f32.mrf.mxu0
      %v2655 = vadd.f32 0.0, %v2654
      %v2656 = vpop.f32.mrf.mxu0
      %v2657 = vadd.f32 0.0, %v2656
      %2658 = vmatmul.bf16.gmra.mxu0 %v2587
      %v2659 = vpop.f32.mrf.mxu0
      %v2660 = vadd.f32 0.0, %v2659
      %v2661 = vpop.f32.mrf.mxu0
      %v2662 = vadd.f32 0.0, %v2661
      %2663 = vmatmul.bf16.gmra.mxu0 %v2590
      %v2664 = vpop.f32.mrf.mxu0
      %v2665 = vadd.f32 0.0, %v2664
      %v2666 = vpop.f32.mrf.mxu0
      %v2667 = vadd.f32 0.0, %v2666
      %2668 = vmatmul.bf16.gmra.mxu0 %v2593
      %v2669 = vpop.f32.mrf.mxu0
      %v2670 = vadd.f32 0.0, %v2669
      %v2671 = vpop.f32.mrf.mxu0
      %v2672 = vadd.f32 0.0, %v2671
      %2673 = vmatmul.bf16.gmra.mxu0 %v2596
      %v2674 = vpop.f32.mrf.mxu0
      %v2675 = vadd.f32 0.0, %v2674
      %v2676 = vpop.f32.mrf.mxu0
      %v2677 = vadd.f32 0.0, %v2676
      %2678 = vmatmul.bf16.gmra.mxu0 %v2599
      %v2679 = vpop.f32.mrf.mxu0
      %v2680 = vadd.f32 0.0, %v2679
      %v2681 = vpop.f32.mrf.mxu0
      %v2682 = vadd.f32 0.0, %v2681
      %2683 = vmatmul.bf16.gmra.mxu0 %v2602
      %v2684 = vpop.f32.mrf.mxu0
      %v2685 = vadd.f32 0.0, %v2684
      %v2686 = vpop.f32.mrf.mxu0
      %v2687 = vadd.f32 0.0, %v2686
      %2688 = vmatmul.bf16.gmra.mxu0 %v2605
      %v2689 = vpop.f32.mrf.mxu0
      %v2690 = vadd.f32 0.0, %v2689
      %v2691 = vpop.f32.mrf.mxu0
      %v2692 = vadd.f32 0.0, %v2691
      %2693 = vmatmul.bf16.gmra.mxu0 %v2608
      %v2694 = vpop.f32.mrf.mxu0
      %v2695 = vadd.f32 0.0, %v2694
      %v2696 = vpop.f32.mrf.mxu0
      %v2697 = vadd.f32 0.0, %v2696
      %2698 = vmatmul.bf16.gmra.mxu0 %v2611
      %v2699 = vpop.f32.mrf.mxu0
      %v2700 = vadd.f32 0.0, %v2699
      %v2701 = vpop.f32.mrf.mxu0
      %v2702 = vadd.f32 0.0, %v2701
      %2703 = vmatmul.bf16.gmra.mxu0 %v2614
      %v2704 = vpop.f32.mrf.mxu0
      %v2705 = vadd.f32 0.0, %v2704
      %v2706 = vpop.f32.mrf.mxu0
      %v2707 = vadd.f32 0.0, %v2706
      %2708 = vmatmul.bf16.gmra.mxu0 %v2617
      %v2709 = vpop.f32.mrf.mxu0
      %v2710 = vadd.f32 0.0, %v2709
      %v2711 = vpop.f32.mrf.mxu0
      %v2712 = vadd.f32 0.0, %v2711
      %2713 = vmatmul.bf16.gmra.mxu0 %v2620
      %v2714 = vpop.f32.mrf.mxu0
      %v2715 = vadd.f32 0.0, %v2714
      %v2716 = vpop.f32.mrf.mxu0
      %v2717 = vadd.f32 0.0, %v2716
      %2718 = vmatmul.bf16.gmra.mxu0 %v2623
      %v2719 = vpop.f32.mrf.mxu0
      %v2720 = vadd.f32 0.0, %v2719
      %v2721 = vpop.f32.mrf.mxu0
      %v2722 = vadd.f32 0.0, %v2721
      %2723 = vdwg.mxu0
      %v2724 = vadd.f32 %v2351, %v2635
      %v2725 = vadd.f32 %v2352, %v2637
      %v2726 = vadd.f32 %v2353, %v2640
      %v2727 = vadd.f32 %v2354, %v2642
      %v2728 = vadd.f32 %v2355, %v2645
      %v2729 = vadd.f32 %v2356, %v2647
      %v2730 = vadd.f32 %v2357, %v2650
      %v2731 = vadd.f32 %v2358, %v2652
      %v2732 = vadd.f32 %v2359, %v2655
      %v2733 = vadd.f32 %v2360, %v2657
      %v2734 = vadd.f32 %v2361, %v2660
      %v2735 = vadd.f32 %v2362, %v2662
      %v2736 = vadd.f32 %v2363, %v2665
      %v2737 = vadd.f32 %v2364, %v2667
      %v2738 = vadd.f32 %v2365, %v2670
      %v2739 = vadd.f32 %v2366, %v2672
      %v2740 = vadd.f32 %v2367, %v2675
      %v2741 = vadd.f32 %v2368, %v2677
      %v2742 = vadd.f32 %v2369, %v2680
      %v2743 = vadd.f32 %v2370, %v2682
      %v2744 = vadd.f32 %v2371, %v2685
      %v2745 = vadd.f32 %v2372, %v2687
      %v2746 = vadd.f32 %v2373, %v2690
      %v2747 = vadd.f32 %v2374, %v2692
      %v2748 = vadd.f32 %v2375, %v2695
      %v2749 = vadd.f32 %v2376, %v2697
      %v2750 = vadd.f32 %v2377, %v2700
      %v2751 = vadd.f32 %v2378, %v2702
      %v2752 = vadd.f32 %v2379, %v2705
      %v2753 = vadd.f32 %v2380, %v2707
      %v2754 = vadd.f32 %v2381, %v2710
      %v2755 = vadd.f32 %v2382, %v2712
      %v2756 = vadd.f32 %v2383, %v2715
      %v2757 = vadd.f32 %v2384, %v2717
      %v2758 = vadd.f32 %v2385, %v2720
      %v2759 = vadd.f32 %v2386, %v2722
      %v2760 = vld [vmem:[%s212 + $0x10] sm:$0x8]
      %s2761 = scalar_lea.vmem %s2, 64
      %v2762 = vld [vmem:[%s2761] sm:$0xf]
      %v2763 = vld [vmem:[%s2761 + $0x4] sm:$0xf]
      %v2765 = vunpack.c.l.b16 %v2760
      %v2766 = vpack.c.b16 %v2100, %v2765
      %vm2767 = vcmask 1044480
      %v2768 = vrot.slane %v2766, 3
      %v2769 = vrot.slane %v2137, 3
      %v2770 = vsel %vm2767, %v2768, %v2769
      %v2771 = vrot.slane %v2138, 3
      %v2772 = vsel %vm2767, %v2769, %v2771
      %v2773 = vrot.slane %v2139, 3
      %v2774 = vsel %vm2767, %v2771, %v2773
      %v2775 = vrot.slane %v2140, 3
      %v2776 = vsel %vm2767, %v2773, %v2775
      %v2777 = vrot.slane %v2141, 3
      %v2778 = vsel %vm2767, %v2775, %v2777
      %v2779 = vrot.slane %v2142, 3
      %v2780 = vsel %vm2767, %v2777, %v2779
      %v2781 = vrot.slane %v2143, 3
      %v2782 = vsel %vm2767, %v2779, %v2781
      %v2783 = vrot.slane %v2144, 3
      %v2784 = vsel %vm2767, %v2781, %v2783
      %v2785 = vrot.slane %v2145, 3
      %v2786 = vsel %vm2767, %v2783, %v2785
      %v2787 = vrot.slane %v2146, 3
      %v2788 = vsel %vm2767, %v2785, %v2787
      %v2789 = vrot.slane %v2147, 3
      %v2790 = vsel %vm2767, %v2787, %v2789
      %v2791 = vrot.slane %v2148, 3
      %v2792 = vsel %vm2767, %v2789, %v2791
      %v2793 = vrot.slane %v2149, 3
      %v2794 = vsel %vm2767, %v2791, %v2793
      %v2795 = vrot.slane %v2150, 3
      %v2796 = vsel %vm2767, %v2793, %v2795
      %v2797 = vrot.slane %v2151, 3
      %v2798 = vsel %vm2767, %v2795, %v2797
      %v2799 = vrot.slane %v2152, 3
      %v2800 = vsel %vm2767, %v2797, %v2799
      %v2801 = vrot.slane %v2153, 3
      %v2802 = vsel %vm2767, %v2799, %v2801
      %v2803 = vrot.slane %v2393, 3
      %v2804 = vsel %vm2767, %v2801, %v2803
      %v2807 = vunpack.c.l.b16 %v2762
      %v2808 = vunpack.c.l.b16 %v2763
      %v2809 = vpack.c.b16 %v2808, %v2807
      %v2812 = vsel %vm509, %v2770, 0
      %v2815 = vsel %vm509, %v2772, 0
      %v2818 = vsel %vm509, %v2774, 0
      %v2821 = vsel %vm509, %v2776, 0
      %v2824 = vsel %vm509, %v2778, 0
      %v2827 = vsel %vm509, %v2780, 0
      %v2830 = vsel %vm509, %v2782, 0
      %v2833 = vsel %vm509, %v2784, 0
      %v2836 = vsel %vm509, %v2786, 0
      %v2839 = vsel %vm509, %v2788, 0
      %v2842 = vsel %vm509, %v2790, 0
      %v2845 = vsel %vm509, %v2792, 0
      %v2848 = vsel %vm509, %v2794, 0
      %v2851 = vsel %vm509, %v2796, 0
      %v2854 = vsel %vm509, %v2798, 0
      %v2857 = vsel %vm509, %v2800, 0
      %v2860 = vsel %vm509, %v2802, 0
      %v2863 = vsel %vm509, %v2804, 0
      %2865 = vmatpush.bf16.msra.mxu0 0
      %2866 = vmatpush.bf16.msra.mxu0 0
      %2867 = vmatpush.bf16.msra.mxu0 0
      %2868 = vmatpush.bf16.msra.mxu0 0
      %2869 = vmatpush.bf16.msra.mxu0 0
      %2870 = vmatpush.bf16.msra.mxu0 0
      %2871 = vmatpush.bf16.msra.mxu0 0
      %2872 = vmatpush.bf16.msra.mxu0 %v2809
      %2873 = vmatmul.bf16.gmra.mxu0 %v2812
      %v2874 = vpop.f32.mrf.mxu0
      %v2875 = vadd.f32 0.0, %v2874
      %v2876 = vpop.f32.mrf.mxu0
      %v2877 = vadd.f32 0.0, %v2876
      %2878 = vmatmul.bf16.gmra.mxu0 %v2815
      %v2879 = vpop.f32.mrf.mxu0
      %v2880 = vadd.f32 0.0, %v2879
      %v2881 = vpop.f32.mrf.mxu0
      %v2882 = vadd.f32 0.0, %v2881
      %2883 = vmatmul.bf16.gmra.mxu0 %v2818
      %v2884 = vpop.f32.mrf.mxu0
      %v2885 = vadd.f32 0.0, %v2884
      %v2886 = vpop.f32.mrf.mxu0
      %v2887 = vadd.f32 0.0, %v2886
      %2888 = vmatmul.bf16.gmra.mxu0 %v2821
      %v2889 = vpop.f32.mrf.mxu0
      %v2890 = vadd.f32 0.0, %v2889
      %v2891 = vpop.f32.mrf.mxu0
      %v2892 = vadd.f32 0.0, %v2891
      %2893 = vmatmul.bf16.gmra.mxu0 %v2824
      %v2894 = vpop.f32.mrf.mxu0
      %v2895 = vadd.f32 0.0, %v2894
      %v2896 = vpop.f32.mrf.mxu0
      %v2897 = vadd.f32 0.0, %v2896
      %2898 = vmatmul.bf16.gmra.mxu0 %v2827
      %v2899 = vpop.f32.mrf.mxu0
      %v2900 = vadd.f32 0.0, %v2899
      %v2901 = vpop.f32.mrf.mxu0
      %v2902 = vadd.f32 0.0, %v2901
      %2903 = vmatmul.bf16.gmra.mxu0 %v2830
      %v2904 = vpop.f32.mrf.mxu0
      %v2905 = vadd.f32 0.0, %v2904
      %v2906 = vpop.f32.mrf.mxu0
      %v2907 = vadd.f32 0.0, %v2906
      %2908 = vmatmul.bf16.gmra.mxu0 %v2833
      %v2909 = vpop.f32.mrf.mxu0
      %v2910 = vadd.f32 0.0, %v2909
      %v2911 = vpop.f32.mrf.mxu0
      %v2912 = vadd.f32 0.0, %v2911
      %2913 = vmatmul.bf16.gmra.mxu0 %v2836
      %v2914 = vpop.f32.mrf.mxu0
      %v2915 = vadd.f32 0.0, %v2914
      %v2916 = vpop.f32.mrf.mxu0
      %v2917 = vadd.f32 0.0, %v2916
      %2918 = vmatmul.bf16.gmra.mxu0 %v2839
      %v2919 = vpop.f32.mrf.mxu0
      %v2920 = vadd.f32 0.0, %v2919
      %v2921 = vpop.f32.mrf.mxu0
      %v2922 = vadd.f32 0.0, %v2921
      %2923 = vmatmul.bf16.gmra.mxu0 %v2842
      %v2924 = vpop.f32.mrf.mxu0
      %v2925 = vadd.f32 0.0, %v2924
      %v2926 = vpop.f32.mrf.mxu0
      %v2927 = vadd.f32 0.0, %v2926
      %2928 = vmatmul.bf16.gmra.mxu0 %v2845
      %v2929 = vpop.f32.mrf.mxu0
      %v2930 = vadd.f32 0.0, %v2929
      %v2931 = vpop.f32.mrf.mxu0
      %v2932 = vadd.f32 0.0, %v2931
      %2933 = vmatmul.bf16.gmra.mxu0 %v2848
      %v2934 = vpop.f32.mrf.mxu0
      %v2935 = vadd.f32 0.0, %v2934
      %v2936 = vpop.f32.mrf.mxu0
      %v2937 = vadd.f32 0.0, %v2936
      %2938 = vmatmul.bf16.gmra.mxu0 %v2851
      %v2939 = vpop.f32.mrf.mxu0
      %v2940 = vadd.f32 0.0, %v2939
      %v2941 = vpop.f32.mrf.mxu0
      %v2942 = vadd.f32 0.0, %v2941
      %2943 = vmatmul.bf16.gmra.mxu0 %v2854
      %v2944 = vpop.f32.mrf.mxu0
      %v2945 = vadd.f32 0.0, %v2944
      %v2946 = vpop.f32.mrf.mxu0
      %v2947 = vadd.f32 0.0, %v2946
      %2948 = vmatmul.bf16.gmra.mxu0 %v2857
      %v2949 = vpop.f32.mrf.mxu0
      %v2950 = vadd.f32 0.0, %v2949
      %v2951 = vpop.f32.mrf.mxu0
      %v2952 = vadd.f32 0.0, %v2951
      %2953 = vmatmul.bf16.gmra.mxu0 %v2860
      %v2954 = vpop.f32.mrf.mxu0
      %v2955 = vadd.f32 0.0, %v2954
      %v2956 = vpop.f32.mrf.mxu0
      %v2957 = vadd.f32 0.0, %v2956
      %2958 = vmatmul.bf16.gmra.mxu0 %v2863
      %v2959 = vpop.f32.mrf.mxu0
      %v2960 = vadd.f32 0.0, %v2959
      %v2961 = vpop.f32.mrf.mxu0
      %v2962 = vadd.f32 0.0, %v2961
      %2963 = vdwg.mxu0
      %v2964 = vadd.f32 %v2724, %v2875
      %v2965 = vadd.f32 %v2725, %v2877
      %v2966 = vadd.f32 %v2726, %v2880
      %v2967 = vadd.f32 %v2727, %v2882
      %v2968 = vadd.f32 %v2728, %v2885
      %v2969 = vadd.f32 %v2729, %v2887
      %v2970 = vadd.f32 %v2730, %v2890
      %v2971 = vadd.f32 %v2731, %v2892
      %v2972 = vadd.f32 %v2732, %v2895
      %v2973 = vadd.f32 %v2733, %v2897
      %v2974 = vadd.f32 %v2734, %v2900
      %v2975 = vadd.f32 %v2735, %v2902
      %v2976 = vadd.f32 %v2736, %v2905
      %v2977 = vadd.f32 %v2737, %v2907
      %v2978 = vadd.f32 %v2738, %v2910
      %v2979 = vadd.f32 %v2739, %v2912
      %v2980 = vadd.f32 %v2740, %v2915
      %v2981 = vadd.f32 %v2741, %v2917
      %v2982 = vadd.f32 %v2742, %v2920
      %v2983 = vadd.f32 %v2743, %v2922
      %v2984 = vadd.f32 %v2744, %v2925
      %v2985 = vadd.f32 %v2745, %v2927
      %v2986 = vadd.f32 %v2746, %v2930
      %v2987 = vadd.f32 %v2747, %v2932
      %v2988 = vadd.f32 %v2748, %v2935
      %v2989 = vadd.f32 %v2749, %v2937
      %v2990 = vadd.f32 %v2750, %v2940
      %v2991 = vadd.f32 %v2751, %v2942
      %v2992 = vadd.f32 %v2752, %v2945
      %v2993 = vadd.f32 %v2753, %v2947
      %v2994 = vadd.f32 %v2754, %v2950
      %v2995 = vadd.f32 %v2755, %v2952
      %v2996 = vadd.f32 %v2756, %v2955
      %v2997 = vadd.f32 %v2757, %v2957
      %v2998 = vadd.f32 %v2758, %v2960
      %v2999 = vadd.f32 %v2759, %v2962
      %v3000 = vld [vmem:[%s3] sm:$0x1]
      %v3002 = vperm.slane %v3000, 0
      %v3004 = vadd.f32 %v2964, %v3002
      %v3005 = vadd.f32 %v2965, %v3002
      %v3006 = vadd.f32 %v2966, %v3002
      %v3007 = vadd.f32 %v2967, %v3002
      %v3008 = vadd.f32 %v2968, %v3002
      %v3009 = vadd.f32 %v2969, %v3002
      %v3010 = vadd.f32 %v2970, %v3002
      %v3011 = vadd.f32 %v2971, %v3002
      %v3012 = vadd.f32 %v2972, %v3002
      %v3013 = vadd.f32 %v2973, %v3002
      %v3014 = vadd.f32 %v2974, %v3002
      %v3015 = vadd.f32 %v2975, %v3002
      %v3016 = vadd.f32 %v2976, %v3002
      %v3017 = vadd.f32 %v2977, %v3002
      %v3018 = vadd.f32 %v2978, %v3002
      %v3019 = vadd.f32 %v2979, %v3002
      %v3020 = vadd.f32 %v2980, %v3002
      %v3021 = vadd.f32 %v2981, %v3002
      %v3022 = vadd.f32 %v2982, %v3002
      %v3023 = vadd.f32 %v2983, %v3002
      %v3024 = vadd.f32 %v2984, %v3002
      %v3025 = vadd.f32 %v2985, %v3002
      %v3026 = vadd.f32 %v2986, %v3002
      %v3027 = vadd.f32 %v2987, %v3002
      %v3028 = vadd.f32 %v2988, %v3002
      %v3029 = vadd.f32 %v2989, %v3002
      %v3030 = vadd.f32 %v2990, %v3002
      %v3031 = vadd.f32 %v2991, %v3002
      %v3032 = vadd.f32 %v2992, %v3002
      %v3033 = vadd.f32 %v2993, %v3002
      %v3034 = vadd.f32 %v2994, %v3002
      %v3035 = vadd.f32 %v2995, %v3002
      %v3036 = vadd.f32 %v2996, %v3002
      %v3037 = vadd.f32 %v2997, %v3002
      %v3038 = vadd.f32 %v2998, %v3002
      %v3039 = vadd.f32 %v2999, %v3002
      %v3040 = vmax.f32 %v3004, 0.0
      %v3041 = vmax.f32 %v3005, 0.0
      %v3042 = vmax.f32 %v3006, 0.0
      %v3043 = vmax.f32 %v3007, 0.0
      %v3044 = vmax.f32 %v3008, 0.0
      %v3045 = vmax.f32 %v3009, 0.0
      %v3046 = vmax.f32 %v3010, 0.0
      %v3047 = vmax.f32 %v3011, 0.0
      %v3048 = vmax.f32 %v3012, 0.0
      %v3049 = vmax.f32 %v3013, 0.0
      %v3050 = vmax.f32 %v3014, 0.0
      %v3051 = vmax.f32 %v3015, 0.0
      %v3052 = vmax.f32 %v3016, 0.0
      %v3053 = vmax.f32 %v3017, 0.0
      %v3054 = vmax.f32 %v3018, 0.0
      %v3055 = vmax.f32 %v3019, 0.0
      %v3056 = vmax.f32 %v3020, 0.0
      %v3057 = vmax.f32 %v3021, 0.0
      %v3058 = vmax.f32 %v3022, 0.0
      %v3059 = vmax.f32 %v3023, 0.0
      %v3060 = vmax.f32 %v3024, 0.0
      %v3061 = vmax.f32 %v3025, 0.0
      %v3062 = vmax.f32 %v3026, 0.0
      %v3063 = vmax.f32 %v3027, 0.0
      %v3064 = vmax.f32 %v3028, 0.0
      %v3065 = vmax.f32 %v3029, 0.0
      %v3066 = vmax.f32 %v3030, 0.0
      %v3067 = vmax.f32 %v3031, 0.0
      %v3068 = vmax.f32 %v3032, 0.0
      %v3069 = vmax.f32 %v3033, 0.0
      %v3070 = vmax.f32 %v3034, 0.0
      %v3071 = vmax.f32 %v3035, 0.0
      %v3072 = vmax.f32 %v3036, 0.0
      %v3073 = vmax.f32 %v3037, 0.0
      %v3074 = vmax.f32 %v3038, 0.0
      %v3075 = vmax.f32 %v3039, 0.0
      %v3076 = vld [vmem:[%s207] sm:$0xf]
      %v3077 = vld [vmem:[%s207 + $0x4] sm:$0xf]
      %v3078 = vld [vmem:[%s207 + $0x8] sm:$0xf]
      %v3079 = vld [vmem:[%s207 + $0xc] sm:$0xf]
      %v3080 = vld [vmem:[%s207 + $0x10] sm:$0xf]
      %v3081 = vld [vmem:[%s207 + $0x14] sm:$0xf]
      %v3082 = vld [vmem:[%s207 + $0x18] sm:$0xf]
      %v3083 = vld [vmem:[%s207 + $0x1c] sm:$0xf]
      %v3084 = vld [vmem:[%s207 + $0x20] sm:$0xf]
      %v3085 = vld [vmem:[%s207 + $0x24] sm:$0xf]
      %v3086 = vld [vmem:[%s207 + $0x28] sm:$0xf]
      %v3087 = vld [vmem:[%s207 + $0x2c] sm:$0xf]
      %v3088 = vld [vmem:[%s207 + $0x30] sm:$0xf]
      %v3089 = vld [vmem:[%s207 + $0x34] sm:$0xf]
      %v3090 = vld [vmem:[%s207 + $0x38] sm:$0xf]
      %v3091 = vld [vmem:[%s207 + $0x3c] sm:$0xf]
      %v3092 = vld [vmem:[%s207 + $0x40] sm:$0xf]
      %v3093 = vld [vmem:[%s207 + $0x44] sm:$0xf]
      %v3094 = vld [vmem:[%s207 + $0x48] sm:$0xf]
      %v3095 = vld [vmem:[%s207 + $0x4c] sm:$0xf]
      %v3096 = vld [vmem:[%s207 + $0x50] sm:$0xf]
      %v3097 = vld [vmem:[%s207 + $0x54] sm:$0xf]
      %v3098 = vld [vmem:[%s207 + $0x58] sm:$0xf]
      %v3099 = vld [vmem:[%s207 + $0x5c] sm:$0xf]
      %v3100 = vld [vmem:[%s207 + $0x60] sm:$0xf]
      %v3101 = vld [vmem:[%s207 + $0x64] sm:$0xf]
      %v3102 = vld [vmem:[%s207 + $0x68] sm:$0xf]
      %v3103 = vld [vmem:[%s207 + $0x6c] sm:$0xf]
      %v3104 = vld [vmem:[%s207 + $0x70] sm:$0xf]
      %v3105 = vld [vmem:[%s207 + $0x74] sm:$0xf]
      %v3106 = vld [vmem:[%s207 + $0x78] sm:$0xf]
      %v3107 = vld [vmem:[%s207 + $0x7c] sm:$0xf]
      %v3108 = vld [vmem:[%s207 + $0x80] sm:$0xf]
      %v3109 = vld [vmem:[%s207 + $0x84] sm:$0xf]
      %v3110 = vld [vmem:[%s207 + $0x88] sm:$0xf]
      %v3111 = vld [vmem:[%s207 + $0x8c] sm:$0xf]
      %v3112 = vunpack.c.l.bf16 %v3076
      %v3113 = vunpack.c.l.bf16 %v3077
      %v3114 = vunpack.c.l.bf16 %v3078
      %v3115 = vunpack.c.l.bf16 %v3079
      %v3116 = vunpack.c.l.bf16 %v3080
      %v3117 = vunpack.c.l.bf16 %v3081
      %v3118 = vunpack.c.l.bf16 %v3082
      %v3119 = vunpack.c.l.bf16 %v3083
      %v3120 = vunpack.c.l.bf16 %v3084
      %v3121 = vunpack.c.l.bf16 %v3085
      %v3122 = vunpack.c.l.bf16 %v3086
      %v3123 = vunpack.c.l.bf16 %v3087
      %v3124 = vunpack.c.l.bf16 %v3088
      %v3125 = vunpack.c.l.bf16 %v3089
      %v3126 = vunpack.c.l.bf16 %v3090
      %v3127 = vunpack.c.l.bf16 %v3091
      %v3128 = vunpack.c.l.bf16 %v3092
      %v3129 = vunpack.c.l.bf16 %v3093
      %v3130 = vunpack.c.l.bf16 %v3094
      %v3131 = vunpack.c.l.bf16 %v3095
      %v3132 = vunpack.c.l.bf16 %v3096
      %v3133 = vunpack.c.l.bf16 %v3097
      %v3134 = vunpack.c.l.bf16 %v3098
      %v3135 = vunpack.c.l.bf16 %v3099
      %v3136 = vunpack.c.l.bf16 %v3100
      %v3137 = vunpack.c.l.bf16 %v3101
      %v3138 = vunpack.c.l.bf16 %v3102
      %v3139 = vunpack.c.l.bf16 %v3103
      %v3140 = vunpack.c.l.bf16 %v3104
      %v3141 = vunpack.c.l.bf16 %v3105
      %v3142 = vunpack.c.l.bf16 %v3106
      %v3143 = vunpack.c.l.bf16 %v3107
      %v3144 = vunpack.c.l.bf16 %v3108
      %v3145 = vunpack.c.l.bf16 %v3109
      %v3146 = vunpack.c.l.bf16 %v3110
      %v3147 = vunpack.c.l.bf16 %v3111
      %3148 = vst.msk [vmem:[%s217] sm:$0xff] %vm509, %v3112
      %3149 = vst.msk [vmem:[%s217 + $0x8] sm:$0xff] %vm509, %v3113
      %3150 = vst.msk [vmem:[%s217 + $0x10] sm:$0xff] %vm509, %v3114
      %3151 = vst.msk [vmem:[%s217 + $0x18] sm:$0xff] %vm509, %v3115
      %3152 = vst.msk [vmem:[%s217 + $0x20] sm:$0xff] %vm509, %v3116
      %3153 = vst.msk [vmem:[%s217 + $0x28] sm:$0xff] %vm509, %v3117
      %3154 = vst.msk [vmem:[%s217 + $0x30] sm:$0xff] %vm509, %v3118
      %3155 = vst.msk [vmem:[%s217 + $0x38] sm:$0xff] %vm509, %v3119
      %3156 = vst.msk [vmem:[%s217 + $0x40] sm:$0xff] %vm509, %v3120
      %3157 = vst.msk [vmem:[%s217 + $0x48] sm:$0xff] %vm509, %v3121
      %3158 = vst.msk [vmem:[%s217 + $0x50] sm:$0xff] %vm509, %v3122
      %3159 = vst.msk [vmem:[%s217 + $0x58] sm:$0xff] %vm509, %v3123
      %3160 = vst.msk [vmem:[%s217 + $0x60] sm:$0xff] %vm509, %v3124
      %3161 = vst.msk [vmem:[%s217 + $0x68] sm:$0xff] %vm509, %v3125
      %3162 = vst.msk [vmem:[%s217 + $0x70] sm:$0xff] %vm509, %v3126
      %3163 = vst.msk [vmem:[%s217 + $0x78] sm:$0xff] %vm509, %v3127
      %3164 = vst.msk [vmem:[%s217 + $0x80] sm:$0xff] %vm509, %v3128
      %3165 = vst.msk [vmem:[%s217 + $0x88] sm:$0xff] %vm509, %v3129
      %3166 = vst.msk [vmem:[%s217 + $0x90] sm:$0xff] %vm509, %v3130
      %3167 = vst.msk [vmem:[%s217 + $0x98] sm:$0xff] %vm509, %v3131
      %3168 = vst.msk [vmem:[%s217 + $0xa0] sm:$0xff] %vm509, %v3132
      %3169 = vst.msk [vmem:[%s217 + $0xa8] sm:$0xff] %vm509, %v3133
      %3170 = vst.msk [vmem:[%s217 + $0xb0] sm:$0xff] %vm509, %v3134
      %3171 = vst.msk [vmem:[%s217 + $0xb8] sm:$0xff] %vm509, %v3135
      %3172 = vst.msk [vmem:[%s217 + $0xc0] sm:$0xff] %vm509, %v3136
      %3173 = vst.msk [vmem:[%s217 + $0xc8] sm:$0xff] %vm509, %v3137
      %3174 = vst.msk [vmem:[%s217 + $0xd0] sm:$0xff] %vm509, %v3138
      %3175 = vst.msk [vmem:[%s217 + $0xd8] sm:$0xff] %vm509, %v3139
      %3176 = vst.msk [vmem:[%s217 + $0xe0] sm:$0xff] %vm509, %v3140
      %3177 = vst.msk [vmem:[%s217 + $0xe8] sm:$0xff] %vm509, %v3141
      %3178 = vst.msk [vmem:[%s217 + $0xf0] sm:$0xff] %vm509, %v3142
      %3179 = vst.msk [vmem:[%s217 + $0xf8] sm:$0xff] %vm509, %v3143
      %3180 = vst.msk [vmem:[%s217 + $0x100] sm:$0xff] %vm509, %v3144
      %3181 = vst.msk [vmem:[%s217 + $0x108] sm:$0xff] %vm509, %v3145
      %3182 = vst.msk [vmem:[%s217 + $0x110] sm:$0xff] %vm509, %v3146
      %3183 = vst.msk [vmem:[%s217 + $0x118] sm:$0xff] %vm509, %v3147
      %s3184 = scalar_lea.vmem %s217, 288
      %3185 = vst.msk [vmem:[%s3184] sm:$0xff] %vm509, %v3040
      %3186 = vst.msk [vmem:[%s3184 + $0x8] sm:$0xff] %vm509, %v3041
      %3187 = vst.msk [vmem:[%s3184 + $0x10] sm:$0xff] %vm509, %v3042
      %3188 = vst.msk [vmem:[%s3184 + $0x18] sm:$0xff] %vm509, %v3043
      %3189 = vst.msk [vmem:[%s3184 + $0x20] sm:$0xff] %vm509, %v3044
      %3190 = vst.msk [vmem:[%s3184 + $0x28] sm:$0xff] %vm509, %v3045
      %3191 = vst.msk [vmem:[%s3184 + $0x30] sm:$0xff] %vm509, %v3046
      %3192 = vst.msk [vmem:[%s3184 + $0x38] sm:$0xff] %vm509, %v3047
      %3193 = vst.msk [vmem:[%s3184 + $0x40] sm:$0xff] %vm509, %v3048
      %3194 = vst.msk [vmem:[%s3184 + $0x48] sm:$0xff] %vm509, %v3049
      %3195 = vst.msk [vmem:[%s3184 + $0x50] sm:$0xff] %vm509, %v3050
      %3196 = vst.msk [vmem:[%s3184 + $0x58] sm:$0xff] %vm509, %v3051
      %3197 = vst.msk [vmem:[%s3184 + $0x60] sm:$0xff] %vm509, %v3052
      %3198 = vst.msk [vmem:[%s3184 + $0x68] sm:$0xff] %vm509, %v3053
      %3199 = vst.msk [vmem:[%s3184 + $0x70] sm:$0xff] %vm509, %v3054
      %3200 = vst.msk [vmem:[%s3184 + $0x78] sm:$0xff] %vm509, %v3055
      %3201 = vst.msk [vmem:[%s3184 + $0x80] sm:$0xff] %vm509, %v3056
      %3202 = vst.msk [vmem:[%s3184 + $0x88] sm:$0xff] %vm509, %v3057
      %3203 = vst.msk [vmem:[%s3184 + $0x90] sm:$0xff] %vm509, %v3058
      %3204 = vst.msk [vmem:[%s3184 + $0x98] sm:$0xff] %vm509, %v3059
      %3205 = vst.msk [vmem:[%s3184 + $0xa0] sm:$0xff] %vm509, %v3060
      %3206 = vst.msk [vmem:[%s3184 + $0xa8] sm:$0xff] %vm509, %v3061
      %3207 = vst.msk [vmem:[%s3184 + $0xb0] sm:$0xff] %vm509, %v3062
      %3208 = vst.msk [vmem:[%s3184 + $0xb8] sm:$0xff] %vm509, %v3063
      %3209 = vst.msk [vmem:[%s3184 + $0xc0] sm:$0xff] %vm509, %v3064
      %3210 = vst.msk [vmem:[%s3184 + $0xc8] sm:$0xff] %vm509, %v3065
      %3211 = vst.msk [vmem:[%s3184 + $0xd0] sm:$0xff] %vm509, %v3066
      %3212 = vst.msk [vmem:[%s3184 + $0xd8] sm:$0xff] %vm509, %v3067
      %3213 = vst.msk [vmem:[%s3184 + $0xe0] sm:$0xff] %vm509, %v3068
      %3214 = vst.msk [vmem:[%s3184 + $0xe8] sm:$0xff] %vm509, %v3069
      %3215 = vst.msk [vmem:[%s3184 + $0xf0] sm:$0xff] %vm509, %v3070
      %3216 = vst.msk [vmem:[%s3184 + $0xf8] sm:$0xff] %vm509, %v3071
      %3217 = vst.msk [vmem:[%s3184 + $0x100] sm:$0xff] %vm509, %v3072
      %3218 = vst.msk [vmem:[%s3184 + $0x108] sm:$0xff] %vm509, %v3073
      %3219 = vst.msk [vmem:[%s3184 + $0x110] sm:$0xff] %vm509, %v3074
      %3220 = vst.msk [vmem:[%s3184 + $0x118] sm:$0xff] %vm509, %v3075
      %p3221 = scmp.lt.s32.totalorder %s15, 1
      %s3222 = scalar_select %p3221, %s15, 1
      %s3223 = smul.addr %s3222, 72
      %s3224 = smul.addr %s3223, 8
      %s3225 = scalar_lea.vmem %s4, %s3224
      // Predicated region
      $region37: #{_lambda_.5} parent=35 // pred_check
        %p3226 = pneg %p127
      $region38: #{_lambda_.5} parent=35 // pred_check_branch
        %3228 = sbr.rel (%p3226) target = $region40
      $region39: #{_lambda_.5} parent=35 // pred_region
        _
      $region40: #{_lambda_.5} parent=35 // pred_fallthru
        _
    $region36: #{_lambda_.5} parent=5 // pred_fallthru
      _
    %p3229 = scmp.le.s32.totalorder 2, %s10
    // Predicated region
    $region41: #{_lambda_.5} parent=5 // pred_check
      %p3230 = pneg %p3229
    $region42: #{_lambda_.5} parent=5 // pred_check_branch
      %3232 = sbr.rel (%p3230) target = $region44
    $region43: #{_lambda_.5} parent=5 // pred_region
      %s3233 = ssub.s32 %s10, 2
      // Predicated region
      $region45: #{_lambda_.5} parent=43 // pred_check
        %p3234 = pneg %p133
      $region46: #{_lambda_.5} parent=43 // pred_check_branch
        %3236 = sbr.rel (%p3234) target = $region48
      $region47: #{_lambda_.5} parent=43 // pred_region
        %p3237 = scmp.lt.s32.totalorder %s16, 1
        %s3238 = scalar_select %p3237, %s16, 1
        %s3239 = smul.addr %s3238, 72
        %s3240 = smul.addr %s3239, 8
        %s3241 = scalar_lea.vmem %s4, %s3240
      $region48: #{_lambda_.5} parent=43 // pred_fallthru
        _
    $region44: #{_lambda_.5} parent=5 // pred_fallthru
      _
  $region6: #{_lambda_.5} parent=0 // loop_footer
    %s14 = sadd.s32 1, %s10
  $region7: #{_lambda_.5} parent=0 // loop_footer_branch
    %9 = sbr.rel target = $region3
  $region8: #{_lambda_.5} parent=0 // loop_exit
    _

// kernel: _lambda_.4
$region0: #{_lambda_.4}
  #allocation0 [shape = 'u32[]', space=smem, size = 0x4, offset = 0x4, fixed_abs, tag = 'smem constant byte address 0x4 - core index']
  #allocation1 [shape = 'u32[72,128]{1,0:T(1,128)}', space=vmem, size = 0x9000, scoped, tag = 'internal scratch']
  %s0 = inlined_call_operand.vmem [shape: bf16[2,342,16], index: 0, kind: input, shape index: {}]
  %s1 = inlined_call_operand.vmem [shape: bf16[9,16,32], index: 1, kind: input, shape index: {}]
  %s2 = inlined_call_operand.vmem [shape: f32[1,32], index: 2, kind: input, shape index: {}]
  %s3 = inlined_call_operand.vmem [shape: f32[288,1], index: 3, kind: input, shape index: {}]
  %s4 = inlined_call_operand.vmem [shape: bf16[2,288,16], index: 4, kind: output, shape index: {0}]
  %s5 = inlined_call_operand.vmem [shape: bf16[2,342,16], index: 5, kind: output, shape index: {1}]
  %6 = xla_tuple %s4, %s5
  %s7 = sld [smem:[#allocation0]]
  $region57: #{_lambda_.4} parent=0
    _
  %s9 = ssub.s32 1, %s7
  %s10 = scalar_select 0, %s9, %s7
  loop: start=0, step=1, limit=4
  $region2: #{_lambda_.4} parent=0 // loop_pre_header
    _
  $region3: #{_lambda_.4} parent=0 // loop_header
    %s12 = sphi 0, %s16
    %p13 = scmp.ge.s32.totalorder %s12, 4
    %s22 = sphi 0, %s24
    %s25 = sphi 0, %s22
    %s26 = sphi 0, %s25
    %s42 = sphi 0, %s26
    %s46 = sphi 0, %s46
    %s48 = sphi 0, %s46
    %s49 = sphi 0, %s48
    %s63 = sphi 0, %s49
    %s67 = sphi 0, %s67
    %s69 = sphi 0, %s67
    %s70 = sphi 0, %s69
    %s84 = sphi 0, %s70
    %s88 = sphi 0, %s88
    %s90 = sphi 0, %s88
    %s91 = sphi 0, %s90
    %s105 = sphi 0, %s91
    %s111 = sphi 0, %s113
    %s114 = sphi 0, %s111
    %s115 = sphi 0, %s114
    %s131 = sphi 0, %s115
    %s137 = sphi 0, %s139
    %s140 = sphi 0, %s137
    %s141 = sphi 0, %s140
    %s157 = sphi 0, %s141
  $region4: #{_lambda_.4} parent=0 // loop_header_branch
    %15 = sbr.rel (%p13) target = $region8
  $region5: #{_lambda_.4} parent=0 // loop_body
    %s17 = ssub.s32 %s12, 1
    %s18 = ssub.s32 %s12, 2
    %s19 = sadd.s32 %s12, 1
    %s20 = ssub.s32 %s12, %s19
    %p21 = scmp.eq.s32.totalorder %s20, 0
    %s23 = sadd.s32 %s22, 1
    %s24 = scalar_select %p21, %s22, %s23
    %p27 = pneg %p21
    %p28 = scmp.eq.s32.totalorder %s12, 1
    %p29 = por %p27, %p28
    %p30 = scmp.ne.s32.totalorder %s22, %s25
    %p31 = scmp.eq.s32.totalorder %s12, 0
    %p32 = por %p30, %p31
    %p33 = scmp.ne.s32.totalorder %s22, %s25
    %p34 = scmp.eq.s32.totalorder %s17, 1
    %p35 = por %p33, %p34
    %p36 = scmp.ne.s32.totalorder %s25, %s26
    %p37 = scmp.eq.s32.totalorder %s17, 0
    %p38 = por %p36, %p37
    %p39 = scmp.ne.s32.totalorder %s25, %s26
    %p40 = scmp.eq.s32.totalorder %s18, 1
    %p41 = por %p39, %p40
    %p43 = scmp.ne.s32.totalorder %s26, %s42
    %p44 = scmp.eq.s32.totalorder %s18, 0
    %p45 = por %p43, %p44
    %s47 = sadd.s32 %s46, 1
    %p50 = scmp.eq.s32.totalorder %s12, 1
    %p51 = scmp.ne.s32.totalorder %s46, %s48
    %p52 = scmp.eq.s32.totalorder %s12, 0
    %p53 = por %p51, %p52
    %p54 = scmp.ne.s32.totalorder %s46, %s48
    %p55 = scmp.eq.s32.totalorder %s17, 1
    %p56 = por %p54, %p55
    %p57 = scmp.ne.s32.totalorder %s48, %s49
    %p58 = scmp.eq.s32.totalorder %s17, 0
    %p59 = por %p57, %p58
    %p60 = scmp.ne.s32.totalorder %s48, %s49
    %p61 = scmp.eq.s32.totalorder %s18, 1
    %p62 = por %p60, %p61
    %p64 = scmp.ne.s32.totalorder %s49, %s63
    %p65 = scmp.eq.s32.totalorder %s18, 0
    %p66 = por %p64, %p65
    %s68 = sadd.s32 %s67, 1
    %p71 = scmp.eq.s32.totalorder %s12, 1
    %p72 = scmp.ne.s32.totalorder %s67, %s69
    %p73 = scmp.eq.s32.totalorder %s12, 0
    %p74 = por %p72, %p73
    %p75 = scmp.ne.s32.totalorder %s67, %s69
    %p76 = scmp.eq.s32.totalorder %s17, 1
    %p77 = por %p75, %p76
    %p78 = scmp.ne.s32.totalorder %s69, %s70
    %p79 = scmp.eq.s32.totalorder %s17, 0
    %p80 = por %p78, %p79
    %p81 = scmp.ne.s32.totalorder %s69, %s70
    %p82 = scmp.eq.s32.totalorder %s18, 1
    %p83 = por %p81, %p82
    %p85 = scmp.ne.s32.totalorder %s70, %s84
    %p86 = scmp.eq.s32.totalorder %s18, 0
    %p87 = por %p85, %p86
    %s89 = sadd.s32 %s88, 1
    %p92 = scmp.eq.s32.totalorder %s12, 1
    %p93 = scmp.ne.s32.totalorder %s88, %s90
    %p94 = scmp.eq.s32.totalorder %s12, 0
    %p95 = por %p93, %p94
    %p96 = scmp.ne.s32.totalorder %s88, %s90
    %p97 = scmp.eq.s32.totalorder %s17, 1
    %p98 = por %p96, %p97
    %p99 = scmp.ne.s32.totalorder %s90, %s91
    %p100 = scmp.eq.s32.totalorder %s17, 0
    %p101 = por %p99, %p100
    %p102 = scmp.ne.s32.totalorder %s90, %s91
    %p103 = scmp.eq.s32.totalorder %s18, 1
    %p104 = por %p102, %p103
    %p106 = scmp.ne.s32.totalorder %s91, %s105
    %p107 = scmp.eq.s32.totalorder %s18, 0
    %p108 = por %p106, %p107
    %s109 = ssub.s32 %s12, %s19
    %p110 = scmp.eq.s32.totalorder %s109, 0
    %s112 = sadd.s32 %s111, 1
    %s113 = scalar_select %p110, %s111, %s112
    %p116 = pneg %p110
    %p117 = scmp.eq.s32.totalorder %s12, 1
    %p118 = por %p116, %p117
    %p119 = scmp.ne.s32.totalorder %s111, %s114
    %p120 = scmp.eq.s32.totalorder %s12, 0
    %p121 = por %p119, %p120
    %p122 = scmp.ne.s32.totalorder %s111, %s114
    %p123 = scmp.eq.s32.totalorder %s17, 1
    %p124 = por %p122, %p123
    %p125 = scmp.ne.s32.totalorder %s114, %s115
    %p126 = scmp.eq.s32.totalorder %s17, 0
    %p127 = por %p125, %p126
    %p128 = scmp.ne.s32.totalorder %s114, %s115
    %p129 = scmp.eq.s32.totalorder %s18, 1
    %p130 = por %p128, %p129
    %p132 = scmp.ne.s32.totalorder %s115, %s131
    %p133 = scmp.eq.s32.totalorder %s18, 0
    %p134 = por %p132, %p133
    %s135 = ssub.s32 %s12, %s19
    %p136 = scmp.eq.s32.totalorder %s135, 0
    %s138 = sadd.s32 %s137, 1
    %s139 = scalar_select %p136, %s137, %s138
    %p142 = pneg %p136
    %p143 = scmp.eq.s32.totalorder %s12, 1
    %p144 = por %p142, %p143
    %p145 = scmp.ne.s32.totalorder %s137, %s140
    %p146 = scmp.eq.s32.totalorder %s12, 0
    %p147 = por %p145, %p146
    %p148 = scmp.ne.s32.totalorder %s137, %s140
    %p149 = scmp.eq.s32.totalorder %s17, 1
    %p150 = por %p148, %p149
    %p151 = scmp.ne.s32.totalorder %s140, %s141
    %p152 = scmp.eq.s32.totalorder %s17, 0
    %p153 = por %p151, %p152
    %p154 = scmp.ne.s32.totalorder %s140, %s141
    %p155 = scmp.eq.s32.totalorder %s18, 1
    %p156 = por %p154, %p155
    %p158 = scmp.ne.s32.totalorder %s141, %s157
    %p159 = scmp.eq.s32.totalorder %s18, 0
    %p160 = por %p158, %p159
    %p161 = scmp.le.s32.totalorder 1, %s12
    %p162 = scmp.lt.s32.totalorder %s12, 3
    %p163 = pnand %p161, %p162
    %p164 = pneg %p163
    // Predicated region
    $region9: #{_lambda_.4} parent=5 // pred_check
      _
    $region10: #{_lambda_.4} parent=5 // pred_check_branch
      %166 = sbr.rel (%p163) target = $region12
    $region11: #{_lambda_.4} parent=5 // pred_region
      %s167 = ssub.s32 %s12, 1
      // Predicated region
      $region13: #{_lambda_.4} parent=11 // pred_check
        %p168 = pneg %p59
      $region14: #{_lambda_.4} parent=11 // pred_check_branch
        %170 = sbr.rel (%p168) target = $region16
      $region15: #{_lambda_.4} parent=11 // pred_region
        _
      $region16: #{_lambda_.4} parent=11 // pred_fallthru
        _
      // Predicated region
      $region17: #{_lambda_.4} parent=11 // pred_check
        %p171 = pneg %p80
      $region18: #{_lambda_.4} parent=11 // pred_check_branch
        %173 = sbr.rel (%p171) target = $region20
      $region19: #{_lambda_.4} parent=11 // pred_region
        _
      $region20: #{_lambda_.4} parent=11 // pred_fallthru
        _
      // Predicated region
      $region21: #{_lambda_.4} parent=11 // pred_check
        %p174 = pneg %p101
      $region22: #{_lambda_.4} parent=11 // pred_check_branch
        %176 = sbr.rel (%p174) target = $region24
      $region23: #{_lambda_.4} parent=11 // pred_region
        _
      $region24: #{_lambda_.4} parent=11 // pred_fallthru
        _
    $region12: #{_lambda_.4} parent=5 // pred_fallthru
      _
    %p177 = scmp.lt.s32.totalorder %s12, 2
    // Predicated region
    $region25: #{_lambda_.4} parent=5 // pred_check
      %p178 = pneg %p177
    $region26: #{_lambda_.4} parent=5 // pred_check_branch
      %180 = sbr.rel (%p178) target = $region28
    $region27: #{_lambda_.4} parent=5 // pred_region
      // Predicated region
      $region29: #{_lambda_.4} parent=27 // pred_check
        %p181 = pneg %p32
      $region30: #{_lambda_.4} parent=27 // pred_check_branch
        %183 = sbr.rel (%p181) target = $region32
      $region31: #{_lambda_.4} parent=27 // pred_region
        %p184 = scmp.lt.s32.totalorder %s12, 1
        %s185 = scalar_select %p184, %s12, 1
        %s186 = smul.addr %s185, 43
        %s187 = smul.addr %s186, 4
        %s188 = scalar_lea.vmem %s0, %s187
      $region32: #{_lambda_.4} parent=27 // pred_fallthru
        _
    $region28: #{_lambda_.4} parent=5 // pred_fallthru
      _
    %p189 = scmp.le.s32.totalorder 1, %s12
    %p190 = scmp.lt.s32.totalorder %s12, 3
    %p191 = pnand %p189, %p190
    %p192 = pneg %p191
    // Predicated region
    $region33: #{_lambda_.4} parent=5 // pred_check
      _
    $region34: #{_lambda_.4} parent=5 // pred_check_branch
      %194 = sbr.rel (%p191) target = $region36
    $region35: #{_lambda_.4} parent=5 // pred_region
      %s195 = ssub.s32 %s12, 1
      %p196 = scmp.lt.s32.totalorder %s17, 1
      %s197 = scalar_select %p196, %s17, 1
      %s198 = smul.addr %s197, 43
      %s199 = smul.addr %s198, 4
      %s200 = scalar_lea.vmem %s0, %s199
      %p201 = pneg %p38
      %p202 = pneg %p35
      %p203 = pneg %p59
      %p204 = pneg %p56
      %p205 = pneg %p80
      %p206 = pneg %p77
      %p207 = pneg %p101
      %p208 = pneg %p98
      %p209 = pneg %p127
      %p210 = pneg %p124
      %p211 = scmp.lt.s32.totalorder %s17, 1
      %s212 = scalar_select %p211, %s17, 1
      %s213 = smul.addr %s212, 36
      %s214 = smul.addr %s213, 4
      %s215 = scalar_lea.vmem %s4, %s214
      %p216 = pneg %p153
      %p217 = pneg %p150
      %p218 = scmp.lt.s32.totalorder %s17, 1
      %s219 = scalar_select %p218, %s17, 1
      %s220 = smul.addr %s219, 43
      %s221 = smul.addr %s220, 4
      %s222 = scalar_lea.vmem %s5, %s221
      %p223 = scmp.lt.s32.totalorder %s17, 1
      %s224 = scalar_select %p223, %s17, 1
      %s225 = smul.addr %s224, 43
      %s226 = smul.addr %s225, 4
      %s227 = scalar_lea.vmem %s0, %s226
      %p228 = scmp.lt.s32.totalorder %s17, 1
      %s229 = scalar_select %p228, %s17, 1
      %s230 = smul.addr %s229, 36
      %s231 = smul.addr %s230, 4
      %s232 = scalar_lea.vmem %s4, %s231
      %p233 = scmp.lt.s32.totalorder %s17, 1
      %s234 = scalar_select %p233, %s17, 1
      %s235 = smul.addr %s234, 43
      %s236 = smul.addr %s235, 4
      %s237 = scalar_lea.vmem %s5, %s236
      %v239 = vld [vmem:[%s227] sm:$0xf]
      %v240 = vld [vmem:[%s227 + $0x4] sm:$0xf]
      %v241 = vld [vmem:[%s227 + $0x8] sm:$0xf]
      %v242 = vld [vmem:[%s227 + $0xc] sm:$0xf]
      %v243 = vld [vmem:[%s227 + $0x10] sm:$0xf]
      %v244 = vld [vmem:[%s227 + $0x14] sm:$0xf]
      %v245 = vld [vmem:[%s227 + $0x18] sm:$0xf]
      %v246 = vld [vmem:[%s227 + $0x1c] sm:$0xf]
      %v247 = vld [vmem:[%s227 + $0x20] sm:$0xf]
      %v248 = vld [vmem:[%s227 + $0x24] sm:$0xf]
      %v249 = vld [vmem:[%s227 + $0x28] sm:$0xf]
      %v250 = vld [vmem:[%s227 + $0x2c] sm:$0xf]
      %v251 = vld [vmem:[%s227 + $0x30] sm:$0xf]
      %v252 = vld [vmem:[%s227 + $0x34] sm:$0xf]
      %v253 = vld [vmem:[%s227 + $0x38] sm:$0xf]
      %v254 = vld [vmem:[%s227 + $0x3c] sm:$0xf]
      %v255 = vld [vmem:[%s227 + $0x40] sm:$0xf]
      %v256 = vld [vmem:[%s227 + $0x44] sm:$0xf]
      %v257 = vld [vmem:[%s227 + $0x48] sm:$0xf]
      %v258 = vld [vmem:[%s227 + $0x4c] sm:$0xf]
      %v259 = vld [vmem:[%s227 + $0x50] sm:$0xf]
      %v260 = vld [vmem:[%s227 + $0x54] sm:$0xf]
      %v261 = vld [vmem:[%s227 + $0x58] sm:$0xf]
      %v262 = vld [vmem:[%s227 + $0x5c] sm:$0xf]
      %v263 = vld [vmem:[%s227 + $0x60] sm:$0xf]
      %v264 = vld [vmem:[%s227 + $0x64] sm:$0xf]
      %v265 = vld [vmem:[%s227 + $0x68] sm:$0xf]
      %v266 = vld [vmem:[%s227 + $0x6c] sm:$0xf]
      %v267 = vld [vmem:[%s227 + $0x70] sm:$0xf]
      %v268 = vld [vmem:[%s227 + $0x74] sm:$0xf]
      %v269 = vld [vmem:[%s227 + $0x78] sm:$0xf]
      %v270 = vld [vmem:[%s227 + $0x7c] sm:$0xf]
      %v271 = vld [vmem:[%s227 + $0x80] sm:$0xf]
      %v272 = vld [vmem:[%s227 + $0x84] sm:$0xf]
      %v273 = vld [vmem:[%s227 + $0x88] sm:$0xf]
      %v274 = vld [vmem:[%s227 + $0x8c] sm:$0xf]
      %v275 = vld [vmem:[%s1] sm:$0xf]
      %v276 = vld [vmem:[%s1 + $0x4] sm:$0xf]
      %v277 = vld [vmem:[%s227 + $0x90] sm:$0x1]
      %s278 = scalar_lea.vmem %s1, 8
      %v279 = vld [vmem:[%s278] sm:$0xf]
      %v280 = vld [vmem:[%s278 + $0x4] sm:$0xf]
      %v318 = vunpack.c.l.b16 %v239
      %v319 = vunpack.c.l.b16 %v240
      %v320 = vunpack.c.l.b16 %v241
      %v321 = vunpack.c.l.b16 %v242
      %v322 = vunpack.c.l.b16 %v243
      %v323 = vunpack.c.l.b16 %v244
      %v324 = vunpack.c.l.b16 %v245
      %v325 = vunpack.c.l.b16 %v246
      %v326 = vunpack.c.l.b16 %v247
      %v327 = vunpack.c.l.b16 %v248
      %v328 = vunpack.c.l.b16 %v249
      %v329 = vunpack.c.l.b16 %v250
      %v330 = vunpack.c.l.b16 %v251
      %v331 = vunpack.c.l.b16 %v252
      %v332 = vunpack.c.l.b16 %v253
      %v333 = vunpack.c.l.b16 %v254
      %v334 = vunpack.c.l.b16 %v255
      %v335 = vunpack.c.l.b16 %v256
      %v336 = vunpack.c.l.b16 %v257
      %v337 = vunpack.c.l.b16 %v258
      %v338 = vunpack.c.l.b16 %v259
      %v339 = vunpack.c.l.b16 %v260
      %v340 = vunpack.c.l.b16 %v261
      %v341 = vunpack.c.l.b16 %v262
      %v342 = vunpack.c.l.b16 %v263
      %v343 = vunpack.c.l.b16 %v264
      %v344 = vunpack.c.l.b16 %v265
      %v345 = vunpack.c.l.b16 %v266
      %v346 = vunpack.c.l.b16 %v267
      %v347 = vunpack.c.l.b16 %v268
      %v348 = vunpack.c.l.b16 %v269
      %v349 = vunpack.c.l.b16 %v270
      %v350 = vunpack.c.l.b16 %v271
      %v351 = vunpack.c.l.b16 %v272
      %v352 = vunpack.c.l.b16 %v273
      %v353 = vunpack.c.l.b16 %v274
      %v354 = vunpack.c.l.b16 %v277
      %v355 = vpack.c.b16 %v319, %v318
      %v356 = vpack.c.b16 %v321, %v320
      %v357 = vpack.c.b16 %v323, %v322
      %v358 = vpack.c.b16 %v325, %v324
      %v359 = vpack.c.b16 %v327, %v326
      %v360 = vpack.c.b16 %v329, %v328
      %v361 = vpack.c.b16 %v331, %v330
      %v362 = vpack.c.b16 %v333, %v332
      %v363 = vpack.c.b16 %v335, %v334
      %v364 = vpack.c.b16 %v337, %v336
      %v365 = vpack.c.b16 %v339, %v338
      %v366 = vpack.c.b16 %v341, %v340
      %v367 = vpack.c.b16 %v343, %v342
      %v368 = vpack.c.b16 %v345, %v344
      %v369 = vpack.c.b16 %v347, %v346
      %v370 = vpack.c.b16 %v349, %v348
      %v371 = vpack.c.b16 %v351, %v350
      %v372 = vpack.c.b16 %v353, %v352
      %v373 = vpack.c.b16 %v354, %v354
      %vm374 = vsmask.f32 7424
      %v376 = vshrl.u32 %v355, 16
      %v378 = vshll.u32 %v355, 16
      %v380 = vrot.slane %v378, 1
      %v381 = vor.u32 %v376, %v380
      %v383 = vshll.u32 %v356, 16
      %v385 = vrot.slane %v383, 1
      %v386 = vsel %vm374, %v381, %v385
      %v387 = vshrl.u32 %v356, 16
      %v389 = vor.u32 %v387, %v385
      %v391 = vshll.u32 %v357, 16
      %v393 = vrot.slane %v391, 1
      %v394 = vsel %vm374, %v389, %v393
      %v395 = vshrl.u32 %v357, 16
      %v397 = vor.u32 %v395, %v393
      %v399 = vshll.u32 %v358, 16
      %v401 = vrot.slane %v399, 1
      %v402 = vsel %vm374, %v397, %v401
      %v403 = vshrl.u32 %v358, 16
      %v405 = vor.u32 %v403, %v401
      %v407 = vshll.u32 %v359, 16
      %v409 = vrot.slane %v407, 1
      %v410 = vsel %vm374, %v405, %v409
      %v411 = vshrl.u32 %v359, 16
      %v413 = vor.u32 %v411, %v409
      %v415 = vshll.u32 %v360, 16
      %v417 = vrot.slane %v415, 1
      %v418 = vsel %vm374, %v413, %v417
      %v419 = vshrl.u32 %v360, 16
      %v421 = vor.u32 %v419, %v417
      %v423 = vshll.u32 %v361, 16
      %v425 = vrot.slane %v423, 1
      %v426 = vsel %vm374, %v421, %v425
      %v427 = vshrl.u32 %v361, 16
      %v429 = vor.u32 %v427, %v425
      %v431 = vshll.u32 %v362, 16
      %v433 = vrot.slane %v431, 1
      %v434 = vsel %vm374, %v429, %v433
      %v435 = vshrl.u32 %v362, 16
      %v437 = vor.u32 %v435, %v433
      %v439 = vshll.u32 %v363, 16
      %v441 = vrot.slane %v439, 1
      %v442 = vsel %vm374, %v437, %v441
      %v443 = vshrl.u32 %v363, 16
      %v445 = vor.u32 %v443, %v441
      %v447 = vshll.u32 %v364, 16
      %v449 = vrot.slane %v447, 1
      %v450 = vsel %vm374, %v445, %v449
      %v451 = vshrl.u32 %v364, 16
      %v453 = vor.u32 %v451, %v449
      %v455 = vshll.u32 %v365, 16
      %v457 = vrot.slane %v455, 1
      %v458 = vsel %vm374, %v453, %v457
      %v459 = vshrl.u32 %v365, 16
      %v461 = vor.u32 %v459, %v457
      %v463 = vshll.u32 %v366, 16
      %v465 = vrot.slane %v463, 1
      %v466 = vsel %vm374, %v461, %v465
      %v467 = vshrl.u32 %v366, 16
      %v469 = vor.u32 %v467, %v465
      %v471 = vshll.u32 %v367, 16
      %v473 = vrot.slane %v471, 1
      %v474 = vsel %vm374, %v469, %v473
      %v475 = vshrl.u32 %v367, 16
      %v477 = vor.u32 %v475, %v473
      %v479 = vshll.u32 %v368, 16
      %v481 = vrot.slane %v479, 1
      %v482 = vsel %vm374, %v477, %v481
      %v483 = vshrl.u32 %v368, 16
      %v485 = vor.u32 %v483, %v481
      %v487 = vshll.u32 %v369, 16
      %v489 = vrot.slane %v487, 1
      %v490 = vsel %vm374, %v485, %v489
      %v491 = vshrl.u32 %v369, 16
      %v493 = vor.u32 %v491, %v489
      %v495 = vshll.u32 %v370, 16
      %v497 = vrot.slane %v495, 1
      %v498 = vsel %vm374, %v493, %v497
      %v499 = vshrl.u32 %v370, 16
      %v501 = vor.u32 %v499, %v497
      %v503 = vshll.u32 %v371, 16
      %v505 = vrot.slane %v503, 1
      %v506 = vsel %vm374, %v501, %v505
      %v507 = vshrl.u32 %v371, 16
      %v509 = vor.u32 %v507, %v505
      %v511 = vshll.u32 %v372, 16
      %v513 = vrot.slane %v511, 1
      %v514 = vsel %vm374, %v509, %v513
      %v515 = vshrl.u32 %v372, 16
      %v517 = vor.u32 %v515, %v513
      %v519 = vshll.u32 %v373, 16
      %v521 = vrot.slane %v519, 1
      %v522 = vsel %vm374, %v517, %v521
      %v525 = vunpack.c.l.b16 %v279
      %v526 = vunpack.c.l.b16 %v280
      %v527 = vpack.c.b16 %v526, %v525
      %vm529 = vcmask 130048
      %v531 = vsel %vm529, %v386, 0
      %v534 = vsel %vm529, %v394, 0
      %v537 = vsel %vm529, %v402, 0
      %v540 = vsel %vm529, %v410, 0
      %v543 = vsel %vm529, %v418, 0
      %v546 = vsel %vm529, %v426, 0
      %v549 = vsel %vm529, %v434, 0
      %v552 = vsel %vm529, %v442, 0
      %v555 = vsel %vm529, %v450, 0
      %v558 = vsel %vm529, %v458, 0
      %v561 = vsel %vm529, %v466, 0
      %v564 = vsel %vm529, %v474, 0
      %v567 = vsel %vm529, %v482, 0
      %v570 = vsel %vm529, %v490, 0
      %v573 = vsel %vm529, %v498, 0
      %v576 = vsel %vm529, %v506, 0
      %v579 = vsel %vm529, %v514, 0
      %v582 = vsel %vm529, %v522, 0
      %584 = vmatpush.bf16.msra.mxu0 0
      %585 = vmatpush.bf16.msra.mxu0 0
      %586 = vmatpush.bf16.msra.mxu0 0
      %587 = vmatpush.bf16.msra.mxu0 0
      %588 = vmatpush.bf16.msra.mxu0 0
      %589 = vmatpush.bf16.msra.mxu0 0
      %590 = vmatpush.bf16.msra.mxu0 0
      %591 = vmatpush.bf16.msra.mxu0 %v527
      %592 = vmatmul.bf16.gmra.mxu0 %v531
      %v593 = vpop.f32.mrf.mxu0
      %v594 = vadd.f32 0.0, %v593
      %v595 = vpop.f32.mrf.mxu0
      %v596 = vadd.f32 0.0, %v595
      %597 = vmatmul.bf16.gmra.mxu0 %v534
      %v598 = vpop.f32.mrf.mxu0
      %v599 = vadd.f32 0.0, %v598
      %v600 = vpop.f32.mrf.mxu0
      %v601 = vadd.f32 0.0, %v600
      %602 = vmatmul.bf16.gmra.mxu0 %v537
      %v603 = vpop.f32.mrf.mxu0
      %v604 = vadd.f32 0.0, %v603
      %v605 = vpop.f32.mrf.mxu0
      %v606 = vadd.f32 0.0, %v605
      %607 = vmatmul.bf16.gmra.mxu0 %v540
      %v608 = vpop.f32.mrf.mxu0
      %v609 = vadd.f32 0.0, %v608
      %v610 = vpop.f32.mrf.mxu0
      %v611 = vadd.f32 0.0, %v610
      %612 = vmatmul.bf16.gmra.mxu0 %v543
      %v613 = vpop.f32.mrf.mxu0
      %v614 = vadd.f32 0.0, %v613
      %v615 = vpop.f32.mrf.mxu0
      %v616 = vadd.f32 0.0, %v615
      %617 = vmatmul.bf16.gmra.mxu0 %v546
      %v618 = vpop.f32.mrf.mxu0
      %v619 = vadd.f32 0.0, %v618
      %v620 = vpop.f32.mrf.mxu0
      %v621 = vadd.f32 0.0, %v620
      %622 = vmatmul.bf16.gmra.mxu0 %v549
      %v623 = vpop.f32.mrf.mxu0
      %v624 = vadd.f32 0.0, %v623
      %v625 = vpop.f32.mrf.mxu0
      %v626 = vadd.f32 0.0, %v625
      %627 = vmatmul.bf16.gmra.mxu0 %v552
      %v628 = vpop.f32.mrf.mxu0
      %v629 = vadd.f32 0.0, %v628
      %v630 = vpop.f32.mrf.mxu0
      %v631 = vadd.f32 0.0, %v630
      %632 = vmatmul.bf16.gmra.mxu0 %v555
      %v633 = vpop.f32.mrf.mxu0
      %v634 = vadd.f32 0.0, %v633
      %v635 = vpop.f32.mrf.mxu0
      %v636 = vadd.f32 0.0, %v635
      %637 = vmatmul.bf16.gmra.mxu0 %v558
      %v638 = vpop.f32.mrf.mxu0
      %v639 = vadd.f32 0.0, %v638
      %v640 = vpop.f32.mrf.mxu0
      %v641 = vadd.f32 0.0, %v640
      %642 = vmatmul.bf16.gmra.mxu0 %v561
      %v643 = vpop.f32.mrf.mxu0
      %v644 = vadd.f32 0.0, %v643
      %v645 = vpop.f32.mrf.mxu0
      %v646 = vadd.f32 0.0, %v645
      %647 = vmatmul.bf16.gmra.mxu0 %v564
      %v648 = vpop.f32.mrf.mxu0
      %v649 = vadd.f32 0.0, %v648
      %v650 = vpop.f32.mrf.mxu0
      %v651 = vadd.f32 0.0, %v650
      %652 = vmatmul.bf16.gmra.mxu0 %v567
      %v653 = vpop.f32.mrf.mxu0
      %v654 = vadd.f32 0.0, %v653
      %v655 = vpop.f32.mrf.mxu0
      %v656 = vadd.f32 0.0, %v655
      %657 = vmatmul.bf16.gmra.mxu0 %v570
      %v658 = vpop.f32.mrf.mxu0
      %v659 = vadd.f32 0.0, %v658
      %v660 = vpop.f32.mrf.mxu0
      %v661 = vadd.f32 0.0, %v660
      %662 = vmatmul.bf16.gmra.mxu0 %v573
      %v663 = vpop.f32.mrf.mxu0
      %v664 = vadd.f32 0.0, %v663
      %v665 = vpop.f32.mrf.mxu0
      %v666 = vadd.f32 0.0, %v665
      %667 = vmatmul.bf16.gmra.mxu0 %v576
      %v668 = vpop.f32.mrf.mxu0
      %v669 = vadd.f32 0.0, %v668
      %v670 = vpop.f32.mrf.mxu0
      %v671 = vadd.f32 0.0, %v670
      %672 = vmatmul.bf16.gmra.mxu0 %v579
      %v673 = vpop.f32.mrf.mxu0
      %v674 = vadd.f32 0.0, %v673
      %v675 = vpop.f32.mrf.mxu0
      %v676 = vadd.f32 0.0, %v675
      %677 = vmatmul.bf16.gmra.mxu0 %v582
      %v678 = vpop.f32.mrf.mxu0
      %v679 = vadd.f32 0.0, %v678
      %v680 = vpop.f32.mrf.mxu0
      %v681 = vadd.f32 0.0, %v680
      %682 = vdwg.mxu0
      %v685 = vunpack.c.l.b16 %v275
      %v686 = vunpack.c.l.b16 %v276
      %v687 = vpack.c.b16 %v686, %v685
      %v689 = vsel %vm529, %v355, 0
      %v691 = vsel %vm529, %v356, 0
      %v693 = vsel %vm529, %v357, 0
      %v695 = vsel %vm529, %v358, 0
      %v697 = vsel %vm529, %v359, 0
      %v699 = vsel %vm529, %v360, 0
      %v701 = vsel %vm529, %v361, 0
      %v703 = vsel %vm529, %v362, 0
      %v705 = vsel %vm529, %v363, 0
      %v707 = vsel %vm529, %v364, 0
      %v709 = vsel %vm529, %v365, 0
      %v711 = vsel %vm529, %v366, 0
      %v713 = vsel %vm529, %v367, 0
      %v715 = vsel %vm529, %v368, 0
      %v717 = vsel %vm529, %v369, 0
      %v719 = vsel %vm529, %v370, 0
      %v721 = vsel %vm529, %v371, 0
      %v723 = vsel %vm529, %v372, 0
      %725 = vmatpush.bf16.msra.mxu0 0
      %726 = vmatpush.bf16.msra.mxu0 0
      %727 = vmatpush.bf16.msra.mxu0 0
      %728 = vmatpush.bf16.msra.mxu0 0
      %729 = vmatpush.bf16.msra.mxu0 0
      %730 = vmatpush.bf16.msra.mxu0 0
      %731 = vmatpush.bf16.msra.mxu0 0
      %732 = vmatpush.bf16.msra.mxu0 %v687
      %733 = vmatmul.bf16.gmra.mxu0 %v689
      %v734 = vpop.f32.mrf.mxu0
      %v735 = vadd.f32 %v594, %v734
      %v736 = vpop.f32.mrf.mxu0
      %v737 = vadd.f32 %v596, %v736
      %738 = vmatmul.bf16.gmra.mxu0 %v691
      %v739 = vpop.f32.mrf.mxu0
      %v740 = vadd.f32 %v599, %v739
      %v741 = vpop.f32.mrf.mxu0
      %v742 = vadd.f32 %v601, %v741
      %743 = vmatmul.bf16.gmra.mxu0 %v693
      %v744 = vpop.f32.mrf.mxu0
      %v745 = vadd.f32 %v604, %v744
      %v746 = vpop.f32.mrf.mxu0
      %v747 = vadd.f32 %v606, %v746
      %748 = vmatmul.bf16.gmra.mxu0 %v695
      %v749 = vpop.f32.mrf.mxu0
      %v750 = vadd.f32 %v609, %v749
      %v751 = vpop.f32.mrf.mxu0
      %v752 = vadd.f32 %v611, %v751
      %753 = vmatmul.bf16.gmra.mxu0 %v697
      %v754 = vpop.f32.mrf.mxu0
      %v755 = vadd.f32 %v614, %v754
      %v756 = vpop.f32.mrf.mxu0
      %v757 = vadd.f32 %v616, %v756
      %758 = vmatmul.bf16.gmra.mxu0 %v699
      %v759 = vpop.f32.mrf.mxu0
      %v760 = vadd.f32 %v619, %v759
      %v761 = vpop.f32.mrf.mxu0
      %v762 = vadd.f32 %v621, %v761
      %763 = vmatmul.bf16.gmra.mxu0 %v701
      %v764 = vpop.f32.mrf.mxu0
      %v765 = vadd.f32 %v624, %v764
      %v766 = vpop.f32.mrf.mxu0
      %v767 = vadd.f32 %v626, %v766
      %768 = vmatmul.bf16.gmra.mxu0 %v703
      %v769 = vpop.f32.mrf.mxu0
      %v770 = vadd.f32 %v629, %v769
      %v771 = vpop.f32.mrf.mxu0
      %v772 = vadd.f32 %v631, %v771
      %773 = vmatmul.bf16.gmra.mxu0 %v705
      %v774 = vpop.f32.mrf.mxu0
      %v775 = vadd.f32 %v634, %v774
      %v776 = vpop.f32.mrf.mxu0
      %v777 = vadd.f32 %v636, %v776
      %778 = vmatmul.bf16.gmra.mxu0 %v707
      %v779 = vpop.f32.mrf.mxu0
      %v780 = vadd.f32 %v639, %v779
      %v781 = vpop.f32.mrf.mxu0
      %v782 = vadd.f32 %v641, %v781
      %783 = vmatmul.bf16.gmra.mxu0 %v709
      %v784 = vpop.f32.mrf.mxu0
      %v785 = vadd.f32 %v644, %v784
      %v786 = vpop.f32.mrf.mxu0
      %v787 = vadd.f32 %v646, %v786
      %788 = vmatmul.bf16.gmra.mxu0 %v711
      %v789 = vpop.f32.mrf.mxu0
      %v790 = vadd.f32 %v649, %v789
      %v791 = vpop.f32.mrf.mxu0
      %v792 = vadd.f32 %v651, %v791
      %793 = vmatmul.bf16.gmra.mxu0 %v713
      %v794 = vpop.f32.mrf.mxu0
      %v795 = vadd.f32 %v654, %v794
      %v796 = vpop.f32.mrf.mxu0
      %v797 = vadd.f32 %v656, %v796
      %798 = vmatmul.bf16.gmra.mxu0 %v715
      %v799 = vpop.f32.mrf.mxu0
      %v800 = vadd.f32 %v659, %v799
      %v801 = vpop.f32.mrf.mxu0
      %v802 = vadd.f32 %v661, %v801
      %803 = vmatmul.bf16.gmra.mxu0 %v717
      %v804 = vpop.f32.mrf.mxu0
      %v805 = vadd.f32 %v664, %v804
      %v806 = vpop.f32.mrf.mxu0
      %v807 = vadd.f32 %v666, %v806
      %808 = vmatmul.bf16.gmra.mxu0 %v719
      %v809 = vpop.f32.mrf.mxu0
      %v810 = vadd.f32 %v669, %v809
      %v811 = vpop.f32.mrf.mxu0
      %v812 = vadd.f32 %v671, %v811
      %813 = vmatmul.bf16.gmra.mxu0 %v721
      %v814 = vpop.f32.mrf.mxu0
      %v815 = vadd.f32 %v674, %v814
      %v816 = vpop.f32.mrf.mxu0
      %v817 = vadd.f32 %v676, %v816
      %818 = vmatmul.bf16.gmra.mxu0 %v723
      %v819 = vpop.f32.mrf.mxu0
      %v820 = vadd.f32 %v679, %v819
      %v821 = vpop.f32.mrf.mxu0
      %v822 = vadd.f32 %v681, %v821
      %823 = vdwg.mxu0
      %v824 = vld [vmem:[%s227] sm:$0xe]
      %s825 = scalar_lea.vmem %s1, 16
      %v826 = vld [vmem:[%s825] sm:$0xf]
      %v827 = vld [vmem:[%s825 + $0x4] sm:$0xf]
      %v829 = vunpack.c.l.b16 %v824
      %v830 = vpack.c.b16 %v319, %v829
      %vm831 = vcmask 1046528
      %v832 = vrot.slane %v830, 1
      %v833 = vrot.slane %v356, 1
      %v834 = vsel %vm831, %v832, %v833
      %v835 = vrot.slane %v357, 1
      %v836 = vsel %vm831, %v833, %v835
      %v837 = vrot.slane %v358, 1
      %v838 = vsel %vm831, %v835, %v837
      %v839 = vrot.slane %v359, 1
      %v840 = vsel %vm831, %v837, %v839
      %v841 = vrot.slane %v360, 1
      %v842 = vsel %vm831, %v839, %v841
      %v843 = vrot.slane %v361, 1
      %v844 = vsel %vm831, %v841, %v843
      %v845 = vrot.slane %v362, 1
      %v846 = vsel %vm831, %v843, %v845
      %v847 = vrot.slane %v363, 1
      %v848 = vsel %vm831, %v845, %v847
      %v849 = vrot.slane %v364, 1
      %v850 = vsel %vm831, %v847, %v849
      %v851 = vrot.slane %v365, 1
      %v852 = vsel %vm831, %v849, %v851
      %v853 = vrot.slane %v366, 1
      %v854 = vsel %vm831, %v851, %v853
      %v855 = vrot.slane %v367, 1
      %v856 = vsel %vm831, %v853, %v855
      %v857 = vrot.slane %v368, 1
      %v858 = vsel %vm831, %v855, %v857
      %v859 = vrot.slane %v369, 1
      %v860 = vsel %vm831, %v857, %v859
      %v861 = vrot.slane %v370, 1
      %v862 = vsel %vm831, %v859, %v861
      %v863 = vrot.slane %v371, 1
      %v864 = vsel %vm831, %v861, %v863
      %v865 = vrot.slane %v372, 1
      %v866 = vsel %vm831, %v863, %v865
      %v867 = vrot.slane %v373, 1
      %v868 = vsel %vm831, %v865, %v867
      %v871 = vunpack.c.l.b16 %v826
      %v872 = vunpack.c.l.b16 %v827
      %v873 = vpack.c.b16 %v872, %v871
      %v876 = vsel %vm529, %v834, 0
      %v879 = vsel %vm529, %v836, 0
      %v882 = vsel %vm529, %v838, 0
      %v885 = vsel %vm529, %v840, 0
      %v888 = vsel %vm529, %v842, 0
      %v891 = vsel %vm529, %v844, 0
      %v894 = vsel %vm529, %v846, 0
      %v897 = vsel %vm529, %v848, 0
      %v900 = vsel %vm529, %v850, 0
      %v903 = vsel %vm529, %v852, 0
      %v906 = vsel %vm529, %v854, 0
      %v909 = vsel %vm529, %v856, 0
      %v912 = vsel %vm529, %v858, 0
      %v915 = vsel %vm529, %v860, 0
      %v918 = vsel %vm529, %v862, 0
      %v921 = vsel %vm529, %v864, 0
      %v924 = vsel %vm529, %v866, 0
      %v927 = vsel %vm529, %v868, 0
      %929 = vmatpush.bf16.msra.mxu0 0
      %930 = vmatpush.bf16.msra.mxu0 0
      %931 = vmatpush.bf16.msra.mxu0 0
      %932 = vmatpush.bf16.msra.mxu0 0
      %933 = vmatpush.bf16.msra.mxu0 0
      %934 = vmatpush.bf16.msra.mxu0 0
      %935 = vmatpush.bf16.msra.mxu0 0
      %936 = vmatpush.bf16.msra.mxu0 %v873
      %937 = vmatmul.bf16.gmra.mxu0 %v876
      %v938 = vpop.f32.mrf.mxu0
      %v939 = vadd.f32 0.0, %v938
      %v940 = vpop.f32.mrf.mxu0
      %v941 = vadd.f32 0.0, %v940
      %942 = vmatmul.bf16.gmra.mxu0 %v879
      %v943 = vpop.f32.mrf.mxu0
      %v944 = vadd.f32 0.0, %v943
      %v945 = vpop.f32.mrf.mxu0
      %v946 = vadd.f32 0.0, %v945
      %947 = vmatmul.bf16.gmra.mxu0 %v882
      %v948 = vpop.f32.mrf.mxu0
      %v949 = vadd.f32 0.0, %v948
      %v950 = vpop.f32.mrf.mxu0
      %v951 = vadd.f32 0.0, %v950
      %952 = vmatmul.bf16.gmra.mxu0 %v885
      %v953 = vpop.f32.mrf.mxu0
      %v954 = vadd.f32 0.0, %v953
      %v955 = vpop.f32.mrf.mxu0
      %v956 = vadd.f32 0.0, %v955
      %957 = vmatmul.bf16.gmra.mxu0 %v888
      %v958 = vpop.f32.mrf.mxu0
      %v959 = vadd.f32 0.0, %v958
      %v960 = vpop.f32.mrf.mxu0
      %v961 = vadd.f32 0.0, %v960
      %962 = vmatmul.bf16.gmra.mxu0 %v891
      %v963 = vpop.f32.mrf.mxu0
      %v964 = vadd.f32 0.0, %v963
      %v965 = vpop.f32.mrf.mxu0
      %v966 = vadd.f32 0.0, %v965
      %967 = vmatmul.bf16.gmra.mxu0 %v894
      %v968 = vpop.f32.mrf.mxu0
      %v969 = vadd.f32 0.0, %v968
      %v970 = vpop.f32.mrf.mxu0
      %v971 = vadd.f32 0.0, %v970
      %972 = vmatmul.bf16.gmra.mxu0 %v897
      %v973 = vpop.f32.mrf.mxu0
      %v974 = vadd.f32 0.0, %v973
      %v975 = vpop.f32.mrf.mxu0
      %v976 = vadd.f32 0.0, %v975
      %977 = vmatmul.bf16.gmra.mxu0 %v900
      %v978 = vpop.f32.mrf.mxu0
      %v979 = vadd.f32 0.0, %v978
      %v980 = vpop.f32.mrf.mxu0
      %v981 = vadd.f32 0.0, %v980
      %982 = vmatmul.bf16.gmra.mxu0 %v903
      %v983 = vpop.f32.mrf.mxu0
      %v984 = vadd.f32 0.0, %v983
      %v985 = vpop.f32.mrf.mxu0
      %v986 = vadd.f32 0.0, %v985
      %987 = vmatmul.bf16.gmra.mxu0 %v906
      %v988 = vpop.f32.mrf.mxu0
      %v989 = vadd.f32 0.0, %v988
      %v990 = vpop.f32.mrf.mxu0
      %v991 = vadd.f32 0.0, %v990
      %992 = vmatmul.bf16.gmra.mxu0 %v909
      %v993 = vpop.f32.mrf.mxu0
      %v994 = vadd.f32 0.0, %v993
      %v995 = vpop.f32.mrf.mxu0
      %v996 = vadd.f32 0.0, %v995
      %997 = vmatmul.bf16.gmra.mxu0 %v912
      %v998 = vpop.f32.mrf.mxu0
      %v999 = vadd.f32 0.0, %v998
      %v1000 = vpop.f32.mrf.mxu0
      %v1001 = vadd.f32 0.0, %v1000
      %1002 = vmatmul.bf16.gmra.mxu0 %v915
      %v1003 = vpop.f32.mrf.mxu0
      %v1004 = vadd.f32 0.0, %v1003
      %v1005 = vpop.f32.mrf.mxu0
      %v1006 = vadd.f32 0.0, %v1005
      %1007 = vmatmul.bf16.gmra.mxu0 %v918
      %v1008 = vpop.f32.mrf.mxu0
      %v1009 = vadd.f32 0.0, %v1008
      %v1010 = vpop.f32.mrf.mxu0
      %v1011 = vadd.f32 0.0, %v1010
      %1012 = vmatmul.bf16.gmra.mxu0 %v921
      %v1013 = vpop.f32.mrf.mxu0
      %v1014 = vadd.f32 0.0, %v1013
      %v1015 = vpop.f32.mrf.mxu0
      %v1016 = vadd.f32 0.0, %v1015
      %1017 = vmatmul.bf16.gmra.mxu0 %v924
      %v1018 = vpop.f32.mrf.mxu0
      %v1019 = vadd.f32 0.0, %v1018
      %v1020 = vpop.f32.mrf.mxu0
      %v1021 = vadd.f32 0.0, %v1020
      %1022 = vmatmul.bf16.gmra.mxu0 %v927
      %v1023 = vpop.f32.mrf.mxu0
      %v1024 = vadd.f32 0.0, %v1023
      %v1025 = vpop.f32.mrf.mxu0
      %v1026 = vadd.f32 0.0, %v1025
      %1027 = vdwg.mxu0
      %v1028 = vadd.f32 %v735, %v939
      %v1029 = vadd.f32 %v737, %v941
      %v1030 = vadd.f32 %v740, %v944
      %v1031 = vadd.f32 %v742, %v946
      %v1032 = vadd.f32 %v745, %v949
      %v1033 = vadd.f32 %v747, %v951
      %v1034 = vadd.f32 %v750, %v954
      %v1035 = vadd.f32 %v752, %v956
      %v1036 = vadd.f32 %v755, %v959
      %v1037 = vadd.f32 %v757, %v961
      %v1038 = vadd.f32 %v760, %v964
      %v1039 = vadd.f32 %v762, %v966
      %v1040 = vadd.f32 %v765, %v969
      %v1041 = vadd.f32 %v767, %v971
      %v1042 = vadd.f32 %v770, %v974
      %v1043 = vadd.f32 %v772, %v976
      %v1044 = vadd.f32 %v775, %v979
      %v1045 = vadd.f32 %v777, %v981
      %v1046 = vadd.f32 %v780, %v984
      %v1047 = vadd.f32 %v782, %v986
      %v1048 = vadd.f32 %v785, %v989
      %v1049 = vadd.f32 %v787, %v991
      %v1050 = vadd.f32 %v790, %v994
      %v1051 = vadd.f32 %v792, %v996
      %v1052 = vadd.f32 %v795, %v999
      %v1053 = vadd.f32 %v797, %v1001
      %v1054 = vadd.f32 %v800, %v1004
      %v1055 = vadd.f32 %v802, %v1006
      %v1056 = vadd.f32 %v805, %v1009
      %v1057 = vadd.f32 %v807, %v1011
      %v1058 = vadd.f32 %v810, %v1014
      %v1059 = vadd.f32 %v812, %v1016
      %v1060 = vadd.f32 %v815, %v1019
      %v1061 = vadd.f32 %v817, %v1021
      %v1062 = vadd.f32 %v820, %v1024
      %v1063 = vadd.f32 %v822, %v1026
      %v1064 = vld [vmem:[%s227 + $0x8] sm:$0xe]
      %v1065 = vld [vmem:[%s227 + $0xc] sm:$0xf]
      %v1066 = vld [vmem:[%s227 + $0x10] sm:$0xf]
      %v1067 = vld [vmem:[%s227 + $0x14] sm:$0xf]
      %v1068 = vld [vmem:[%s227 + $0x18] sm:$0xf]
      %v1069 = vld [vmem:[%s227 + $0x1c] sm:$0xf]
      %v1070 = vld [vmem:[%s227 + $0x20] sm:$0xf]
      %v1071 = vld [vmem:[%s227 + $0x24] sm:$0xf]
      %v1072 = vld [vmem:[%s227 + $0x28] sm:$0xf]
      %v1073 = vld [vmem:[%s227 + $0x2c] sm:$0xf]
      %v1074 = vld [vmem:[%s227 + $0x30] sm:$0xf]
      %v1075 = vld [vmem:[%s227 + $0x34] sm:$0xf]
      %v1076 = vld [vmem:[%s227 + $0x38] sm:$0xf]
      %v1077 = vld [vmem:[%s227 + $0x3c] sm:$0xf]
      %v1078 = vld [vmem:[%s227 + $0x40] sm:$0xf]
      %v1079 = vld [vmem:[%s227 + $0x44] sm:$0xf]
      %v1080 = vld [vmem:[%s227 + $0x48] sm:$0xf]
      %v1081 = vld [vmem:[%s227 + $0x4c] sm:$0xf]
      %v1082 = vld [vmem:[%s227 + $0x50] sm:$0xf]
      %v1083 = vld [vmem:[%s227 + $0x54] sm:$0xf]
      %v1084 = vld [vmem:[%s227 + $0x58] sm:$0xf]
      %v1085 = vld [vmem:[%s227 + $0x5c] sm:$0xf]
      %v1086 = vld [vmem:[%s227 + $0x60] sm:$0xf]
      %v1087 = vld [vmem:[%s227 + $0x64] sm:$0xf]
      %v1088 = vld [vmem:[%s227 + $0x68] sm:$0xf]
      %v1089 = vld [vmem:[%s227 + $0x6c] sm:$0xf]
      %v1090 = vld [vmem:[%s227 + $0x70] sm:$0xf]
      %v1091 = vld [vmem:[%s227 + $0x74] sm:$0xf]
      %v1092 = vld [vmem:[%s227 + $0x78] sm:$0xf]
      %v1093 = vld [vmem:[%s227 + $0x7c] sm:$0xf]
      %v1094 = vld [vmem:[%s227 + $0x80] sm:$0xf]
      %v1095 = vld [vmem:[%s227 + $0x84] sm:$0xf]
      %v1096 = vld [vmem:[%s227 + $0x88] sm:$0xf]
      %v1097 = vld [vmem:[%s227 + $0x8c] sm:$0xf]
      %v1098 = vld [vmem:[%s227 + $0x90] sm:$0xf]
      %v1099 = vld [vmem:[%s227 + $0x94] sm:$0xf]
      %v1100 = vld [vmem:[%s227 + $0x98] sm:$0x1]
      %s1101 = scalar_lea.vmem %s1, 24
      %v1102 = vld [vmem:[%s1101] sm:$0xf]
      %v1103 = vld [vmem:[%s1101 + $0x4] sm:$0xf]
      %v1141 = vunpack.c.l.b16 %v1064
      %v1142 = vunpack.c.l.b16 %v1065
      %v1143 = vunpack.c.l.b16 %v1066
      %v1144 = vunpack.c.l.b16 %v1067
      %v1145 = vunpack.c.l.b16 %v1068
      %v1146 = vunpack.c.l.b16 %v1069
      %v1147 = vunpack.c.l.b16 %v1070
      %v1148 = vunpack.c.l.b16 %v1071
      %v1149 = vunpack.c.l.b16 %v1072
      %v1150 = vunpack.c.l.b16 %v1073
      %v1151 = vunpack.c.l.b16 %v1074
      %v1152 = vunpack.c.l.b16 %v1075
      %v1153 = vunpack.c.l.b16 %v1076
      %v1154 = vunpack.c.l.b16 %v1077
      %v1155 = vunpack.c.l.b16 %v1078
      %v1156 = vunpack.c.l.b16 %v1079
      %v1157 = vunpack.c.l.b16 %v1080
      %v1158 = vunpack.c.l.b16 %v1081
      %v1159 = vunpack.c.l.b16 %v1082
      %v1160 = vunpack.c.l.b16 %v1083
      %v1161 = vunpack.c.l.b16 %v1084
      %v1162 = vunpack.c.l.b16 %v1085
      %v1163 = vunpack.c.l.b16 %v1086
      %v1164 = vunpack.c.l.b16 %v1087
      %v1165 = vunpack.c.l.b16 %v1088
      %v1166 = vunpack.c.l.b16 %v1089
      %v1167 = vunpack.c.l.b16 %v1090
      %v1168 = vunpack.c.l.b16 %v1091
      %v1169 = vunpack.c.l.b16 %v1092
      %v1170 = vunpack.c.l.b16 %v1093
      %v1171 = vunpack.c.l.b16 %v1094
      %v1172 = vunpack.c.l.b16 %v1095
      %v1173 = vunpack.c.l.b16 %v1096
      %v1174 = vunpack.c.l.b16 %v1097
      %v1175 = vunpack.c.l.b16 %v1098
      %v1176 = vunpack.c.l.b16 %v1099
      %v1177 = vunpack.c.l.b16 %v1100
      %v1178 = vpack.c.b16 %v1142, %v1141
      %v1179 = vpack.c.b16 %v1144, %v1143
      %v1180 = vpack.c.b16 %v1146, %v1145
      %v1181 = vpack.c.b16 %v1148, %v1147
      %v1182 = vpack.c.b16 %v1150, %v1149
      %v1183 = vpack.c.b16 %v1152, %v1151
      %v1184 = vpack.c.b16 %v1154, %v1153
      %v1185 = vpack.c.b16 %v1156, %v1155
      %v1186 = vpack.c.b16 %v1158, %v1157
      %v1187 = vpack.c.b16 %v1160, %v1159
      %v1188 = vpack.c.b16 %v1162, %v1161
      %v1189 = vpack.c.b16 %v1164, %v1163
      %v1190 = vpack.c.b16 %v1166, %v1165
      %v1191 = vpack.c.b16 %v1168, %v1167
      %v1192 = vpack.c.b16 %v1170, %v1169
      %v1193 = vpack.c.b16 %v1172, %v1171
      %v1194 = vpack.c.b16 %v1174, %v1173
      %v1195 = vpack.c.b16 %v1176, %v1175
      %v1196 = vpack.c.b16 %v1177, %v1177
      %v1197 = vrot.slane %v1178, 1
      %v1198 = vrot.slane %v1179, 1
      %v1199 = vsel %vm831, %v1197, %v1198
      %v1200 = vrot.slane %v1180, 1
      %v1201 = vsel %vm831, %v1198, %v1200
      %v1202 = vrot.slane %v1181, 1
      %v1203 = vsel %vm831, %v1200, %v1202
      %v1204 = vrot.slane %v1182, 1
      %v1205 = vsel %vm831, %v1202, %v1204
      %v1206 = vrot.slane %v1183, 1
      %v1207 = vsel %vm831, %v1204, %v1206
      %v1208 = vrot.slane %v1184, 1
      %v1209 = vsel %vm831, %v1206, %v1208
      %v1210 = vrot.slane %v1185, 1
      %v1211 = vsel %vm831, %v1208, %v1210
      %v1212 = vrot.slane %v1186, 1
      %v1213 = vsel %vm831, %v1210, %v1212
      %v1214 = vrot.slane %v1187, 1
      %v1215 = vsel %vm831, %v1212, %v1214
      %v1216 = vrot.slane %v1188, 1
      %v1217 = vsel %vm831, %v1214, %v1216
      %v1218 = vrot.slane %v1189, 1
      %v1219 = vsel %vm831, %v1216, %v1218
      %v1220 = vrot.slane %v1190, 1
      %v1221 = vsel %vm831, %v1218, %v1220
      %v1222 = vrot.slane %v1191, 1
      %v1223 = vsel %vm831, %v1220, %v1222
      %v1224 = vrot.slane %v1192, 1
      %v1225 = vsel %vm831, %v1222, %v1224
      %v1226 = vrot.slane %v1193, 1
      %v1227 = vsel %vm831, %v1224, %v1226
      %v1228 = vrot.slane %v1194, 1
      %v1229 = vsel %vm831, %v1226, %v1228
      %v1230 = vrot.slane %v1195, 1
      %v1231 = vsel %vm831, %v1228, %v1230
      %v1232 = vrot.slane %v1196, 1
      %v1233 = vsel %vm831, %v1230, %v1232
      %v1236 = vunpack.c.l.b16 %v1102
      %v1237 = vunpack.c.l.b16 %v1103
      %v1238 = vpack.c.b16 %v1237, %v1236
      %v1241 = vsel %vm529, %v1199, 0
      %v1244 = vsel %vm529, %v1201, 0
      %v1247 = vsel %vm529, %v1203, 0
      %v1250 = vsel %vm529, %v1205, 0
      %v1253 = vsel %vm529, %v1207, 0
      %v1256 = vsel %vm529, %v1209, 0
      %v1259 = vsel %vm529, %v1211, 0
      %v1262 = vsel %vm529, %v1213, 0
      %v1265 = vsel %vm529, %v1215, 0
      %v1268 = vsel %vm529, %v1217, 0
      %v1271 = vsel %vm529, %v1219, 0
      %v1274 = vsel %vm529, %v1221, 0
      %v1277 = vsel %vm529, %v1223, 0
      %v1280 = vsel %vm529, %v1225, 0
      %v1283 = vsel %vm529, %v1227, 0
      %v1286 = vsel %vm529, %v1229, 0
      %v1289 = vsel %vm529, %v1231, 0
      %v1292 = vsel %vm529, %v1233, 0
      %1294 = vmatpush.bf16.msra.mxu0 0
      %1295 = vmatpush.bf16.msra.mxu0 0
      %1296 = vmatpush.bf16.msra.mxu0 0
      %1297 = vmatpush.bf16.msra.mxu0 0
      %1298 = vmatpush.bf16.msra.mxu0 0
      %1299 = vmatpush.bf16.msra.mxu0 0
      %1300 = vmatpush.bf16.msra.mxu0 0
      %1301 = vmatpush.bf16.msra.mxu0 %v1238
      %1302 = vmatmul.bf16.gmra.mxu0 %v1241
      %v1303 = vpop.f32.mrf.mxu0
      %v1304 = vadd.f32 0.0, %v1303
      %v1305 = vpop.f32.mrf.mxu0
      %v1306 = vadd.f32 0.0, %v1305
      %1307 = vmatmul.bf16.gmra.mxu0 %v1244
      %v1308 = vpop.f32.mrf.mxu0
      %v1309 = vadd.f32 0.0, %v1308
      %v1310 = vpop.f32.mrf.mxu0
      %v1311 = vadd.f32 0.0, %v1310
      %1312 = vmatmul.bf16.gmra.mxu0 %v1247
      %v1313 = vpop.f32.mrf.mxu0
      %v1314 = vadd.f32 0.0, %v1313
      %v1315 = vpop.f32.mrf.mxu0
      %v1316 = vadd.f32 0.0, %v1315
      %1317 = vmatmul.bf16.gmra.mxu0 %v1250
      %v1318 = vpop.f32.mrf.mxu0
      %v1319 = vadd.f32 0.0, %v1318
      %v1320 = vpop.f32.mrf.mxu0
      %v1321 = vadd.f32 0.0, %v1320
      %1322 = vmatmul.bf16.gmra.mxu0 %v1253
      %v1323 = vpop.f32.mrf.mxu0
      %v1324 = vadd.f32 0.0, %v1323
      %v1325 = vpop.f32.mrf.mxu0
      %v1326 = vadd.f32 0.0, %v1325
      %1327 = vmatmul.bf16.gmra.mxu0 %v1256
      %v1328 = vpop.f32.mrf.mxu0
      %v1329 = vadd.f32 0.0, %v1328
      %v1330 = vpop.f32.mrf.mxu0
      %v1331 = vadd.f32 0.0, %v1330
      %1332 = vmatmul.bf16.gmra.mxu0 %v1259
      %v1333 = vpop.f32.mrf.mxu0
      %v1334 = vadd.f32 0.0, %v1333
      %v1335 = vpop.f32.mrf.mxu0
      %v1336 = vadd.f32 0.0, %v1335
      %1337 = vmatmul.bf16.gmra.mxu0 %v1262
      %v1338 = vpop.f32.mrf.mxu0
      %v1339 = vadd.f32 0.0, %v1338
      %v1340 = vpop.f32.mrf.mxu0
      %v1341 = vadd.f32 0.0, %v1340
      %1342 = vmatmul.bf16.gmra.mxu0 %v1265
      %v1343 = vpop.f32.mrf.mxu0
      %v1344 = vadd.f32 0.0, %v1343
      %v1345 = vpop.f32.mrf.mxu0
      %v1346 = vadd.f32 0.0, %v1345
      %1347 = vmatmul.bf16.gmra.mxu0 %v1268
      %v1348 = vpop.f32.mrf.mxu0
      %v1349 = vadd.f32 0.0, %v1348
      %v1350 = vpop.f32.mrf.mxu0
      %v1351 = vadd.f32 0.0, %v1350
      %1352 = vmatmul.bf16.gmra.mxu0 %v1271
      %v1353 = vpop.f32.mrf.mxu0
      %v1354 = vadd.f32 0.0, %v1353
      %v1355 = vpop.f32.mrf.mxu0
      %v1356 = vadd.f32 0.0, %v1355
      %1357 = vmatmul.bf16.gmra.mxu0 %v1274
      %v1358 = vpop.f32.mrf.mxu0
      %v1359 = vadd.f32 0.0, %v1358
      %v1360 = vpop.f32.mrf.mxu0
      %v1361 = vadd.f32 0.0, %v1360
      %1362 = vmatmul.bf16.gmra.mxu0 %v1277
      %v1363 = vpop.f32.mrf.mxu0
      %v1364 = vadd.f32 0.0, %v1363
      %v1365 = vpop.f32.mrf.mxu0
      %v1366 = vadd.f32 0.0, %v1365
      %1367 = vmatmul.bf16.gmra.mxu0 %v1280
      %v1368 = vpop.f32.mrf.mxu0
      %v1369 = vadd.f32 0.0, %v1368
      %v1370 = vpop.f32.mrf.mxu0
      %v1371 = vadd.f32 0.0, %v1370
      %1372 = vmatmul.bf16.gmra.mxu0 %v1283
      %v1373 = vpop.f32.mrf.mxu0
      %v1374 = vadd.f32 0.0, %v1373
      %v1375 = vpop.f32.mrf.mxu0
      %v1376 = vadd.f32 0.0, %v1375
      %1377 = vmatmul.bf16.gmra.mxu0 %v1286
      %v1378 = vpop.f32.mrf.mxu0
      %v1379 = vadd.f32 0.0, %v1378
      %v1380 = vpop.f32.mrf.mxu0
      %v1381 = vadd.f32 0.0, %v1380
      %1382 = vmatmul.bf16.gmra.mxu0 %v1289
      %v1383 = vpop.f32.mrf.mxu0
      %v1384 = vadd.f32 0.0, %v1383
      %v1385 = vpop.f32.mrf.mxu0
      %v1386 = vadd.f32 0.0, %v1385
      %1387 = vmatmul.bf16.gmra.mxu0 %v1292
      %v1388 = vpop.f32.mrf.mxu0
      %v1389 = vadd.f32 0.0, %v1388
      %v1390 = vpop.f32.mrf.mxu0
      %v1391 = vadd.f32 0.0, %v1390
      %1392 = vdwg.mxu0
      %v1393 = vadd.f32 %v1028, %v1304
      %v1394 = vadd.f32 %v1029, %v1306
      %v1395 = vadd.f32 %v1030, %v1309
      %v1396 = vadd.f32 %v1031, %v1311
      %v1397 = vadd.f32 %v1032, %v1314
      %v1398 = vadd.f32 %v1033, %v1316
      %v1399 = vadd.f32 %v1034, %v1319
      %v1400 = vadd.f32 %v1035, %v1321
      %v1401 = vadd.f32 %v1036, %v1324
      %v1402 = vadd.f32 %v1037, %v1326
      %v1403 = vadd.f32 %v1038, %v1329
      %v1404 = vadd.f32 %v1039, %v1331
      %v1405 = vadd.f32 %v1040, %v1334
      %v1406 = vadd.f32 %v1041, %v1336
      %v1407 = vadd.f32 %v1042, %v1339
      %v1408 = vadd.f32 %v1043, %v1341
      %v1409 = vadd.f32 %v1044, %v1344
      %v1410 = vadd.f32 %v1045, %v1346
      %v1411 = vadd.f32 %v1046, %v1349
      %v1412 = vadd.f32 %v1047, %v1351
      %v1413 = vadd.f32 %v1048, %v1354
      %v1414 = vadd.f32 %v1049, %v1356
      %v1415 = vadd.f32 %v1050, %v1359
      %v1416 = vadd.f32 %v1051, %v1361
      %v1417 = vadd.f32 %v1052, %v1364
      %v1418 = vadd.f32 %v1053, %v1366
      %v1419 = vadd.f32 %v1054, %v1369
      %v1420 = vadd.f32 %v1055, %v1371
      %v1421 = vadd.f32 %v1056, %v1374
      %v1422 = vadd.f32 %v1057, %v1376
      %v1423 = vadd.f32 %v1058, %v1379
      %v1424 = vadd.f32 %v1059, %v1381
      %v1425 = vadd.f32 %v1060, %v1384
      %v1426 = vadd.f32 %v1061, %v1386
      %v1427 = vadd.f32 %v1062, %v1389
      %v1428 = vadd.f32 %v1063, %v1391
      %v1429 = vld [vmem:[%s227 + $0x98] sm:$0x3]
      %s1430 = scalar_lea.vmem %s1, 32
      %v1431 = vld [vmem:[%s1430] sm:$0xf]
      %v1432 = vld [vmem:[%s1430 + $0x4] sm:$0xf]
      %v1434 = vunpack.c.l.b16 %v1429
      %v1435 = vpack.c.b16 %v1434, %v1434
      %vm1436 = vsmask.f32 6400
      %v1438 = vshrl.u32 %v1178, 16
      %v1440 = vrot.slane %v1438, 1
      %v1441 = vshll.u32 %v1178, 16
      %v1443 = vrot.slane %v1441, 2
      %v1444 = vor.u32 %v1440, %v1443
      %v1446 = vshrl.u32 %v1179, 16
      %v1448 = vrot.slane %v1446, 1
      %v1449 = vshll.u32 %v1179, 16
      %v1451 = vrot.slane %v1449, 2
      %v1452 = vor.u32 %v1448, %v1451
      %v1453 = vsel %vm1436, %v1444, %v1452
      %v1455 = vshrl.u32 %v1180, 16
      %v1457 = vrot.slane %v1455, 1
      %v1458 = vshll.u32 %v1180, 16
      %v1460 = vrot.slane %v1458, 2
      %v1461 = vor.u32 %v1457, %v1460
      %v1462 = vsel %vm1436, %v1452, %v1461
      %v1464 = vshrl.u32 %v1181, 16
      %v1466 = vrot.slane %v1464, 1
      %v1467 = vshll.u32 %v1181, 16
      %v1469 = vrot.slane %v1467, 2
      %v1470 = vor.u32 %v1466, %v1469
      %v1471 = vsel %vm1436, %v1461, %v1470
      %v1473 = vshrl.u32 %v1182, 16
      %v1475 = vrot.slane %v1473, 1
      %v1476 = vshll.u32 %v1182, 16
      %v1478 = vrot.slane %v1476, 2
      %v1479 = vor.u32 %v1475, %v1478
      %v1480 = vsel %vm1436, %v1470, %v1479
      %v1482 = vshrl.u32 %v1183, 16
      %v1484 = vrot.slane %v1482, 1
      %v1485 = vshll.u32 %v1183, 16
      %v1487 = vrot.slane %v1485, 2
      %v1488 = vor.u32 %v1484, %v1487
      %v1489 = vsel %vm1436, %v1479, %v1488
      %v1491 = vshrl.u32 %v1184, 16
      %v1493 = vrot.slane %v1491, 1
      %v1494 = vshll.u32 %v1184, 16
      %v1496 = vrot.slane %v1494, 2
      %v1497 = vor.u32 %v1493, %v1496
      %v1498 = vsel %vm1436, %v1488, %v1497
      %v1500 = vshrl.u32 %v1185, 16
      %v1502 = vrot.slane %v1500, 1
      %v1503 = vshll.u32 %v1185, 16
      %v1505 = vrot.slane %v1503, 2
      %v1506 = vor.u32 %v1502, %v1505
      %v1507 = vsel %vm1436, %v1497, %v1506
      %v1509 = vshrl.u32 %v1186, 16
      %v1511 = vrot.slane %v1509, 1
      %v1512 = vshll.u32 %v1186, 16
      %v1514 = vrot.slane %v1512, 2
      %v1515 = vor.u32 %v1511, %v1514
      %v1516 = vsel %vm1436, %v1506, %v1515
      %v1518 = vshrl.u32 %v1187, 16
      %v1520 = vrot.slane %v1518, 1
      %v1521 = vshll.u32 %v1187, 16
      %v1523 = vrot.slane %v1521, 2
      %v1524 = vor.u32 %v1520, %v1523
      %v1525 = vsel %vm1436, %v1515, %v1524
      %v1527 = vshrl.u32 %v1188, 16
      %v1529 = vrot.slane %v1527, 1
      %v1530 = vshll.u32 %v1188, 16
      %v1532 = vrot.slane %v1530, 2
      %v1533 = vor.u32 %v1529, %v1532
      %v1534 = vsel %vm1436, %v1524, %v1533
      %v1536 = vshrl.u32 %v1189, 16
      %v1538 = vrot.slane %v1536, 1
      %v1539 = vshll.u32 %v1189, 16
      %v1541 = vrot.slane %v1539, 2
      %v1542 = vor.u32 %v1538, %v1541
      %v1543 = vsel %vm1436, %v1533, %v1542
      %v1545 = vshrl.u32 %v1190, 16
      %v1547 = vrot.slane %v1545, 1
      %v1548 = vshll.u32 %v1190, 16
      %v1550 = vrot.slane %v1548, 2
      %v1551 = vor.u32 %v1547, %v1550
      %v1552 = vsel %vm1436, %v1542, %v1551
      %v1554 = vshrl.u32 %v1191, 16
      %v1556 = vrot.slane %v1554, 1
      %v1557 = vshll.u32 %v1191, 16
      %v1559 = vrot.slane %v1557, 2
      %v1560 = vor.u32 %v1556, %v1559
      %v1561 = vsel %vm1436, %v1551, %v1560
      %v1563 = vshrl.u32 %v1192, 16
      %v1565 = vrot.slane %v1563, 1
      %v1566 = vshll.u32 %v1192, 16
      %v1568 = vrot.slane %v1566, 2
      %v1569 = vor.u32 %v1565, %v1568
      %v1570 = vsel %vm1436, %v1560, %v1569
      %v1572 = vshrl.u32 %v1193, 16
      %v1574 = vrot.slane %v1572, 1
      %v1575 = vshll.u32 %v1193, 16
      %v1577 = vrot.slane %v1575, 2
      %v1578 = vor.u32 %v1574, %v1577
      %v1579 = vsel %vm1436, %v1569, %v1578
      %v1581 = vshrl.u32 %v1194, 16
      %v1583 = vrot.slane %v1581, 1
      %v1584 = vshll.u32 %v1194, 16
      %v1586 = vrot.slane %v1584, 2
      %v1587 = vor.u32 %v1583, %v1586
      %v1588 = vsel %vm1436, %v1578, %v1587
      %v1590 = vshrl.u32 %v1195, 16
      %v1592 = vrot.slane %v1590, 1
      %v1593 = vshll.u32 %v1195, 16
      %v1595 = vrot.slane %v1593, 2
      %v1596 = vor.u32 %v1592, %v1595
      %v1597 = vsel %vm1436, %v1587, %v1596
      %v1599 = vshrl.u32 %v1435, 16
      %v1601 = vrot.slane %v1599, 1
      %v1602 = vshll.u32 %v1435, 16
      %v1604 = vrot.slane %v1602, 2
      %v1605 = vor.u32 %v1601, %v1604
      %v1606 = vsel %vm1436, %v1596, %v1605
      %v1609 = vunpack.c.l.b16 %v1431
      %v1610 = vunpack.c.l.b16 %v1432
      %v1611 = vpack.c.b16 %v1610, %v1609
      %v1614 = vsel %vm529, %v1453, 0
      %v1617 = vsel %vm529, %v1462, 0
      %v1620 = vsel %vm529, %v1471, 0
      %v1623 = vsel %vm529, %v1480, 0
      %v1626 = vsel %vm529, %v1489, 0
      %v1629 = vsel %vm529, %v1498, 0
      %v1632 = vsel %vm529, %v1507, 0
      %v1635 = vsel %vm529, %v1516, 0
      %v1638 = vsel %vm529, %v1525, 0
      %v1641 = vsel %vm529, %v1534, 0
      %v1644 = vsel %vm529, %v1543, 0
      %v1647 = vsel %vm529, %v1552, 0
      %v1650 = vsel %vm529, %v1561, 0
      %v1653 = vsel %vm529, %v1570, 0
      %v1656 = vsel %vm529, %v1579, 0
      %v1659 = vsel %vm529, %v1588, 0
      %v1662 = vsel %vm529, %v1597, 0
      %v1665 = vsel %vm529, %v1606, 0
      %1667 = vmatpush.bf16.msra.mxu0 0
      %1668 = vmatpush.bf16.msra.mxu0 0
      %1669 = vmatpush.bf16.msra.mxu0 0
      %1670 = vmatpush.bf16.msra.mxu0 0
      %1671 = vmatpush.bf16.msra.mxu0 0
      %1672 = vmatpush.bf16.msra.mxu0 0
      %1673 = vmatpush.bf16.msra.mxu0 0
      %1674 = vmatpush.bf16.msra.mxu0 %v1611
      %1675 = vmatmul.bf16.gmra.mxu0 %v1614
      %v1676 = vpop.f32.mrf.mxu0
      %v1677 = vadd.f32 0.0, %v1676
      %v1678 = vpop.f32.mrf.mxu0
      %v1679 = vadd.f32 0.0, %v1678
      %1680 = vmatmul.bf16.gmra.mxu0 %v1617
      %v1681 = vpop.f32.mrf.mxu0
      %v1682 = vadd.f32 0.0, %v1681
      %v1683 = vpop.f32.mrf.mxu0
      %v1684 = vadd.f32 0.0, %v1683
      %1685 = vmatmul.bf16.gmra.mxu0 %v1620
      %v1686 = vpop.f32.mrf.mxu0
      %v1687 = vadd.f32 0.0, %v1686
      %v1688 = vpop.f32.mrf.mxu0
      %v1689 = vadd.f32 0.0, %v1688
      %1690 = vmatmul.bf16.gmra.mxu0 %v1623
      %v1691 = vpop.f32.mrf.mxu0
      %v1692 = vadd.f32 0.0, %v1691
      %v1693 = vpop.f32.mrf.mxu0
      %v1694 = vadd.f32 0.0, %v1693
      %1695 = vmatmul.bf16.gmra.mxu0 %v1626
      %v1696 = vpop.f32.mrf.mxu0
      %v1697 = vadd.f32 0.0, %v1696
      %v1698 = vpop.f32.mrf.mxu0
      %v1699 = vadd.f32 0.0, %v1698
      %1700 = vmatmul.bf16.gmra.mxu0 %v1629
      %v1701 = vpop.f32.mrf.mxu0
      %v1702 = vadd.f32 0.0, %v1701
      %v1703 = vpop.f32.mrf.mxu0
      %v1704 = vadd.f32 0.0, %v1703
      %1705 = vmatmul.bf16.gmra.mxu0 %v1632
      %v1706 = vpop.f32.mrf.mxu0
      %v1707 = vadd.f32 0.0, %v1706
      %v1708 = vpop.f32.mrf.mxu0
      %v1709 = vadd.f32 0.0, %v1708
      %1710 = vmatmul.bf16.gmra.mxu0 %v1635
      %v1711 = vpop.f32.mrf.mxu0
      %v1712 = vadd.f32 0.0, %v1711
      %v1713 = vpop.f32.mrf.mxu0
      %v1714 = vadd.f32 0.0, %v1713
      %1715 = vmatmul.bf16.gmra.mxu0 %v1638
      %v1716 = vpop.f32.mrf.mxu0
      %v1717 = vadd.f32 0.0, %v1716
      %v1718 = vpop.f32.mrf.mxu0
      %v1719 = vadd.f32 0.0, %v1718
      %1720 = vmatmul.bf16.gmra.mxu0 %v1641
      %v1721 = vpop.f32.mrf.mxu0
      %v1722 = vadd.f32 0.0, %v1721
      %v1723 = vpop.f32.mrf.mxu0
      %v1724 = vadd.f32 0.0, %v1723
      %1725 = vmatmul.bf16.gmra.mxu0 %v1644
      %v1726 = vpop.f32.mrf.mxu0
      %v1727 = vadd.f32 0.0, %v1726
      %v1728 = vpop.f32.mrf.mxu0
      %v1729 = vadd.f32 0.0, %v1728
      %1730 = vmatmul.bf16.gmra.mxu0 %v1647
      %v1731 = vpop.f32.mrf.mxu0
      %v1732 = vadd.f32 0.0, %v1731
      %v1733 = vpop.f32.mrf.mxu0
      %v1734 = vadd.f32 0.0, %v1733
      %1735 = vmatmul.bf16.gmra.mxu0 %v1650
      %v1736 = vpop.f32.mrf.mxu0
      %v1737 = vadd.f32 0.0, %v1736
      %v1738 = vpop.f32.mrf.mxu0
      %v1739 = vadd.f32 0.0, %v1738
      %1740 = vmatmul.bf16.gmra.mxu0 %v1653
      %v1741 = vpop.f32.mrf.mxu0
      %v1742 = vadd.f32 0.0, %v1741
      %v1743 = vpop.f32.mrf.mxu0
      %v1744 = vadd.f32 0.0, %v1743
      %1745 = vmatmul.bf16.gmra.mxu0 %v1656
      %v1746 = vpop.f32.mrf.mxu0
      %v1747 = vadd.f32 0.0, %v1746
      %v1748 = vpop.f32.mrf.mxu0
      %v1749 = vadd.f32 0.0, %v1748
      %1750 = vmatmul.bf16.gmra.mxu0 %v1659
      %v1751 = vpop.f32.mrf.mxu0
      %v1752 = vadd.f32 0.0, %v1751
      %v1753 = vpop.f32.mrf.mxu0
      %v1754 = vadd.f32 0.0, %v1753
      %1755 = vmatmul.bf16.gmra.mxu0 %v1662
      %v1756 = vpop.f32.mrf.mxu0
      %v1757 = vadd.f32 0.0, %v1756
      %v1758 = vpop.f32.mrf.mxu0
      %v1759 = vadd.f32 0.0, %v1758
      %1760 = vmatmul.bf16.gmra.mxu0 %v1665
      %v1761 = vpop.f32.mrf.mxu0
      %v1762 = vadd.f32 0.0, %v1761
      %v1763 = vpop.f32.mrf.mxu0
      %v1764 = vadd.f32 0.0, %v1763
      %1765 = vdwg.mxu0
      %v1766 = vadd.f32 %v1393, %v1677
      %v1767 = vadd.f32 %v1394, %v1679
      %v1768 = vadd.f32 %v1395, %v1682
      %v1769 = vadd.f32 %v1396, %v1684
      %v1770 = vadd.f32 %v1397, %v1687
      %v1771 = vadd.f32 %v1398, %v1689
      %v1772 = vadd.f32 %v1399, %v1692
      %v1773 = vadd.f32 %v1400, %v1694
      %v1774 = vadd.f32 %v1401, %v1697
      %v1775 = vadd.f32 %v1402, %v1699
      %v1776 = vadd.f32 %v1403, %v1702
      %v1777 = vadd.f32 %v1404, %v1704
      %v1778 = vadd.f32 %v1405, %v1707
      %v1779 = vadd.f32 %v1406, %v1709
      %v1780 = vadd.f32 %v1407, %v1712
      %v1781 = vadd.f32 %v1408, %v1714
      %v1782 = vadd.f32 %v1409, %v1717
      %v1783 = vadd.f32 %v1410, %v1719
      %v1784 = vadd.f32 %v1411, %v1722
      %v1785 = vadd.f32 %v1412, %v1724
      %v1786 = vadd.f32 %v1413, %v1727
      %v1787 = vadd.f32 %v1414, %v1729
      %v1788 = vadd.f32 %v1415, %v1732
      %v1789 = vadd.f32 %v1416, %v1734
      %v1790 = vadd.f32 %v1417, %v1737
      %v1791 = vadd.f32 %v1418, %v1739
      %v1792 = vadd.f32 %v1419, %v1742
      %v1793 = vadd.f32 %v1420, %v1744
      %v1794 = vadd.f32 %v1421, %v1747
      %v1795 = vadd.f32 %v1422, %v1749
      %v1796 = vadd.f32 %v1423, %v1752
      %v1797 = vadd.f32 %v1424, %v1754
      %v1798 = vadd.f32 %v1425, %v1757
      %v1799 = vadd.f32 %v1426, %v1759
      %v1800 = vadd.f32 %v1427, %v1762
      %v1801 = vadd.f32 %v1428, %v1764
      %v1802 = vld [vmem:[%s227 + $0x8] sm:$0xc]
      %s1803 = scalar_lea.vmem %s1, 40
      %v1804 = vld [vmem:[%s1803] sm:$0xf]
      %v1805 = vld [vmem:[%s1803 + $0x4] sm:$0xf]
      %v1807 = vunpack.c.l.b16 %v1802
      %v1808 = vpack.c.b16 %v1142, %v1807
      %vm1809 = vcmask 1045504
      %v1810 = vrot.slane %v1808, 2
      %v1811 = vrot.slane %v1179, 2
      %v1812 = vsel %vm1809, %v1810, %v1811
      %v1813 = vrot.slane %v1180, 2
      %v1814 = vsel %vm1809, %v1811, %v1813
      %v1815 = vrot.slane %v1181, 2
      %v1816 = vsel %vm1809, %v1813, %v1815
      %v1817 = vrot.slane %v1182, 2
      %v1818 = vsel %vm1809, %v1815, %v1817
      %v1819 = vrot.slane %v1183, 2
      %v1820 = vsel %vm1809, %v1817, %v1819
      %v1821 = vrot.slane %v1184, 2
      %v1822 = vsel %vm1809, %v1819, %v1821
      %v1823 = vrot.slane %v1185, 2
      %v1824 = vsel %vm1809, %v1821, %v1823
      %v1825 = vrot.slane %v1186, 2
      %v1826 = vsel %vm1809, %v1823, %v1825
      %v1827 = vrot.slane %v1187, 2
      %v1828 = vsel %vm1809, %v1825, %v1827
      %v1829 = vrot.slane %v1188, 2
      %v1830 = vsel %vm1809, %v1827, %v1829
      %v1831 = vrot.slane %v1189, 2
      %v1832 = vsel %vm1809, %v1829, %v1831
      %v1833 = vrot.slane %v1190, 2
      %v1834 = vsel %vm1809, %v1831, %v1833
      %v1835 = vrot.slane %v1191, 2
      %v1836 = vsel %vm1809, %v1833, %v1835
      %v1837 = vrot.slane %v1192, 2
      %v1838 = vsel %vm1809, %v1835, %v1837
      %v1839 = vrot.slane %v1193, 2
      %v1840 = vsel %vm1809, %v1837, %v1839
      %v1841 = vrot.slane %v1194, 2
      %v1842 = vsel %vm1809, %v1839, %v1841
      %v1843 = vrot.slane %v1195, 2
      %v1844 = vsel %vm1809, %v1841, %v1843
      %v1845 = vrot.slane %v1435, 2
      %v1846 = vsel %vm1809, %v1843, %v1845
      %v1849 = vunpack.c.l.b16 %v1804
      %v1850 = vunpack.c.l.b16 %v1805
      %v1851 = vpack.c.b16 %v1850, %v1849
      %v1854 = vsel %vm529, %v1812, 0
      %v1857 = vsel %vm529, %v1814, 0
      %v1860 = vsel %vm529, %v1816, 0
      %v1863 = vsel %vm529, %v1818, 0
      %v1866 = vsel %vm529, %v1820, 0
      %v1869 = vsel %vm529, %v1822, 0
      %v1872 = vsel %vm529, %v1824, 0
      %v1875 = vsel %vm529, %v1826, 0
      %v1878 = vsel %vm529, %v1828, 0
      %v1881 = vsel %vm529, %v1830, 0
      %v1884 = vsel %vm529, %v1832, 0
      %v1887 = vsel %vm529, %v1834, 0
      %v1890 = vsel %vm529, %v1836, 0
      %v1893 = vsel %vm529, %v1838, 0
      %v1896 = vsel %vm529, %v1840, 0
      %v1899 = vsel %vm529, %v1842, 0
      %v1902 = vsel %vm529, %v1844, 0
      %v1905 = vsel %vm529, %v1846, 0
      %1907 = vmatpush.bf16.msra.mxu0 0
      %1908 = vmatpush.bf16.msra.mxu0 0
      %1909 = vmatpush.bf16.msra.mxu0 0
      %1910 = vmatpush.bf16.msra.mxu0 0
      %1911 = vmatpush.bf16.msra.mxu0 0
      %1912 = vmatpush.bf16.msra.mxu0 0
      %1913 = vmatpush.bf16.msra.mxu0 0
      %1914 = vmatpush.bf16.msra.mxu0 %v1851
      %1915 = vmatmul.bf16.gmra.mxu0 %v1854
      %v1916 = vpop.f32.mrf.mxu0
      %v1917 = vadd.f32 0.0, %v1916
      %v1918 = vpop.f32.mrf.mxu0
      %v1919 = vadd.f32 0.0, %v1918
      %1920 = vmatmul.bf16.gmra.mxu0 %v1857
      %v1921 = vpop.f32.mrf.mxu0
      %v1922 = vadd.f32 0.0, %v1921
      %v1923 = vpop.f32.mrf.mxu0
      %v1924 = vadd.f32 0.0, %v1923
      %1925 = vmatmul.bf16.gmra.mxu0 %v1860
      %v1926 = vpop.f32.mrf.mxu0
      %v1927 = vadd.f32 0.0, %v1926
      %v1928 = vpop.f32.mrf.mxu0
      %v1929 = vadd.f32 0.0, %v1928
      %1930 = vmatmul.bf16.gmra.mxu0 %v1863
      %v1931 = vpop.f32.mrf.mxu0
      %v1932 = vadd.f32 0.0, %v1931
      %v1933 = vpop.f32.mrf.mxu0
      %v1934 = vadd.f32 0.0, %v1933
      %1935 = vmatmul.bf16.gmra.mxu0 %v1866
      %v1936 = vpop.f32.mrf.mxu0
      %v1937 = vadd.f32 0.0, %v1936
      %v1938 = vpop.f32.mrf.mxu0
      %v1939 = vadd.f32 0.0, %v1938
      %1940 = vmatmul.bf16.gmra.mxu0 %v1869
      %v1941 = vpop.f32.mrf.mxu0
      %v1942 = vadd.f32 0.0, %v1941
      %v1943 = vpop.f32.mrf.mxu0
      %v1944 = vadd.f32 0.0, %v1943
      %1945 = vmatmul.bf16.gmra.mxu0 %v1872
      %v1946 = vpop.f32.mrf.mxu0
      %v1947 = vadd.f32 0.0, %v1946
      %v1948 = vpop.f32.mrf.mxu0
      %v1949 = vadd.f32 0.0, %v1948
      %1950 = vmatmul.bf16.gmra.mxu0 %v1875
      %v1951 = vpop.f32.mrf.mxu0
      %v1952 = vadd.f32 0.0, %v1951
      %v1953 = vpop.f32.mrf.mxu0
      %v1954 = vadd.f32 0.0, %v1953
      %1955 = vmatmul.bf16.gmra.mxu0 %v1878
      %v1956 = vpop.f32.mrf.mxu0
      %v1957 = vadd.f32 0.0, %v1956
      %v1958 = vpop.f32.mrf.mxu0
      %v1959 = vadd.f32 0.0, %v1958
      %1960 = vmatmul.bf16.gmra.mxu0 %v1881
      %v1961 = vpop.f32.mrf.mxu0
      %v1962 = vadd.f32 0.0, %v1961
      %v1963 = vpop.f32.mrf.mxu0
      %v1964 = vadd.f32 0.0, %v1963
      %1965 = vmatmul.bf16.gmra.mxu0 %v1884
      %v1966 = vpop.f32.mrf.mxu0
      %v1967 = vadd.f32 0.0, %v1966
      %v1968 = vpop.f32.mrf.mxu0
      %v1969 = vadd.f32 0.0, %v1968
      %1970 = vmatmul.bf16.gmra.mxu0 %v1887
      %v1971 = vpop.f32.mrf.mxu0
      %v1972 = vadd.f32 0.0, %v1971
      %v1973 = vpop.f32.mrf.mxu0
      %v1974 = vadd.f32 0.0, %v1973
      %1975 = vmatmul.bf16.gmra.mxu0 %v1890
      %v1976 = vpop.f32.mrf.mxu0
      %v1977 = vadd.f32 0.0, %v1976
      %v1978 = vpop.f32.mrf.mxu0
      %v1979 = vadd.f32 0.0, %v1978
      %1980 = vmatmul.bf16.gmra.mxu0 %v1893
      %v1981 = vpop.f32.mrf.mxu0
      %v1982 = vadd.f32 0.0, %v1981
      %v1983 = vpop.f32.mrf.mxu0
      %v1984 = vadd.f32 0.0, %v1983
      %1985 = vmatmul.bf16.gmra.mxu0 %v1896
      %v1986 = vpop.f32.mrf.mxu0
      %v1987 = vadd.f32 0.0, %v1986
      %v1988 = vpop.f32.mrf.mxu0
      %v1989 = vadd.f32 0.0, %v1988
      %1990 = vmatmul.bf16.gmra.mxu0 %v1899
      %v1991 = vpop.f32.mrf.mxu0
      %v1992 = vadd.f32 0.0, %v1991
      %v1993 = vpop.f32.mrf.mxu0
      %v1994 = vadd.f32 0.0, %v1993
      %1995 = vmatmul.bf16.gmra.mxu0 %v1902
      %v1996 = vpop.f32.mrf.mxu0
      %v1997 = vadd.f32 0.0, %v1996
      %v1998 = vpop.f32.mrf.mxu0
      %v1999 = vadd.f32 0.0, %v1998
      %2000 = vmatmul.bf16.gmra.mxu0 %v1905
      %v2001 = vpop.f32.mrf.mxu0
      %v2002 = vadd.f32 0.0, %v2001
      %v2003 = vpop.f32.mrf.mxu0
      %v2004 = vadd.f32 0.0, %v2003
      %2005 = vdwg.mxu0
      %v2006 = vadd.f32 %v1766, %v1917
      %v2007 = vadd.f32 %v1767, %v1919
      %v2008 = vadd.f32 %v1768, %v1922
      %v2009 = vadd.f32 %v1769, %v1924
      %v2010 = vadd.f32 %v1770, %v1927
      %v2011 = vadd.f32 %v1771, %v1929
      %v2012 = vadd.f32 %v1772, %v1932
      %v2013 = vadd.f32 %v1773, %v1934
      %v2014 = vadd.f32 %v1774, %v1937
      %v2015 = vadd.f32 %v1775, %v1939
      %v2016 = vadd.f32 %v1776, %v1942
      %v2017 = vadd.f32 %v1777, %v1944
      %v2018 = vadd.f32 %v1778, %v1947
      %v2019 = vadd.f32 %v1779, %v1949
      %v2020 = vadd.f32 %v1780, %v1952
      %v2021 = vadd.f32 %v1781, %v1954
      %v2022 = vadd.f32 %v1782, %v1957
      %v2023 = vadd.f32 %v1783, %v1959
      %v2024 = vadd.f32 %v1784, %v1962
      %v2025 = vadd.f32 %v1785, %v1964
      %v2026 = vadd.f32 %v1786, %v1967
      %v2027 = vadd.f32 %v1787, %v1969
      %v2028 = vadd.f32 %v1788, %v1972
      %v2029 = vadd.f32 %v1789, %v1974
      %v2030 = vadd.f32 %v1790, %v1977
      %v2031 = vadd.f32 %v1791, %v1979
      %v2032 = vadd.f32 %v1792, %v1982
      %v2033 = vadd.f32 %v1793, %v1984
      %v2034 = vadd.f32 %v1794, %v1987
      %v2035 = vadd.f32 %v1795, %v1989
      %v2036 = vadd.f32 %v1796, %v1992
      %v2037 = vadd.f32 %v1797, %v1994
      %v2038 = vadd.f32 %v1798, %v1997
      %v2039 = vadd.f32 %v1799, %v1999
      %v2040 = vadd.f32 %v1800, %v2002
      %v2041 = vadd.f32 %v1801, %v2004
      %v2042 = vld [vmem:[%s227 + $0x10] sm:$0xc]
      %v2043 = vld [vmem:[%s227 + $0x14] sm:$0xf]
      %v2044 = vld [vmem:[%s227 + $0x18] sm:$0xf]
      %v2045 = vld [vmem:[%s227 + $0x1c] sm:$0xf]
      %v2046 = vld [vmem:[%s227 + $0x20] sm:$0xf]
      %v2047 = vld [vmem:[%s227 + $0x24] sm:$0xf]
      %v2048 = vld [vmem:[%s227 + $0x28] sm:$0xf]
      %v2049 = vld [vmem:[%s227 + $0x2c] sm:$0xf]
      %v2050 = vld [vmem:[%s227 + $0x30] sm:$0xf]
      %v2051 = vld [vmem:[%s227 + $0x34] sm:$0xf]
      %v2052 = vld [vmem:[%s227 + $0x38] sm:$0xf]
      %v2053 = vld [vmem:[%s227 + $0x3c] sm:$0xf]
      %v2054 = vld [vmem:[%s227 + $0x40] sm:$0xf]
      %v2055 = vld [vmem:[%s227 + $0x44] sm:$0xf]
      %v2056 = vld [vmem:[%s227 + $0x48] sm:$0xf]
      %v2057 = vld [vmem:[%s227 + $0x4c] sm:$0xf]
      %v2058 = vld [vmem:[%s227 + $0x50] sm:$0xf]
      %v2059 = vld [vmem:[%s227 + $0x54] sm:$0xf]
      %v2060 = vld [vmem:[%s227 + $0x58] sm:$0xf]
      %v2061 = vld [vmem:[%s227 + $0x5c] sm:$0xf]
      %v2062 = vld [vmem:[%s227 + $0x60] sm:$0xf]
      %v2063 = vld [vmem:[%s227 + $0x64] sm:$0xf]
      %v2064 = vld [vmem:[%s227 + $0x68] sm:$0xf]
      %v2065 = vld [vmem:[%s227 + $0x6c] sm:$0xf]
      %v2066 = vld [vmem:[%s227 + $0x70] sm:$0xf]
      %v2067 = vld [vmem:[%s227 + $0x74] sm:$0xf]
      %v2068 = vld [vmem:[%s227 + $0x78] sm:$0xf]
      %v2069 = vld [vmem:[%s227 + $0x7c] sm:$0xf]
      %v2070 = vld [vmem:[%s227 + $0x80] sm:$0xf]
      %v2071 = vld [vmem:[%s227 + $0x84] sm:$0xf]
      %v2072 = vld [vmem:[%s227 + $0x88] sm:$0xf]
      %v2073 = vld [vmem:[%s227 + $0x8c] sm:$0xf]
      %v2074 = vld [vmem:[%s227 + $0x90] sm:$0xf]
      %v2075 = vld [vmem:[%s227 + $0x94] sm:$0xf]
      %v2076 = vld [vmem:[%s227 + $0x98] sm:$0xf]
      %v2077 = vld [vmem:[%s227 + $0x9c] sm:$0xf]
      %v2078 = vld [vmem:[%s227 + $0xa0] sm:$0x3]
      %s2079 = scalar_lea.vmem %s1, 48
      %v2080 = vld [vmem:[%s2079] sm:$0xf]
      %v2081 = vld [vmem:[%s2079 + $0x4] sm:$0xf]
      %v2119 = vunpack.c.l.b16 %v2042
      %v2120 = vunpack.c.l.b16 %v2043
      %v2121 = vunpack.c.l.b16 %v2044
      %v2122 = vunpack.c.l.b16 %v2045
      %v2123 = vunpack.c.l.b16 %v2046
      %v2124 = vunpack.c.l.b16 %v2047
      %v2125 = vunpack.c.l.b16 %v2048
      %v2126 = vunpack.c.l.b16 %v2049
      %v2127 = vunpack.c.l.b16 %v2050
      %v2128 = vunpack.c.l.b16 %v2051
      %v2129 = vunpack.c.l.b16 %v2052
      %v2130 = vunpack.c.l.b16 %v2053
      %v2131 = vunpack.c.l.b16 %v2054
      %v2132 = vunpack.c.l.b16 %v2055
      %v2133 = vunpack.c.l.b16 %v2056
      %v2134 = vunpack.c.l.b16 %v2057
      %v2135 = vunpack.c.l.b16 %v2058
      %v2136 = vunpack.c.l.b16 %v2059
      %v2137 = vunpack.c.l.b16 %v2060
      %v2138 = vunpack.c.l.b16 %v2061
      %v2139 = vunpack.c.l.b16 %v2062
      %v2140 = vunpack.c.l.b16 %v2063
      %v2141 = vunpack.c.l.b16 %v2064
      %v2142 = vunpack.c.l.b16 %v2065
      %v2143 = vunpack.c.l.b16 %v2066
      %v2144 = vunpack.c.l.b16 %v2067
      %v2145 = vunpack.c.l.b16 %v2068
      %v2146 = vunpack.c.l.b16 %v2069
      %v2147 = vunpack.c.l.b16 %v2070
      %v2148 = vunpack.c.l.b16 %v2071
      %v2149 = vunpack.c.l.b16 %v2072
      %v2150 = vunpack.c.l.b16 %v2073
      %v2151 = vunpack.c.l.b16 %v2074
      %v2152 = vunpack.c.l.b16 %v2075
      %v2153 = vunpack.c.l.b16 %v2076
      %v2154 = vunpack.c.l.b16 %v2077
      %v2155 = vunpack.c.l.b16 %v2078
      %v2156 = vpack.c.b16 %v2120, %v2119
      %v2157 = vpack.c.b16 %v2122, %v2121
      %v2158 = vpack.c.b16 %v2124, %v2123
      %v2159 = vpack.c.b16 %v2126, %v2125
      %v2160 = vpack.c.b16 %v2128, %v2127
      %v2161 = vpack.c.b16 %v2130, %v2129
      %v2162 = vpack.c.b16 %v2132, %v2131
      %v2163 = vpack.c.b16 %v2134, %v2133
      %v2164 = vpack.c.b16 %v2136, %v2135
      %v2165 = vpack.c.b16 %v2138, %v2137
      %v2166 = vpack.c.b16 %v2140, %v2139
      %v2167 = vpack.c.b16 %v2142, %v2141
      %v2168 = vpack.c.b16 %v2144, %v2143
      %v2169 = vpack.c.b16 %v2146, %v2145
      %v2170 = vpack.c.b16 %v2148, %v2147
      %v2171 = vpack.c.b16 %v2150, %v2149
      %v2172 = vpack.c.b16 %v2152, %v2151
      %v2173 = vpack.c.b16 %v2154, %v2153
      %v2174 = vpack.c.b16 %v2155, %v2155
      %v2175 = vrot.slane %v2156, 2
      %v2176 = vrot.slane %v2157, 2
      %v2177 = vsel %vm1809, %v2175, %v2176
      %v2178 = vrot.slane %v2158, 2
      %v2179 = vsel %vm1809, %v2176, %v2178
      %v2180 = vrot.slane %v2159, 2
      %v2181 = vsel %vm1809, %v2178, %v2180
      %v2182 = vrot.slane %v2160, 2
      %v2183 = vsel %vm1809, %v2180, %v2182
      %v2184 = vrot.slane %v2161, 2
      %v2185 = vsel %vm1809, %v2182, %v2184
      %v2186 = vrot.slane %v2162, 2
      %v2187 = vsel %vm1809, %v2184, %v2186
      %v2188 = vrot.slane %v2163, 2
      %v2189 = vsel %vm1809, %v2186, %v2188
      %v2190 = vrot.slane %v2164, 2
      %v2191 = vsel %vm1809, %v2188, %v2190
      %v2192 = vrot.slane %v2165, 2
      %v2193 = vsel %vm1809, %v2190, %v2192
      %v2194 = vrot.slane %v2166, 2
      %v2195 = vsel %vm1809, %v2192, %v2194
      %v2196 = vrot.slane %v2167, 2
      %v2197 = vsel %vm1809, %v2194, %v2196
      %v2198 = vrot.slane %v2168, 2
      %v2199 = vsel %vm1809, %v2196, %v2198
      %v2200 = vrot.slane %v2169, 2
      %v2201 = vsel %vm1809, %v2198, %v2200
      %v2202 = vrot.slane %v2170, 2
      %v2203 = vsel %vm1809, %v2200, %v2202
      %v2204 = vrot.slane %v2171, 2
      %v2205 = vsel %vm1809, %v2202, %v2204
      %v2206 = vrot.slane %v2172, 2
      %v2207 = vsel %vm1809, %v2204, %v2206
      %v2208 = vrot.slane %v2173, 2
      %v2209 = vsel %vm1809, %v2206, %v2208
      %v2210 = vrot.slane %v2174, 2
      %v2211 = vsel %vm1809, %v2208, %v2210
      %v2214 = vunpack.c.l.b16 %v2080
      %v2215 = vunpack.c.l.b16 %v2081
      %v2216 = vpack.c.b16 %v2215, %v2214
      %v2219 = vsel %vm529, %v2177, 0
      %v2222 = vsel %vm529, %v2179, 0
      %v2225 = vsel %vm529, %v2181, 0
      %v2228 = vsel %vm529, %v2183, 0
      %v2231 = vsel %vm529, %v2185, 0
      %v2234 = vsel %vm529, %v2187, 0
      %v2237 = vsel %vm529, %v2189, 0
      %v2240 = vsel %vm529, %v2191, 0
      %v2243 = vsel %vm529, %v2193, 0
      %v2246 = vsel %vm529, %v2195, 0
      %v2249 = vsel %vm529, %v2197, 0
      %v2252 = vsel %vm529, %v2199, 0
      %v2255 = vsel %vm529, %v2201, 0
      %v2258 = vsel %vm529, %v2203, 0
      %v2261 = vsel %vm529, %v2205, 0
      %v2264 = vsel %vm529, %v2207, 0
      %v2267 = vsel %vm529, %v2209, 0
      %v2270 = vsel %vm529, %v2211, 0
      %2272 = vmatpush.bf16.msra.mxu0 0
      %2273 = vmatpush.bf16.msra.mxu0 0
      %2274 = vmatpush.bf16.msra.mxu0 0
      %2275 = vmatpush.bf16.msra.mxu0 0
      %2276 = vmatpush.bf16.msra.mxu0 0
      %2277 = vmatpush.bf16.msra.mxu0 0
      %2278 = vmatpush.bf16.msra.mxu0 0
      %2279 = vmatpush.bf16.msra.mxu0 %v2216
      %2280 = vmatmul.bf16.gmra.mxu0 %v2219
      %v2281 = vpop.f32.mrf.mxu0
      %v2282 = vadd.f32 0.0, %v2281
      %v2283 = vpop.f32.mrf.mxu0
      %v2284 = vadd.f32 0.0, %v2283
      %2285 = vmatmul.bf16.gmra.mxu0 %v2222
      %v2286 = vpop.f32.mrf.mxu0
      %v2287 = vadd.f32 0.0, %v2286
      %v2288 = vpop.f32.mrf.mxu0
      %v2289 = vadd.f32 0.0, %v2288
      %2290 = vmatmul.bf16.gmra.mxu0 %v2225
      %v2291 = vpop.f32.mrf.mxu0
      %v2292 = vadd.f32 0.0, %v2291
      %v2293 = vpop.f32.mrf.mxu0
      %v2294 = vadd.f32 0.0, %v2293
      %2295 = vmatmul.bf16.gmra.mxu0 %v2228
      %v2296 = vpop.f32.mrf.mxu0
      %v2297 = vadd.f32 0.0, %v2296
      %v2298 = vpop.f32.mrf.mxu0
      %v2299 = vadd.f32 0.0, %v2298
      %2300 = vmatmul.bf16.gmra.mxu0 %v2231
      %v2301 = vpop.f32.mrf.mxu0
      %v2302 = vadd.f32 0.0, %v2301
      %v2303 = vpop.f32.mrf.mxu0
      %v2304 = vadd.f32 0.0, %v2303
      %2305 = vmatmul.bf16.gmra.mxu0 %v2234
      %v2306 = vpop.f32.mrf.mxu0
      %v2307 = vadd.f32 0.0, %v2306
      %v2308 = vpop.f32.mrf.mxu0
      %v2309 = vadd.f32 0.0, %v2308
      %2310 = vmatmul.bf16.gmra.mxu0 %v2237
      %v2311 = vpop.f32.mrf.mxu0
      %v2312 = vadd.f32 0.0, %v2311
      %v2313 = vpop.f32.mrf.mxu0
      %v2314 = vadd.f32 0.0, %v2313
      %2315 = vmatmul.bf16.gmra.mxu0 %v2240
      %v2316 = vpop.f32.mrf.mxu0
      %v2317 = vadd.f32 0.0, %v2316
      %v2318 = vpop.f32.mrf.mxu0
      %v2319 = vadd.f32 0.0, %v2318
      %2320 = vmatmul.bf16.gmra.mxu0 %v2243
      %v2321 = vpop.f32.mrf.mxu0
      %v2322 = vadd.f32 0.0, %v2321
      %v2323 = vpop.f32.mrf.mxu0
      %v2324 = vadd.f32 0.0, %v2323
      %2325 = vmatmul.bf16.gmra.mxu0 %v2246
      %v2326 = vpop.f32.mrf.mxu0
      %v2327 = vadd.f32 0.0, %v2326
      %v2328 = vpop.f32.mrf.mxu0
      %v2329 = vadd.f32 0.0, %v2328
      %2330 = vmatmul.bf16.gmra.mxu0 %v2249
      %v2331 = vpop.f32.mrf.mxu0
      %v2332 = vadd.f32 0.0, %v2331
      %v2333 = vpop.f32.mrf.mxu0
      %v2334 = vadd.f32 0.0, %v2333
      %2335 = vmatmul.bf16.gmra.mxu0 %v2252
      %v2336 = vpop.f32.mrf.mxu0
      %v2337 = vadd.f32 0.0, %v2336
      %v2338 = vpop.f32.mrf.mxu0
      %v2339 = vadd.f32 0.0, %v2338
      %2340 = vmatmul.bf16.gmra.mxu0 %v2255
      %v2341 = vpop.f32.mrf.mxu0
      %v2342 = vadd.f32 0.0, %v2341
      %v2343 = vpop.f32.mrf.mxu0
      %v2344 = vadd.f32 0.0, %v2343
      %2345 = vmatmul.bf16.gmra.mxu0 %v2258
      %v2346 = vpop.f32.mrf.mxu0
      %v2347 = vadd.f32 0.0, %v2346
      %v2348 = vpop.f32.mrf.mxu0
      %v2349 = vadd.f32 0.0, %v2348
      %2350 = vmatmul.bf16.gmra.mxu0 %v2261
      %v2351 = vpop.f32.mrf.mxu0
      %v2352 = vadd.f32 0.0, %v2351
      %v2353 = vpop.f32.mrf.mxu0
      %v2354 = vadd.f32 0.0, %v2353
      %2355 = vmatmul.bf16.gmra.mxu0 %v2264
      %v2356 = vpop.f32.mrf.mxu0
      %v2357 = vadd.f32 0.0, %v2356
      %v2358 = vpop.f32.mrf.mxu0
      %v2359 = vadd.f32 0.0, %v2358
      %2360 = vmatmul.bf16.gmra.mxu0 %v2267
      %v2361 = vpop.f32.mrf.mxu0
      %v2362 = vadd.f32 0.0, %v2361
      %v2363 = vpop.f32.mrf.mxu0
      %v2364 = vadd.f32 0.0, %v2363
      %2365 = vmatmul.bf16.gmra.mxu0 %v2270
      %v2366 = vpop.f32.mrf.mxu0
      %v2367 = vadd.f32 0.0, %v2366
      %v2368 = vpop.f32.mrf.mxu0
      %v2369 = vadd.f32 0.0, %v2368
      %2370 = vdwg.mxu0
      %v2371 = vadd.f32 %v2006, %v2282
      %v2372 = vadd.f32 %v2007, %v2284
      %v2373 = vadd.f32 %v2008, %v2287
      %v2374 = vadd.f32 %v2009, %v2289
      %v2375 = vadd.f32 %v2010, %v2292
      %v2376 = vadd.f32 %v2011, %v2294
      %v2377 = vadd.f32 %v2012, %v2297
      %v2378 = vadd.f32 %v2013, %v2299
      %v2379 = vadd.f32 %v2014, %v2302
      %v2380 = vadd.f32 %v2015, %v2304
      %v2381 = vadd.f32 %v2016, %v2307
      %v2382 = vadd.f32 %v2017, %v2309
      %v2383 = vadd.f32 %v2018, %v2312
      %v2384 = vadd.f32 %v2019, %v2314
      %v2385 = vadd.f32 %v2020, %v2317
      %v2386 = vadd.f32 %v2021, %v2319
      %v2387 = vadd.f32 %v2022, %v2322
      %v2388 = vadd.f32 %v2023, %v2324
      %v2389 = vadd.f32 %v2024, %v2327
      %v2390 = vadd.f32 %v2025, %v2329
      %v2391 = vadd.f32 %v2026, %v2332
      %v2392 = vadd.f32 %v2027, %v2334
      %v2393 = vadd.f32 %v2028, %v2337
      %v2394 = vadd.f32 %v2029, %v2339
      %v2395 = vadd.f32 %v2030, %v2342
      %v2396 = vadd.f32 %v2031, %v2344
      %v2397 = vadd.f32 %v2032, %v2347
      %v2398 = vadd.f32 %v2033, %v2349
      %v2399 = vadd.f32 %v2034, %v2352
      %v2400 = vadd.f32 %v2035, %v2354
      %v2401 = vadd.f32 %v2036, %v2357
      %v2402 = vadd.f32 %v2037, %v2359
      %v2403 = vadd.f32 %v2038, %v2362
      %v2404 = vadd.f32 %v2039, %v2364
      %v2405 = vadd.f32 %v2040, %v2367
      %v2406 = vadd.f32 %v2041, %v2369
      %v2407 = vld [vmem:[%s227 + $0xa0] sm:$0x7]
      %s2408 = scalar_lea.vmem %s1, 56
      %v2409 = vld [vmem:[%s2408] sm:$0xf]
      %v2410 = vld [vmem:[%s2408 + $0x4] sm:$0xf]
      %v2412 = vunpack.c.l.b16 %v2407
      %v2413 = vpack.c.b16 %v2412, %v2412
      %vm2414 = vsmask.f32 5376
      %v2416 = vshrl.u32 %v2156, 16
      %v2418 = vrot.slane %v2416, 2
      %v2419 = vshll.u32 %v2156, 16
      %v2421 = vrot.slane %v2419, 3
      %v2422 = vor.u32 %v2418, %v2421
      %v2424 = vshrl.u32 %v2157, 16
      %v2426 = vrot.slane %v2424, 2
      %v2427 = vshll.u32 %v2157, 16
      %v2429 = vrot.slane %v2427, 3
      %v2430 = vor.u32 %v2426, %v2429
      %v2431 = vsel %vm2414, %v2422, %v2430
      %v2433 = vshrl.u32 %v2158, 16
      %v2435 = vrot.slane %v2433, 2
      %v2436 = vshll.u32 %v2158, 16
      %v2438 = vrot.slane %v2436, 3
      %v2439 = vor.u32 %v2435, %v2438
      %v2440 = vsel %vm2414, %v2430, %v2439
      %v2442 = vshrl.u32 %v2159, 16
      %v2444 = vrot.slane %v2442, 2
      %v2445 = vshll.u32 %v2159, 16
      %v2447 = vrot.slane %v2445, 3
      %v2448 = vor.u32 %v2444, %v2447
      %v2449 = vsel %vm2414, %v2439, %v2448
      %v2451 = vshrl.u32 %v2160, 16
      %v2453 = vrot.slane %v2451, 2
      %v2454 = vshll.u32 %v2160, 16
      %v2456 = vrot.slane %v2454, 3
      %v2457 = vor.u32 %v2453, %v2456
      %v2458 = vsel %vm2414, %v2448, %v2457
      %v2460 = vshrl.u32 %v2161, 16
      %v2462 = vrot.slane %v2460, 2
      %v2463 = vshll.u32 %v2161, 16
      %v2465 = vrot.slane %v2463, 3
      %v2466 = vor.u32 %v2462, %v2465
      %v2467 = vsel %vm2414, %v2457, %v2466
      %v2469 = vshrl.u32 %v2162, 16
      %v2471 = vrot.slane %v2469, 2
      %v2472 = vshll.u32 %v2162, 16
      %v2474 = vrot.slane %v2472, 3
      %v2475 = vor.u32 %v2471, %v2474
      %v2476 = vsel %vm2414, %v2466, %v2475
      %v2478 = vshrl.u32 %v2163, 16
      %v2480 = vrot.slane %v2478, 2
      %v2481 = vshll.u32 %v2163, 16
      %v2483 = vrot.slane %v2481, 3
      %v2484 = vor.u32 %v2480, %v2483
      %v2485 = vsel %vm2414, %v2475, %v2484
      %v2487 = vshrl.u32 %v2164, 16
      %v2489 = vrot.slane %v2487, 2
      %v2490 = vshll.u32 %v2164, 16
      %v2492 = vrot.slane %v2490, 3
      %v2493 = vor.u32 %v2489, %v2492
      %v2494 = vsel %vm2414, %v2484, %v2493
      %v2496 = vshrl.u32 %v2165, 16
      %v2498 = vrot.slane %v2496, 2
      %v2499 = vshll.u32 %v2165, 16
      %v2501 = vrot.slane %v2499, 3
      %v2502 = vor.u32 %v2498, %v2501
      %v2503 = vsel %vm2414, %v2493, %v2502
      %v2505 = vshrl.u32 %v2166, 16
      %v2507 = vrot.slane %v2505, 2
      %v2508 = vshll.u32 %v2166, 16
      %v2510 = vrot.slane %v2508, 3
      %v2511 = vor.u32 %v2507, %v2510
      %v2512 = vsel %vm2414, %v2502, %v2511
      %v2514 = vshrl.u32 %v2167, 16
      %v2516 = vrot.slane %v2514, 2
      %v2517 = vshll.u32 %v2167, 16
      %v2519 = vrot.slane %v2517, 3
      %v2520 = vor.u32 %v2516, %v2519
      %v2521 = vsel %vm2414, %v2511, %v2520
      %v2523 = vshrl.u32 %v2168, 16
      %v2525 = vrot.slane %v2523, 2
      %v2526 = vshll.u32 %v2168, 16
      %v2528 = vrot.slane %v2526, 3
      %v2529 = vor.u32 %v2525, %v2528
      %v2530 = vsel %vm2414, %v2520, %v2529
      %v2532 = vshrl.u32 %v2169, 16
      %v2534 = vrot.slane %v2532, 2
      %v2535 = vshll.u32 %v2169, 16
      %v2537 = vrot.slane %v2535, 3
      %v2538 = vor.u32 %v2534, %v2537
      %v2539 = vsel %vm2414, %v2529, %v2538
      %v2541 = vshrl.u32 %v2170, 16
      %v2543 = vrot.slane %v2541, 2
      %v2544 = vshll.u32 %v2170, 16
      %v2546 = vrot.slane %v2544, 3
      %v2547 = vor.u32 %v2543, %v2546
      %v2548 = vsel %vm2414, %v2538, %v2547
      %v2550 = vshrl.u32 %v2171, 16
      %v2552 = vrot.slane %v2550, 2
      %v2553 = vshll.u32 %v2171, 16
      %v2555 = vrot.slane %v2553, 3
      %v2556 = vor.u32 %v2552, %v2555
      %v2557 = vsel %vm2414, %v2547, %v2556
      %v2559 = vshrl.u32 %v2172, 16
      %v2561 = vrot.slane %v2559, 2
      %v2562 = vshll.u32 %v2172, 16
      %v2564 = vrot.slane %v2562, 3
      %v2565 = vor.u32 %v2561, %v2564
      %v2566 = vsel %vm2414, %v2556, %v2565
      %v2568 = vshrl.u32 %v2173, 16
      %v2570 = vrot.slane %v2568, 2
      %v2571 = vshll.u32 %v2173, 16
      %v2573 = vrot.slane %v2571, 3
      %v2574 = vor.u32 %v2570, %v2573
      %v2575 = vsel %vm2414, %v2565, %v2574
      %v2577 = vshrl.u32 %v2413, 16
      %v2579 = vrot.slane %v2577, 2
      %v2580 = vshll.u32 %v2413, 16
      %v2582 = vrot.slane %v2580, 3
      %v2583 = vor.u32 %v2579, %v2582
      %v2584 = vsel %vm2414, %v2574, %v2583
      %v2587 = vunpack.c.l.b16 %v2409
      %v2588 = vunpack.c.l.b16 %v2410
      %v2589 = vpack.c.b16 %v2588, %v2587
      %v2592 = vsel %vm529, %v2431, 0
      %v2595 = vsel %vm529, %v2440, 0
      %v2598 = vsel %vm529, %v2449, 0
      %v2601 = vsel %vm529, %v2458, 0
      %v2604 = vsel %vm529, %v2467, 0
      %v2607 = vsel %vm529, %v2476, 0
      %v2610 = vsel %vm529, %v2485, 0
      %v2613 = vsel %vm529, %v2494, 0
      %v2616 = vsel %vm529, %v2503, 0
      %v2619 = vsel %vm529, %v2512, 0
      %v2622 = vsel %vm529, %v2521, 0
      %v2625 = vsel %vm529, %v2530, 0
      %v2628 = vsel %vm529, %v2539, 0
      %v2631 = vsel %vm529, %v2548, 0
      %v2634 = vsel %vm529, %v2557, 0
      %v2637 = vsel %vm529, %v2566, 0
      %v2640 = vsel %vm529, %v2575, 0
      %v2643 = vsel %vm529, %v2584, 0
      %2645 = vmatpush.bf16.msra.mxu0 0
      %2646 = vmatpush.bf16.msra.mxu0 0
      %2647 = vmatpush.bf16.msra.mxu0 0
      %2648 = vmatpush.bf16.msra.mxu0 0
      %2649 = vmatpush.bf16.msra.mxu0 0
      %2650 = vmatpush.bf16.msra.mxu0 0
      %2651 = vmatpush.bf16.msra.mxu0 0
      %2652 = vmatpush.bf16.msra.mxu0 %v2589
      %2653 = vmatmul.bf16.gmra.mxu0 %v2592
      %v2654 = vpop.f32.mrf.mxu0
      %v2655 = vadd.f32 0.0, %v2654
      %v2656 = vpop.f32.mrf.mxu0
      %v2657 = vadd.f32 0.0, %v2656
      %2658 = vmatmul.bf16.gmra.mxu0 %v2595
      %v2659 = vpop.f32.mrf.mxu0
      %v2660 = vadd.f32 0.0, %v2659
      %v2661 = vpop.f32.mrf.mxu0
      %v2662 = vadd.f32 0.0, %v2661
      %2663 = vmatmul.bf16.gmra.mxu0 %v2598
      %v2664 = vpop.f32.mrf.mxu0
      %v2665 = vadd.f32 0.0, %v2664
      %v2666 = vpop.f32.mrf.mxu0
      %v2667 = vadd.f32 0.0, %v2666
      %2668 = vmatmul.bf16.gmra.mxu0 %v2601
      %v2669 = vpop.f32.mrf.mxu0
      %v2670 = vadd.f32 0.0, %v2669
      %v2671 = vpop.f32.mrf.mxu0
      %v2672 = vadd.f32 0.0, %v2671
      %2673 = vmatmul.bf16.gmra.mxu0 %v2604
      %v2674 = vpop.f32.mrf.mxu0
      %v2675 = vadd.f32 0.0, %v2674
      %v2676 = vpop.f32.mrf.mxu0
      %v2677 = vadd.f32 0.0, %v2676
      %2678 = vmatmul.bf16.gmra.mxu0 %v2607
      %v2679 = vpop.f32.mrf.mxu0
      %v2680 = vadd.f32 0.0, %v2679
      %v2681 = vpop.f32.mrf.mxu0
      %v2682 = vadd.f32 0.0, %v2681
      %2683 = vmatmul.bf16.gmra.mxu0 %v2610
      %v2684 = vpop.f32.mrf.mxu0
      %v2685 = vadd.f32 0.0, %v2684
      %v2686 = vpop.f32.mrf.mxu0
      %v2687 = vadd.f32 0.0, %v2686
      %2688 = vmatmul.bf16.gmra.mxu0 %v2613
      %v2689 = vpop.f32.mrf.mxu0
      %v2690 = vadd.f32 0.0, %v2689
      %v2691 = vpop.f32.mrf.mxu0
      %v2692 = vadd.f32 0.0, %v2691
      %2693 = vmatmul.bf16.gmra.mxu0 %v2616
      %v2694 = vpop.f32.mrf.mxu0
      %v2695 = vadd.f32 0.0, %v2694
      %v2696 = vpop.f32.mrf.mxu0
      %v2697 = vadd.f32 0.0, %v2696
      %2698 = vmatmul.bf16.gmra.mxu0 %v2619
      %v2699 = vpop.f32.mrf.mxu0
      %v2700 = vadd.f32 0.0, %v2699
      %v2701 = vpop.f32.mrf.mxu0
      %v2702 = vadd.f32 0.0, %v2701
      %2703 = vmatmul.bf16.gmra.mxu0 %v2622
      %v2704 = vpop.f32.mrf.mxu0
      %v2705 = vadd.f32 0.0, %v2704
      %v2706 = vpop.f32.mrf.mxu0
      %v2707 = vadd.f32 0.0, %v2706
      %2708 = vmatmul.bf16.gmra.mxu0 %v2625
      %v2709 = vpop.f32.mrf.mxu0
      %v2710 = vadd.f32 0.0, %v2709
      %v2711 = vpop.f32.mrf.mxu0
      %v2712 = vadd.f32 0.0, %v2711
      %2713 = vmatmul.bf16.gmra.mxu0 %v2628
      %v2714 = vpop.f32.mrf.mxu0
      %v2715 = vadd.f32 0.0, %v2714
      %v2716 = vpop.f32.mrf.mxu0
      %v2717 = vadd.f32 0.0, %v2716
      %2718 = vmatmul.bf16.gmra.mxu0 %v2631
      %v2719 = vpop.f32.mrf.mxu0
      %v2720 = vadd.f32 0.0, %v2719
      %v2721 = vpop.f32.mrf.mxu0
      %v2722 = vadd.f32 0.0, %v2721
      %2723 = vmatmul.bf16.gmra.mxu0 %v2634
      %v2724 = vpop.f32.mrf.mxu0
      %v2725 = vadd.f32 0.0, %v2724
      %v2726 = vpop.f32.mrf.mxu0
      %v2727 = vadd.f32 0.0, %v2726
      %2728 = vmatmul.bf16.gmra.mxu0 %v2637
      %v2729 = vpop.f32.mrf.mxu0
      %v2730 = vadd.f32 0.0, %v2729
      %v2731 = vpop.f32.mrf.mxu0
      %v2732 = vadd.f32 0.0, %v2731
      %2733 = vmatmul.bf16.gmra.mxu0 %v2640
      %v2734 = vpop.f32.mrf.mxu0
      %v2735 = vadd.f32 0.0, %v2734
      %v2736 = vpop.f32.mrf.mxu0
      %v2737 = vadd.f32 0.0, %v2736
      %2738 = vmatmul.bf16.gmra.mxu0 %v2643
      %v2739 = vpop.f32.mrf.mxu0
      %v2740 = vadd.f32 0.0, %v2739
      %v2741 = vpop.f32.mrf.mxu0
      %v2742 = vadd.f32 0.0, %v2741
      %2743 = vdwg.mxu0
      %v2744 = vadd.f32 %v2371, %v2655
      %v2745 = vadd.f32 %v2372, %v2657
      %v2746 = vadd.f32 %v2373, %v2660
      %v2747 = vadd.f32 %v2374, %v2662
      %v2748 = vadd.f32 %v2375, %v2665
      %v2749 = vadd.f32 %v2376, %v2667
      %v2750 = vadd.f32 %v2377, %v2670
      %v2751 = vadd.f32 %v2378, %v2672
      %v2752 = vadd.f32 %v2379, %v2675
      %v2753 = vadd.f32 %v2380, %v2677
      %v2754 = vadd.f32 %v2381, %v2680
      %v2755 = vadd.f32 %v2382, %v2682
      %v2756 = vadd.f32 %v2383, %v2685
      %v2757 = vadd.f32 %v2384, %v2687
      %v2758 = vadd.f32 %v2385, %v2690
      %v2759 = vadd.f32 %v2386, %v2692
      %v2760 = vadd.f32 %v2387, %v2695
      %v2761 = vadd.f32 %v2388, %v2697
      %v2762 = vadd.f32 %v2389, %v2700
      %v2763 = vadd.f32 %v2390, %v2702
      %v2764 = vadd.f32 %v2391, %v2705
      %v2765 = vadd.f32 %v2392, %v2707
      %v2766 = vadd.f32 %v2393, %v2710
      %v2767 = vadd.f32 %v2394, %v2712
      %v2768 = vadd.f32 %v2395, %v2715
      %v2769 = vadd.f32 %v2396, %v2717
      %v2770 = vadd.f32 %v2397, %v2720
      %v2771 = vadd.f32 %v2398, %v2722
      %v2772 = vadd.f32 %v2399, %v2725
      %v2773 = vadd.f32 %v2400, %v2727
      %v2774 = vadd.f32 %v2401, %v2730
      %v2775 = vadd.f32 %v2402, %v2732
      %v2776 = vadd.f32 %v2403, %v2735
      %v2777 = vadd.f32 %v2404, %v2737
      %v2778 = vadd.f32 %v2405, %v2740
      %v2779 = vadd.f32 %v2406, %v2742
      %v2780 = vld [vmem:[%s227 + $0x10] sm:$0x8]
      %s2781 = scalar_lea.vmem %s1, 64
      %v2782 = vld [vmem:[%s2781] sm:$0xf]
      %v2783 = vld [vmem:[%s2781 + $0x4] sm:$0xf]
      %v2785 = vunpack.c.l.b16 %v2780
      %v2786 = vpack.c.b16 %v2120, %v2785
      %vm2787 = vcmask 1044480
      %v2788 = vrot.slane %v2786, 3
      %v2789 = vrot.slane %v2157, 3
      %v2790 = vsel %vm2787, %v2788, %v2789
      %v2791 = vrot.slane %v2158, 3
      %v2792 = vsel %vm2787, %v2789, %v2791
      %v2793 = vrot.slane %v2159, 3
      %v2794 = vsel %vm2787, %v2791, %v2793
      %v2795 = vrot.slane %v2160, 3
      %v2796 = vsel %vm2787, %v2793, %v2795
      %v2797 = vrot.slane %v2161, 3
      %v2798 = vsel %vm2787, %v2795, %v2797
      %v2799 = vrot.slane %v2162, 3
      %v2800 = vsel %vm2787, %v2797, %v2799
      %v2801 = vrot.slane %v2163, 3
      %v2802 = vsel %vm2787, %v2799, %v2801
      %v2803 = vrot.slane %v2164, 3
      %v2804 = vsel %vm2787, %v2801, %v2803
      %v2805 = vrot.slane %v2165, 3
      %v2806 = vsel %vm2787, %v2803, %v2805
      %v2807 = vrot.slane %v2166, 3
      %v2808 = vsel %vm2787, %v2805, %v2807
      %v2809 = vrot.slane %v2167, 3
      %v2810 = vsel %vm2787, %v2807, %v2809
      %v2811 = vrot.slane %v2168, 3
      %v2812 = vsel %vm2787, %v2809, %v2811
      %v2813 = vrot.slane %v2169, 3
      %v2814 = vsel %vm2787, %v2811, %v2813
      %v2815 = vrot.slane %v2170, 3
      %v2816 = vsel %vm2787, %v2813, %v2815
      %v2817 = vrot.slane %v2171, 3
      %v2818 = vsel %vm2787, %v2815, %v2817
      %v2819 = vrot.slane %v2172, 3
      %v2820 = vsel %vm2787, %v2817, %v2819
      %v2821 = vrot.slane %v2173, 3
      %v2822 = vsel %vm2787, %v2819, %v2821
      %v2823 = vrot.slane %v2413, 3
      %v2824 = vsel %vm2787, %v2821, %v2823
      %v2827 = vunpack.c.l.b16 %v2782
      %v2828 = vunpack.c.l.b16 %v2783
      %v2829 = vpack.c.b16 %v2828, %v2827
      %v2832 = vsel %vm529, %v2790, 0
      %v2835 = vsel %vm529, %v2792, 0
      %v2838 = vsel %vm529, %v2794, 0
      %v2841 = vsel %vm529, %v2796, 0
      %v2844 = vsel %vm529, %v2798, 0
      %v2847 = vsel %vm529, %v2800, 0
      %v2850 = vsel %vm529, %v2802, 0
      %v2853 = vsel %vm529, %v2804, 0
      %v2856 = vsel %vm529, %v2806, 0
      %v2859 = vsel %vm529, %v2808, 0
      %v2862 = vsel %vm529, %v2810, 0
      %v2865 = vsel %vm529, %v2812, 0
      %v2868 = vsel %vm529, %v2814, 0
      %v2871 = vsel %vm529, %v2816, 0
      %v2874 = vsel %vm529, %v2818, 0
      %v2877 = vsel %vm529, %v2820, 0
      %v2880 = vsel %vm529, %v2822, 0
      %v2883 = vsel %vm529, %v2824, 0
      %2885 = vmatpush.bf16.msra.mxu0 0
      %2886 = vmatpush.bf16.msra.mxu0 0
      %2887 = vmatpush.bf16.msra.mxu0 0
      %2888 = vmatpush.bf16.msra.mxu0 0
      %2889 = vmatpush.bf16.msra.mxu0 0
      %2890 = vmatpush.bf16.msra.mxu0 0
      %2891 = vmatpush.bf16.msra.mxu0 0
      %2892 = vmatpush.bf16.msra.mxu0 %v2829
      %2893 = vmatmul.bf16.gmra.mxu0 %v2832
      %v2894 = vpop.f32.mrf.mxu0
      %v2895 = vadd.f32 0.0, %v2894
      %v2896 = vpop.f32.mrf.mxu0
      %v2897 = vadd.f32 0.0, %v2896
      %2898 = vmatmul.bf16.gmra.mxu0 %v2835
      %v2899 = vpop.f32.mrf.mxu0
      %v2900 = vadd.f32 0.0, %v2899
      %v2901 = vpop.f32.mrf.mxu0
      %v2902 = vadd.f32 0.0, %v2901
      %2903 = vmatmul.bf16.gmra.mxu0 %v2838
      %v2904 = vpop.f32.mrf.mxu0
      %v2905 = vadd.f32 0.0, %v2904
      %v2906 = vpop.f32.mrf.mxu0
      %v2907 = vadd.f32 0.0, %v2906
      %2908 = vmatmul.bf16.gmra.mxu0 %v2841
      %v2909 = vpop.f32.mrf.mxu0
      %v2910 = vadd.f32 0.0, %v2909
      %v2911 = vpop.f32.mrf.mxu0
      %v2912 = vadd.f32 0.0, %v2911
      %2913 = vmatmul.bf16.gmra.mxu0 %v2844
      %v2914 = vpop.f32.mrf.mxu0
      %v2915 = vadd.f32 0.0, %v2914
      %v2916 = vpop.f32.mrf.mxu0
      %v2917 = vadd.f32 0.0, %v2916
      %2918 = vmatmul.bf16.gmra.mxu0 %v2847
      %v2919 = vpop.f32.mrf.mxu0
      %v2920 = vadd.f32 0.0, %v2919
      %v2921 = vpop.f32.mrf.mxu0
      %v2922 = vadd.f32 0.0, %v2921
      %2923 = vmatmul.bf16.gmra.mxu0 %v2850
      %v2924 = vpop.f32.mrf.mxu0
      %v2925 = vadd.f32 0.0, %v2924
      %v2926 = vpop.f32.mrf.mxu0
      %v2927 = vadd.f32 0.0, %v2926
      %2928 = vmatmul.bf16.gmra.mxu0 %v2853
      %v2929 = vpop.f32.mrf.mxu0
      %v2930 = vadd.f32 0.0, %v2929
      %v2931 = vpop.f32.mrf.mxu0
      %v2932 = vadd.f32 0.0, %v2931
      %2933 = vmatmul.bf16.gmra.mxu0 %v2856
      %v2934 = vpop.f32.mrf.mxu0
      %v2935 = vadd.f32 0.0, %v2934
      %v2936 = vpop.f32.mrf.mxu0
      %v2937 = vadd.f32 0.0, %v2936
      %2938 = vmatmul.bf16.gmra.mxu0 %v2859
      %v2939 = vpop.f32.mrf.mxu0
      %v2940 = vadd.f32 0.0, %v2939
      %v2941 = vpop.f32.mrf.mxu0
      %v2942 = vadd.f32 0.0, %v2941
      %2943 = vmatmul.bf16.gmra.mxu0 %v2862
      %v2944 = vpop.f32.mrf.mxu0
      %v2945 = vadd.f32 0.0, %v2944
      %v2946 = vpop.f32.mrf.mxu0
      %v2947 = vadd.f32 0.0, %v2946
      %2948 = vmatmul.bf16.gmra.mxu0 %v2865
      %v2949 = vpop.f32.mrf.mxu0
      %v2950 = vadd.f32 0.0, %v2949
      %v2951 = vpop.f32.mrf.mxu0
      %v2952 = vadd.f32 0.0, %v2951
      %2953 = vmatmul.bf16.gmra.mxu0 %v2868
      %v2954 = vpop.f32.mrf.mxu0
      %v2955 = vadd.f32 0.0, %v2954
      %v2956 = vpop.f32.mrf.mxu0
      %v2957 = vadd.f32 0.0, %v2956
      %2958 = vmatmul.bf16.gmra.mxu0 %v2871
      %v2959 = vpop.f32.mrf.mxu0
      %v2960 = vadd.f32 0.0, %v2959
      %v2961 = vpop.f32.mrf.mxu0
      %v2962 = vadd.f32 0.0, %v2961
      %2963 = vmatmul.bf16.gmra.mxu0 %v2874
      %v2964 = vpop.f32.mrf.mxu0
      %v2965 = vadd.f32 0.0, %v2964
      %v2966 = vpop.f32.mrf.mxu0
      %v2967 = vadd.f32 0.0, %v2966
      %2968 = vmatmul.bf16.gmra.mxu0 %v2877
      %v2969 = vpop.f32.mrf.mxu0
      %v2970 = vadd.f32 0.0, %v2969
      %v2971 = vpop.f32.mrf.mxu0
      %v2972 = vadd.f32 0.0, %v2971
      %2973 = vmatmul.bf16.gmra.mxu0 %v2880
      %v2974 = vpop.f32.mrf.mxu0
      %v2975 = vadd.f32 0.0, %v2974
      %v2976 = vpop.f32.mrf.mxu0
      %v2977 = vadd.f32 0.0, %v2976
      %2978 = vmatmul.bf16.gmra.mxu0 %v2883
      %v2979 = vpop.f32.mrf.mxu0
      %v2980 = vadd.f32 0.0, %v2979
      %v2981 = vpop.f32.mrf.mxu0
      %v2982 = vadd.f32 0.0, %v2981
      %2983 = vdwg.mxu0
      %v2984 = vadd.f32 %v2744, %v2895
      %v2985 = vadd.f32 %v2745, %v2897
      %v2986 = vadd.f32 %v2746, %v2900
      %v2987 = vadd.f32 %v2747, %v2902
      %v2988 = vadd.f32 %v2748, %v2905
      %v2989 = vadd.f32 %v2749, %v2907
      %v2990 = vadd.f32 %v2750, %v2910
      %v2991 = vadd.f32 %v2751, %v2912
      %v2992 = vadd.f32 %v2752, %v2915
      %v2993 = vadd.f32 %v2753, %v2917
      %v2994 = vadd.f32 %v2754, %v2920
      %v2995 = vadd.f32 %v2755, %v2922
      %v2996 = vadd.f32 %v2756, %v2925
      %v2997 = vadd.f32 %v2757, %v2927
      %v2998 = vadd.f32 %v2758, %v2930
      %v2999 = vadd.f32 %v2759, %v2932
      %v3000 = vadd.f32 %v2760, %v2935
      %v3001 = vadd.f32 %v2761, %v2937
      %v3002 = vadd.f32 %v2762, %v2940
      %v3003 = vadd.f32 %v2763, %v2942
      %v3004 = vadd.f32 %v2764, %v2945
      %v3005 = vadd.f32 %v2765, %v2947
      %v3006 = vadd.f32 %v2766, %v2950
      %v3007 = vadd.f32 %v2767, %v2952
      %v3008 = vadd.f32 %v2768, %v2955
      %v3009 = vadd.f32 %v2769, %v2957
      %v3010 = vadd.f32 %v2770, %v2960
      %v3011 = vadd.f32 %v2771, %v2962
      %v3012 = vadd.f32 %v2772, %v2965
      %v3013 = vadd.f32 %v2773, %v2967
      %v3014 = vadd.f32 %v2774, %v2970
      %v3015 = vadd.f32 %v2775, %v2972
      %v3016 = vadd.f32 %v2776, %v2975
      %v3017 = vadd.f32 %v2777, %v2977
      %v3018 = vadd.f32 %v2778, %v2980
      %v3019 = vadd.f32 %v2779, %v2982
      %v3020 = vld [vmem:[%s2] sm:$0x1]
      %v3022 = vperm.slane %v3020, 0
      %v3024 = vadd.f32 %v2984, %v3022
      %v3025 = vadd.f32 %v2985, %v3022
      %v3026 = vadd.f32 %v2986, %v3022
      %v3027 = vadd.f32 %v2987, %v3022
      %v3028 = vadd.f32 %v2988, %v3022
      %v3029 = vadd.f32 %v2989, %v3022
      %v3030 = vadd.f32 %v2990, %v3022
      %v3031 = vadd.f32 %v2991, %v3022
      %v3032 = vadd.f32 %v2992, %v3022
      %v3033 = vadd.f32 %v2993, %v3022
      %v3034 = vadd.f32 %v2994, %v3022
      %v3035 = vadd.f32 %v2995, %v3022
      %v3036 = vadd.f32 %v2996, %v3022
      %v3037 = vadd.f32 %v2997, %v3022
      %v3038 = vadd.f32 %v2998, %v3022
      %v3039 = vadd.f32 %v2999, %v3022
      %v3040 = vadd.f32 %v3000, %v3022
      %v3041 = vadd.f32 %v3001, %v3022
      %v3042 = vadd.f32 %v3002, %v3022
      %v3043 = vadd.f32 %v3003, %v3022
      %v3044 = vadd.f32 %v3004, %v3022
      %v3045 = vadd.f32 %v3005, %v3022
      %v3046 = vadd.f32 %v3006, %v3022
      %v3047 = vadd.f32 %v3007, %v3022
      %v3048 = vadd.f32 %v3008, %v3022
      %v3049 = vadd.f32 %v3009, %v3022
      %v3050 = vadd.f32 %v3010, %v3022
      %v3051 = vadd.f32 %v3011, %v3022
      %v3052 = vadd.f32 %v3012, %v3022
      %v3053 = vadd.f32 %v3013, %v3022
      %v3054 = vadd.f32 %v3014, %v3022
      %v3055 = vadd.f32 %v3015, %v3022
      %v3056 = vadd.f32 %v3016, %v3022
      %v3057 = vadd.f32 %v3017, %v3022
      %v3058 = vadd.f32 %v3018, %v3022
      %v3059 = vadd.f32 %v3019, %v3022
      %v3060 = vmax.f32 %v3024, 0.0
      %v3061 = vmax.f32 %v3025, 0.0
      %v3062 = vmax.f32 %v3026, 0.0
      %v3063 = vmax.f32 %v3027, 0.0
      %v3064 = vmax.f32 %v3028, 0.0
      %v3065 = vmax.f32 %v3029, 0.0
      %v3066 = vmax.f32 %v3030, 0.0
      %v3067 = vmax.f32 %v3031, 0.0
      %v3068 = vmax.f32 %v3032, 0.0
      %v3069 = vmax.f32 %v3033, 0.0
      %v3070 = vmax.f32 %v3034, 0.0
      %v3071 = vmax.f32 %v3035, 0.0
      %v3072 = vmax.f32 %v3036, 0.0
      %v3073 = vmax.f32 %v3037, 0.0
      %v3074 = vmax.f32 %v3038, 0.0
      %v3075 = vmax.f32 %v3039, 0.0
      %v3076 = vmax.f32 %v3040, 0.0
      %v3077 = vmax.f32 %v3041, 0.0
      %v3078 = vmax.f32 %v3042, 0.0
      %v3079 = vmax.f32 %v3043, 0.0
      %v3080 = vmax.f32 %v3044, 0.0
      %v3081 = vmax.f32 %v3045, 0.0
      %v3082 = vmax.f32 %v3046, 0.0
      %v3083 = vmax.f32 %v3047, 0.0
      %v3084 = vmax.f32 %v3048, 0.0
      %v3085 = vmax.f32 %v3049, 0.0
      %v3086 = vmax.f32 %v3050, 0.0
      %v3087 = vmax.f32 %v3051, 0.0
      %v3088 = vmax.f32 %v3052, 0.0
      %v3089 = vmax.f32 %v3053, 0.0
      %v3090 = vmax.f32 %v3054, 0.0
      %v3091 = vmax.f32 %v3055, 0.0
      %v3092 = vmax.f32 %v3056, 0.0
      %v3093 = vmax.f32 %v3057, 0.0
      %v3094 = vmax.f32 %v3058, 0.0
      %v3095 = vmax.f32 %v3059, 0.0
      %v3096 = vpack.c.bf16 %v3060, %v3060
      %v3097 = vpack.c.bf16 %v3061, %v3061
      %v3098 = vpack.c.bf16 %v3062, %v3062
      %v3099 = vpack.c.bf16 %v3063, %v3063
      %v3100 = vpack.c.bf16 %v3064, %v3064
      %v3101 = vpack.c.bf16 %v3065, %v3065
      %v3102 = vpack.c.bf16 %v3066, %v3066
      %v3103 = vpack.c.bf16 %v3067, %v3067
      %v3104 = vpack.c.bf16 %v3068, %v3068
      %v3105 = vpack.c.bf16 %v3069, %v3069
      %v3106 = vpack.c.bf16 %v3070, %v3070
      %v3107 = vpack.c.bf16 %v3071, %v3071
      %v3108 = vpack.c.bf16 %v3072, %v3072
      %v3109 = vpack.c.bf16 %v3073, %v3073
      %v3110 = vpack.c.bf16 %v3074, %v3074
      %v3111 = vpack.c.bf16 %v3075, %v3075
      %v3112 = vpack.c.bf16 %v3076, %v3076
      %v3113 = vpack.c.bf16 %v3077, %v3077
      %v3114 = vpack.c.bf16 %v3078, %v3078
      %v3115 = vpack.c.bf16 %v3079, %v3079
      %v3116 = vpack.c.bf16 %v3080, %v3080
      %v3117 = vpack.c.bf16 %v3081, %v3081
      %v3118 = vpack.c.bf16 %v3082, %v3082
      %v3119 = vpack.c.bf16 %v3083, %v3083
      %v3120 = vpack.c.bf16 %v3084, %v3084
      %v3121 = vpack.c.bf16 %v3085, %v3085
      %v3122 = vpack.c.bf16 %v3086, %v3086
      %v3123 = vpack.c.bf16 %v3087, %v3087
      %v3124 = vpack.c.bf16 %v3088, %v3088
      %v3125 = vpack.c.bf16 %v3089, %v3089
      %v3126 = vpack.c.bf16 %v3090, %v3090
      %v3127 = vpack.c.bf16 %v3091, %v3091
      %v3128 = vpack.c.bf16 %v3092, %v3092
      %v3129 = vpack.c.bf16 %v3093, %v3093
      %v3130 = vpack.c.bf16 %v3094, %v3094
      %v3131 = vpack.c.bf16 %v3095, %v3095
      %vm3132 = vcmask 125952
      %3133 = vst.msk [vmem:[%s232] sm:$0xf] %vm3132, %v3096
      %3134 = vst.msk [vmem:[%s232 + $0x4] sm:$0xf] %vm3132, %v3097
      %3135 = vst.msk [vmem:[%s232 + $0x8] sm:$0xf] %vm3132, %v3098
      %3136 = vst.msk [vmem:[%s232 + $0xc] sm:$0xf] %vm3132, %v3099
      %3137 = vst.msk [vmem:[%s232 + $0x10] sm:$0xf] %vm3132, %v3100
      %3138 = vst.msk [vmem:[%s232 + $0x14] sm:$0xf] %vm3132, %v3101
      %3139 = vst.msk [vmem:[%s232 + $0x18] sm:$0xf] %vm3132, %v3102
      %3140 = vst.msk [vmem:[%s232 + $0x1c] sm:$0xf] %vm3132, %v3103
      %3141 = vst.msk [vmem:[%s232 + $0x20] sm:$0xf] %vm3132, %v3104
      %3142 = vst.msk [vmem:[%s232 + $0x24] sm:$0xf] %vm3132, %v3105
      %3143 = vst.msk [vmem:[%s232 + $0x28] sm:$0xf] %vm3132, %v3106
      %3144 = vst.msk [vmem:[%s232 + $0x2c] sm:$0xf] %vm3132, %v3107
      %3145 = vst.msk [vmem:[%s232 + $0x30] sm:$0xf] %vm3132, %v3108
      %3146 = vst.msk [vmem:[%s232 + $0x34] sm:$0xf] %vm3132, %v3109
      %3147 = vst.msk [vmem:[%s232 + $0x38] sm:$0xf] %vm3132, %v3110
      %3148 = vst.msk [vmem:[%s232 + $0x3c] sm:$0xf] %vm3132, %v3111
      %3149 = vst.msk [vmem:[%s232 + $0x40] sm:$0xf] %vm3132, %v3112
      %3150 = vst.msk [vmem:[%s232 + $0x44] sm:$0xf] %vm3132, %v3113
      %3151 = vst.msk [vmem:[%s232 + $0x48] sm:$0xf] %vm3132, %v3114
      %3152 = vst.msk [vmem:[%s232 + $0x4c] sm:$0xf] %vm3132, %v3115
      %3153 = vst.msk [vmem:[%s232 + $0x50] sm:$0xf] %vm3132, %v3116
      %3154 = vst.msk [vmem:[%s232 + $0x54] sm:$0xf] %vm3132, %v3117
      %3155 = vst.msk [vmem:[%s232 + $0x58] sm:$0xf] %vm3132, %v3118
      %3156 = vst.msk [vmem:[%s232 + $0x5c] sm:$0xf] %vm3132, %v3119
      %3157 = vst.msk [vmem:[%s232 + $0x60] sm:$0xf] %vm3132, %v3120
      %3158 = vst.msk [vmem:[%s232 + $0x64] sm:$0xf] %vm3132, %v3121
      %3159 = vst.msk [vmem:[%s232 + $0x68] sm:$0xf] %vm3132, %v3122
      %3160 = vst.msk [vmem:[%s232 + $0x6c] sm:$0xf] %vm3132, %v3123
      %3161 = vst.msk [vmem:[%s232 + $0x70] sm:$0xf] %vm3132, %v3124
      %3162 = vst.msk [vmem:[%s232 + $0x74] sm:$0xf] %vm3132, %v3125
      %3163 = vst.msk [vmem:[%s232 + $0x78] sm:$0xf] %vm3132, %v3126
      %3164 = vst.msk [vmem:[%s232 + $0x7c] sm:$0xf] %vm3132, %v3127
      %3165 = vst.msk [vmem:[%s232 + $0x80] sm:$0xf] %vm3132, %v3128
      %3166 = vst.msk [vmem:[%s232 + $0x84] sm:$0xf] %vm3132, %v3129
      %3167 = vst.msk [vmem:[%s232 + $0x88] sm:$0xf] %vm3132, %v3130
      %3168 = vst.msk [vmem:[%s232 + $0x8c] sm:$0xf] %vm3132, %v3131
      %v3169 = vld [vmem:[%s3] sm:$0xff]
      %v3170 = vld [vmem:[%s3 + $0x8] sm:$0xff]
      %v3171 = vld [vmem:[%s3 + $0x10] sm:$0xff]
      %v3172 = vld [vmem:[%s3 + $0x18] sm:$0xff]
      %v3173 = vld [vmem:[%s3 + $0x20] sm:$0xff]
      %v3174 = vld [vmem:[%s3 + $0x28] sm:$0xff]
      %v3175 = vld [vmem:[%s3 + $0x30] sm:$0xff]
      %v3176 = vld [vmem:[%s3 + $0x38] sm:$0xff]
      %v3177 = vld [vmem:[%s3 + $0x40] sm:$0xff]
      %v3178 = vld [vmem:[%s3 + $0x48] sm:$0xff]
      %v3179 = vld [vmem:[%s3 + $0x50] sm:$0xff]
      %v3180 = vld [vmem:[%s3 + $0x58] sm:$0xff]
      %v3181 = vld [vmem:[%s3 + $0x60] sm:$0xff]
      %v3182 = vld [vmem:[%s3 + $0x68] sm:$0xff]
      %v3183 = vld [vmem:[%s3 + $0x70] sm:$0xff]
      %v3184 = vld [vmem:[%s3 + $0x78] sm:$0xff]
      %v3185 = vld [vmem:[%s3 + $0x80] sm:$0xff]
      %v3186 = vld [vmem:[%s3 + $0x88] sm:$0xff]
      %v3187 = vld [vmem:[%s3 + $0x90] sm:$0xff]
      %v3188 = vld [vmem:[%s3 + $0x98] sm:$0xff]
      %v3189 = vld [vmem:[%s3 + $0xa0] sm:$0xff]
      %v3190 = vld [vmem:[%s3 + $0xa8] sm:$0xff]
      %v3191 = vld [vmem:[%s3 + $0xb0] sm:$0xff]
      %v3192 = vld [vmem:[%s3 + $0xb8] sm:$0xff]
      %v3193 = vld [vmem:[%s3 + $0xc0] sm:$0xff]
      %v3194 = vld [vmem:[%s3 + $0xc8] sm:$0xff]
      %v3195 = vld [vmem:[%s3 + $0xd0] sm:$0xff]
      %v3196 = vld [vmem:[%s3 + $0xd8] sm:$0xff]
      %v3197 = vld [vmem:[%s3 + $0xe0] sm:$0xff]
      %v3198 = vld [vmem:[%s3 + $0xe8] sm:$0xff]
      %v3199 = vld [vmem:[%s3 + $0xf0] sm:$0xff]
      %v3200 = vld [vmem:[%s3 + $0xf8] sm:$0xff]
      %v3201 = vld [vmem:[%s3 + $0x100] sm:$0xff]
      %v3202 = vld [vmem:[%s3 + $0x108] sm:$0xff]
      %v3203 = vld [vmem:[%s3 + $0x110] sm:$0xff]
      %v3204 = vld [vmem:[%s3 + $0x118] sm:$0xff]
      %3206 = vset.pattern.permute.xlu0 0
      %3207 = vperm.xlu0 %3206, %v3169
      %v3208 = vpop.permute.xlu0 %3207
      %3211 = vset.pattern.permute.xlu0 0
      %3212 = vperm.xlu0 %3211, %v3170
      %v3213 = vpop.permute.xlu0 %3212
      %3216 = vset.pattern.permute.xlu0 0
      %3217 = vperm.xlu0 %3216, %v3171
      %v3218 = vpop.permute.xlu0 %3217
      %3221 = vset.pattern.permute.xlu0 0
      %3222 = vperm.xlu0 %3221, %v3172
      %v3223 = vpop.permute.xlu0 %3222
      %3226 = vset.pattern.permute.xlu0 0
      %3227 = vperm.xlu0 %3226, %v3173
      %v3228 = vpop.permute.xlu0 %3227
      %3231 = vset.pattern.permute.xlu0 0
      %3232 = vperm.xlu0 %3231, %v3174
      %v3233 = vpop.permute.xlu0 %3232
      %3236 = vset.pattern.permute.xlu0 0
      %3237 = vperm.xlu0 %3236, %v3175
      %v3238 = vpop.permute.xlu0 %3237
      %3241 = vset.pattern.permute.xlu0 0
      %3242 = vperm.xlu0 %3241, %v3176
      %v3243 = vpop.permute.xlu0 %3242
      %3246 = vset.pattern.permute.xlu0 0
      %3247 = vperm.xlu0 %3246, %v3177
      %v3248 = vpop.permute.xlu0 %3247
      %3251 = vset.pattern.permute.xlu0 0
      %3252 = vperm.xlu0 %3251, %v3178
      %v3253 = vpop.permute.xlu0 %3252
      %3256 = vset.pattern.permute.xlu0 0
      %3257 = vperm.xlu0 %3256, %v3179
      %v3258 = vpop.permute.xlu0 %3257
      %3261 = vset.pattern.permute.xlu0 0
      %3262 = vperm.xlu0 %3261, %v3180
      %v3263 = vpop.permute.xlu0 %3262
      %3266 = vset.pattern.permute.xlu0 0
      %3267 = vperm.xlu0 %3266, %v3181
      %v3268 = vpop.permute.xlu0 %3267
      %3271 = vset.pattern.permute.xlu0 0
      %3272 = vperm.xlu0 %3271, %v3182
      %v3273 = vpop.permute.xlu0 %3272
      %3276 = vset.pattern.permute.xlu0 0
      %3277 = vperm.xlu0 %3276, %v3183
      %v3278 = vpop.permute.xlu0 %3277
      %3281 = vset.pattern.permute.xlu0 0
      %3282 = vperm.xlu0 %3281, %v3184
      %v3283 = vpop.permute.xlu0 %3282
      %3286 = vset.pattern.permute.xlu0 0
      %3287 = vperm.xlu0 %3286, %v3185
      %v3288 = vpop.permute.xlu0 %3287
      %3291 = vset.pattern.permute.xlu0 0
      %3292 = vperm.xlu0 %3291, %v3186
      %v3293 = vpop.permute.xlu0 %3292
      %3296 = vset.pattern.permute.xlu0 0
      %3297 = vperm.xlu0 %3296, %v3187
      %v3298 = vpop.permute.xlu0 %3297
      %3301 = vset.pattern.permute.xlu0 0
      %3302 = vperm.xlu0 %3301, %v3188
      %v3303 = vpop.permute.xlu0 %3302
      %3306 = vset.pattern.permute.xlu0 0
      %3307 = vperm.xlu0 %3306, %v3189
      %v3308 = vpop.permute.xlu0 %3307
      %3311 = vset.pattern.permute.xlu0 0
      %3312 = vperm.xlu0 %3311, %v3190
      %v3313 = vpop.permute.xlu0 %3312
      %3316 = vset.pattern.permute.xlu0 0
      %3317 = vperm.xlu0 %3316, %v3191
      %v3318 = vpop.permute.xlu0 %3317
      %3321 = vset.pattern.permute.xlu0 0
      %3322 = vperm.xlu0 %3321, %v3192
      %v3323 = vpop.permute.xlu0 %3322
      %3326 = vset.pattern.permute.xlu0 0
      %3327 = vperm.xlu0 %3326, %v3193
      %v3328 = vpop.permute.xlu0 %3327
      %3331 = vset.pattern.permute.xlu0 0
      %3332 = vperm.xlu0 %3331, %v3194
      %v3333 = vpop.permute.xlu0 %3332
      %3336 = vset.pattern.permute.xlu0 0
      %3337 = vperm.xlu0 %3336, %v3195
      %v3338 = vpop.permute.xlu0 %3337
      %3341 = vset.pattern.permute.xlu0 0
      %3342 = vperm.xlu0 %3341, %v3196
      %v3343 = vpop.permute.xlu0 %3342
      %3346 = vset.pattern.permute.xlu0 0
      %3347 = vperm.xlu0 %3346, %v3197
      %v3348 = vpop.permute.xlu0 %3347
      %3351 = vset.pattern.permute.xlu0 0
      %3352 = vperm.xlu0 %3351, %v3198
      %v3353 = vpop.permute.xlu0 %3352
      %3356 = vset.pattern.permute.xlu0 0
      %3357 = vperm.xlu0 %3356, %v3199
      %v3358 = vpop.permute.xlu0 %3357
      %3361 = vset.pattern.permute.xlu0 0
      %3362 = vperm.xlu0 %3361, %v3200
      %v3363 = vpop.permute.xlu0 %3362
      %3366 = vset.pattern.permute.xlu0 0
      %3367 = vperm.xlu0 %3366, %v3201
      %v3368 = vpop.permute.xlu0 %3367
      %3371 = vset.pattern.permute.xlu0 0
      %3372 = vperm.xlu0 %3371, %v3202
      %v3373 = vpop.permute.xlu0 %3372
      %3376 = vset.pattern.permute.xlu0 0
      %3377 = vperm.xlu0 %3376, %v3203
      %v3378 = vpop.permute.xlu0 %3377
      %3381 = vset.pattern.permute.xlu0 0
      %3382 = vperm.xlu0 %3381, %v3204
      %v3383 = vpop.permute.xlu0 %3382
      %v3385 = vmul.f32 %v3060, %v3208
      %v3386 = vmul.f32 %v3061, %v3213
      %v3387 = vmul.f32 %v3062, %v3218
      %v3388 = vmul.f32 %v3063, %v3223
      %v3389 = vmul.f32 %v3064, %v3228
      %v3390 = vmul.f32 %v3065, %v3233
      %v3391 = vmul.f32 %v3066, %v3238
      %v3392 = vmul.f32 %v3067, %v3243
      %v3393 = vmul.f32 %v3068, %v3248
      %v3394 = vmul.f32 %v3069, %v3253
      %v3395 = vmul.f32 %v3070, %v3258
      %v3396 = vmul.f32 %v3071, %v3263
      %v3397 = vmul.f32 %v3072, %v3268
      %v3398 = vmul.f32 %v3073, %v3273
      %v3399 = vmul.f32 %v3074, %v3278
      %v3400 = vmul.f32 %v3075, %v3283
      %v3401 = vmul.f32 %v3076, %v3288
      %v3402 = vmul.f32 %v3077, %v3293
      %v3403 = vmul.f32 %v3078, %v3298
      %v3404 = vmul.f32 %v3079, %v3303
      %v3405 = vmul.f32 %v3080, %v3308
      %v3406 = vmul.f32 %v3081, %v3313
      %v3407 = vmul.f32 %v3082, %v3318
      %v3408 = vmul.f32 %v3083, %v3323
      %v3409 = vmul.f32 %v3084, %v3328
      %v3410 = vmul.f32 %v3085, %v3333
      %v3411 = vmul.f32 %v3086, %v3338
      %v3412 = vmul.f32 %v3087, %v3343
      %v3413 = vmul.f32 %v3088, %v3348
      %v3414 = vmul.f32 %v3089, %v3353
      %v3415 = vmul.f32 %v3090, %v3358
      %v3416 = vmul.f32 %v3091, %v3363
      %v3417 = vmul.f32 %v3092, %v3368
      %v3418 = vmul.f32 %v3093, %v3373
      %v3419 = vmul.f32 %v3094, %v3378
      %v3420 = vmul.f32 %v3095, %v3383
      %3421 = vst.msk [vmem:[%s237] sm:$0xf] %vm3132, 0
      %3422 = vst.msk [vmem:[%s237 + $0x4] sm:$0xf] %vm3132, 0
      %3423 = vst.msk [vmem:[%s237 + $0x8] sm:$0xf] %vm3132, 0
      %3424 = vst.msk [vmem:[%s237 + $0xc] sm:$0xf] %vm3132, 0
      %3425 = vst.msk [vmem:[%s237 + $0x10] sm:$0xf] %vm3132, 0
      %3426 = vst.msk [vmem:[%s237 + $0x14] sm:$0xf] %vm3132, 0
      %3427 = vst.msk [vmem:[%s237 + $0x18] sm:$0xf] %vm3132, 0
      %3428 = vst.msk [vmem:[%s237 + $0x1c] sm:$0xf] %vm3132, 0
      %3429 = vst.msk [vmem:[%s237 + $0x20] sm:$0xf] %vm3132, 0
      %3430 = vst.msk [vmem:[%s237 + $0x24] sm:$0xf] %vm3132, 0
      %3431 = vst.msk [vmem:[%s237 + $0x28] sm:$0xf] %vm3132, 0
      %3432 = vst.msk [vmem:[%s237 + $0x2c] sm:$0xf] %vm3132, 0
      %3433 = vst.msk [vmem:[%s237 + $0x30] sm:$0xf] %vm3132, 0
      %3434 = vst.msk [vmem:[%s237 + $0x34] sm:$0xf] %vm3132, 0
      %3435 = vst.msk [vmem:[%s237 + $0x38] sm:$0xf] %vm3132, 0
      %3436 = vst.msk [vmem:[%s237 + $0x3c] sm:$0xf] %vm3132, 0
      %3437 = vst.msk [vmem:[%s237 + $0x40] sm:$0xf] %vm3132, 0
      %3438 = vst.msk [vmem:[%s237 + $0x44] sm:$0xf] %vm3132, 0
      %3439 = vst.msk [vmem:[%s237 + $0x48] sm:$0xf] %vm3132, 0
      %3440 = vst.msk [vmem:[%s237 + $0x4c] sm:$0xf] %vm3132, 0
      %3441 = vst.msk [vmem:[%s237 + $0x50] sm:$0xf] %vm3132, 0
      %3442 = vst.msk [vmem:[%s237 + $0x54] sm:$0xf] %vm3132, 0
      %3443 = vst.msk [vmem:[%s237 + $0x58] sm:$0xf] %vm3132, 0
      %3444 = vst.msk [vmem:[%s237 + $0x5c] sm:$0xf] %vm3132, 0
      %3445 = vst.msk [vmem:[%s237 + $0x60] sm:$0xf] %vm3132, 0
      %3446 = vst.msk [vmem:[%s237 + $0x64] sm:$0xf] %vm3132, 0
      %3447 = vst.msk [vmem:[%s237 + $0x68] sm:$0xf] %vm3132, 0
      %3448 = vst.msk [vmem:[%s237 + $0x6c] sm:$0xf] %vm3132, 0
      %3449 = vst.msk [vmem:[%s237 + $0x70] sm:$0xf] %vm3132, 0
      %3450 = vst.msk [vmem:[%s237 + $0x74] sm:$0xf] %vm3132, 0
      %3451 = vst.msk [vmem:[%s237 + $0x78] sm:$0xf] %vm3132, 0
      %3452 = vst.msk [vmem:[%s237 + $0x7c] sm:$0xf] %vm3132, 0
      %3453 = vst.msk [vmem:[%s237 + $0x80] sm:$0xf] %vm3132, 0
      %3454 = vst.msk [vmem:[%s237 + $0x84] sm:$0xf] %vm3132, 0
      %3455 = vst.msk [vmem:[%s237 + $0x88] sm:$0xf] %vm3132, 0
      %3456 = vst.msk [vmem:[%s237 + $0x8c] sm:$0xf] %vm3132, 0
      %3457 = vst.msk [vmem:[%s237 + $0x90] sm:$0xf] %vm3132, 0
      %3458 = vst.msk [vmem:[%s237 + $0x94] sm:$0xf] %vm3132, 0
      %3459 = vst.msk [vmem:[%s237 + $0x98] sm:$0xf] %vm3132, 0
      %3460 = vst.msk [vmem:[%s237 + $0x9c] sm:$0xf] %vm3132, 0
      %3461 = vst.msk [vmem:[%s237 + $0xa0] sm:$0xf] %vm3132, 0
      %3462 = vst.msk [vmem:[%s237 + $0xa4] sm:$0xf] %vm3132, 0
      %vm3463 = vcmask 124928
      %3464 = vst.msk [vmem:[%s237 + $0xa8] sm:$0x7] %vm3463, 0
      %v3465 = vpack.c.bf16 %v3385, %v3385
      %v3466 = vpack.c.bf16 %v3386, %v3386
      %v3467 = vpack.c.bf16 %v3387, %v3387
      %v3468 = vpack.c.bf16 %v3388, %v3388
      %v3469 = vpack.c.bf16 %v3389, %v3389
      %v3470 = vpack.c.bf16 %v3390, %v3390
      %v3471 = vpack.c.bf16 %v3391, %v3391
      %v3472 = vpack.c.bf16 %v3392, %v3392
      %v3473 = vpack.c.bf16 %v3393, %v3393
      %v3474 = vpack.c.bf16 %v3394, %v3394
      %v3475 = vpack.c.bf16 %v3395, %v3395
      %v3476 = vpack.c.bf16 %v3396, %v3396
      %v3477 = vpack.c.bf16 %v3397, %v3397
      %v3478 = vpack.c.bf16 %v3398, %v3398
      %v3479 = vpack.c.bf16 %v3399, %v3399
      %v3480 = vpack.c.bf16 %v3400, %v3400
      %v3481 = vpack.c.bf16 %v3401, %v3401
      %v3482 = vpack.c.bf16 %v3402, %v3402
      %v3483 = vpack.c.bf16 %v3403, %v3403
      %v3484 = vpack.c.bf16 %v3404, %v3404
      %v3485 = vpack.c.bf16 %v3405, %v3405
      %v3486 = vpack.c.bf16 %v3406, %v3406
      %v3487 = vpack.c.bf16 %v3407, %v3407
      %v3488 = vpack.c.bf16 %v3408, %v3408
      %v3489 = vpack.c.bf16 %v3409, %v3409
      %v3490 = vpack.c.bf16 %v3410, %v3410
      %v3491 = vpack.c.bf16 %v3411, %v3411
      %v3492 = vpack.c.bf16 %v3412, %v3412
      %v3493 = vpack.c.bf16 %v3413, %v3413
      %v3494 = vpack.c.bf16 %v3414, %v3414
      %v3495 = vpack.c.bf16 %v3415, %v3415
      %v3496 = vpack.c.bf16 %v3416, %v3416
      %v3497 = vpack.c.bf16 %v3417, %v3417
      %v3498 = vpack.c.bf16 %v3418, %v3418
      %v3499 = vpack.c.bf16 %v3419, %v3419
      %v3500 = vpack.c.bf16 %v3420, %v3420
      %vm3501 = vsmask.f32 1280
      %vm3502 = vsmask.f32 5392
      %vm3503 = vmor %vm3501, %vm3502
      %v3505 = vshrl.u32 %v3465, 16
      %v3507 = vrot.slane %v3505, 6
      %v3508 = vshll.u32 %v3465, 16
      %v3510 = vrot.slane %v3508, 7
      %v3511 = vor.u32 %v3507, %v3510
      %v3512 = vrot.slane %v3511, 4
      %v3514 = vshrl.u32 %v3466, 16
      %v3516 = vrot.slane %v3514, 6
      %v3517 = vshll.u32 %v3466, 16
      %v3519 = vrot.slane %v3517, 7
      %v3520 = vor.u32 %v3516, %v3519
      %v3521 = vsel %vm3503, %v3512, %v3520
      %v3522 = vrot.slane %v3520, 4
      %v3524 = vshrl.u32 %v3467, 16
      %v3526 = vrot.slane %v3524, 6
      %v3527 = vshll.u32 %v3467, 16
      %v3529 = vrot.slane %v3527, 7
      %v3530 = vor.u32 %v3526, %v3529
      %v3531 = vsel %vm3503, %v3522, %v3530
      %v3532 = vrot.slane %v3530, 4
      %v3534 = vshrl.u32 %v3468, 16
      %v3536 = vrot.slane %v3534, 6
      %v3537 = vshll.u32 %v3468, 16
      %v3539 = vrot.slane %v3537, 7
      %v3540 = vor.u32 %v3536, %v3539
      %v3541 = vsel %vm3503, %v3532, %v3540
      %v3542 = vrot.slane %v3540, 4
      %v3544 = vshrl.u32 %v3469, 16
      %v3546 = vrot.slane %v3544, 6
      %v3547 = vshll.u32 %v3469, 16
      %v3549 = vrot.slane %v3547, 7
      %v3550 = vor.u32 %v3546, %v3549
      %v3551 = vsel %vm3503, %v3542, %v3550
      %v3552 = vrot.slane %v3550, 4
      %v3554 = vshrl.u32 %v3470, 16
      %v3556 = vrot.slane %v3554, 6
      %v3557 = vshll.u32 %v3470, 16
      %v3559 = vrot.slane %v3557, 7
      %v3560 = vor.u32 %v3556, %v3559
      %v3561 = vsel %vm3503, %v3552, %v3560
      %v3562 = vrot.slane %v3560, 4
      %v3564 = vshrl.u32 %v3471, 16
      %v3566 = vrot.slane %v3564, 6
      %v3567 = vshll.u32 %v3471, 16
      %v3569 = vrot.slane %v3567, 7
      %v3570 = vor.u32 %v3566, %v3569
      %v3571 = vsel %vm3503, %v3562, %v3570
      %v3572 = vrot.slane %v3570, 4
      %v3574 = vshrl.u32 %v3472, 16
      %v3576 = vrot.slane %v3574, 6
      %v3577 = vshll.u32 %v3472, 16
      %v3579 = vrot.slane %v3577, 7
      %v3580 = vor.u32 %v3576, %v3579
      %v3581 = vsel %vm3503, %v3572, %v3580
      %v3582 = vrot.slane %v3580, 4
      %v3584 = vshrl.u32 %v3473, 16
      %v3586 = vrot.slane %v3584, 6
      %v3587 = vshll.u32 %v3473, 16
      %v3589 = vrot.slane %v3587, 7
      %v3590 = vor.u32 %v3586, %v3589
      %v3591 = vsel %vm3503, %v3582, %v3590
      %v3592 = vrot.slane %v3590, 4
      %v3594 = vshrl.u32 %v3474, 16
      %v3596 = vrot.slane %v3594, 6
      %v3597 = vshll.u32 %v3474, 16
      %v3599 = vrot.slane %v3597, 7
      %v3600 = vor.u32 %v3596, %v3599
      %v3601 = vsel %vm3503, %v3592, %v3600
      %v3602 = vrot.slane %v3600, 4
      %v3604 = vshrl.u32 %v3475, 16
      %v3606 = vrot.slane %v3604, 6
      %v3607 = vshll.u32 %v3475, 16
      %v3609 = vrot.slane %v3607, 7
      %v3610 = vor.u32 %v3606, %v3609
      %v3611 = vsel %vm3503, %v3602, %v3610
      %v3612 = vrot.slane %v3610, 4
      %v3614 = vshrl.u32 %v3476, 16
      %v3616 = vrot.slane %v3614, 6
      %v3617 = vshll.u32 %v3476, 16
      %v3619 = vrot.slane %v3617, 7
      %v3620 = vor.u32 %v3616, %v3619
      %v3621 = vsel %vm3503, %v3612, %v3620
      %v3622 = vrot.slane %v3620, 4
      %v3624 = vshrl.u32 %v3477, 16
      %v3626 = vrot.slane %v3624, 6
      %v3627 = vshll.u32 %v3477, 16
      %v3629 = vrot.slane %v3627, 7
      %v3630 = vor.u32 %v3626, %v3629
      %v3631 = vsel %vm3503, %v3622, %v3630
      %v3632 = vrot.slane %v3630, 4
      %v3634 = vshrl.u32 %v3478, 16
      %v3636 = vrot.slane %v3634, 6
      %v3637 = vshll.u32 %v3478, 16
      %v3639 = vrot.slane %v3637, 7
      %v3640 = vor.u32 %v3636, %v3639
      %v3641 = vsel %vm3503, %v3632, %v3640
      %v3642 = vrot.slane %v3640, 4
      %v3644 = vshrl.u32 %v3479, 16
      %v3646 = vrot.slane %v3644, 6
      %v3647 = vshll.u32 %v3479, 16
      %v3649 = vrot.slane %v3647, 7
      %v3650 = vor.u32 %v3646, %v3649
      %v3651 = vsel %vm3503, %v3642, %v3650
      %v3652 = vrot.slane %v3650, 4
      %v3654 = vshrl.u32 %v3480, 16
      %v3656 = vrot.slane %v3654, 6
      %v3657 = vshll.u32 %v3480, 16
      %v3659 = vrot.slane %v3657, 7
      %v3660 = vor.u32 %v3656, %v3659
      %v3661 = vsel %vm3503, %v3652, %v3660
      %v3662 = vrot.slane %v3660, 4
      %v3664 = vshrl.u32 %v3481, 16
      %v3666 = vrot.slane %v3664, 6
      %v3667 = vshll.u32 %v3481, 16
      %v3669 = vrot.slane %v3667, 7
      %v3670 = vor.u32 %v3666, %v3669
      %v3671 = vsel %vm3503, %v3662, %v3670
      %v3672 = vrot.slane %v3670, 4
      %v3674 = vshrl.u32 %v3482, 16
      %v3676 = vrot.slane %v3674, 6
      %v3677 = vshll.u32 %v3482, 16
      %v3679 = vrot.slane %v3677, 7
      %v3680 = vor.u32 %v3676, %v3679
      %v3681 = vsel %vm3503, %v3672, %v3680
      %v3682 = vrot.slane %v3680, 4
      %v3684 = vshrl.u32 %v3483, 16
      %v3686 = vrot.slane %v3684, 6
      %v3687 = vshll.u32 %v3483, 16
      %v3689 = vrot.slane %v3687, 7
      %v3690 = vor.u32 %v3686, %v3689
      %v3691 = vsel %vm3503, %v3682, %v3690
      %v3692 = vrot.slane %v3690, 4
      %v3694 = vshrl.u32 %v3484, 16
      %v3696 = vrot.slane %v3694, 6
      %v3697 = vshll.u32 %v3484, 16
      %v3699 = vrot.slane %v3697, 7
      %v3700 = vor.u32 %v3696, %v3699
      %v3701 = vsel %vm3503, %v3692, %v3700
      %v3702 = vrot.slane %v3700, 4
      %v3704 = vshrl.u32 %v3485, 16
      %v3706 = vrot.slane %v3704, 6
      %v3707 = vshll.u32 %v3485, 16
      %v3709 = vrot.slane %v3707, 7
      %v3710 = vor.u32 %v3706, %v3709
      %v3711 = vsel %vm3503, %v3702, %v3710
      %v3712 = vrot.slane %v3710, 4
      %v3714 = vshrl.u32 %v3486, 16
      %v3716 = vrot.slane %v3714, 6
      %v3717 = vshll.u32 %v3486, 16
      %v3719 = vrot.slane %v3717, 7
      %v3720 = vor.u32 %v3716, %v3719
      %v3721 = vsel %vm3503, %v3712, %v3720
      %v3722 = vrot.slane %v3720, 4
      %v3724 = vshrl.u32 %v3487, 16
      %v3726 = vrot.slane %v3724, 6
      %v3727 = vshll.u32 %v3487, 16
      %v3729 = vrot.slane %v3727, 7
      %v3730 = vor.u32 %v3726, %v3729
      %v3731 = vsel %vm3503, %v3722, %v3730
      %v3732 = vrot.slane %v3730, 4
      %v3734 = vshrl.u32 %v3488, 16
      %v3736 = vrot.slane %v3734, 6
      %v3737 = vshll.u32 %v3488, 16
      %v3739 = vrot.slane %v3737, 7
      %v3740 = vor.u32 %v3736, %v3739
      %v3741 = vsel %vm3503, %v3732, %v3740
      %v3742 = vrot.slane %v3740, 4
      %v3744 = vshrl.u32 %v3489, 16
      %v3746 = vrot.slane %v3744, 6
      %v3747 = vshll.u32 %v3489, 16
      %v3749 = vrot.slane %v3747, 7
      %v3750 = vor.u32 %v3746, %v3749
      %v3751 = vsel %vm3503, %v3742, %v3750
      %v3752 = vrot.slane %v3750, 4
      %v3754 = vshrl.u32 %v3490, 16
      %v3756 = vrot.slane %v3754, 6
      %v3757 = vshll.u32 %v3490, 16
      %v3759 = vrot.slane %v3757, 7
      %v3760 = vor.u32 %v3756, %v3759
      %v3761 = vsel %vm3503, %v3752, %v3760
      %v3762 = vrot.slane %v3760, 4
      %v3764 = vshrl.u32 %v3491, 16
      %v3766 = vrot.slane %v3764, 6
      %v3767 = vshll.u32 %v3491, 16
      %v3769 = vrot.slane %v3767, 7
      %v3770 = vor.u32 %v3766, %v3769
      %v3771 = vsel %vm3503, %v3762, %v3770
      %v3772 = vrot.slane %v3770, 4
      %v3774 = vshrl.u32 %v3492, 16
      %v3776 = vrot.slane %v3774, 6
      %v3777 = vshll.u32 %v3492, 16
      %v3779 = vrot.slane %v3777, 7
      %v3780 = vor.u32 %v3776, %v3779
      %v3781 = vsel %vm3503, %v3772, %v3780
      %v3782 = vrot.slane %v3780, 4
      %v3784 = vshrl.u32 %v3493, 16
      %v3786 = vrot.slane %v3784, 6
      %v3787 = vshll.u32 %v3493, 16
      %v3789 = vrot.slane %v3787, 7
      %v3790 = vor.u32 %v3786, %v3789
      %v3791 = vsel %vm3503, %v3782, %v3790
      %v3792 = vrot.slane %v3790, 4
      %v3794 = vshrl.u32 %v3494, 16
      %v3796 = vrot.slane %v3794, 6
      %v3797 = vshll.u32 %v3494, 16
      %v3799 = vrot.slane %v3797, 7
      %v3800 = vor.u32 %v3796, %v3799
      %v3801 = vsel %vm3503, %v3792, %v3800
      %v3802 = vrot.slane %v3800, 4
      %v3804 = vshrl.u32 %v3495, 16
      %v3806 = vrot.slane %v3804, 6
      %v3807 = vshll.u32 %v3495, 16
      %v3809 = vrot.slane %v3807, 7
      %v3810 = vor.u32 %v3806, %v3809
      %v3811 = vsel %vm3503, %v3802, %v3810
      %v3812 = vrot.slane %v3810, 4
      %v3814 = vshrl.u32 %v3496, 16
      %v3816 = vrot.slane %v3814, 6
      %v3817 = vshll.u32 %v3496, 16
      %v3819 = vrot.slane %v3817, 7
      %v3820 = vor.u32 %v3816, %v3819
      %v3821 = vsel %vm3503, %v3812, %v3820
      %v3822 = vrot.slane %v3820, 4
      %v3824 = vshrl.u32 %v3497, 16
      %v3826 = vrot.slane %v3824, 6
      %v3827 = vshll.u32 %v3497, 16
      %v3829 = vrot.slane %v3827, 7
      %v3830 = vor.u32 %v3826, %v3829
      %v3831 = vsel %vm3503, %v3822, %v3830
      %v3832 = vrot.slane %v3830, 4
      %v3834 = vshrl.u32 %v3498, 16
      %v3836 = vrot.slane %v3834, 6
      %v3837 = vshll.u32 %v3498, 16
      %v3839 = vrot.slane %v3837, 7
      %v3840 = vor.u32 %v3836, %v3839
      %v3841 = vsel %vm3503, %v3832, %v3840
      %v3842 = vrot.slane %v3840, 4
      %v3844 = vshrl.u32 %v3499, 16
      %v3846 = vrot.slane %v3844, 6
      %v3847 = vshll.u32 %v3499, 16
      %v3849 = vrot.slane %v3847, 7
      %v3850 = vor.u32 %v3846, %v3849
      %v3851 = vsel %vm3503, %v3842, %v3850
      %v3852 = vrot.slane %v3850, 4
      %v3854 = vshrl.u32 %v3500, 16
      %v3856 = vrot.slane %v3854, 6
      %v3857 = vshll.u32 %v3500, 16
      %v3859 = vrot.slane %v3857, 7
      %v3860 = vor.u32 %v3856, %v3859
      %v3861 = vsel %vm3503, %v3852, %v3860
      %v3862 = vrot.slane %v3860, 4
      %3863 = vrot.lane.b32.xlu0 %v3511, 112
      %v3864 = vpop.permute.xlu0 %3863
      %3865 = vrot.lane.b32.xlu0 %v3521, 112
      %v3866 = vpop.permute.xlu0 %3865
      %3867 = vrot.lane.b32.xlu0 %v3531, 112
      %v3868 = vpop.permute.xlu0 %3867
      %3869 = vrot.lane.b32.xlu0 %v3541, 112
      %v3870 = vpop.permute.xlu0 %3869
      %3871 = vrot.lane.b32.xlu0 %v3551, 112
      %v3872 = vpop.permute.xlu0 %3871
      %3873 = vrot.lane.b32.xlu0 %v3561, 112
      %v3874 = vpop.permute.xlu0 %3873
      %3875 = vrot.lane.b32.xlu0 %v3571, 112
      %v3876 = vpop.permute.xlu0 %3875
      %3877 = vrot.lane.b32.xlu0 %v3581, 112
      %v3878 = vpop.permute.xlu0 %3877
      %3879 = vrot.lane.b32.xlu0 %v3591, 112
      %v3880 = vpop.permute.xlu0 %3879
      %3881 = vrot.lane.b32.xlu0 %v3601, 112
      %v3882 = vpop.permute.xlu0 %3881
      %3883 = vrot.lane.b32.xlu0 %v3611, 112
      %v3884 = vpop.permute.xlu0 %3883
      %3885 = vrot.lane.b32.xlu0 %v3621, 112
      %v3886 = vpop.permute.xlu0 %3885
      %3887 = vrot.lane.b32.xlu0 %v3631, 112
      %v3888 = vpop.permute.xlu0 %3887
      %3889 = vrot.lane.b32.xlu0 %v3641, 112
      %v3890 = vpop.permute.xlu0 %3889
      %3891 = vrot.lane.b32.xlu0 %v3651, 112
      %v3892 = vpop.permute.xlu0 %3891
      %3893 = vrot.lane.b32.xlu0 %v3661, 112
      %v3894 = vpop.permute.xlu0 %3893
      %3895 = vrot.lane.b32.xlu0 %v3671, 112
      %v3896 = vpop.permute.xlu0 %3895
      %3897 = vrot.lane.b32.xlu0 %v3681, 112
      %v3898 = vpop.permute.xlu0 %3897
      %3899 = vrot.lane.b32.xlu0 %v3691, 112
      %v3900 = vpop.permute.xlu0 %3899
      %3901 = vrot.lane.b32.xlu0 %v3701, 112
      %v3902 = vpop.permute.xlu0 %3901
      %3903 = vrot.lane.b32.xlu0 %v3711, 112
      %v3904 = vpop.permute.xlu0 %3903
      %3905 = vrot.lane.b32.xlu0 %v3721, 112
      %v3906 = vpop.permute.xlu0 %3905
      %3907 = vrot.lane.b32.xlu0 %v3731, 112
      %v3908 = vpop.permute.xlu0 %3907
      %3909 = vrot.lane.b32.xlu0 %v3741, 112
      %v3910 = vpop.permute.xlu0 %3909
      %3911 = vrot.lane.b32.xlu0 %v3751, 112
      %v3912 = vpop.permute.xlu0 %3911
      %3913 = vrot.lane.b32.xlu0 %v3761, 112
      %v3914 = vpop.permute.xlu0 %3913
      %3915 = vrot.lane.b32.xlu0 %v3771, 112
      %v3916 = vpop.permute.xlu0 %3915
      %3917 = vrot.lane.b32.xlu0 %v3781, 112
      %v3918 = vpop.permute.xlu0 %3917
      %3919 = vrot.lane.b32.xlu0 %v3791, 112
      %v3920 = vpop.permute.xlu0 %3919
      %3921 = vrot.lane.b32.xlu0 %v3801, 112
      %v3922 = vpop.permute.xlu0 %3921
      %3923 = vrot.lane.b32.xlu0 %v3811, 112
      %v3924 = vpop.permute.xlu0 %3923
      %3925 = vrot.lane.b32.xlu0 %v3821, 112
      %v3926 = vpop.permute.xlu0 %3925
      %3927 = vrot.lane.b32.xlu0 %v3831, 112
      %v3928 = vpop.permute.xlu0 %3927
      %3929 = vrot.lane.b32.xlu0 %v3841, 112
      %v3930 = vpop.permute.xlu0 %3929
      %3931 = vrot.lane.b32.xlu0 %v3851, 112
      %v3932 = vpop.permute.xlu0 %3931
      %3933 = vrot.lane.b32.xlu0 %v3861, 112
      %v3934 = vpop.permute.xlu0 %3933
      %3935 = vrot.lane.b32.xlu0 %v3862, 112
      %v3936 = vpop.permute.xlu0 %3935
      %vm3974 = vcmask 125953
      %vm3975 = vsmask.f32 7942
      %vm3976 = vmand %vm3974, %vm3975
      %v3977 = vld [vmem:[%s237 + $0x8] sm:$0xe]
      %v3978 = vsel %vm3976, %v3864, %v3977
      %3979 = vst [vmem:[%s237 + $0x8] sm:$0xe] %v3978
      %3980 = vst.msk [vmem:[%s237 + $0xc] sm:$0xf] %vm3132, %v3866
      %3981 = vst.msk [vmem:[%s237 + $0x10] sm:$0xf] %vm3132, %v3868
      %3982 = vst.msk [vmem:[%s237 + $0x14] sm:$0xf] %vm3132, %v3870
      %3983 = vst.msk [vmem:[%s237 + $0x18] sm:$0xf] %vm3132, %v3872
      %3984 = vst.msk [vmem:[%s237 + $0x1c] sm:$0xf] %vm3132, %v3874
      %3985 = vst.msk [vmem:[%s237 + $0x20] sm:$0xf] %vm3132, %v3876
      %3986 = vst.msk [vmem:[%s237 + $0x24] sm:$0xf] %vm3132, %v3878
      %3987 = vst.msk [vmem:[%s237 + $0x28] sm:$0xf] %vm3132, %v3880
      %3988 = vst.msk [vmem:[%s237 + $0x2c] sm:$0xf] %vm3132, %v3882
      %3989 = vst.msk [vmem:[%s237 + $0x30] sm:$0xf] %vm3132, %v3884
      %3990 = vst.msk [vmem:[%s237 + $0x34] sm:$0xf] %vm3132, %v3886
      %3991 = vst.msk [vmem:[%s237 + $0x38] sm:$0xf] %vm3132, %v3888
      %3992 = vst.msk [vmem:[%s237 + $0x3c] sm:$0xf] %vm3132, %v3890
      %3993 = vst.msk [vmem:[%s237 + $0x40] sm:$0xf] %vm3132, %v3892
      %3994 = vst.msk [vmem:[%s237 + $0x44] sm:$0xf] %vm3132, %v3894
      %3995 = vst.msk [vmem:[%s237 + $0x48] sm:$0xf] %vm3132, %v3896
      %3996 = vst.msk [vmem:[%s237 + $0x4c] sm:$0xf] %vm3132, %v3898
      %3997 = vst.msk [vmem:[%s237 + $0x50] sm:$0xf] %vm3132, %v3900
      %3998 = vst.msk [vmem:[%s237 + $0x54] sm:$0xf] %vm3132, %v3902
      %3999 = vst.msk [vmem:[%s237 + $0x58] sm:$0xf] %vm3132, %v3904
      %4000 = vst.msk [vmem:[%s237 + $0x5c] sm:$0xf] %vm3132, %v3906
      %4001 = vst.msk [vmem:[%s237 + $0x60] sm:$0xf] %vm3132, %v3908
      %4002 = vst.msk [vmem:[%s237 + $0x64] sm:$0xf] %vm3132, %v3910
      %4003 = vst.msk [vmem:[%s237 + $0x68] sm:$0xf] %vm3132, %v3912
      %4004 = vst.msk [vmem:[%s237 + $0x6c] sm:$0xf] %vm3132, %v3914
      %4005 = vst.msk [vmem:[%s237 + $0x70] sm:$0xf] %vm3132, %v3916
      %4006 = vst.msk [vmem:[%s237 + $0x74] sm:$0xf] %vm3132, %v3918
      %4007 = vst.msk [vmem:[%s237 + $0x78] sm:$0xf] %vm3132, %v3920
      %4008 = vst.msk [vmem:[%s237 + $0x7c] sm:$0xf] %vm3132, %v3922
      %4009 = vst.msk [vmem:[%s237 + $0x80] sm:$0xf] %vm3132, %v3924
      %4010 = vst.msk [vmem:[%s237 + $0x84] sm:$0xf] %vm3132, %v3926
      %4011 = vst.msk [vmem:[%s237 + $0x88] sm:$0xf] %vm3132, %v3928
      %4012 = vst.msk [vmem:[%s237 + $0x8c] sm:$0xf] %vm3132, %v3930
      %4013 = vst.msk [vmem:[%s237 + $0x90] sm:$0xf] %vm3132, %v3932
      %4014 = vst.msk [vmem:[%s237 + $0x94] sm:$0xf] %vm3132, %v3934
      %vm4015 = vcmask 123904
      %vm4016 = vmand %vm4015, %vm3501
      %v4017 = vld [vmem:[%s237 + $0x98] sm:$0x3]
      %v4018 = vsel %vm4016, %v3936, %v4017
      %4019 = vst [vmem:[%s237 + $0x98] sm:$0x3] %v4018
      %p4020 = scmp.lt.s32.totalorder %s17, 1
      %s4021 = scalar_select %p4020, %s17, 1
      %s4022 = smul.addr %s4021, 36
      %s4023 = smul.addr %s4022, 4
      %s4024 = scalar_lea.vmem %s4, %s4023
      %p4025 = scmp.lt.s32.totalorder %s17, 1
      %s4026 = scalar_select %p4025, %s17, 1
      %s4027 = smul.addr %s4026, 43
      %s4028 = smul.addr %s4027, 4
      %s4029 = scalar_lea.vmem %s5, %s4028
      // Predicated region
      $region37: #{_lambda_.4} parent=35 // pred_check
        %p4030 = pneg %p124
      $region38: #{_lambda_.4} parent=35 // pred_check_branch
        %4032 = sbr.rel (%p4030) target = $region40
      $region39: #{_lambda_.4} parent=35 // pred_region
        _
      $region40: #{_lambda_.4} parent=35 // pred_fallthru
        _
      // Predicated region
      $region41: #{_lambda_.4} parent=35 // pred_check
        %p4033 = pneg %p150
      $region42: #{_lambda_.4} parent=35 // pred_check_branch
        %4035 = sbr.rel (%p4033) target = $region44
      $region43: #{_lambda_.4} parent=35 // pred_region
        _
      $region44: #{_lambda_.4} parent=35 // pred_fallthru
        _
    $region36: #{_lambda_.4} parent=5 // pred_fallthru
      _
    %p4036 = scmp.le.s32.totalorder 2, %s12
    // Predicated region
    $region45: #{_lambda_.4} parent=5 // pred_check
      %p4037 = pneg %p4036
    $region46: #{_lambda_.4} parent=5 // pred_check_branch
      %4039 = sbr.rel (%p4037) target = $region48
    $region47: #{_lambda_.4} parent=5 // pred_region
      %s4040 = ssub.s32 %s12, 2
      // Predicated region
      $region49: #{_lambda_.4} parent=47 // pred_check
        %p4041 = pneg %p130
      $region50: #{_lambda_.4} parent=47 // pred_check_branch
        %4043 = sbr.rel (%p4041) target = $region52
      $region51: #{_lambda_.4} parent=47 // pred_region
        %p4044 = scmp.lt.s32.totalorder %s18, 1
        %s4045 = scalar_select %p4044, %s18, 1
        %s4046 = smul.addr %s4045, 36
        %s4047 = smul.addr %s4046, 4
        %s4048 = scalar_lea.vmem %s4, %s4047
      $region52: #{_lambda_.4} parent=47 // pred_fallthru
        _
      // Predicated region
      $region53: #{_lambda_.4} parent=47 // pred_check
        %p4049 = pneg %p156
      $region54: #{_lambda_.4} parent=47 // pred_check_branch
        %4051 = sbr.rel (%p4049) target = $region56
      $region55: #{_lambda_.4} parent=47 // pred_region
        %p4052 = scmp.lt.s32.totalorder %s18, 1
        %s4053 = scalar_select %p4052, %s18, 1
        %s4054 = smul.addr %s4053, 43
        %s4055 = smul.addr %s4054, 4
        %s4056 = scalar_lea.vmem %s5, %s4055
      $region56: #{_lambda_.4} parent=47 // pred_fallthru
        _
    $region48: #{_lambda_.4} parent=5 // pred_fallthru
      _
  $region6: #{_lambda_.4} parent=0 // loop_footer
    %s16 = sadd.s32 1, %s12
  $region7: #{_lambda_.4} parent=0 // loop_footer_branch
    %11 = sbr.rel target = $region3
  $region8: #{_lambda_.4} parent=0 // loop_exit
    _

// kernel: _lambda_.3
$region0: #{_lambda_.3}
  #allocation0 [shape = 'u32[]', space=smem, size = 0x4, offset = 0x4, fixed_abs, tag = 'smem constant byte address 0x4 - core index']
  #allocation1 [shape = 'u32[72,128]{1,0:T(1,128)}', space=vmem, size = 0x9000, scoped, tag = 'internal scratch']
  %s0 = inlined_call_operand.vmem [shape: bf16[2,342,64], index: 0, kind: input, shape index: {}]
  %s1 = inlined_call_operand.vmem [shape: bf16[9,64,16], index: 1, kind: input, shape index: {}]
  %s2 = inlined_call_operand.vmem [shape: f32[1,16], index: 2, kind: input, shape index: {}]
  %s3 = inlined_call_operand.vmem [shape: f32[288,1], index: 3, kind: input, shape index: {}]
  %s4 = inlined_call_operand.vmem [shape: bf16[2,342,16], index: 4, kind: output, shape index: {}]
  %s5 = sld [smem:[#allocation0]]
  $region49: #{_lambda_.3} parent=0
    _
  %s7 = ssub.s32 1, %s5
  %s8 = scalar_select 0, %s7, %s5
  loop: start=0, step=1, limit=4
  $region2: #{_lambda_.3} parent=0 // loop_pre_header
    _
  $region3: #{_lambda_.3} parent=0 // loop_header
    %s10 = sphi 0, %s14
    %p11 = scmp.ge.s32.totalorder %s10, 4
    %s20 = sphi 0, %s22
    %s23 = sphi 0, %s20
    %s24 = sphi 0, %s23
    %s40 = sphi 0, %s24
    %s44 = sphi 0, %s44
    %s46 = sphi 0, %s44
    %s47 = sphi 0, %s46
    %s61 = sphi 0, %s47
    %s65 = sphi 0, %s65
    %s67 = sphi 0, %s65
    %s68 = sphi 0, %s67
    %s82 = sphi 0, %s68
    %s86 = sphi 0, %s86
    %s88 = sphi 0, %s86
    %s89 = sphi 0, %s88
    %s103 = sphi 0, %s89
    %s109 = sphi 0, %s111
    %s112 = sphi 0, %s109
    %s113 = sphi 0, %s112
    %s129 = sphi 0, %s113
  $region4: #{_lambda_.3} parent=0 // loop_header_branch
    %13 = sbr.rel (%p11) target = $region8
  $region5: #{_lambda_.3} parent=0 // loop_body
    %s15 = ssub.s32 %s10, 1
    %s16 = ssub.s32 %s10, 2
    %s17 = sadd.s32 %s10, 1
    %s18 = ssub.s32 %s10, %s17
    %p19 = scmp.eq.s32.totalorder %s18, 0
    %s21 = sadd.s32 %s20, 1
    %s22 = scalar_select %p19, %s20, %s21
    %p25 = pneg %p19
    %p26 = scmp.eq.s32.totalorder %s10, 1
    %p27 = por %p25, %p26
    %p28 = scmp.ne.s32.totalorder %s20, %s23
    %p29 = scmp.eq.s32.totalorder %s10, 0
    %p30 = por %p28, %p29
    %p31 = scmp.ne.s32.totalorder %s20, %s23
    %p32 = scmp.eq.s32.totalorder %s15, 1
    %p33 = por %p31, %p32
    %p34 = scmp.ne.s32.totalorder %s23, %s24
    %p35 = scmp.eq.s32.totalorder %s15, 0
    %p36 = por %p34, %p35
    %p37 = scmp.ne.s32.totalorder %s23, %s24
    %p38 = scmp.eq.s32.totalorder %s16, 1
    %p39 = por %p37, %p38
    %p41 = scmp.ne.s32.totalorder %s24, %s40
    %p42 = scmp.eq.s32.totalorder %s16, 0
    %p43 = por %p41, %p42
    %s45 = sadd.s32 %s44, 1
    %p48 = scmp.eq.s32.totalorder %s10, 1
    %p49 = scmp.ne.s32.totalorder %s44, %s46
    %p50 = scmp.eq.s32.totalorder %s10, 0
    %p51 = por %p49, %p50
    %p52 = scmp.ne.s32.totalorder %s44, %s46
    %p53 = scmp.eq.s32.totalorder %s15, 1
    %p54 = por %p52, %p53
    %p55 = scmp.ne.s32.totalorder %s46, %s47
    %p56 = scmp.eq.s32.totalorder %s15, 0
    %p57 = por %p55, %p56
    %p58 = scmp.ne.s32.totalorder %s46, %s47
    %p59 = scmp.eq.s32.totalorder %s16, 1
    %p60 = por %p58, %p59
    %p62 = scmp.ne.s32.totalorder %s47, %s61
    %p63 = scmp.eq.s32.totalorder %s16, 0
    %p64 = por %p62, %p63
    %s66 = sadd.s32 %s65, 1
    %p69 = scmp.eq.s32.totalorder %s10, 1
    %p70 = scmp.ne.s32.totalorder %s65, %s67
    %p71 = scmp.eq.s32.totalorder %s10, 0
    %p72 = por %p70, %p71
    %p73 = scmp.ne.s32.totalorder %s65, %s67
    %p74 = scmp.eq.s32.totalorder %s15, 1
    %p75 = por %p73, %p74
    %p76 = scmp.ne.s32.totalorder %s67, %s68
    %p77 = scmp.eq.s32.totalorder %s15, 0
    %p78 = por %p76, %p77
    %p79 = scmp.ne.s32.totalorder %s67, %s68
    %p80 = scmp.eq.s32.totalorder %s16, 1
    %p81 = por %p79, %p80
    %p83 = scmp.ne.s32.totalorder %s68, %s82
    %p84 = scmp.eq.s32.totalorder %s16, 0
    %p85 = por %p83, %p84
    %s87 = sadd.s32 %s86, 1
    %p90 = scmp.eq.s32.totalorder %s10, 1
    %p91 = scmp.ne.s32.totalorder %s86, %s88
    %p92 = scmp.eq.s32.totalorder %s10, 0
    %p93 = por %p91, %p92
    %p94 = scmp.ne.s32.totalorder %s86, %s88
    %p95 = scmp.eq.s32.totalorder %s15, 1
    %p96 = por %p94, %p95
    %p97 = scmp.ne.s32.totalorder %s88, %s89
    %p98 = scmp.eq.s32.totalorder %s15, 0
    %p99 = por %p97, %p98
    %p100 = scmp.ne.s32.totalorder %s88, %s89
    %p101 = scmp.eq.s32.totalorder %s16, 1
    %p102 = por %p100, %p101
    %p104 = scmp.ne.s32.totalorder %s89, %s103
    %p105 = scmp.eq.s32.totalorder %s16, 0
    %p106 = por %p104, %p105
    %s107 = ssub.s32 %s10, %s17
    %p108 = scmp.eq.s32.totalorder %s107, 0
    %s110 = sadd.s32 %s109, 1
    %s111 = scalar_select %p108, %s109, %s110
    %p114 = pneg %p108
    %p115 = scmp.eq.s32.totalorder %s10, 1
    %p116 = por %p114, %p115
    %p117 = scmp.ne.s32.totalorder %s109, %s112
    %p118 = scmp.eq.s32.totalorder %s10, 0
    %p119 = por %p117, %p118
    %p120 = scmp.ne.s32.totalorder %s109, %s112
    %p121 = scmp.eq.s32.totalorder %s15, 1
    %p122 = por %p120, %p121
    %p123 = scmp.ne.s32.totalorder %s112, %s113
    %p124 = scmp.eq.s32.totalorder %s15, 0
    %p125 = por %p123, %p124
    %p126 = scmp.ne.s32.totalorder %s112, %s113
    %p127 = scmp.eq.s32.totalorder %s16, 1
    %p128 = por %p126, %p127
    %p130 = scmp.ne.s32.totalorder %s113, %s129
    %p131 = scmp.eq.s32.totalorder %s16, 0
    %p132 = por %p130, %p131
    %p133 = scmp.le.s32.totalorder 1, %s10
    %p134 = scmp.lt.s32.totalorder %s10, 3
    %p135 = pnand %p133, %p134
    %p136 = pneg %p135
    // Predicated region
    $region9: #{_lambda_.3} parent=5 // pred_check
      _
    $region10: #{_lambda_.3} parent=5 // pred_check_branch
      %138 = sbr.rel (%p135) target = $region12
    $region11: #{_lambda_.3} parent=5 // pred_region
      %s139 = ssub.s32 %s10, 1
      // Predicated region
      $region13: #{_lambda_.3} parent=11 // pred_check
        %p140 = pneg %p57
      $region14: #{_lambda_.3} parent=11 // pred_check_branch
        %142 = sbr.rel (%p140) target = $region16
      $region15: #{_lambda_.3} parent=11 // pred_region
        _
      $region16: #{_lambda_.3} parent=11 // pred_fallthru
        _
      // Predicated region
      $region17: #{_lambda_.3} parent=11 // pred_check
        %p143 = pneg %p78
      $region18: #{_lambda_.3} parent=11 // pred_check_branch
        %145 = sbr.rel (%p143) target = $region20
      $region19: #{_lambda_.3} parent=11 // pred_region
        _
      $region20: #{_lambda_.3} parent=11 // pred_fallthru
        _
      // Predicated region
      $region21: #{_lambda_.3} parent=11 // pred_check
        %p146 = pneg %p99
      $region22: #{_lambda_.3} parent=11 // pred_check_branch
        %148 = sbr.rel (%p146) target = $region24
      $region23: #{_lambda_.3} parent=11 // pred_region
        _
      $region24: #{_lambda_.3} parent=11 // pred_fallthru
        _
    $region12: #{_lambda_.3} parent=5 // pred_fallthru
      _
    %p149 = scmp.lt.s32.totalorder %s10, 2
    // Predicated region
    $region25: #{_lambda_.3} parent=5 // pred_check
      %p150 = pneg %p149
    $region26: #{_lambda_.3} parent=5 // pred_check_branch
      %152 = sbr.rel (%p150) target = $region28
    $region27: #{_lambda_.3} parent=5 // pred_region
      // Predicated region
      $region29: #{_lambda_.3} parent=27 // pred_check
        %p153 = pneg %p30
      $region30: #{_lambda_.3} parent=27 // pred_check_branch
        %155 = sbr.rel (%p153) target = $region32
      $region31: #{_lambda_.3} parent=27 // pred_region
        %p156 = scmp.lt.s32.totalorder %s10, 1
        %s157 = scalar_select %p156, %s10, 1
        %s158 = smul.addr %s157, 43
        %s159 = smul.addr %s158, 4
        %s160 = scalar_lea.vmem %s0, %s159
      $region32: #{_lambda_.3} parent=27 // pred_fallthru
        _
    $region28: #{_lambda_.3} parent=5 // pred_fallthru
      _
    %p161 = scmp.le.s32.totalorder 1, %s10
    %p162 = scmp.lt.s32.totalorder %s10, 3
    %p163 = pnand %p161, %p162
    %p164 = pneg %p163
    // Predicated region
    $region33: #{_lambda_.3} parent=5 // pred_check
      _
    $region34: #{_lambda_.3} parent=5 // pred_check_branch
      %166 = sbr.rel (%p163) target = $region36
    $region35: #{_lambda_.3} parent=5 // pred_region
      %s167 = ssub.s32 %s10, 1
      %p168 = scmp.lt.s32.totalorder %s15, 1
      %s169 = scalar_select %p168, %s15, 1
      %s170 = smul.addr %s169, 43
      %s171 = smul.addr %s170, 4
      %s172 = scalar_lea.vmem %s0, %s171
      %p173 = pneg %p36
      %p174 = pneg %p33
      %p175 = pneg %p57
      %p176 = pneg %p54
      %p177 = pneg %p78
      %p178 = pneg %p75
      %p179 = pneg %p99
      %p180 = pneg %p96
      %p181 = pneg %p125
      %p182 = pneg %p122
      %p183 = scmp.lt.s32.totalorder %s15, 1
      %s184 = scalar_select %p183, %s15, 1
      %s185 = smul.addr %s184, 43
      %s186 = smul.addr %s185, 4
      %s187 = scalar_lea.vmem %s4, %s186
      %p188 = scmp.lt.s32.totalorder %s15, 1
      %s189 = scalar_select %p188, %s15, 1
      %s190 = smul.addr %s189, 43
      %s191 = smul.addr %s190, 4
      %s192 = scalar_lea.vmem %s0, %s191
      %p193 = scmp.lt.s32.totalorder %s15, 1
      %s194 = scalar_select %p193, %s15, 1
      %s195 = smul.addr %s194, 43
      %s196 = smul.addr %s195, 4
      %s197 = scalar_lea.vmem %s4, %s196
      %v199 = vld [vmem:[%s192] sm:$0xf]
      %v200 = vld [vmem:[%s192 + $0x4] sm:$0xf]
      %v201 = vld [vmem:[%s192 + $0x8] sm:$0xf]
      %v202 = vld [vmem:[%s192 + $0xc] sm:$0xf]
      %v203 = vld [vmem:[%s192 + $0x10] sm:$0xf]
      %v204 = vld [vmem:[%s192 + $0x14] sm:$0xf]
      %v205 = vld [vmem:[%s192 + $0x18] sm:$0xf]
      %v206 = vld [vmem:[%s192 + $0x1c] sm:$0xf]
      %v207 = vld [vmem:[%s192 + $0x20] sm:$0xf]
      %v208 = vld [vmem:[%s192 + $0x24] sm:$0xf]
      %v209 = vld [vmem:[%s192 + $0x28] sm:$0xf]
      %v210 = vld [vmem:[%s192 + $0x2c] sm:$0xf]
      %v211 = vld [vmem:[%s192 + $0x30] sm:$0xf]
      %v212 = vld [vmem:[%s192 + $0x34] sm:$0xf]
      %v213 = vld [vmem:[%s192 + $0x38] sm:$0xf]
      %v214 = vld [vmem:[%s192 + $0x3c] sm:$0xf]
      %v215 = vld [vmem:[%s192 + $0x40] sm:$0xf]
      %v216 = vld [vmem:[%s192 + $0x44] sm:$0xf]
      %v217 = vld [vmem:[%s192 + $0x48] sm:$0xf]
      %v218 = vld [vmem:[%s192 + $0x4c] sm:$0xf]
      %v219 = vld [vmem:[%s192 + $0x50] sm:$0xf]
      %v220 = vld [vmem:[%s192 + $0x54] sm:$0xf]
      %v221 = vld [vmem:[%s192 + $0x58] sm:$0xf]
      %v222 = vld [vmem:[%s192 + $0x5c] sm:$0xf]
      %v223 = vld [vmem:[%s192 + $0x60] sm:$0xf]
      %v224 = vld [vmem:[%s192 + $0x64] sm:$0xf]
      %v225 = vld [vmem:[%s192 + $0x68] sm:$0xf]
      %v226 = vld [vmem:[%s192 + $0x6c] sm:$0xf]
      %v227 = vld [vmem:[%s192 + $0x70] sm:$0xf]
      %v228 = vld [vmem:[%s192 + $0x74] sm:$0xf]
      %v229 = vld [vmem:[%s192 + $0x78] sm:$0xf]
      %v230 = vld [vmem:[%s192 + $0x7c] sm:$0xf]
      %v231 = vld [vmem:[%s192 + $0x80] sm:$0xf]
      %v232 = vld [vmem:[%s192 + $0x84] sm:$0xf]
      %v233 = vld [vmem:[%s192 + $0x88] sm:$0xf]
      %v234 = vld [vmem:[%s192 + $0x8c] sm:$0xf]
      %v235 = vld [vmem:[%s1] sm:$0xf]
      %v236 = vld [vmem:[%s1 + $0x4] sm:$0xf]
      %v237 = vld [vmem:[%s1 + $0x8] sm:$0xf]
      %v238 = vld [vmem:[%s1 + $0xc] sm:$0xf]
      %v239 = vld [vmem:[%s1 + $0x10] sm:$0xf]
      %v240 = vld [vmem:[%s1 + $0x14] sm:$0xf]
      %v241 = vld [vmem:[%s1 + $0x18] sm:$0xf]
      %v242 = vld [vmem:[%s1 + $0x1c] sm:$0xf]
      %v243 = vld [vmem:[%s192 + $0x90] sm:$0x1]
      %s244 = scalar_lea.vmem %s1, 32
      %v245 = vld [vmem:[%s244] sm:$0xf]
      %v246 = vld [vmem:[%s244 + $0x4] sm:$0xf]
      %v247 = vld [vmem:[%s244 + $0x8] sm:$0xf]
      %v248 = vld [vmem:[%s244 + $0xc] sm:$0xf]
      %v249 = vld [vmem:[%s244 + $0x10] sm:$0xf]
      %v250 = vld [vmem:[%s244 + $0x14] sm:$0xf]
      %v251 = vld [vmem:[%s244 + $0x18] sm:$0xf]
      %v252 = vld [vmem:[%s244 + $0x1c] sm:$0xf]
      %v290 = vunpack.c.l.b16 %v199
      %v291 = vunpack.c.l.b16 %v200
      %v292 = vunpack.c.l.b16 %v201
      %v293 = vunpack.c.l.b16 %v202
      %v294 = vunpack.c.l.b16 %v203
      %v295 = vunpack.c.l.b16 %v204
      %v296 = vunpack.c.l.b16 %v205
      %v297 = vunpack.c.l.b16 %v206
      %v298 = vunpack.c.l.b16 %v207
      %v299 = vunpack.c.l.b16 %v208
      %v300 = vunpack.c.l.b16 %v209
      %v301 = vunpack.c.l.b16 %v210
      %v302 = vunpack.c.l.b16 %v211
      %v303 = vunpack.c.l.b16 %v212
      %v304 = vunpack.c.l.b16 %v213
      %v305 = vunpack.c.l.b16 %v214
      %v306 = vunpack.c.l.b16 %v215
      %v307 = vunpack.c.l.b16 %v216
      %v308 = vunpack.c.l.b16 %v217
      %v309 = vunpack.c.l.b16 %v218
      %v310 = vunpack.c.l.b16 %v219
      %v311 = vunpack.c.l.b16 %v220
      %v312 = vunpack.c.l.b16 %v221
      %v313 = vunpack.c.l.b16 %v222
      %v314 = vunpack.c.l.b16 %v223
      %v315 = vunpack.c.l.b16 %v224
      %v316 = vunpack.c.l.b16 %v225
      %v317 = vunpack.c.l.b16 %v226
      %v318 = vunpack.c.l.b16 %v227
      %v319 = vunpack.c.l.b16 %v228
      %v320 = vunpack.c.l.b16 %v229
      %v321 = vunpack.c.l.b16 %v230
      %v322 = vunpack.c.l.b16 %v231
      %v323 = vunpack.c.l.b16 %v232
      %v324 = vunpack.c.l.b16 %v233
      %v325 = vunpack.c.l.b16 %v234
      %v326 = vunpack.c.l.b16 %v243
      %v327 = vpack.c.b16 %v291, %v290
      %v328 = vpack.c.b16 %v293, %v292
      %v329 = vpack.c.b16 %v295, %v294
      %v330 = vpack.c.b16 %v297, %v296
      %v331 = vpack.c.b16 %v299, %v298
      %v332 = vpack.c.b16 %v301, %v300
      %v333 = vpack.c.b16 %v303, %v302
      %v334 = vpack.c.b16 %v305, %v304
      %v335 = vpack.c.b16 %v307, %v306
      %v336 = vpack.c.b16 %v309, %v308
      %v337 = vpack.c.b16 %v311, %v310
      %v338 = vpack.c.b16 %v313, %v312
      %v339 = vpack.c.b16 %v315, %v314
      %v340 = vpack.c.b16 %v317, %v316
      %v341 = vpack.c.b16 %v319, %v318
      %v342 = vpack.c.b16 %v321, %v320
      %v343 = vpack.c.b16 %v323, %v322
      %v344 = vpack.c.b16 %v325, %v324
      %v345 = vpack.c.b16 %v326, %v326
      %vm346 = vsmask.f32 7424
      %v348 = vshrl.u32 %v327, 16
      %v350 = vshll.u32 %v327, 16
      %v352 = vrot.slane %v350, 1
      %v353 = vor.u32 %v348, %v352
      %v355 = vshll.u32 %v328, 16
      %v357 = vrot.slane %v355, 1
      %v358 = vsel %vm346, %v353, %v357
      %v359 = vshrl.u32 %v328, 16
      %v361 = vor.u32 %v359, %v357
      %v363 = vshll.u32 %v329, 16
      %v365 = vrot.slane %v363, 1
      %v366 = vsel %vm346, %v361, %v365
      %v367 = vshrl.u32 %v329, 16
      %v369 = vor.u32 %v367, %v365
      %v371 = vshll.u32 %v330, 16
      %v373 = vrot.slane %v371, 1
      %v374 = vsel %vm346, %v369, %v373
      %v375 = vshrl.u32 %v330, 16
      %v377 = vor.u32 %v375, %v373
      %v379 = vshll.u32 %v331, 16
      %v381 = vrot.slane %v379, 1
      %v382 = vsel %vm346, %v377, %v381
      %v383 = vshrl.u32 %v331, 16
      %v385 = vor.u32 %v383, %v381
      %v387 = vshll.u32 %v332, 16
      %v389 = vrot.slane %v387, 1
      %v390 = vsel %vm346, %v385, %v389
      %v391 = vshrl.u32 %v332, 16
      %v393 = vor.u32 %v391, %v389
      %v395 = vshll.u32 %v333, 16
      %v397 = vrot.slane %v395, 1
      %v398 = vsel %vm346, %v393, %v397
      %v399 = vshrl.u32 %v333, 16
      %v401 = vor.u32 %v399, %v397
      %v403 = vshll.u32 %v334, 16
      %v405 = vrot.slane %v403, 1
      %v406 = vsel %vm346, %v401, %v405
      %v407 = vshrl.u32 %v334, 16
      %v409 = vor.u32 %v407, %v405
      %v411 = vshll.u32 %v335, 16
      %v413 = vrot.slane %v411, 1
      %v414 = vsel %vm346, %v409, %v413
      %v415 = vshrl.u32 %v335, 16
      %v417 = vor.u32 %v415, %v413
      %v419 = vshll.u32 %v336, 16
      %v421 = vrot.slane %v419, 1
      %v422 = vsel %vm346, %v417, %v421
      %v423 = vshrl.u32 %v336, 16
      %v425 = vor.u32 %v423, %v421
      %v427 = vshll.u32 %v337, 16
      %v429 = vrot.slane %v427, 1
      %v430 = vsel %vm346, %v425, %v429
      %v431 = vshrl.u32 %v337, 16
      %v433 = vor.u32 %v431, %v429
      %v435 = vshll.u32 %v338, 16
      %v437 = vrot.slane %v435, 1
      %v438 = vsel %vm346, %v433, %v437
      %v439 = vshrl.u32 %v338, 16
      %v441 = vor.u32 %v439, %v437
      %v443 = vshll.u32 %v339, 16
      %v445 = vrot.slane %v443, 1
      %v446 = vsel %vm346, %v441, %v445
      %v447 = vshrl.u32 %v339, 16
      %v449 = vor.u32 %v447, %v445
      %v451 = vshll.u32 %v340, 16
      %v453 = vrot.slane %v451, 1
      %v454 = vsel %vm346, %v449, %v453
      %v455 = vshrl.u32 %v340, 16
      %v457 = vor.u32 %v455, %v453
      %v459 = vshll.u32 %v341, 16
      %v461 = vrot.slane %v459, 1
      %v462 = vsel %vm346, %v457, %v461
      %v463 = vshrl.u32 %v341, 16
      %v465 = vor.u32 %v463, %v461
      %v467 = vshll.u32 %v342, 16
      %v469 = vrot.slane %v467, 1
      %v470 = vsel %vm346, %v465, %v469
      %v471 = vshrl.u32 %v342, 16
      %v473 = vor.u32 %v471, %v469
      %v475 = vshll.u32 %v343, 16
      %v477 = vrot.slane %v475, 1
      %v478 = vsel %vm346, %v473, %v477
      %v479 = vshrl.u32 %v343, 16
      %v481 = vor.u32 %v479, %v477
      %v483 = vshll.u32 %v344, 16
      %v485 = vrot.slane %v483, 1
      %v486 = vsel %vm346, %v481, %v485
      %v487 = vshrl.u32 %v344, 16
      %v489 = vor.u32 %v487, %v485
      %v491 = vshll.u32 %v345, 16
      %v493 = vrot.slane %v491, 1
      %v494 = vsel %vm346, %v489, %v493
      %v503 = vunpack.c.l.b16 %v245
      %v504 = vunpack.c.l.b16 %v246
      %v505 = vunpack.c.l.b16 %v247
      %v506 = vunpack.c.l.b16 %v248
      %v507 = vunpack.c.l.b16 %v249
      %v508 = vunpack.c.l.b16 %v250
      %v509 = vunpack.c.l.b16 %v251
      %v510 = vunpack.c.l.b16 %v252
      %v511 = vpack.c.b16 %v504, %v503
      %v512 = vpack.c.b16 %v506, %v505
      %v513 = vpack.c.b16 %v508, %v507
      %v514 = vpack.c.b16 %v510, %v509
      %vm519 = vcmask 523264
      %v521 = vsel %vm519, %v358, 0
      %v524 = vsel %vm519, %v366, 0
      %v527 = vsel %vm519, %v374, 0
      %v530 = vsel %vm519, %v382, 0
      %v533 = vsel %vm519, %v390, 0
      %v536 = vsel %vm519, %v398, 0
      %v539 = vsel %vm519, %v406, 0
      %v542 = vsel %vm519, %v414, 0
      %v545 = vsel %vm519, %v422, 0
      %v548 = vsel %vm519, %v430, 0
      %v551 = vsel %vm519, %v438, 0
      %v554 = vsel %vm519, %v446, 0
      %v557 = vsel %vm519, %v454, 0
      %v560 = vsel %vm519, %v462, 0
      %v563 = vsel %vm519, %v470, 0
      %v566 = vsel %vm519, %v478, 0
      %v569 = vsel %vm519, %v486, 0
      %v572 = vsel %vm519, %v494, 0
      %574 = vmatpush.bf16.msra.mxu0 0
      %575 = vmatpush.bf16.msra.mxu0 0
      %576 = vmatpush.bf16.msra.mxu0 0
      %577 = vmatpush.bf16.msra.mxu0 0
      %578 = vmatpush.bf16.msra.mxu0 %v514
      %579 = vmatpush.bf16.msra.mxu0 %v513
      %580 = vmatpush.bf16.msra.mxu0 %v512
      %581 = vmatpush.bf16.msra.mxu0 %v511
      %582 = vmatmul.bf16.gmra.mxu0 %v521
      %v583 = vpop.f32.mrf.mxu0
      %v584 = vadd.f32 0.0, %v583
      %v585 = vpop.f32.mrf.mxu0
      %v586 = vadd.f32 0.0, %v585
      %587 = vmatmul.bf16.gmra.mxu0 %v524
      %v588 = vpop.f32.mrf.mxu0
      %v589 = vadd.f32 0.0, %v588
      %v590 = vpop.f32.mrf.mxu0
      %v591 = vadd.f32 0.0, %v590
      %592 = vmatmul.bf16.gmra.mxu0 %v527
      %v593 = vpop.f32.mrf.mxu0
      %v594 = vadd.f32 0.0, %v593
      %v595 = vpop.f32.mrf.mxu0
      %v596 = vadd.f32 0.0, %v595
      %597 = vmatmul.bf16.gmra.mxu0 %v530
      %v598 = vpop.f32.mrf.mxu0
      %v599 = vadd.f32 0.0, %v598
      %v600 = vpop.f32.mrf.mxu0
      %v601 = vadd.f32 0.0, %v600
      %602 = vmatmul.bf16.gmra.mxu0 %v533
      %v603 = vpop.f32.mrf.mxu0
      %v604 = vadd.f32 0.0, %v603
      %v605 = vpop.f32.mrf.mxu0
      %v606 = vadd.f32 0.0, %v605
      %607 = vmatmul.bf16.gmra.mxu0 %v536
      %v608 = vpop.f32.mrf.mxu0
      %v609 = vadd.f32 0.0, %v608
      %v610 = vpop.f32.mrf.mxu0
      %v611 = vadd.f32 0.0, %v610
      %612 = vmatmul.bf16.gmra.mxu0 %v539
      %v613 = vpop.f32.mrf.mxu0
      %v614 = vadd.f32 0.0, %v613
      %v615 = vpop.f32.mrf.mxu0
      %v616 = vadd.f32 0.0, %v615
      %617 = vmatmul.bf16.gmra.mxu0 %v542
      %v618 = vpop.f32.mrf.mxu0
      %v619 = vadd.f32 0.0, %v618
      %v620 = vpop.f32.mrf.mxu0
      %v621 = vadd.f32 0.0, %v620
      %622 = vmatmul.bf16.gmra.mxu0 %v545
      %v623 = vpop.f32.mrf.mxu0
      %v624 = vadd.f32 0.0, %v623
      %v625 = vpop.f32.mrf.mxu0
      %v626 = vadd.f32 0.0, %v625
      %627 = vmatmul.bf16.gmra.mxu0 %v548
      %v628 = vpop.f32.mrf.mxu0
      %v629 = vadd.f32 0.0, %v628
      %v630 = vpop.f32.mrf.mxu0
      %v631 = vadd.f32 0.0, %v630
      %632 = vmatmul.bf16.gmra.mxu0 %v551
      %v633 = vpop.f32.mrf.mxu0
      %v634 = vadd.f32 0.0, %v633
      %v635 = vpop.f32.mrf.mxu0
      %v636 = vadd.f32 0.0, %v635
      %637 = vmatmul.bf16.gmra.mxu0 %v554
      %v638 = vpop.f32.mrf.mxu0
      %v639 = vadd.f32 0.0, %v638
      %v640 = vpop.f32.mrf.mxu0
      %v641 = vadd.f32 0.0, %v640
      %642 = vmatmul.bf16.gmra.mxu0 %v557
      %v643 = vpop.f32.mrf.mxu0
      %v644 = vadd.f32 0.0, %v643
      %v645 = vpop.f32.mrf.mxu0
      %v646 = vadd.f32 0.0, %v645
      %647 = vmatmul.bf16.gmra.mxu0 %v560
      %v648 = vpop.f32.mrf.mxu0
      %v649 = vadd.f32 0.0, %v648
      %v650 = vpop.f32.mrf.mxu0
      %v651 = vadd.f32 0.0, %v650
      %652 = vmatmul.bf16.gmra.mxu0 %v563
      %v653 = vpop.f32.mrf.mxu0
      %v654 = vadd.f32 0.0, %v653
      %v655 = vpop.f32.mrf.mxu0
      %v656 = vadd.f32 0.0, %v655
      %657 = vmatmul.bf16.gmra.mxu0 %v566
      %v658 = vpop.f32.mrf.mxu0
      %v659 = vadd.f32 0.0, %v658
      %v660 = vpop.f32.mrf.mxu0
      %v661 = vadd.f32 0.0, %v660
      %662 = vmatmul.bf16.gmra.mxu0 %v569
      %v663 = vpop.f32.mrf.mxu0
      %v664 = vadd.f32 0.0, %v663
      %v665 = vpop.f32.mrf.mxu0
      %v666 = vadd.f32 0.0, %v665
      %667 = vmatmul.bf16.gmra.mxu0 %v572
      %v668 = vpop.f32.mrf.mxu0
      %v669 = vadd.f32 0.0, %v668
      %v670 = vpop.f32.mrf.mxu0
      %v671 = vadd.f32 0.0, %v670
      %672 = vdwg.mxu0
      %v681 = vunpack.c.l.b16 %v235
      %v682 = vunpack.c.l.b16 %v236
      %v683 = vunpack.c.l.b16 %v237
      %v684 = vunpack.c.l.b16 %v238
      %v685 = vunpack.c.l.b16 %v239
      %v686 = vunpack.c.l.b16 %v240
      %v687 = vunpack.c.l.b16 %v241
      %v688 = vunpack.c.l.b16 %v242
      %v689 = vpack.c.b16 %v682, %v681
      %v690 = vpack.c.b16 %v684, %v683
      %v691 = vpack.c.b16 %v686, %v685
      %v692 = vpack.c.b16 %v688, %v687
      %v697 = vsel %vm519, %v327, 0
      %v699 = vsel %vm519, %v328, 0
      %v701 = vsel %vm519, %v329, 0
      %v703 = vsel %vm519, %v330, 0
      %v705 = vsel %vm519, %v331, 0
      %v707 = vsel %vm519, %v332, 0
      %v709 = vsel %vm519, %v333, 0
      %v711 = vsel %vm519, %v334, 0
      %v713 = vsel %vm519, %v335, 0
      %v715 = vsel %vm519, %v336, 0
      %v717 = vsel %vm519, %v337, 0
      %v719 = vsel %vm519, %v338, 0
      %v721 = vsel %vm519, %v339, 0
      %v723 = vsel %vm519, %v340, 0
      %v725 = vsel %vm519, %v341, 0
      %v727 = vsel %vm519, %v342, 0
      %v729 = vsel %vm519, %v343, 0
      %v731 = vsel %vm519, %v344, 0
      %733 = vmatpush.bf16.msra.mxu0 0
      %734 = vmatpush.bf16.msra.mxu0 0
      %735 = vmatpush.bf16.msra.mxu0 0
      %736 = vmatpush.bf16.msra.mxu0 0
      %737 = vmatpush.bf16.msra.mxu0 %v692
      %738 = vmatpush.bf16.msra.mxu0 %v691
      %739 = vmatpush.bf16.msra.mxu0 %v690
      %740 = vmatpush.bf16.msra.mxu0 %v689
      %741 = vmatmul.bf16.gmra.mxu0 %v697
      %v742 = vpop.f32.mrf.mxu0
      %v743 = vadd.f32 %v584, %v742
      %v744 = vpop.f32.mrf.mxu0
      %v745 = vadd.f32 %v586, %v744
      %746 = vmatmul.bf16.gmra.mxu0 %v699
      %v747 = vpop.f32.mrf.mxu0
      %v748 = vadd.f32 %v589, %v747
      %v749 = vpop.f32.mrf.mxu0
      %v750 = vadd.f32 %v591, %v749
      %751 = vmatmul.bf16.gmra.mxu0 %v701
      %v752 = vpop.f32.mrf.mxu0
      %v753 = vadd.f32 %v594, %v752
      %v754 = vpop.f32.mrf.mxu0
      %v755 = vadd.f32 %v596, %v754
      %756 = vmatmul.bf16.gmra.mxu0 %v703
      %v757 = vpop.f32.mrf.mxu0
      %v758 = vadd.f32 %v599, %v757
      %v759 = vpop.f32.mrf.mxu0
      %v760 = vadd.f32 %v601, %v759
      %761 = vmatmul.bf16.gmra.mxu0 %v705
      %v762 = vpop.f32.mrf.mxu0
      %v763 = vadd.f32 %v604, %v762
      %v764 = vpop.f32.mrf.mxu0
      %v765 = vadd.f32 %v606, %v764
      %766 = vmatmul.bf16.gmra.mxu0 %v707
      %v767 = vpop.f32.mrf.mxu0
      %v768 = vadd.f32 %v609, %v767
      %v769 = vpop.f32.mrf.mxu0
      %v770 = vadd.f32 %v611, %v769
      %771 = vmatmul.bf16.gmra.mxu0 %v709
      %v772 = vpop.f32.mrf.mxu0
      %v773 = vadd.f32 %v614, %v772
      %v774 = vpop.f32.mrf.mxu0
      %v775 = vadd.f32 %v616, %v774
      %776 = vmatmul.bf16.gmra.mxu0 %v711
      %v777 = vpop.f32.mrf.mxu0
      %v778 = vadd.f32 %v619, %v777
      %v779 = vpop.f32.mrf.mxu0
      %v780 = vadd.f32 %v621, %v779
      %781 = vmatmul.bf16.gmra.mxu0 %v713
      %v782 = vpop.f32.mrf.mxu0
      %v783 = vadd.f32 %v624, %v782
      %v784 = vpop.f32.mrf.mxu0
      %v785 = vadd.f32 %v626, %v784
      %786 = vmatmul.bf16.gmra.mxu0 %v715
      %v787 = vpop.f32.mrf.mxu0
      %v788 = vadd.f32 %v629, %v787
      %v789 = vpop.f32.mrf.mxu0
      %v790 = vadd.f32 %v631, %v789
      %791 = vmatmul.bf16.gmra.mxu0 %v717
      %v792 = vpop.f32.mrf.mxu0
      %v793 = vadd.f32 %v634, %v792
      %v794 = vpop.f32.mrf.mxu0
      %v795 = vadd.f32 %v636, %v794
      %796 = vmatmul.bf16.gmra.mxu0 %v719
      %v797 = vpop.f32.mrf.mxu0
      %v798 = vadd.f32 %v639, %v797
      %v799 = vpop.f32.mrf.mxu0
      %v800 = vadd.f32 %v641, %v799
      %801 = vmatmul.bf16.gmra.mxu0 %v721
      %v802 = vpop.f32.mrf.mxu0
      %v803 = vadd.f32 %v644, %v802
      %v804 = vpop.f32.mrf.mxu0
      %v805 = vadd.f32 %v646, %v804
      %806 = vmatmul.bf16.gmra.mxu0 %v723
      %v807 = vpop.f32.mrf.mxu0
      %v808 = vadd.f32 %v649, %v807
      %v809 = vpop.f32.mrf.mxu0
      %v810 = vadd.f32 %v651, %v809
      %811 = vmatmul.bf16.gmra.mxu0 %v725
      %v812 = vpop.f32.mrf.mxu0
      %v813 = vadd.f32 %v654, %v812
      %v814 = vpop.f32.mrf.mxu0
      %v815 = vadd.f32 %v656, %v814
      %816 = vmatmul.bf16.gmra.mxu0 %v727
      %v817 = vpop.f32.mrf.mxu0
      %v818 = vadd.f32 %v659, %v817
      %v819 = vpop.f32.mrf.mxu0
      %v820 = vadd.f32 %v661, %v819
      %821 = vmatmul.bf16.gmra.mxu0 %v729
      %v822 = vpop.f32.mrf.mxu0
      %v823 = vadd.f32 %v664, %v822
      %v824 = vpop.f32.mrf.mxu0
      %v825 = vadd.f32 %v666, %v824
      %826 = vmatmul.bf16.gmra.mxu0 %v731
      %v827 = vpop.f32.mrf.mxu0
      %v828 = vadd.f32 %v669, %v827
      %v829 = vpop.f32.mrf.mxu0
      %v830 = vadd.f32 %v671, %v829
      %831 = vdwg.mxu0
      %v832 = vld [vmem:[%s192] sm:$0xe]
      %s833 = scalar_lea.vmem %s1, 64
      %v834 = vld [vmem:[%s833] sm:$0xf]
      %v835 = vld [vmem:[%s833 + $0x4] sm:$0xf]
      %v836 = vld [vmem:[%s833 + $0x8] sm:$0xf]
      %v837 = vld [vmem:[%s833 + $0xc] sm:$0xf]
      %v838 = vld [vmem:[%s833 + $0x10] sm:$0xf]
      %v839 = vld [vmem:[%s833 + $0x14] sm:$0xf]
      %v840 = vld [vmem:[%s833 + $0x18] sm:$0xf]
      %v841 = vld [vmem:[%s833 + $0x1c] sm:$0xf]
      %v843 = vunpack.c.l.b16 %v832
      %v844 = vpack.c.b16 %v291, %v843
      %vm845 = vcmask 1046528
      %v846 = vrot.slane %v844, 1
      %v847 = vrot.slane %v328, 1
      %v848 = vsel %vm845, %v846, %v847
      %v849 = vrot.slane %v329, 1
      %v850 = vsel %vm845, %v847, %v849
      %v851 = vrot.slane %v330, 1
      %v852 = vsel %vm845, %v849, %v851
      %v853 = vrot.slane %v331, 1
      %v854 = vsel %vm845, %v851, %v853
      %v855 = vrot.slane %v332, 1
      %v856 = vsel %vm845, %v853, %v855
      %v857 = vrot.slane %v333, 1
      %v858 = vsel %vm845, %v855, %v857
      %v859 = vrot.slane %v334, 1
      %v860 = vsel %vm845, %v857, %v859
      %v861 = vrot.slane %v335, 1
      %v862 = vsel %vm845, %v859, %v861
      %v863 = vrot.slane %v336, 1
      %v864 = vsel %vm845, %v861, %v863
      %v865 = vrot.slane %v337, 1
      %v866 = vsel %vm845, %v863, %v865
      %v867 = vrot.slane %v338, 1
      %v868 = vsel %vm845, %v865, %v867
      %v869 = vrot.slane %v339, 1
      %v870 = vsel %vm845, %v867, %v869
      %v871 = vrot.slane %v340, 1
      %v872 = vsel %vm845, %v869, %v871
      %v873 = vrot.slane %v341, 1
      %v874 = vsel %vm845, %v871, %v873
      %v875 = vrot.slane %v342, 1
      %v876 = vsel %vm845, %v873, %v875
      %v877 = vrot.slane %v343, 1
      %v878 = vsel %vm845, %v875, %v877
      %v879 = vrot.slane %v344, 1
      %v880 = vsel %vm845, %v877, %v879
      %v881 = vrot.slane %v345, 1
      %v882 = vsel %vm845, %v879, %v881
      %v891 = vunpack.c.l.b16 %v834
      %v892 = vunpack.c.l.b16 %v835
      %v893 = vunpack.c.l.b16 %v836
      %v894 = vunpack.c.l.b16 %v837
      %v895 = vunpack.c.l.b16 %v838
      %v896 = vunpack.c.l.b16 %v839
      %v897 = vunpack.c.l.b16 %v840
      %v898 = vunpack.c.l.b16 %v841
      %v899 = vpack.c.b16 %v892, %v891
      %v900 = vpack.c.b16 %v894, %v893
      %v901 = vpack.c.b16 %v896, %v895
      %v902 = vpack.c.b16 %v898, %v897
      %v908 = vsel %vm519, %v848, 0
      %v911 = vsel %vm519, %v850, 0
      %v914 = vsel %vm519, %v852, 0
      %v917 = vsel %vm519, %v854, 0
      %v920 = vsel %vm519, %v856, 0
      %v923 = vsel %vm519, %v858, 0
      %v926 = vsel %vm519, %v860, 0
      %v929 = vsel %vm519, %v862, 0
      %v932 = vsel %vm519, %v864, 0
      %v935 = vsel %vm519, %v866, 0
      %v938 = vsel %vm519, %v868, 0
      %v941 = vsel %vm519, %v870, 0
      %v944 = vsel %vm519, %v872, 0
      %v947 = vsel %vm519, %v874, 0
      %v950 = vsel %vm519, %v876, 0
      %v953 = vsel %vm519, %v878, 0
      %v956 = vsel %vm519, %v880, 0
      %v959 = vsel %vm519, %v882, 0
      %961 = vmatpush.bf16.msra.mxu0 0
      %962 = vmatpush.bf16.msra.mxu0 0
      %963 = vmatpush.bf16.msra.mxu0 0
      %964 = vmatpush.bf16.msra.mxu0 0
      %965 = vmatpush.bf16.msra.mxu0 %v902
      %966 = vmatpush.bf16.msra.mxu0 %v901
      %967 = vmatpush.bf16.msra.mxu0 %v900
      %968 = vmatpush.bf16.msra.mxu0 %v899
      %969 = vmatmul.bf16.gmra.mxu0 %v908
      %v970 = vpop.f32.mrf.mxu0
      %v971 = vadd.f32 0.0, %v970
      %v972 = vpop.f32.mrf.mxu0
      %v973 = vadd.f32 0.0, %v972
      %974 = vmatmul.bf16.gmra.mxu0 %v911
      %v975 = vpop.f32.mrf.mxu0
      %v976 = vadd.f32 0.0, %v975
      %v977 = vpop.f32.mrf.mxu0
      %v978 = vadd.f32 0.0, %v977
      %979 = vmatmul.bf16.gmra.mxu0 %v914
      %v980 = vpop.f32.mrf.mxu0
      %v981 = vadd.f32 0.0, %v980
      %v982 = vpop.f32.mrf.mxu0
      %v983 = vadd.f32 0.0, %v982
      %984 = vmatmul.bf16.gmra.mxu0 %v917
      %v985 = vpop.f32.mrf.mxu0
      %v986 = vadd.f32 0.0, %v985
      %v987 = vpop.f32.mrf.mxu0
      %v988 = vadd.f32 0.0, %v987
      %989 = vmatmul.bf16.gmra.mxu0 %v920
      %v990 = vpop.f32.mrf.mxu0
      %v991 = vadd.f32 0.0, %v990
      %v992 = vpop.f32.mrf.mxu0
      %v993 = vadd.f32 0.0, %v992
      %994 = vmatmul.bf16.gmra.mxu0 %v923
      %v995 = vpop.f32.mrf.mxu0
      %v996 = vadd.f32 0.0, %v995
      %v997 = vpop.f32.mrf.mxu0
      %v998 = vadd.f32 0.0, %v997
      %999 = vmatmul.bf16.gmra.mxu0 %v926
      %v1000 = vpop.f32.mrf.mxu0
      %v1001 = vadd.f32 0.0, %v1000
      %v1002 = vpop.f32.mrf.mxu0
      %v1003 = vadd.f32 0.0, %v1002
      %1004 = vmatmul.bf16.gmra.mxu0 %v929
      %v1005 = vpop.f32.mrf.mxu0
      %v1006 = vadd.f32 0.0, %v1005
      %v1007 = vpop.f32.mrf.mxu0
      %v1008 = vadd.f32 0.0, %v1007
      %1009 = vmatmul.bf16.gmra.mxu0 %v932
      %v1010 = vpop.f32.mrf.mxu0
      %v1011 = vadd.f32 0.0, %v1010
      %v1012 = vpop.f32.mrf.mxu0
      %v1013 = vadd.f32 0.0, %v1012
      %1014 = vmatmul.bf16.gmra.mxu0 %v935
      %v1015 = vpop.f32.mrf.mxu0
      %v1016 = vadd.f32 0.0, %v1015
      %v1017 = vpop.f32.mrf.mxu0
      %v1018 = vadd.f32 0.0, %v1017
      %1019 = vmatmul.bf16.gmra.mxu0 %v938
      %v1020 = vpop.f32.mrf.mxu0
      %v1021 = vadd.f32 0.0, %v1020
      %v1022 = vpop.f32.mrf.mxu0
      %v1023 = vadd.f32 0.0, %v1022
      %1024 = vmatmul.bf16.gmra.mxu0 %v941
      %v1025 = vpop.f32.mrf.mxu0
      %v1026 = vadd.f32 0.0, %v1025
      %v1027 = vpop.f32.mrf.mxu0
      %v1028 = vadd.f32 0.0, %v1027
      %1029 = vmatmul.bf16.gmra.mxu0 %v944
      %v1030 = vpop.f32.mrf.mxu0
      %v1031 = vadd.f32 0.0, %v1030
      %v1032 = vpop.f32.mrf.mxu0
      %v1033 = vadd.f32 0.0, %v1032
      %1034 = vmatmul.bf16.gmra.mxu0 %v947
      %v1035 = vpop.f32.mrf.mxu0
      %v1036 = vadd.f32 0.0, %v1035
      %v1037 = vpop.f32.mrf.mxu0
      %v1038 = vadd.f32 0.0, %v1037
      %1039 = vmatmul.bf16.gmra.mxu0 %v950
      %v1040 = vpop.f32.mrf.mxu0
      %v1041 = vadd.f32 0.0, %v1040
      %v1042 = vpop.f32.mrf.mxu0
      %v1043 = vadd.f32 0.0, %v1042
      %1044 = vmatmul.bf16.gmra.mxu0 %v953
      %v1045 = vpop.f32.mrf.mxu0
      %v1046 = vadd.f32 0.0, %v1045
      %v1047 = vpop.f32.mrf.mxu0
      %v1048 = vadd.f32 0.0, %v1047
      %1049 = vmatmul.bf16.gmra.mxu0 %v956
      %v1050 = vpop.f32.mrf.mxu0
      %v1051 = vadd.f32 0.0, %v1050
      %v1052 = vpop.f32.mrf.mxu0
      %v1053 = vadd.f32 0.0, %v1052
      %1054 = vmatmul.bf16.gmra.mxu0 %v959
      %v1055 = vpop.f32.mrf.mxu0
      %v1056 = vadd.f32 0.0, %v1055
      %v1057 = vpop.f32.mrf.mxu0
      %v1058 = vadd.f32 0.0, %v1057
      %1059 = vdwg.mxu0
      %v1060 = vadd.f32 %v743, %v971
      %v1061 = vadd.f32 %v745, %v973
      %v1062 = vadd.f32 %v748, %v976
      %v1063 = vadd.f32 %v750, %v978
      %v1064 = vadd.f32 %v753, %v981
      %v1065 = vadd.f32 %v755, %v983
      %v1066 = vadd.f32 %v758, %v986
      %v1067 = vadd.f32 %v760, %v988
      %v1068 = vadd.f32 %v763, %v991
      %v1069 = vadd.f32 %v765, %v993
      %v1070 = vadd.f32 %v768, %v996
      %v1071 = vadd.f32 %v770, %v998
      %v1072 = vadd.f32 %v773, %v1001
      %v1073 = vadd.f32 %v775, %v1003
      %v1074 = vadd.f32 %v778, %v1006
      %v1075 = vadd.f32 %v780, %v1008
      %v1076 = vadd.f32 %v783, %v1011
      %v1077 = vadd.f32 %v785, %v1013
      %v1078 = vadd.f32 %v788, %v1016
      %v1079 = vadd.f32 %v790, %v1018
      %v1080 = vadd.f32 %v793, %v1021
      %v1081 = vadd.f32 %v795, %v1023
      %v1082 = vadd.f32 %v798, %v1026
      %v1083 = vadd.f32 %v800, %v1028
      %v1084 = vadd.f32 %v803, %v1031
      %v1085 = vadd.f32 %v805, %v1033
      %v1086 = vadd.f32 %v808, %v1036
      %v1087 = vadd.f32 %v810, %v1038
      %v1088 = vadd.f32 %v813, %v1041
      %v1089 = vadd.f32 %v815, %v1043
      %v1090 = vadd.f32 %v818, %v1046
      %v1091 = vadd.f32 %v820, %v1048
      %v1092 = vadd.f32 %v823, %v1051
      %v1093 = vadd.f32 %v825, %v1053
      %v1094 = vadd.f32 %v828, %v1056
      %v1095 = vadd.f32 %v830, %v1058
      %v1096 = vld [vmem:[%s192 + $0x8] sm:$0xe]
      %v1097 = vld [vmem:[%s192 + $0xc] sm:$0xf]
      %v1098 = vld [vmem:[%s192 + $0x10] sm:$0xf]
      %v1099 = vld [vmem:[%s192 + $0x14] sm:$0xf]
      %v1100 = vld [vmem:[%s192 + $0x18] sm:$0xf]
      %v1101 = vld [vmem:[%s192 + $0x1c] sm:$0xf]
      %v1102 = vld [vmem:[%s192 + $0x20] sm:$0xf]
      %v1103 = vld [vmem:[%s192 + $0x24] sm:$0xf]
      %v1104 = vld [vmem:[%s192 + $0x28] sm:$0xf]
      %v1105 = vld [vmem:[%s192 + $0x2c] sm:$0xf]
      %v1106 = vld [vmem:[%s192 + $0x30] sm:$0xf]
      %v1107 = vld [vmem:[%s192 + $0x34] sm:$0xf]
      %v1108 = vld [vmem:[%s192 + $0x38] sm:$0xf]
      %v1109 = vld [vmem:[%s192 + $0x3c] sm:$0xf]
      %v1110 = vld [vmem:[%s192 + $0x40] sm:$0xf]
      %v1111 = vld [vmem:[%s192 + $0x44] sm:$0xf]
      %v1112 = vld [vmem:[%s192 + $0x48] sm:$0xf]
      %v1113 = vld [vmem:[%s192 + $0x4c] sm:$0xf]
      %v1114 = vld [vmem:[%s192 + $0x50] sm:$0xf]
      %v1115 = vld [vmem:[%s192 + $0x54] sm:$0xf]
      %v1116 = vld [vmem:[%s192 + $0x58] sm:$0xf]
      %v1117 = vld [vmem:[%s192 + $0x5c] sm:$0xf]
      %v1118 = vld [vmem:[%s192 + $0x60] sm:$0xf]
      %v1119 = vld [vmem:[%s192 + $0x64] sm:$0xf]
      %v1120 = vld [vmem:[%s192 + $0x68] sm:$0xf]
      %v1121 = vld [vmem:[%s192 + $0x6c] sm:$0xf]
      %v1122 = vld [vmem:[%s192 + $0x70] sm:$0xf]
      %v1123 = vld [vmem:[%s192 + $0x74] sm:$0xf]
      %v1124 = vld [vmem:[%s192 + $0x78] sm:$0xf]
      %v1125 = vld [vmem:[%s192 + $0x7c] sm:$0xf]
      %v1126 = vld [vmem:[%s192 + $0x80] sm:$0xf]
      %v1127 = vld [vmem:[%s192 + $0x84] sm:$0xf]
      %v1128 = vld [vmem:[%s192 + $0x88] sm:$0xf]
      %v1129 = vld [vmem:[%s192 + $0x8c] sm:$0xf]
      %v1130 = vld [vmem:[%s192 + $0x90] sm:$0xf]
      %v1131 = vld [vmem:[%s192 + $0x94] sm:$0xf]
      %v1132 = vld [vmem:[%s192 + $0x98] sm:$0x1]
      %s1133 = scalar_lea.vmem %s1, 96
      %v1134 = vld [vmem:[%s1133] sm:$0xf]
      %v1135 = vld [vmem:[%s1133 + $0x4] sm:$0xf]
      %v1136 = vld [vmem:[%s1133 + $0x8] sm:$0xf]
      %v1137 = vld [vmem:[%s1133 + $0xc] sm:$0xf]
      %v1138 = vld [vmem:[%s1133 + $0x10] sm:$0xf]
      %v1139 = vld [vmem:[%s1133 + $0x14] sm:$0xf]
      %v1140 = vld [vmem:[%s1133 + $0x18] sm:$0xf]
      %v1141 = vld [vmem:[%s1133 + $0x1c] sm:$0xf]
      %v1179 = vunpack.c.l.b16 %v1096
      %v1180 = vunpack.c.l.b16 %v1097
      %v1181 = vunpack.c.l.b16 %v1098
      %v1182 = vunpack.c.l.b16 %v1099
      %v1183 = vunpack.c.l.b16 %v1100
      %v1184 = vunpack.c.l.b16 %v1101
      %v1185 = vunpack.c.l.b16 %v1102
      %v1186 = vunpack.c.l.b16 %v1103
      %v1187 = vunpack.c.l.b16 %v1104
      %v1188 = vunpack.c.l.b16 %v1105
      %v1189 = vunpack.c.l.b16 %v1106
      %v1190 = vunpack.c.l.b16 %v1107
      %v1191 = vunpack.c.l.b16 %v1108
      %v1192 = vunpack.c.l.b16 %v1109
      %v1193 = vunpack.c.l.b16 %v1110
      %v1194 = vunpack.c.l.b16 %v1111
      %v1195 = vunpack.c.l.b16 %v1112
      %v1196 = vunpack.c.l.b16 %v1113
      %v1197 = vunpack.c.l.b16 %v1114
      %v1198 = vunpack.c.l.b16 %v1115
      %v1199 = vunpack.c.l.b16 %v1116
      %v1200 = vunpack.c.l.b16 %v1117
      %v1201 = vunpack.c.l.b16 %v1118
      %v1202 = vunpack.c.l.b16 %v1119
      %v1203 = vunpack.c.l.b16 %v1120
      %v1204 = vunpack.c.l.b16 %v1121
      %v1205 = vunpack.c.l.b16 %v1122
      %v1206 = vunpack.c.l.b16 %v1123
      %v1207 = vunpack.c.l.b16 %v1124
      %v1208 = vunpack.c.l.b16 %v1125
      %v1209 = vunpack.c.l.b16 %v1126
      %v1210 = vunpack.c.l.b16 %v1127
      %v1211 = vunpack.c.l.b16 %v1128
      %v1212 = vunpack.c.l.b16 %v1129
      %v1213 = vunpack.c.l.b16 %v1130
      %v1214 = vunpack.c.l.b16 %v1131
      %v1215 = vunpack.c.l.b16 %v1132
      %v1216 = vpack.c.b16 %v1180, %v1179
      %v1217 = vpack.c.b16 %v1182, %v1181
      %v1218 = vpack.c.b16 %v1184, %v1183
      %v1219 = vpack.c.b16 %v1186, %v1185
      %v1220 = vpack.c.b16 %v1188, %v1187
      %v1221 = vpack.c.b16 %v1190, %v1189
      %v1222 = vpack.c.b16 %v1192, %v1191
      %v1223 = vpack.c.b16 %v1194, %v1193
      %v1224 = vpack.c.b16 %v1196, %v1195
      %v1225 = vpack.c.b16 %v1198, %v1197
      %v1226 = vpack.c.b16 %v1200, %v1199
      %v1227 = vpack.c.b16 %v1202, %v1201
      %v1228 = vpack.c.b16 %v1204, %v1203
      %v1229 = vpack.c.b16 %v1206, %v1205
      %v1230 = vpack.c.b16 %v1208, %v1207
      %v1231 = vpack.c.b16 %v1210, %v1209
      %v1232 = vpack.c.b16 %v1212, %v1211
      %v1233 = vpack.c.b16 %v1214, %v1213
      %v1234 = vpack.c.b16 %v1215, %v1215
      %v1235 = vrot.slane %v1216, 1
      %v1236 = vrot.slane %v1217, 1
      %v1237 = vsel %vm845, %v1235, %v1236
      %v1238 = vrot.slane %v1218, 1
      %v1239 = vsel %vm845, %v1236, %v1238
      %v1240 = vrot.slane %v1219, 1
      %v1241 = vsel %vm845, %v1238, %v1240
      %v1242 = vrot.slane %v1220, 1
      %v1243 = vsel %vm845, %v1240, %v1242
      %v1244 = vrot.slane %v1221, 1
      %v1245 = vsel %vm845, %v1242, %v1244
      %v1246 = vrot.slane %v1222, 1
      %v1247 = vsel %vm845, %v1244, %v1246
      %v1248 = vrot.slane %v1223, 1
      %v1249 = vsel %vm845, %v1246, %v1248
      %v1250 = vrot.slane %v1224, 1
      %v1251 = vsel %vm845, %v1248, %v1250
      %v1252 = vrot.slane %v1225, 1
      %v1253 = vsel %vm845, %v1250, %v1252
      %v1254 = vrot.slane %v1226, 1
      %v1255 = vsel %vm845, %v1252, %v1254
      %v1256 = vrot.slane %v1227, 1
      %v1257 = vsel %vm845, %v1254, %v1256
      %v1258 = vrot.slane %v1228, 1
      %v1259 = vsel %vm845, %v1256, %v1258
      %v1260 = vrot.slane %v1229, 1
      %v1261 = vsel %vm845, %v1258, %v1260
      %v1262 = vrot.slane %v1230, 1
      %v1263 = vsel %vm845, %v1260, %v1262
      %v1264 = vrot.slane %v1231, 1
      %v1265 = vsel %vm845, %v1262, %v1264
      %v1266 = vrot.slane %v1232, 1
      %v1267 = vsel %vm845, %v1264, %v1266
      %v1268 = vrot.slane %v1233, 1
      %v1269 = vsel %vm845, %v1266, %v1268
      %v1270 = vrot.slane %v1234, 1
      %v1271 = vsel %vm845, %v1268, %v1270
      %v1280 = vunpack.c.l.b16 %v1134
      %v1281 = vunpack.c.l.b16 %v1135
      %v1282 = vunpack.c.l.b16 %v1136
      %v1283 = vunpack.c.l.b16 %v1137
      %v1284 = vunpack.c.l.b16 %v1138
      %v1285 = vunpack.c.l.b16 %v1139
      %v1286 = vunpack.c.l.b16 %v1140
      %v1287 = vunpack.c.l.b16 %v1141
      %v1288 = vpack.c.b16 %v1281, %v1280
      %v1289 = vpack.c.b16 %v1283, %v1282
      %v1290 = vpack.c.b16 %v1285, %v1284
      %v1291 = vpack.c.b16 %v1287, %v1286
      %v1297 = vsel %vm519, %v1237, 0
      %v1300 = vsel %vm519, %v1239, 0
      %v1303 = vsel %vm519, %v1241, 0
      %v1306 = vsel %vm519, %v1243, 0
      %v1309 = vsel %vm519, %v1245, 0
      %v1312 = vsel %vm519, %v1247, 0
      %v1315 = vsel %vm519, %v1249, 0
      %v1318 = vsel %vm519, %v1251, 0
      %v1321 = vsel %vm519, %v1253, 0
      %v1324 = vsel %vm519, %v1255, 0
      %v1327 = vsel %vm519, %v1257, 0
      %v1330 = vsel %vm519, %v1259, 0
      %v1333 = vsel %vm519, %v1261, 0
      %v1336 = vsel %vm519, %v1263, 0
      %v1339 = vsel %vm519, %v1265, 0
      %v1342 = vsel %vm519, %v1267, 0
      %v1345 = vsel %vm519, %v1269, 0
      %v1348 = vsel %vm519, %v1271, 0
      %1350 = vmatpush.bf16.msra.mxu0 0
      %1351 = vmatpush.bf16.msra.mxu0 0
      %1352 = vmatpush.bf16.msra.mxu0 0
      %1353 = vmatpush.bf16.msra.mxu0 0
      %1354 = vmatpush.bf16.msra.mxu0 %v1291
      %1355 = vmatpush.bf16.msra.mxu0 %v1290
      %1356 = vmatpush.bf16.msra.mxu0 %v1289
      %1357 = vmatpush.bf16.msra.mxu0 %v1288
      %1358 = vmatmul.bf16.gmra.mxu0 %v1297
      %v1359 = vpop.f32.mrf.mxu0
      %v1360 = vadd.f32 0.0, %v1359
      %v1361 = vpop.f32.mrf.mxu0
      %v1362 = vadd.f32 0.0, %v1361
      %1363 = vmatmul.bf16.gmra.mxu0 %v1300
      %v1364 = vpop.f32.mrf.mxu0
      %v1365 = vadd.f32 0.0, %v1364
      %v1366 = vpop.f32.mrf.mxu0
      %v1367 = vadd.f32 0.0, %v1366
      %1368 = vmatmul.bf16.gmra.mxu0 %v1303
      %v1369 = vpop.f32.mrf.mxu0
      %v1370 = vadd.f32 0.0, %v1369
      %v1371 = vpop.f32.mrf.mxu0
      %v1372 = vadd.f32 0.0, %v1371
      %1373 = vmatmul.bf16.gmra.mxu0 %v1306
      %v1374 = vpop.f32.mrf.mxu0
      %v1375 = vadd.f32 0.0, %v1374
      %v1376 = vpop.f32.mrf.mxu0
      %v1377 = vadd.f32 0.0, %v1376
      %1378 = vmatmul.bf16.gmra.mxu0 %v1309
      %v1379 = vpop.f32.mrf.mxu0
      %v1380 = vadd.f32 0.0, %v1379
      %v1381 = vpop.f32.mrf.mxu0
      %v1382 = vadd.f32 0.0, %v1381
      %1383 = vmatmul.bf16.gmra.mxu0 %v1312
      %v1384 = vpop.f32.mrf.mxu0
      %v1385 = vadd.f32 0.0, %v1384
      %v1386 = vpop.f32.mrf.mxu0
      %v1387 = vadd.f32 0.0, %v1386
      %1388 = vmatmul.bf16.gmra.mxu0 %v1315
      %v1389 = vpop.f32.mrf.mxu0
      %v1390 = vadd.f32 0.0, %v1389
      %v1391 = vpop.f32.mrf.mxu0
      %v1392 = vadd.f32 0.0, %v1391
      %1393 = vmatmul.bf16.gmra.mxu0 %v1318
      %v1394 = vpop.f32.mrf.mxu0
      %v1395 = vadd.f32 0.0, %v1394
      %v1396 = vpop.f32.mrf.mxu0
      %v1397 = vadd.f32 0.0, %v1396
      %1398 = vmatmul.bf16.gmra.mxu0 %v1321
      %v1399 = vpop.f32.mrf.mxu0
      %v1400 = vadd.f32 0.0, %v1399
      %v1401 = vpop.f32.mrf.mxu0
      %v1402 = vadd.f32 0.0, %v1401
      %1403 = vmatmul.bf16.gmra.mxu0 %v1324
      %v1404 = vpop.f32.mrf.mxu0
      %v1405 = vadd.f32 0.0, %v1404
      %v1406 = vpop.f32.mrf.mxu0
      %v1407 = vadd.f32 0.0, %v1406
      %1408 = vmatmul.bf16.gmra.mxu0 %v1327
      %v1409 = vpop.f32.mrf.mxu0
      %v1410 = vadd.f32 0.0, %v1409
      %v1411 = vpop.f32.mrf.mxu0
      %v1412 = vadd.f32 0.0, %v1411
      %1413 = vmatmul.bf16.gmra.mxu0 %v1330
      %v1414 = vpop.f32.mrf.mxu0
      %v1415 = vadd.f32 0.0, %v1414
      %v1416 = vpop.f32.mrf.mxu0
      %v1417 = vadd.f32 0.0, %v1416
      %1418 = vmatmul.bf16.gmra.mxu0 %v1333
      %v1419 = vpop.f32.mrf.mxu0
      %v1420 = vadd.f32 0.0, %v1419
      %v1421 = vpop.f32.mrf.mxu0
      %v1422 = vadd.f32 0.0, %v1421
      %1423 = vmatmul.bf16.gmra.mxu0 %v1336
      %v1424 = vpop.f32.mrf.mxu0
      %v1425 = vadd.f32 0.0, %v1424
      %v1426 = vpop.f32.mrf.mxu0
      %v1427 = vadd.f32 0.0, %v1426
      %1428 = vmatmul.bf16.gmra.mxu0 %v1339
      %v1429 = vpop.f32.mrf.mxu0
      %v1430 = vadd.f32 0.0, %v1429
      %v1431 = vpop.f32.mrf.mxu0
      %v1432 = vadd.f32 0.0, %v1431
      %1433 = vmatmul.bf16.gmra.mxu0 %v1342
      %v1434 = vpop.f32.mrf.mxu0
      %v1435 = vadd.f32 0.0, %v1434
      %v1436 = vpop.f32.mrf.mxu0
      %v1437 = vadd.f32 0.0, %v1436
      %1438 = vmatmul.bf16.gmra.mxu0 %v1345
      %v1439 = vpop.f32.mrf.mxu0
      %v1440 = vadd.f32 0.0, %v1439
      %v1441 = vpop.f32.mrf.mxu0
      %v1442 = vadd.f32 0.0, %v1441
      %1443 = vmatmul.bf16.gmra.mxu0 %v1348
      %v1444 = vpop.f32.mrf.mxu0
      %v1445 = vadd.f32 0.0, %v1444
      %v1446 = vpop.f32.mrf.mxu0
      %v1447 = vadd.f32 0.0, %v1446
      %1448 = vdwg.mxu0
      %v1449 = vadd.f32 %v1060, %v1360
      %v1450 = vadd.f32 %v1061, %v1362
      %v1451 = vadd.f32 %v1062, %v1365
      %v1452 = vadd.f32 %v1063, %v1367
      %v1453 = vadd.f32 %v1064, %v1370
      %v1454 = vadd.f32 %v1065, %v1372
      %v1455 = vadd.f32 %v1066, %v1375
      %v1456 = vadd.f32 %v1067, %v1377
      %v1457 = vadd.f32 %v1068, %v1380
      %v1458 = vadd.f32 %v1069, %v1382
      %v1459 = vadd.f32 %v1070, %v1385
      %v1460 = vadd.f32 %v1071, %v1387
      %v1461 = vadd.f32 %v1072, %v1390
      %v1462 = vadd.f32 %v1073, %v1392
      %v1463 = vadd.f32 %v1074, %v1395
      %v1464 = vadd.f32 %v1075, %v1397
      %v1465 = vadd.f32 %v1076, %v1400
      %v1466 = vadd.f32 %v1077, %v1402
      %v1467 = vadd.f32 %v1078, %v1405
      %v1468 = vadd.f32 %v1079, %v1407
      %v1469 = vadd.f32 %v1080, %v1410
      %v1470 = vadd.f32 %v1081, %v1412
      %v1471 = vadd.f32 %v1082, %v1415
      %v1472 = vadd.f32 %v1083, %v1417
      %v1473 = vadd.f32 %v1084, %v1420
      %v1474 = vadd.f32 %v1085, %v1422
      %v1475 = vadd.f32 %v1086, %v1425
      %v1476 = vadd.f32 %v1087, %v1427
      %v1477 = vadd.f32 %v1088, %v1430
      %v1478 = vadd.f32 %v1089, %v1432
      %v1479 = vadd.f32 %v1090, %v1435
      %v1480 = vadd.f32 %v1091, %v1437
      %v1481 = vadd.f32 %v1092, %v1440
      %v1482 = vadd.f32 %v1093, %v1442
      %v1483 = vadd.f32 %v1094, %v1445
      %v1484 = vadd.f32 %v1095, %v1447
      %v1485 = vld [vmem:[%s192 + $0x98] sm:$0x3]
      %s1486 = scalar_lea.vmem %s1, 128
      %v1487 = vld [vmem:[%s1486] sm:$0xf]
      %v1488 = vld [vmem:[%s1486 + $0x4] sm:$0xf]
      %v1489 = vld [vmem:[%s1486 + $0x8] sm:$0xf]
      %v1490 = vld [vmem:[%s1486 + $0xc] sm:$0xf]
      %v1491 = vld [vmem:[%s1486 + $0x10] sm:$0xf]
      %v1492 = vld [vmem:[%s1486 + $0x14] sm:$0xf]
      %v1493 = vld [vmem:[%s1486 + $0x18] sm:$0xf]
      %v1494 = vld [vmem:[%s1486 + $0x1c] sm:$0xf]
      %v1496 = vunpack.c.l.b16 %v1485
      %v1497 = vpack.c.b16 %v1496, %v1496
      %vm1498 = vsmask.f32 6400
      %v1500 = vshrl.u32 %v1216, 16
      %v1502 = vrot.slane %v1500, 1
      %v1503 = vshll.u32 %v1216, 16
      %v1505 = vrot.slane %v1503, 2
      %v1506 = vor.u32 %v1502, %v1505
      %v1508 = vshrl.u32 %v1217, 16
      %v1510 = vrot.slane %v1508, 1
      %v1511 = vshll.u32 %v1217, 16
      %v1513 = vrot.slane %v1511, 2
      %v1514 = vor.u32 %v1510, %v1513
      %v1515 = vsel %vm1498, %v1506, %v1514
      %v1517 = vshrl.u32 %v1218, 16
      %v1519 = vrot.slane %v1517, 1
      %v1520 = vshll.u32 %v1218, 16
      %v1522 = vrot.slane %v1520, 2
      %v1523 = vor.u32 %v1519, %v1522
      %v1524 = vsel %vm1498, %v1514, %v1523
      %v1526 = vshrl.u32 %v1219, 16
      %v1528 = vrot.slane %v1526, 1
      %v1529 = vshll.u32 %v1219, 16
      %v1531 = vrot.slane %v1529, 2
      %v1532 = vor.u32 %v1528, %v1531
      %v1533 = vsel %vm1498, %v1523, %v1532
      %v1535 = vshrl.u32 %v1220, 16
      %v1537 = vrot.slane %v1535, 1
      %v1538 = vshll.u32 %v1220, 16
      %v1540 = vrot.slane %v1538, 2
      %v1541 = vor.u32 %v1537, %v1540
      %v1542 = vsel %vm1498, %v1532, %v1541
      %v1544 = vshrl.u32 %v1221, 16
      %v1546 = vrot.slane %v1544, 1
      %v1547 = vshll.u32 %v1221, 16
      %v1549 = vrot.slane %v1547, 2
      %v1550 = vor.u32 %v1546, %v1549
      %v1551 = vsel %vm1498, %v1541, %v1550
      %v1553 = vshrl.u32 %v1222, 16
      %v1555 = vrot.slane %v1553, 1
      %v1556 = vshll.u32 %v1222, 16
      %v1558 = vrot.slane %v1556, 2
      %v1559 = vor.u32 %v1555, %v1558
      %v1560 = vsel %vm1498, %v1550, %v1559
      %v1562 = vshrl.u32 %v1223, 16
      %v1564 = vrot.slane %v1562, 1
      %v1565 = vshll.u32 %v1223, 16
      %v1567 = vrot.slane %v1565, 2
      %v1568 = vor.u32 %v1564, %v1567
      %v1569 = vsel %vm1498, %v1559, %v1568
      %v1571 = vshrl.u32 %v1224, 16
      %v1573 = vrot.slane %v1571, 1
      %v1574 = vshll.u32 %v1224, 16
      %v1576 = vrot.slane %v1574, 2
      %v1577 = vor.u32 %v1573, %v1576
      %v1578 = vsel %vm1498, %v1568, %v1577
      %v1580 = vshrl.u32 %v1225, 16
      %v1582 = vrot.slane %v1580, 1
      %v1583 = vshll.u32 %v1225, 16
      %v1585 = vrot.slane %v1583, 2
      %v1586 = vor.u32 %v1582, %v1585
      %v1587 = vsel %vm1498, %v1577, %v1586
      %v1589 = vshrl.u32 %v1226, 16
      %v1591 = vrot.slane %v1589, 1
      %v1592 = vshll.u32 %v1226, 16
      %v1594 = vrot.slane %v1592, 2
      %v1595 = vor.u32 %v1591, %v1594
      %v1596 = vsel %vm1498, %v1586, %v1595
      %v1598 = vshrl.u32 %v1227, 16
      %v1600 = vrot.slane %v1598, 1
      %v1601 = vshll.u32 %v1227, 16
      %v1603 = vrot.slane %v1601, 2
      %v1604 = vor.u32 %v1600, %v1603
      %v1605 = vsel %vm1498, %v1595, %v1604
      %v1607 = vshrl.u32 %v1228, 16
      %v1609 = vrot.slane %v1607, 1
      %v1610 = vshll.u32 %v1228, 16
      %v1612 = vrot.slane %v1610, 2
      %v1613 = vor.u32 %v1609, %v1612
      %v1614 = vsel %vm1498, %v1604, %v1613
      %v1616 = vshrl.u32 %v1229, 16
      %v1618 = vrot.slane %v1616, 1
      %v1619 = vshll.u32 %v1229, 16
      %v1621 = vrot.slane %v1619, 2
      %v1622 = vor.u32 %v1618, %v1621
      %v1623 = vsel %vm1498, %v1613, %v1622
      %v1625 = vshrl.u32 %v1230, 16
      %v1627 = vrot.slane %v1625, 1
      %v1628 = vshll.u32 %v1230, 16
      %v1630 = vrot.slane %v1628, 2
      %v1631 = vor.u32 %v1627, %v1630
      %v1632 = vsel %vm1498, %v1622, %v1631
      %v1634 = vshrl.u32 %v1231, 16
      %v1636 = vrot.slane %v1634, 1
      %v1637 = vshll.u32 %v1231, 16
      %v1639 = vrot.slane %v1637, 2
      %v1640 = vor.u32 %v1636, %v1639
      %v1641 = vsel %vm1498, %v1631, %v1640
      %v1643 = vshrl.u32 %v1232, 16
      %v1645 = vrot.slane %v1643, 1
      %v1646 = vshll.u32 %v1232, 16
      %v1648 = vrot.slane %v1646, 2
      %v1649 = vor.u32 %v1645, %v1648
      %v1650 = vsel %vm1498, %v1640, %v1649
      %v1652 = vshrl.u32 %v1233, 16
      %v1654 = vrot.slane %v1652, 1
      %v1655 = vshll.u32 %v1233, 16
      %v1657 = vrot.slane %v1655, 2
      %v1658 = vor.u32 %v1654, %v1657
      %v1659 = vsel %vm1498, %v1649, %v1658
      %v1661 = vshrl.u32 %v1497, 16
      %v1663 = vrot.slane %v1661, 1
      %v1664 = vshll.u32 %v1497, 16
      %v1666 = vrot.slane %v1664, 2
      %v1667 = vor.u32 %v1663, %v1666
      %v1668 = vsel %vm1498, %v1658, %v1667
      %v1677 = vunpack.c.l.b16 %v1487
      %v1678 = vunpack.c.l.b16 %v1488
      %v1679 = vunpack.c.l.b16 %v1489
      %v1680 = vunpack.c.l.b16 %v1490
      %v1681 = vunpack.c.l.b16 %v1491
      %v1682 = vunpack.c.l.b16 %v1492
      %v1683 = vunpack.c.l.b16 %v1493
      %v1684 = vunpack.c.l.b16 %v1494
      %v1685 = vpack.c.b16 %v1678, %v1677
      %v1686 = vpack.c.b16 %v1680, %v1679
      %v1687 = vpack.c.b16 %v1682, %v1681
      %v1688 = vpack.c.b16 %v1684, %v1683
      %v1694 = vsel %vm519, %v1515, 0
      %v1697 = vsel %vm519, %v1524, 0
      %v1700 = vsel %vm519, %v1533, 0
      %v1703 = vsel %vm519, %v1542, 0
      %v1706 = vsel %vm519, %v1551, 0
      %v1709 = vsel %vm519, %v1560, 0
      %v1712 = vsel %vm519, %v1569, 0
      %v1715 = vsel %vm519, %v1578, 0
      %v1718 = vsel %vm519, %v1587, 0
      %v1721 = vsel %vm519, %v1596, 0
      %v1724 = vsel %vm519, %v1605, 0
      %v1727 = vsel %vm519, %v1614, 0
      %v1730 = vsel %vm519, %v1623, 0
      %v1733 = vsel %vm519, %v1632, 0
      %v1736 = vsel %vm519, %v1641, 0
      %v1739 = vsel %vm519, %v1650, 0
      %v1742 = vsel %vm519, %v1659, 0
      %v1745 = vsel %vm519, %v1668, 0
      %1747 = vmatpush.bf16.msra.mxu0 0
      %1748 = vmatpush.bf16.msra.mxu0 0
      %1749 = vmatpush.bf16.msra.mxu0 0
      %1750 = vmatpush.bf16.msra.mxu0 0
      %1751 = vmatpush.bf16.msra.mxu0 %v1688
      %1752 = vmatpush.bf16.msra.mxu0 %v1687
      %1753 = vmatpush.bf16.msra.mxu0 %v1686
      %1754 = vmatpush.bf16.msra.mxu0 %v1685
      %1755 = vmatmul.bf16.gmra.mxu0 %v1694
      %v1756 = vpop.f32.mrf.mxu0
      %v1757 = vadd.f32 0.0, %v1756
      %v1758 = vpop.f32.mrf.mxu0
      %v1759 = vadd.f32 0.0, %v1758
      %1760 = vmatmul.bf16.gmra.mxu0 %v1697
      %v1761 = vpop.f32.mrf.mxu0
      %v1762 = vadd.f32 0.0, %v1761
      %v1763 = vpop.f32.mrf.mxu0
      %v1764 = vadd.f32 0.0, %v1763
      %1765 = vmatmul.bf16.gmra.mxu0 %v1700
      %v1766 = vpop.f32.mrf.mxu0
      %v1767 = vadd.f32 0.0, %v1766
      %v1768 = vpop.f32.mrf.mxu0
      %v1769 = vadd.f32 0.0, %v1768
      %1770 = vmatmul.bf16.gmra.mxu0 %v1703
      %v1771 = vpop.f32.mrf.mxu0
      %v1772 = vadd.f32 0.0, %v1771
      %v1773 = vpop.f32.mrf.mxu0
      %v1774 = vadd.f32 0.0, %v1773
      %1775 = vmatmul.bf16.gmra.mxu0 %v1706
      %v1776 = vpop.f32.mrf.mxu0
      %v1777 = vadd.f32 0.0, %v1776
      %v1778 = vpop.f32.mrf.mxu0
      %v1779 = vadd.f32 0.0, %v1778
      %1780 = vmatmul.bf16.gmra.mxu0 %v1709
      %v1781 = vpop.f32.mrf.mxu0
      %v1782 = vadd.f32 0.0, %v1781
      %v1783 = vpop.f32.mrf.mxu0
      %v1784 = vadd.f32 0.0, %v1783
      %1785 = vmatmul.bf16.gmra.mxu0 %v1712
      %v1786 = vpop.f32.mrf.mxu0
      %v1787 = vadd.f32 0.0, %v1786
      %v1788 = vpop.f32.mrf.mxu0
      %v1789 = vadd.f32 0.0, %v1788
      %1790 = vmatmul.bf16.gmra.mxu0 %v1715
      %v1791 = vpop.f32.mrf.mxu0
      %v1792 = vadd.f32 0.0, %v1791
      %v1793 = vpop.f32.mrf.mxu0
      %v1794 = vadd.f32 0.0, %v1793
      %1795 = vmatmul.bf16.gmra.mxu0 %v1718
      %v1796 = vpop.f32.mrf.mxu0
      %v1797 = vadd.f32 0.0, %v1796
      %v1798 = vpop.f32.mrf.mxu0
      %v1799 = vadd.f32 0.0, %v1798
      %1800 = vmatmul.bf16.gmra.mxu0 %v1721
      %v1801 = vpop.f32.mrf.mxu0
      %v1802 = vadd.f32 0.0, %v1801
      %v1803 = vpop.f32.mrf.mxu0
      %v1804 = vadd.f32 0.0, %v1803
      %1805 = vmatmul.bf16.gmra.mxu0 %v1724
      %v1806 = vpop.f32.mrf.mxu0
      %v1807 = vadd.f32 0.0, %v1806
      %v1808 = vpop.f32.mrf.mxu0
      %v1809 = vadd.f32 0.0, %v1808
      %1810 = vmatmul.bf16.gmra.mxu0 %v1727
      %v1811 = vpop.f32.mrf.mxu0
      %v1812 = vadd.f32 0.0, %v1811
      %v1813 = vpop.f32.mrf.mxu0
      %v1814 = vadd.f32 0.0, %v1813
      %1815 = vmatmul.bf16.gmra.mxu0 %v1730
      %v1816 = vpop.f32.mrf.mxu0
      %v1817 = vadd.f32 0.0, %v1816
      %v1818 = vpop.f32.mrf.mxu0
      %v1819 = vadd.f32 0.0, %v1818
      %1820 = vmatmul.bf16.gmra.mxu0 %v1733
      %v1821 = vpop.f32.mrf.mxu0
      %v1822 = vadd.f32 0.0, %v1821
      %v1823 = vpop.f32.mrf.mxu0
      %v1824 = vadd.f32 0.0, %v1823
      %1825 = vmatmul.bf16.gmra.mxu0 %v1736
      %v1826 = vpop.f32.mrf.mxu0
      %v1827 = vadd.f32 0.0, %v1826
      %v1828 = vpop.f32.mrf.mxu0
      %v1829 = vadd.f32 0.0, %v1828
      %1830 = vmatmul.bf16.gmra.mxu0 %v1739
      %v1831 = vpop.f32.mrf.mxu0
      %v1832 = vadd.f32 0.0, %v1831
      %v1833 = vpop.f32.mrf.mxu0
      %v1834 = vadd.f32 0.0, %v1833
      %1835 = vmatmul.bf16.gmra.mxu0 %v1742
      %v1836 = vpop.f32.mrf.mxu0
      %v1837 = vadd.f32 0.0, %v1836
      %v1838 = vpop.f32.mrf.mxu0
      %v1839 = vadd.f32 0.0, %v1838
      %1840 = vmatmul.bf16.gmra.mxu0 %v1745
      %v1841 = vpop.f32.mrf.mxu0
      %v1842 = vadd.f32 0.0, %v1841
      %v1843 = vpop.f32.mrf.mxu0
      %v1844 = vadd.f32 0.0, %v1843
      %1845 = vdwg.mxu0
      %v1846 = vadd.f32 %v1449, %v1757
      %v1847 = vadd.f32 %v1450, %v1759
      %v1848 = vadd.f32 %v1451, %v1762
      %v1849 = vadd.f32 %v1452, %v1764
      %v1850 = vadd.f32 %v1453, %v1767
      %v1851 = vadd.f32 %v1454, %v1769
      %v1852 = vadd.f32 %v1455, %v1772
      %v1853 = vadd.f32 %v1456, %v1774
      %v1854 = vadd.f32 %v1457, %v1777
      %v1855 = vadd.f32 %v1458, %v1779
      %v1856 = vadd.f32 %v1459, %v1782
      %v1857 = vadd.f32 %v1460, %v1784
      %v1858 = vadd.f32 %v1461, %v1787
      %v1859 = vadd.f32 %v1462, %v1789
      %v1860 = vadd.f32 %v1463, %v1792
      %v1861 = vadd.f32 %v1464, %v1794
      %v1862 = vadd.f32 %v1465, %v1797
      %v1863 = vadd.f32 %v1466, %v1799
      %v1864 = vadd.f32 %v1467, %v1802
      %v1865 = vadd.f32 %v1468, %v1804
      %v1866 = vadd.f32 %v1469, %v1807
      %v1867 = vadd.f32 %v1470, %v1809
      %v1868 = vadd.f32 %v1471, %v1812
      %v1869 = vadd.f32 %v1472, %v1814
      %v1870 = vadd.f32 %v1473, %v1817
      %v1871 = vadd.f32 %v1474, %v1819
      %v1872 = vadd.f32 %v1475, %v1822
      %v1873 = vadd.f32 %v1476, %v1824
      %v1874 = vadd.f32 %v1477, %v1827
      %v1875 = vadd.f32 %v1478, %v1829
      %v1876 = vadd.f32 %v1479, %v1832
      %v1877 = vadd.f32 %v1480, %v1834
      %v1878 = vadd.f32 %v1481, %v1837
      %v1879 = vadd.f32 %v1482, %v1839
      %v1880 = vadd.f32 %v1483, %v1842
      %v1881 = vadd.f32 %v1484, %v1844
      %v1882 = vld [vmem:[%s192 + $0x8] sm:$0xc]
      %s1883 = scalar_lea.vmem %s1, 160
      %v1884 = vld [vmem:[%s1883] sm:$0xf]
      %v1885 = vld [vmem:[%s1883 + $0x4] sm:$0xf]
      %v1886 = vld [vmem:[%s1883 + $0x8] sm:$0xf]
      %v1887 = vld [vmem:[%s1883 + $0xc] sm:$0xf]
      %v1888 = vld [vmem:[%s1883 + $0x10] sm:$0xf]
      %v1889 = vld [vmem:[%s1883 + $0x14] sm:$0xf]
      %v1890 = vld [vmem:[%s1883 + $0x18] sm:$0xf]
      %v1891 = vld [vmem:[%s1883 + $0x1c] sm:$0xf]
      %v1893 = vunpack.c.l.b16 %v1882
      %v1894 = vpack.c.b16 %v1180, %v1893
      %vm1895 = vcmask 1045504
      %v1896 = vrot.slane %v1894, 2
      %v1897 = vrot.slane %v1217, 2
      %v1898 = vsel %vm1895, %v1896, %v1897
      %v1899 = vrot.slane %v1218, 2
      %v1900 = vsel %vm1895, %v1897, %v1899
      %v1901 = vrot.slane %v1219, 2
      %v1902 = vsel %vm1895, %v1899, %v1901
      %v1903 = vrot.slane %v1220, 2
      %v1904 = vsel %vm1895, %v1901, %v1903
      %v1905 = vrot.slane %v1221, 2
      %v1906 = vsel %vm1895, %v1903, %v1905
      %v1907 = vrot.slane %v1222, 2
      %v1908 = vsel %vm1895, %v1905, %v1907
      %v1909 = vrot.slane %v1223, 2
      %v1910 = vsel %vm1895, %v1907, %v1909
      %v1911 = vrot.slane %v1224, 2
      %v1912 = vsel %vm1895, %v1909, %v1911
      %v1913 = vrot.slane %v1225, 2
      %v1914 = vsel %vm1895, %v1911, %v1913
      %v1915 = vrot.slane %v1226, 2
      %v1916 = vsel %vm1895, %v1913, %v1915
      %v1917 = vrot.slane %v1227, 2
      %v1918 = vsel %vm1895, %v1915, %v1917
      %v1919 = vrot.slane %v1228, 2
      %v1920 = vsel %vm1895, %v1917, %v1919
      %v1921 = vrot.slane %v1229, 2
      %v1922 = vsel %vm1895, %v1919, %v1921
      %v1923 = vrot.slane %v1230, 2
      %v1924 = vsel %vm1895, %v1921, %v1923
      %v1925 = vrot.slane %v1231, 2
      %v1926 = vsel %vm1895, %v1923, %v1925
      %v1927 = vrot.slane %v1232, 2
      %v1928 = vsel %vm1895, %v1925, %v1927
      %v1929 = vrot.slane %v1233, 2
      %v1930 = vsel %vm1895, %v1927, %v1929
      %v1931 = vrot.slane %v1497, 2
      %v1932 = vsel %vm1895, %v1929, %v1931
      %v1941 = vunpack.c.l.b16 %v1884
      %v1942 = vunpack.c.l.b16 %v1885
      %v1943 = vunpack.c.l.b16 %v1886
      %v1944 = vunpack.c.l.b16 %v1887
      %v1945 = vunpack.c.l.b16 %v1888
      %v1946 = vunpack.c.l.b16 %v1889
      %v1947 = vunpack.c.l.b16 %v1890
      %v1948 = vunpack.c.l.b16 %v1891
      %v1949 = vpack.c.b16 %v1942, %v1941
      %v1950 = vpack.c.b16 %v1944, %v1943
      %v1951 = vpack.c.b16 %v1946, %v1945
      %v1952 = vpack.c.b16 %v1948, %v1947
      %v1958 = vsel %vm519, %v1898, 0
      %v1961 = vsel %vm519, %v1900, 0
      %v1964 = vsel %vm519, %v1902, 0
      %v1967 = vsel %vm519, %v1904, 0
      %v1970 = vsel %vm519, %v1906, 0
      %v1973 = vsel %vm519, %v1908, 0
      %v1976 = vsel %vm519, %v1910, 0
      %v1979 = vsel %vm519, %v1912, 0
      %v1982 = vsel %vm519, %v1914, 0
      %v1985 = vsel %vm519, %v1916, 0
      %v1988 = vsel %vm519, %v1918, 0
      %v1991 = vsel %vm519, %v1920, 0
      %v1994 = vsel %vm519, %v1922, 0
      %v1997 = vsel %vm519, %v1924, 0
      %v2000 = vsel %vm519, %v1926, 0
      %v2003 = vsel %vm519, %v1928, 0
      %v2006 = vsel %vm519, %v1930, 0
      %v2009 = vsel %vm519, %v1932, 0
      %2011 = vmatpush.bf16.msra.mxu0 0
      %2012 = vmatpush.bf16.msra.mxu0 0
      %2013 = vmatpush.bf16.msra.mxu0 0
      %2014 = vmatpush.bf16.msra.mxu0 0
      %2015 = vmatpush.bf16.msra.mxu0 %v1952
      %2016 = vmatpush.bf16.msra.mxu0 %v1951
      %2017 = vmatpush.bf16.msra.mxu0 %v1950
      %2018 = vmatpush.bf16.msra.mxu0 %v1949
      %2019 = vmatmul.bf16.gmra.mxu0 %v1958
      %v2020 = vpop.f32.mrf.mxu0
      %v2021 = vadd.f32 0.0, %v2020
      %v2022 = vpop.f32.mrf.mxu0
      %v2023 = vadd.f32 0.0, %v2022
      %2024 = vmatmul.bf16.gmra.mxu0 %v1961
      %v2025 = vpop.f32.mrf.mxu0
      %v2026 = vadd.f32 0.0, %v2025
      %v2027 = vpop.f32.mrf.mxu0
      %v2028 = vadd.f32 0.0, %v2027
      %2029 = vmatmul.bf16.gmra.mxu0 %v1964
      %v2030 = vpop.f32.mrf.mxu0
      %v2031 = vadd.f32 0.0, %v2030
      %v2032 = vpop.f32.mrf.mxu0
      %v2033 = vadd.f32 0.0, %v2032
      %2034 = vmatmul.bf16.gmra.mxu0 %v1967
      %v2035 = vpop.f32.mrf.mxu0
      %v2036 = vadd.f32 0.0, %v2035
      %v2037 = vpop.f32.mrf.mxu0
      %v2038 = vadd.f32 0.0, %v2037
      %2039 = vmatmul.bf16.gmra.mxu0 %v1970
      %v2040 = vpop.f32.mrf.mxu0
      %v2041 = vadd.f32 0.0, %v2040
      %v2042 = vpop.f32.mrf.mxu0
      %v2043 = vadd.f32 0.0, %v2042
      %2044 = vmatmul.bf16.gmra.mxu0 %v1973
      %v2045 = vpop.f32.mrf.mxu0
      %v2046 = vadd.f32 0.0, %v2045
      %v2047 = vpop.f32.mrf.mxu0
      %v2048 = vadd.f32 0.0, %v2047
      %2049 = vmatmul.bf16.gmra.mxu0 %v1976
      %v2050 = vpop.f32.mrf.mxu0
      %v2051 = vadd.f32 0.0, %v2050
      %v2052 = vpop.f32.mrf.mxu0
      %v2053 = vadd.f32 0.0, %v2052
      %2054 = vmatmul.bf16.gmra.mxu0 %v1979
      %v2055 = vpop.f32.mrf.mxu0
      %v2056 = vadd.f32 0.0, %v2055
      %v2057 = vpop.f32.mrf.mxu0
      %v2058 = vadd.f32 0.0, %v2057
      %2059 = vmatmul.bf16.gmra.mxu0 %v1982
      %v2060 = vpop.f32.mrf.mxu0
      %v2061 = vadd.f32 0.0, %v2060
      %v2062 = vpop.f32.mrf.mxu0
      %v2063 = vadd.f32 0.0, %v2062
      %2064 = vmatmul.bf16.gmra.mxu0 %v1985
      %v2065 = vpop.f32.mrf.mxu0
      %v2066 = vadd.f32 0.0, %v2065
      %v2067 = vpop.f32.mrf.mxu0
      %v2068 = vadd.f32 0.0, %v2067
      %2069 = vmatmul.bf16.gmra.mxu0 %v1988
      %v2070 = vpop.f32.mrf.mxu0
      %v2071 = vadd.f32 0.0, %v2070
      %v2072 = vpop.f32.mrf.mxu0
      %v2073 = vadd.f32 0.0, %v2072
      %2074 = vmatmul.bf16.gmra.mxu0 %v1991
      %v2075 = vpop.f32.mrf.mxu0
      %v2076 = vadd.f32 0.0, %v2075
      %v2077 = vpop.f32.mrf.mxu0
      %v2078 = vadd.f32 0.0, %v2077
      %2079 = vmatmul.bf16.gmra.mxu0 %v1994
      %v2080 = vpop.f32.mrf.mxu0
      %v2081 = vadd.f32 0.0, %v2080
      %v2082 = vpop.f32.mrf.mxu0
      %v2083 = vadd.f32 0.0, %v2082
      %2084 = vmatmul.bf16.gmra.mxu0 %v1997
      %v2085 = vpop.f32.mrf.mxu0
      %v2086 = vadd.f32 0.0, %v2085
      %v2087 = vpop.f32.mrf.mxu0
      %v2088 = vadd.f32 0.0, %v2087
      %2089 = vmatmul.bf16.gmra.mxu0 %v2000
      %v2090 = vpop.f32.mrf.mxu0
      %v2091 = vadd.f32 0.0, %v2090
      %v2092 = vpop.f32.mrf.mxu0
      %v2093 = vadd.f32 0.0, %v2092
      %2094 = vmatmul.bf16.gmra.mxu0 %v2003
      %v2095 = vpop.f32.mrf.mxu0
      %v2096 = vadd.f32 0.0, %v2095
      %v2097 = vpop.f32.mrf.mxu0
      %v2098 = vadd.f32 0.0, %v2097
      %2099 = vmatmul.bf16.gmra.mxu0 %v2006
      %v2100 = vpop.f32.mrf.mxu0
      %v2101 = vadd.f32 0.0, %v2100
      %v2102 = vpop.f32.mrf.mxu0
      %v2103 = vadd.f32 0.0, %v2102
      %2104 = vmatmul.bf16.gmra.mxu0 %v2009
      %v2105 = vpop.f32.mrf.mxu0
      %v2106 = vadd.f32 0.0, %v2105
      %v2107 = vpop.f32.mrf.mxu0
      %v2108 = vadd.f32 0.0, %v2107
      %2109 = vdwg.mxu0
      %v2110 = vadd.f32 %v1846, %v2021
      %v2111 = vadd.f32 %v1847, %v2023
      %v2112 = vadd.f32 %v1848, %v2026
      %v2113 = vadd.f32 %v1849, %v2028
      %v2114 = vadd.f32 %v1850, %v2031
      %v2115 = vadd.f32 %v1851, %v2033
      %v2116 = vadd.f32 %v1852, %v2036
      %v2117 = vadd.f32 %v1853, %v2038
      %v2118 = vadd.f32 %v1854, %v2041
      %v2119 = vadd.f32 %v1855, %v2043
      %v2120 = vadd.f32 %v1856, %v2046
      %v2121 = vadd.f32 %v1857, %v2048
      %v2122 = vadd.f32 %v1858, %v2051
      %v2123 = vadd.f32 %v1859, %v2053
      %v2124 = vadd.f32 %v1860, %v2056
      %v2125 = vadd.f32 %v1861, %v2058
      %v2126 = vadd.f32 %v1862, %v2061
      %v2127 = vadd.f32 %v1863, %v2063
      %v2128 = vadd.f32 %v1864, %v2066
      %v2129 = vadd.f32 %v1865, %v2068
      %v2130 = vadd.f32 %v1866, %v2071
      %v2131 = vadd.f32 %v1867, %v2073
      %v2132 = vadd.f32 %v1868, %v2076
      %v2133 = vadd.f32 %v1869, %v2078
      %v2134 = vadd.f32 %v1870, %v2081
      %v2135 = vadd.f32 %v1871, %v2083
      %v2136 = vadd.f32 %v1872, %v2086
      %v2137 = vadd.f32 %v1873, %v2088
      %v2138 = vadd.f32 %v1874, %v2091
      %v2139 = vadd.f32 %v1875, %v2093
      %v2140 = vadd.f32 %v1876, %v2096
      %v2141 = vadd.f32 %v1877, %v2098
      %v2142 = vadd.f32 %v1878, %v2101
      %v2143 = vadd.f32 %v1879, %v2103
      %v2144 = vadd.f32 %v1880, %v2106
      %v2145 = vadd.f32 %v1881, %v2108
      %v2146 = vld [vmem:[%s192 + $0x10] sm:$0xc]
      %v2147 = vld [vmem:[%s192 + $0x14] sm:$0xf]
      %v2148 = vld [vmem:[%s192 + $0x18] sm:$0xf]
      %v2149 = vld [vmem:[%s192 + $0x1c] sm:$0xf]
      %v2150 = vld [vmem:[%s192 + $0x20] sm:$0xf]
      %v2151 = vld [vmem:[%s192 + $0x24] sm:$0xf]
      %v2152 = vld [vmem:[%s192 + $0x28] sm:$0xf]
      %v2153 = vld [vmem:[%s192 + $0x2c] sm:$0xf]
      %v2154 = vld [vmem:[%s192 + $0x30] sm:$0xf]
      %v2155 = vld [vmem:[%s192 + $0x34] sm:$0xf]
      %v2156 = vld [vmem:[%s192 + $0x38] sm:$0xf]
      %v2157 = vld [vmem:[%s192 + $0x3c] sm:$0xf]
      %v2158 = vld [vmem:[%s192 + $0x40] sm:$0xf]
      %v2159 = vld [vmem:[%s192 + $0x44] sm:$0xf]
      %v2160 = vld [vmem:[%s192 + $0x48] sm:$0xf]
      %v2161 = vld [vmem:[%s192 + $0x4c] sm:$0xf]
      %v2162 = vld [vmem:[%s192 + $0x50] sm:$0xf]
      %v2163 = vld [vmem:[%s192 + $0x54] sm:$0xf]
      %v2164 = vld [vmem:[%s192 + $0x58] sm:$0xf]
      %v2165 = vld [vmem:[%s192 + $0x5c] sm:$0xf]
      %v2166 = vld [vmem:[%s192 + $0x60] sm:$0xf]
      %v2167 = vld [vmem:[%s192 + $0x64] sm:$0xf]
      %v2168 = vld [vmem:[%s192 + $0x68] sm:$0xf]
      %v2169 = vld [vmem:[%s192 + $0x6c] sm:$0xf]
      %v2170 = vld [vmem:[%s192 + $0x70] sm:$0xf]
      %v2171 = vld [vmem:[%s192 + $0x74] sm:$0xf]
      %v2172 = vld [vmem:[%s192 + $0x78] sm:$0xf]
      %v2173 = vld [vmem:[%s192 + $0x7c] sm:$0xf]
      %v2174 = vld [vmem:[%s192 + $0x80] sm:$0xf]
      %v2175 = vld [vmem:[%s192 + $0x84] sm:$0xf]
      %v2176 = vld [vmem:[%s192 + $0x88] sm:$0xf]
      %v2177 = vld [vmem:[%s192 + $0x8c] sm:$0xf]
      %v2178 = vld [vmem:[%s192 + $0x90] sm:$0xf]
      %v2179 = vld [vmem:[%s192 + $0x94] sm:$0xf]
      %v2180 = vld [vmem:[%s192 + $0x98] sm:$0xf]
      %v2181 = vld [vmem:[%s192 + $0x9c] sm:$0xf]
      %v2182 = vld [vmem:[%s192 + $0xa0] sm:$0x3]
      %s2183 = scalar_lea.vmem %s1, 192
      %v2184 = vld [vmem:[%s2183] sm:$0xf]
      %v2185 = vld [vmem:[%s2183 + $0x4] sm:$0xf]
      %v2186 = vld [vmem:[%s2183 + $0x8] sm:$0xf]
      %v2187 = vld [vmem:[%s2183 + $0xc] sm:$0xf]
      %v2188 = vld [vmem:[%s2183 + $0x10] sm:$0xf]
      %v2189 = vld [vmem:[%s2183 + $0x14] sm:$0xf]
      %v2190 = vld [vmem:[%s2183 + $0x18] sm:$0xf]
      %v2191 = vld [vmem:[%s2183 + $0x1c] sm:$0xf]
      %v2229 = vunpack.c.l.b16 %v2146
      %v2230 = vunpack.c.l.b16 %v2147
      %v2231 = vunpack.c.l.b16 %v2148
      %v2232 = vunpack.c.l.b16 %v2149
      %v2233 = vunpack.c.l.b16 %v2150
      %v2234 = vunpack.c.l.b16 %v2151
      %v2235 = vunpack.c.l.b16 %v2152
      %v2236 = vunpack.c.l.b16 %v2153
      %v2237 = vunpack.c.l.b16 %v2154
      %v2238 = vunpack.c.l.b16 %v2155
      %v2239 = vunpack.c.l.b16 %v2156
      %v2240 = vunpack.c.l.b16 %v2157
      %v2241 = vunpack.c.l.b16 %v2158
      %v2242 = vunpack.c.l.b16 %v2159
      %v2243 = vunpack.c.l.b16 %v2160
      %v2244 = vunpack.c.l.b16 %v2161
      %v2245 = vunpack.c.l.b16 %v2162
      %v2246 = vunpack.c.l.b16 %v2163
      %v2247 = vunpack.c.l.b16 %v2164
      %v2248 = vunpack.c.l.b16 %v2165
      %v2249 = vunpack.c.l.b16 %v2166
      %v2250 = vunpack.c.l.b16 %v2167
      %v2251 = vunpack.c.l.b16 %v2168
      %v2252 = vunpack.c.l.b16 %v2169
      %v2253 = vunpack.c.l.b16 %v2170
      %v2254 = vunpack.c.l.b16 %v2171
      %v2255 = vunpack.c.l.b16 %v2172
      %v2256 = vunpack.c.l.b16 %v2173
      %v2257 = vunpack.c.l.b16 %v2174
      %v2258 = vunpack.c.l.b16 %v2175
      %v2259 = vunpack.c.l.b16 %v2176
      %v2260 = vunpack.c.l.b16 %v2177
      %v2261 = vunpack.c.l.b16 %v2178
      %v2262 = vunpack.c.l.b16 %v2179
      %v2263 = vunpack.c.l.b16 %v2180
      %v2264 = vunpack.c.l.b16 %v2181
      %v2265 = vunpack.c.l.b16 %v2182
      %v2266 = vpack.c.b16 %v2230, %v2229
      %v2267 = vpack.c.b16 %v2232, %v2231
      %v2268 = vpack.c.b16 %v2234, %v2233
      %v2269 = vpack.c.b16 %v2236, %v2235
      %v2270 = vpack.c.b16 %v2238, %v2237
      %v2271 = vpack.c.b16 %v2240, %v2239
      %v2272 = vpack.c.b16 %v2242, %v2241
      %v2273 = vpack.c.b16 %v2244, %v2243
      %v2274 = vpack.c.b16 %v2246, %v2245
      %v2275 = vpack.c.b16 %v2248, %v2247
      %v2276 = vpack.c.b16 %v2250, %v2249
      %v2277 = vpack.c.b16 %v2252, %v2251
      %v2278 = vpack.c.b16 %v2254, %v2253
      %v2279 = vpack.c.b16 %v2256, %v2255
      %v2280 = vpack.c.b16 %v2258, %v2257
      %v2281 = vpack.c.b16 %v2260, %v2259
      %v2282 = vpack.c.b16 %v2262, %v2261
      %v2283 = vpack.c.b16 %v2264, %v2263
      %v2284 = vpack.c.b16 %v2265, %v2265
      %v2285 = vrot.slane %v2266, 2
      %v2286 = vrot.slane %v2267, 2
      %v2287 = vsel %vm1895, %v2285, %v2286
      %v2288 = vrot.slane %v2268, 2
      %v2289 = vsel %vm1895, %v2286, %v2288
      %v2290 = vrot.slane %v2269, 2
      %v2291 = vsel %vm1895, %v2288, %v2290
      %v2292 = vrot.slane %v2270, 2
      %v2293 = vsel %vm1895, %v2290, %v2292
      %v2294 = vrot.slane %v2271, 2
      %v2295 = vsel %vm1895, %v2292, %v2294
      %v2296 = vrot.slane %v2272, 2
      %v2297 = vsel %vm1895, %v2294, %v2296
      %v2298 = vrot.slane %v2273, 2
      %v2299 = vsel %vm1895, %v2296, %v2298
      %v2300 = vrot.slane %v2274, 2
      %v2301 = vsel %vm1895, %v2298, %v2300
      %v2302 = vrot.slane %v2275, 2
      %v2303 = vsel %vm1895, %v2300, %v2302
      %v2304 = vrot.slane %v2276, 2
      %v2305 = vsel %vm1895, %v2302, %v2304
      %v2306 = vrot.slane %v2277, 2
      %v2307 = vsel %vm1895, %v2304, %v2306
      %v2308 = vrot.slane %v2278, 2
      %v2309 = vsel %vm1895, %v2306, %v2308
      %v2310 = vrot.slane %v2279, 2
      %v2311 = vsel %vm1895, %v2308, %v2310
      %v2312 = vrot.slane %v2280, 2
      %v2313 = vsel %vm1895, %v2310, %v2312
      %v2314 = vrot.slane %v2281, 2
      %v2315 = vsel %vm1895, %v2312, %v2314
      %v2316 = vrot.slane %v2282, 2
      %v2317 = vsel %vm1895, %v2314, %v2316
      %v2318 = vrot.slane %v2283, 2
      %v2319 = vsel %vm1895, %v2316, %v2318
      %v2320 = vrot.slane %v2284, 2
      %v2321 = vsel %vm1895, %v2318, %v2320
      %v2330 = vunpack.c.l.b16 %v2184
      %v2331 = vunpack.c.l.b16 %v2185
      %v2332 = vunpack.c.l.b16 %v2186
      %v2333 = vunpack.c.l.b16 %v2187
      %v2334 = vunpack.c.l.b16 %v2188
      %v2335 = vunpack.c.l.b16 %v2189
      %v2336 = vunpack.c.l.b16 %v2190
      %v2337 = vunpack.c.l.b16 %v2191
      %v2338 = vpack.c.b16 %v2331, %v2330
      %v2339 = vpack.c.b16 %v2333, %v2332
      %v2340 = vpack.c.b16 %v2335, %v2334
      %v2341 = vpack.c.b16 %v2337, %v2336
      %v2347 = vsel %vm519, %v2287, 0
      %v2350 = vsel %vm519, %v2289, 0
      %v2353 = vsel %vm519, %v2291, 0
      %v2356 = vsel %vm519, %v2293, 0
      %v2359 = vsel %vm519, %v2295, 0
      %v2362 = vsel %vm519, %v2297, 0
      %v2365 = vsel %vm519, %v2299, 0
      %v2368 = vsel %vm519, %v2301, 0
      %v2371 = vsel %vm519, %v2303, 0
      %v2374 = vsel %vm519, %v2305, 0
      %v2377 = vsel %vm519, %v2307, 0
      %v2380 = vsel %vm519, %v2309, 0
      %v2383 = vsel %vm519, %v2311, 0
      %v2386 = vsel %vm519, %v2313, 0
      %v2389 = vsel %vm519, %v2315, 0
      %v2392 = vsel %vm519, %v2317, 0
      %v2395 = vsel %vm519, %v2319, 0
      %v2398 = vsel %vm519, %v2321, 0
      %2400 = vmatpush.bf16.msra.mxu0 0
      %2401 = vmatpush.bf16.msra.mxu0 0
      %2402 = vmatpush.bf16.msra.mxu0 0
      %2403 = vmatpush.bf16.msra.mxu0 0
      %2404 = vmatpush.bf16.msra.mxu0 %v2341
      %2405 = vmatpush.bf16.msra.mxu0 %v2340
      %2406 = vmatpush.bf16.msra.mxu0 %v2339
      %2407 = vmatpush.bf16.msra.mxu0 %v2338
      %2408 = vmatmul.bf16.gmra.mxu0 %v2347
      %v2409 = vpop.f32.mrf.mxu0
      %v2410 = vadd.f32 0.0, %v2409
      %v2411 = vpop.f32.mrf.mxu0
      %v2412 = vadd.f32 0.0, %v2411
      %2413 = vmatmul.bf16.gmra.mxu0 %v2350
      %v2414 = vpop.f32.mrf.mxu0
      %v2415 = vadd.f32 0.0, %v2414
      %v2416 = vpop.f32.mrf.mxu0
      %v2417 = vadd.f32 0.0, %v2416
      %2418 = vmatmul.bf16.gmra.mxu0 %v2353
      %v2419 = vpop.f32.mrf.mxu0
      %v2420 = vadd.f32 0.0, %v2419
      %v2421 = vpop.f32.mrf.mxu0
      %v2422 = vadd.f32 0.0, %v2421
      %2423 = vmatmul.bf16.gmra.mxu0 %v2356
      %v2424 = vpop.f32.mrf.mxu0
      %v2425 = vadd.f32 0.0, %v2424
      %v2426 = vpop.f32.mrf.mxu0
      %v2427 = vadd.f32 0.0, %v2426
      %2428 = vmatmul.bf16.gmra.mxu0 %v2359
      %v2429 = vpop.f32.mrf.mxu0
      %v2430 = vadd.f32 0.0, %v2429
      %v2431 = vpop.f32.mrf.mxu0
      %v2432 = vadd.f32 0.0, %v2431
      %2433 = vmatmul.bf16.gmra.mxu0 %v2362
      %v2434 = vpop.f32.mrf.mxu0
      %v2435 = vadd.f32 0.0, %v2434
      %v2436 = vpop.f32.mrf.mxu0
      %v2437 = vadd.f32 0.0, %v2436
      %2438 = vmatmul.bf16.gmra.mxu0 %v2365
      %v2439 = vpop.f32.mrf.mxu0
      %v2440 = vadd.f32 0.0, %v2439
      %v2441 = vpop.f32.mrf.mxu0
      %v2442 = vadd.f32 0.0, %v2441
      %2443 = vmatmul.bf16.gmra.mxu0 %v2368
      %v2444 = vpop.f32.mrf.mxu0
      %v2445 = vadd.f32 0.0, %v2444
      %v2446 = vpop.f32.mrf.mxu0
      %v2447 = vadd.f32 0.0, %v2446
      %2448 = vmatmul.bf16.gmra.mxu0 %v2371
      %v2449 = vpop.f32.mrf.mxu0
      %v2450 = vadd.f32 0.0, %v2449
      %v2451 = vpop.f32.mrf.mxu0
      %v2452 = vadd.f32 0.0, %v2451
      %2453 = vmatmul.bf16.gmra.mxu0 %v2374
      %v2454 = vpop.f32.mrf.mxu0
      %v2455 = vadd.f32 0.0, %v2454
      %v2456 = vpop.f32.mrf.mxu0
      %v2457 = vadd.f32 0.0, %v2456
      %2458 = vmatmul.bf16.gmra.mxu0 %v2377
      %v2459 = vpop.f32.mrf.mxu0
      %v2460 = vadd.f32 0.0, %v2459
      %v2461 = vpop.f32.mrf.mxu0
      %v2462 = vadd.f32 0.0, %v2461
      %2463 = vmatmul.bf16.gmra.mxu0 %v2380
      %v2464 = vpop.f32.mrf.mxu0
      %v2465 = vadd.f32 0.0, %v2464
      %v2466 = vpop.f32.mrf.mxu0
      %v2467 = vadd.f32 0.0, %v2466
      %2468 = vmatmul.bf16.gmra.mxu0 %v2383
      %v2469 = vpop.f32.mrf.mxu0
      %v2470 = vadd.f32 0.0, %v2469
      %v2471 = vpop.f32.mrf.mxu0
      %v2472 = vadd.f32 0.0, %v2471
      %2473 = vmatmul.bf16.gmra.mxu0 %v2386
      %v2474 = vpop.f32.mrf.mxu0
      %v2475 = vadd.f32 0.0, %v2474
      %v2476 = vpop.f32.mrf.mxu0
      %v2477 = vadd.f32 0.0, %v2476
      %2478 = vmatmul.bf16.gmra.mxu0 %v2389
      %v2479 = vpop.f32.mrf.mxu0
      %v2480 = vadd.f32 0.0, %v2479
      %v2481 = vpop.f32.mrf.mxu0
      %v2482 = vadd.f32 0.0, %v2481
      %2483 = vmatmul.bf16.gmra.mxu0 %v2392
      %v2484 = vpop.f32.mrf.mxu0
      %v2485 = vadd.f32 0.0, %v2484
      %v2486 = vpop.f32.mrf.mxu0
      %v2487 = vadd.f32 0.0, %v2486
      %2488 = vmatmul.bf16.gmra.mxu0 %v2395
      %v2489 = vpop.f32.mrf.mxu0
      %v2490 = vadd.f32 0.0, %v2489
      %v2491 = vpop.f32.mrf.mxu0
      %v2492 = vadd.f32 0.0, %v2491
      %2493 = vmatmul.bf16.gmra.mxu0 %v2398
      %v2494 = vpop.f32.mrf.mxu0
      %v2495 = vadd.f32 0.0, %v2494
      %v2496 = vpop.f32.mrf.mxu0
      %v2497 = vadd.f32 0.0, %v2496
      %2498 = vdwg.mxu0
      %v2499 = vadd.f32 %v2110, %v2410
      %v2500 = vadd.f32 %v2111, %v2412
      %v2501 = vadd.f32 %v2112, %v2415
      %v2502 = vadd.f32 %v2113, %v2417
      %v2503 = vadd.f32 %v2114, %v2420
      %v2504 = vadd.f32 %v2115, %v2422
      %v2505 = vadd.f32 %v2116, %v2425
      %v2506 = vadd.f32 %v2117, %v2427
      %v2507 = vadd.f32 %v2118, %v2430
      %v2508 = vadd.f32 %v2119, %v2432
      %v2509 = vadd.f32 %v2120, %v2435
      %v2510 = vadd.f32 %v2121, %v2437
      %v2511 = vadd.f32 %v2122, %v2440
      %v2512 = vadd.f32 %v2123, %v2442
      %v2513 = vadd.f32 %v2124, %v2445
      %v2514 = vadd.f32 %v2125, %v2447
      %v2515 = vadd.f32 %v2126, %v2450
      %v2516 = vadd.f32 %v2127, %v2452
      %v2517 = vadd.f32 %v2128, %v2455
      %v2518 = vadd.f32 %v2129, %v2457
      %v2519 = vadd.f32 %v2130, %v2460
      %v2520 = vadd.f32 %v2131, %v2462
      %v2521 = vadd.f32 %v2132, %v2465
      %v2522 = vadd.f32 %v2133, %v2467
      %v2523 = vadd.f32 %v2134, %v2470
      %v2524 = vadd.f32 %v2135, %v2472
      %v2525 = vadd.f32 %v2136, %v2475
      %v2526 = vadd.f32 %v2137, %v2477
      %v2527 = vadd.f32 %v2138, %v2480
      %v2528 = vadd.f32 %v2139, %v2482
      %v2529 = vadd.f32 %v2140, %v2485
      %v2530 = vadd.f32 %v2141, %v2487
      %v2531 = vadd.f32 %v2142, %v2490
      %v2532 = vadd.f32 %v2143, %v2492
      %v2533 = vadd.f32 %v2144, %v2495
      %v2534 = vadd.f32 %v2145, %v2497
      %v2535 = vld [vmem:[%s192 + $0xa0] sm:$0x7]
      %s2536 = scalar_lea.vmem %s1, 224
      %v2537 = vld [vmem:[%s2536] sm:$0xf]
      %v2538 = vld [vmem:[%s2536 + $0x4] sm:$0xf]
      %v2539 = vld [vmem:[%s2536 + $0x8] sm:$0xf]
      %v2540 = vld [vmem:[%s2536 + $0xc] sm:$0xf]
      %v2541 = vld [vmem:[%s2536 + $0x10] sm:$0xf]
      %v2542 = vld [vmem:[%s2536 + $0x14] sm:$0xf]
      %v2543 = vld [vmem:[%s2536 + $0x18] sm:$0xf]
      %v2544 = vld [vmem:[%s2536 + $0x1c] sm:$0xf]
      %v2546 = vunpack.c.l.b16 %v2535
      %v2547 = vpack.c.b16 %v2546, %v2546
      %vm2548 = vsmask.f32 5376
      %v2550 = vshrl.u32 %v2266, 16
      %v2552 = vrot.slane %v2550, 2
      %v2553 = vshll.u32 %v2266, 16
      %v2555 = vrot.slane %v2553, 3
      %v2556 = vor.u32 %v2552, %v2555
      %v2558 = vshrl.u32 %v2267, 16
      %v2560 = vrot.slane %v2558, 2
      %v2561 = vshll.u32 %v2267, 16
      %v2563 = vrot.slane %v2561, 3
      %v2564 = vor.u32 %v2560, %v2563
      %v2565 = vsel %vm2548, %v2556, %v2564
      %v2567 = vshrl.u32 %v2268, 16
      %v2569 = vrot.slane %v2567, 2
      %v2570 = vshll.u32 %v2268, 16
      %v2572 = vrot.slane %v2570, 3
      %v2573 = vor.u32 %v2569, %v2572
      %v2574 = vsel %vm2548, %v2564, %v2573
      %v2576 = vshrl.u32 %v2269, 16
      %v2578 = vrot.slane %v2576, 2
      %v2579 = vshll.u32 %v2269, 16
      %v2581 = vrot.slane %v2579, 3
      %v2582 = vor.u32 %v2578, %v2581
      %v2583 = vsel %vm2548, %v2573, %v2582
      %v2585 = vshrl.u32 %v2270, 16
      %v2587 = vrot.slane %v2585, 2
      %v2588 = vshll.u32 %v2270, 16
      %v2590 = vrot.slane %v2588, 3
      %v2591 = vor.u32 %v2587, %v2590
      %v2592 = vsel %vm2548, %v2582, %v2591
      %v2594 = vshrl.u32 %v2271, 16
      %v2596 = vrot.slane %v2594, 2
      %v2597 = vshll.u32 %v2271, 16
      %v2599 = vrot.slane %v2597, 3
      %v2600 = vor.u32 %v2596, %v2599
      %v2601 = vsel %vm2548, %v2591, %v2600
      %v2603 = vshrl.u32 %v2272, 16
      %v2605 = vrot.slane %v2603, 2
      %v2606 = vshll.u32 %v2272, 16
      %v2608 = vrot.slane %v2606, 3
      %v2609 = vor.u32 %v2605, %v2608
      %v2610 = vsel %vm2548, %v2600, %v2609
      %v2612 = vshrl.u32 %v2273, 16
      %v2614 = vrot.slane %v2612, 2
      %v2615 = vshll.u32 %v2273, 16
      %v2617 = vrot.slane %v2615, 3
      %v2618 = vor.u32 %v2614, %v2617
      %v2619 = vsel %vm2548, %v2609, %v2618
      %v2621 = vshrl.u32 %v2274, 16
      %v2623 = vrot.slane %v2621, 2
      %v2624 = vshll.u32 %v2274, 16
      %v2626 = vrot.slane %v2624, 3
      %v2627 = vor.u32 %v2623, %v2626
      %v2628 = vsel %vm2548, %v2618, %v2627
      %v2630 = vshrl.u32 %v2275, 16
      %v2632 = vrot.slane %v2630, 2
      %v2633 = vshll.u32 %v2275, 16
      %v2635 = vrot.slane %v2633, 3
      %v2636 = vor.u32 %v2632, %v2635
      %v2637 = vsel %vm2548, %v2627, %v2636
      %v2639 = vshrl.u32 %v2276, 16
      %v2641 = vrot.slane %v2639, 2
      %v2642 = vshll.u32 %v2276, 16
      %v2644 = vrot.slane %v2642, 3
      %v2645 = vor.u32 %v2641, %v2644
      %v2646 = vsel %vm2548, %v2636, %v2645
      %v2648 = vshrl.u32 %v2277, 16
      %v2650 = vrot.slane %v2648, 2
      %v2651 = vshll.u32 %v2277, 16
      %v2653 = vrot.slane %v2651, 3
      %v2654 = vor.u32 %v2650, %v2653
      %v2655 = vsel %vm2548, %v2645, %v2654
      %v2657 = vshrl.u32 %v2278, 16
      %v2659 = vrot.slane %v2657, 2
      %v2660 = vshll.u32 %v2278, 16
      %v2662 = vrot.slane %v2660, 3
      %v2663 = vor.u32 %v2659, %v2662
      %v2664 = vsel %vm2548, %v2654, %v2663
      %v2666 = vshrl.u32 %v2279, 16
      %v2668 = vrot.slane %v2666, 2
      %v2669 = vshll.u32 %v2279, 16
      %v2671 = vrot.slane %v2669, 3
      %v2672 = vor.u32 %v2668, %v2671
      %v2673 = vsel %vm2548, %v2663, %v2672
      %v2675 = vshrl.u32 %v2280, 16
      %v2677 = vrot.slane %v2675, 2
      %v2678 = vshll.u32 %v2280, 16
      %v2680 = vrot.slane %v2678, 3
      %v2681 = vor.u32 %v2677, %v2680
      %v2682 = vsel %vm2548, %v2672, %v2681
      %v2684 = vshrl.u32 %v2281, 16
      %v2686 = vrot.slane %v2684, 2
      %v2687 = vshll.u32 %v2281, 16
      %v2689 = vrot.slane %v2687, 3
      %v2690 = vor.u32 %v2686, %v2689
      %v2691 = vsel %vm2548, %v2681, %v2690
      %v2693 = vshrl.u32 %v2282, 16
      %v2695 = vrot.slane %v2693, 2
      %v2696 = vshll.u32 %v2282, 16
      %v2698 = vrot.slane %v2696, 3
      %v2699 = vor.u32 %v2695, %v2698
      %v2700 = vsel %vm2548, %v2690, %v2699
      %v2702 = vshrl.u32 %v2283, 16
      %v2704 = vrot.slane %v2702, 2
      %v2705 = vshll.u32 %v2283, 16
      %v2707 = vrot.slane %v2705, 3
      %v2708 = vor.u32 %v2704, %v2707
      %v2709 = vsel %vm2548, %v2699, %v2708
      %v2711 = vshrl.u32 %v2547, 16
      %v2713 = vrot.slane %v2711, 2
      %v2714 = vshll.u32 %v2547, 16
      %v2716 = vrot.slane %v2714, 3
      %v2717 = vor.u32 %v2713, %v2716
      %v2718 = vsel %vm2548, %v2708, %v2717
      %v2727 = vunpack.c.l.b16 %v2537
      %v2728 = vunpack.c.l.b16 %v2538
      %v2729 = vunpack.c.l.b16 %v2539
      %v2730 = vunpack.c.l.b16 %v2540
      %v2731 = vunpack.c.l.b16 %v2541
      %v2732 = vunpack.c.l.b16 %v2542
      %v2733 = vunpack.c.l.b16 %v2543
      %v2734 = vunpack.c.l.b16 %v2544
      %v2735 = vpack.c.b16 %v2728, %v2727
      %v2736 = vpack.c.b16 %v2730, %v2729
      %v2737 = vpack.c.b16 %v2732, %v2731
      %v2738 = vpack.c.b16 %v2734, %v2733
      %v2744 = vsel %vm519, %v2565, 0
      %v2747 = vsel %vm519, %v2574, 0
      %v2750 = vsel %vm519, %v2583, 0
      %v2753 = vsel %vm519, %v2592, 0
      %v2756 = vsel %vm519, %v2601, 0
      %v2759 = vsel %vm519, %v2610, 0
      %v2762 = vsel %vm519, %v2619, 0
      %v2765 = vsel %vm519, %v2628, 0
      %v2768 = vsel %vm519, %v2637, 0
      %v2771 = vsel %vm519, %v2646, 0
      %v2774 = vsel %vm519, %v2655, 0
      %v2777 = vsel %vm519, %v2664, 0
      %v2780 = vsel %vm519, %v2673, 0
      %v2783 = vsel %vm519, %v2682, 0
      %v2786 = vsel %vm519, %v2691, 0
      %v2789 = vsel %vm519, %v2700, 0
      %v2792 = vsel %vm519, %v2709, 0
      %v2795 = vsel %vm519, %v2718, 0
      %2797 = vmatpush.bf16.msra.mxu0 0
      %2798 = vmatpush.bf16.msra.mxu0 0
      %2799 = vmatpush.bf16.msra.mxu0 0
      %2800 = vmatpush.bf16.msra.mxu0 0
      %2801 = vmatpush.bf16.msra.mxu0 %v2738
      %2802 = vmatpush.bf16.msra.mxu0 %v2737
      %2803 = vmatpush.bf16.msra.mxu0 %v2736
      %2804 = vmatpush.bf16.msra.mxu0 %v2735
      %2805 = vmatmul.bf16.gmra.mxu0 %v2744
      %v2806 = vpop.f32.mrf.mxu0
      %v2807 = vadd.f32 0.0, %v2806
      %v2808 = vpop.f32.mrf.mxu0
      %v2809 = vadd.f32 0.0, %v2808
      %2810 = vmatmul.bf16.gmra.mxu0 %v2747
      %v2811 = vpop.f32.mrf.mxu0
      %v2812 = vadd.f32 0.0, %v2811
      %v2813 = vpop.f32.mrf.mxu0
      %v2814 = vadd.f32 0.0, %v2813
      %2815 = vmatmul.bf16.gmra.mxu0 %v2750
      %v2816 = vpop.f32.mrf.mxu0
      %v2817 = vadd.f32 0.0, %v2816
      %v2818 = vpop.f32.mrf.mxu0
      %v2819 = vadd.f32 0.0, %v2818
      %2820 = vmatmul.bf16.gmra.mxu0 %v2753
      %v2821 = vpop.f32.mrf.mxu0
      %v2822 = vadd.f32 0.0, %v2821
      %v2823 = vpop.f32.mrf.mxu0
      %v2824 = vadd.f32 0.0, %v2823
      %2825 = vmatmul.bf16.gmra.mxu0 %v2756
      %v2826 = vpop.f32.mrf.mxu0
      %v2827 = vadd.f32 0.0, %v2826
      %v2828 = vpop.f32.mrf.mxu0
      %v2829 = vadd.f32 0.0, %v2828
      %2830 = vmatmul.bf16.gmra.mxu0 %v2759
      %v2831 = vpop.f32.mrf.mxu0
      %v2832 = vadd.f32 0.0, %v2831
      %v2833 = vpop.f32.mrf.mxu0
      %v2834 = vadd.f32 0.0, %v2833
      %2835 = vmatmul.bf16.gmra.mxu0 %v2762
      %v2836 = vpop.f32.mrf.mxu0
      %v2837 = vadd.f32 0.0, %v2836
      %v2838 = vpop.f32.mrf.mxu0
      %v2839 = vadd.f32 0.0, %v2838
      %2840 = vmatmul.bf16.gmra.mxu0 %v2765
      %v2841 = vpop.f32.mrf.mxu0
      %v2842 = vadd.f32 0.0, %v2841
      %v2843 = vpop.f32.mrf.mxu0
      %v2844 = vadd.f32 0.0, %v2843
      %2845 = vmatmul.bf16.gmra.mxu0 %v2768
      %v2846 = vpop.f32.mrf.mxu0
      %v2847 = vadd.f32 0.0, %v2846
      %v2848 = vpop.f32.mrf.mxu0
      %v2849 = vadd.f32 0.0, %v2848
      %2850 = vmatmul.bf16.gmra.mxu0 %v2771
      %v2851 = vpop.f32.mrf.mxu0
      %v2852 = vadd.f32 0.0, %v2851
      %v2853 = vpop.f32.mrf.mxu0
      %v2854 = vadd.f32 0.0, %v2853
      %2855 = vmatmul.bf16.gmra.mxu0 %v2774
      %v2856 = vpop.f32.mrf.mxu0
      %v2857 = vadd.f32 0.0, %v2856
      %v2858 = vpop.f32.mrf.mxu0
      %v2859 = vadd.f32 0.0, %v2858
      %2860 = vmatmul.bf16.gmra.mxu0 %v2777
      %v2861 = vpop.f32.mrf.mxu0
      %v2862 = vadd.f32 0.0, %v2861
      %v2863 = vpop.f32.mrf.mxu0
      %v2864 = vadd.f32 0.0, %v2863
      %2865 = vmatmul.bf16.gmra.mxu0 %v2780
      %v2866 = vpop.f32.mrf.mxu0
      %v2867 = vadd.f32 0.0, %v2866
      %v2868 = vpop.f32.mrf.mxu0
      %v2869 = vadd.f32 0.0, %v2868
      %2870 = vmatmul.bf16.gmra.mxu0 %v2783
      %v2871 = vpop.f32.mrf.mxu0
      %v2872 = vadd.f32 0.0, %v2871
      %v2873 = vpop.f32.mrf.mxu0
      %v2874 = vadd.f32 0.0, %v2873
      %2875 = vmatmul.bf16.gmra.mxu0 %v2786
      %v2876 = vpop.f32.mrf.mxu0
      %v2877 = vadd.f32 0.0, %v2876
      %v2878 = vpop.f32.mrf.mxu0
      %v2879 = vadd.f32 0.0, %v2878
      %2880 = vmatmul.bf16.gmra.mxu0 %v2789
      %v2881 = vpop.f32.mrf.mxu0
      %v2882 = vadd.f32 0.0, %v2881
      %v2883 = vpop.f32.mrf.mxu0
      %v2884 = vadd.f32 0.0, %v2883
      %2885 = vmatmul.bf16.gmra.mxu0 %v2792
      %v2886 = vpop.f32.mrf.mxu0
      %v2887 = vadd.f32 0.0, %v2886
      %v2888 = vpop.f32.mrf.mxu0
      %v2889 = vadd.f32 0.0, %v2888
      %2890 = vmatmul.bf16.gmra.mxu0 %v2795
      %v2891 = vpop.f32.mrf.mxu0
      %v2892 = vadd.f32 0.0, %v2891
      %v2893 = vpop.f32.mrf.mxu0
      %v2894 = vadd.f32 0.0, %v2893
      %2895 = vdwg.mxu0
      %v2896 = vadd.f32 %v2499, %v2807
      %v2897 = vadd.f32 %v2500, %v2809
      %v2898 = vadd.f32 %v2501, %v2812
      %v2899 = vadd.f32 %v2502, %v2814
      %v2900 = vadd.f32 %v2503, %v2817
      %v2901 = vadd.f32 %v2504, %v2819
      %v2902 = vadd.f32 %v2505, %v2822
      %v2903 = vadd.f32 %v2506, %v2824
      %v2904 = vadd.f32 %v2507, %v2827
      %v2905 = vadd.f32 %v2508, %v2829
      %v2906 = vadd.f32 %v2509, %v2832
      %v2907 = vadd.f32 %v2510, %v2834
      %v2908 = vadd.f32 %v2511, %v2837
      %v2909 = vadd.f32 %v2512, %v2839
      %v2910 = vadd.f32 %v2513, %v2842
      %v2911 = vadd.f32 %v2514, %v2844
      %v2912 = vadd.f32 %v2515, %v2847
      %v2913 = vadd.f32 %v2516, %v2849
      %v2914 = vadd.f32 %v2517, %v2852
      %v2915 = vadd.f32 %v2518, %v2854
      %v2916 = vadd.f32 %v2519, %v2857
      %v2917 = vadd.f32 %v2520, %v2859
      %v2918 = vadd.f32 %v2521, %v2862
      %v2919 = vadd.f32 %v2522, %v2864
      %v2920 = vadd.f32 %v2523, %v2867
      %v2921 = vadd.f32 %v2524, %v2869
      %v2922 = vadd.f32 %v2525, %v2872
      %v2923 = vadd.f32 %v2526, %v2874
      %v2924 = vadd.f32 %v2527, %v2877
      %v2925 = vadd.f32 %v2528, %v2879
      %v2926 = vadd.f32 %v2529, %v2882
      %v2927 = vadd.f32 %v2530, %v2884
      %v2928 = vadd.f32 %v2531, %v2887
      %v2929 = vadd.f32 %v2532, %v2889
      %v2930 = vadd.f32 %v2533, %v2892
      %v2931 = vadd.f32 %v2534, %v2894
      %v2932 = vld [vmem:[%s192 + $0x10] sm:$0x8]
      %s2933 = scalar_lea.vmem %s1, 256
      %v2934 = vld [vmem:[%s2933] sm:$0xf]
      %v2935 = vld [vmem:[%s2933 + $0x4] sm:$0xf]
      %v2936 = vld [vmem:[%s2933 + $0x8] sm:$0xf]
      %v2937 = vld [vmem:[%s2933 + $0xc] sm:$0xf]
      %v2938 = vld [vmem:[%s2933 + $0x10] sm:$0xf]
      %v2939 = vld [vmem:[%s2933 + $0x14] sm:$0xf]
      %v2940 = vld [vmem:[%s2933 + $0x18] sm:$0xf]
      %v2941 = vld [vmem:[%s2933 + $0x1c] sm:$0xf]
      %v2943 = vunpack.c.l.b16 %v2932
      %v2944 = vpack.c.b16 %v2230, %v2943
      %vm2945 = vcmask 1044480
      %v2946 = vrot.slane %v2944, 3
      %v2947 = vrot.slane %v2267, 3
      %v2948 = vsel %vm2945, %v2946, %v2947
      %v2949 = vrot.slane %v2268, 3
      %v2950 = vsel %vm2945, %v2947, %v2949
      %v2951 = vrot.slane %v2269, 3
      %v2952 = vsel %vm2945, %v2949, %v2951
      %v2953 = vrot.slane %v2270, 3
      %v2954 = vsel %vm2945, %v2951, %v2953
      %v2955 = vrot.slane %v2271, 3
      %v2956 = vsel %vm2945, %v2953, %v2955
      %v2957 = vrot.slane %v2272, 3
      %v2958 = vsel %vm2945, %v2955, %v2957
      %v2959 = vrot.slane %v2273, 3
      %v2960 = vsel %vm2945, %v2957, %v2959
      %v2961 = vrot.slane %v2274, 3
      %v2962 = vsel %vm2945, %v2959, %v2961
      %v2963 = vrot.slane %v2275, 3
      %v2964 = vsel %vm2945, %v2961, %v2963
      %v2965 = vrot.slane %v2276, 3
      %v2966 = vsel %vm2945, %v2963, %v2965
      %v2967 = vrot.slane %v2277, 3
      %v2968 = vsel %vm2945, %v2965, %v2967
      %v2969 = vrot.slane %v2278, 3
      %v2970 = vsel %vm2945, %v2967, %v2969
      %v2971 = vrot.slane %v2279, 3
      %v2972 = vsel %vm2945, %v2969, %v2971
      %v2973 = vrot.slane %v2280, 3
      %v2974 = vsel %vm2945, %v2971, %v2973
      %v2975 = vrot.slane %v2281, 3
      %v2976 = vsel %vm2945, %v2973, %v2975
      %v2977 = vrot.slane %v2282, 3
      %v2978 = vsel %vm2945, %v2975, %v2977
      %v2979 = vrot.slane %v2283, 3
      %v2980 = vsel %vm2945, %v2977, %v2979
      %v2981 = vrot.slane %v2547, 3
      %v2982 = vsel %vm2945, %v2979, %v2981
      %v2991 = vunpack.c.l.b16 %v2934
      %v2992 = vunpack.c.l.b16 %v2935
      %v2993 = vunpack.c.l.b16 %v2936
      %v2994 = vunpack.c.l.b16 %v2937
      %v2995 = vunpack.c.l.b16 %v2938
      %v2996 = vunpack.c.l.b16 %v2939
      %v2997 = vunpack.c.l.b16 %v2940
      %v2998 = vunpack.c.l.b16 %v2941
      %v2999 = vpack.c.b16 %v2992, %v2991
      %v3000 = vpack.c.b16 %v2994, %v2993
      %v3001 = vpack.c.b16 %v2996, %v2995
      %v3002 = vpack.c.b16 %v2998, %v2997
      %v3008 = vsel %vm519, %v2948, 0
      %v3011 = vsel %vm519, %v2950, 0
      %v3014 = vsel %vm519, %v2952, 0
      %v3017 = vsel %vm519, %v2954, 0
      %v3020 = vsel %vm519, %v2956, 0
      %v3023 = vsel %vm519, %v2958, 0
      %v3026 = vsel %vm519, %v2960, 0
      %v3029 = vsel %vm519, %v2962, 0
      %v3032 = vsel %vm519, %v2964, 0
      %v3035 = vsel %vm519, %v2966, 0
      %v3038 = vsel %vm519, %v2968, 0
      %v3041 = vsel %vm519, %v2970, 0
      %v3044 = vsel %vm519, %v2972, 0
      %v3047 = vsel %vm519, %v2974, 0
      %v3050 = vsel %vm519, %v2976, 0
      %v3053 = vsel %vm519, %v2978, 0
      %v3056 = vsel %vm519, %v2980, 0
      %v3059 = vsel %vm519, %v2982, 0
      %3061 = vmatpush.bf16.msra.mxu0 0
      %3062 = vmatpush.bf16.msra.mxu0 0
      %3063 = vmatpush.bf16.msra.mxu0 0
      %3064 = vmatpush.bf16.msra.mxu0 0
      %3065 = vmatpush.bf16.msra.mxu0 %v3002
      %3066 = vmatpush.bf16.msra.mxu0 %v3001
      %3067 = vmatpush.bf16.msra.mxu0 %v3000
      %3068 = vmatpush.bf16.msra.mxu0 %v2999
      %3069 = vmatmul.bf16.gmra.mxu0 %v3008
      %v3070 = vpop.f32.mrf.mxu0
      %v3071 = vadd.f32 0.0, %v3070
      %v3072 = vpop.f32.mrf.mxu0
      %v3073 = vadd.f32 0.0, %v3072
      %3074 = vmatmul.bf16.gmra.mxu0 %v3011
      %v3075 = vpop.f32.mrf.mxu0
      %v3076 = vadd.f32 0.0, %v3075
      %v3077 = vpop.f32.mrf.mxu0
      %v3078 = vadd.f32 0.0, %v3077
      %3079 = vmatmul.bf16.gmra.mxu0 %v3014
      %v3080 = vpop.f32.mrf.mxu0
      %v3081 = vadd.f32 0.0, %v3080
      %v3082 = vpop.f32.mrf.mxu0
      %v3083 = vadd.f32 0.0, %v3082
      %3084 = vmatmul.bf16.gmra.mxu0 %v3017
      %v3085 = vpop.f32.mrf.mxu0
      %v3086 = vadd.f32 0.0, %v3085
      %v3087 = vpop.f32.mrf.mxu0
      %v3088 = vadd.f32 0.0, %v3087
      %3089 = vmatmul.bf16.gmra.mxu0 %v3020
      %v3090 = vpop.f32.mrf.mxu0
      %v3091 = vadd.f32 0.0, %v3090
      %v3092 = vpop.f32.mrf.mxu0
      %v3093 = vadd.f32 0.0, %v3092
      %3094 = vmatmul.bf16.gmra.mxu0 %v3023
      %v3095 = vpop.f32.mrf.mxu0
      %v3096 = vadd.f32 0.0, %v3095
      %v3097 = vpop.f32.mrf.mxu0
      %v3098 = vadd.f32 0.0, %v3097
      %3099 = vmatmul.bf16.gmra.mxu0 %v3026
      %v3100 = vpop.f32.mrf.mxu0
      %v3101 = vadd.f32 0.0, %v3100
      %v3102 = vpop.f32.mrf.mxu0
      %v3103 = vadd.f32 0.0, %v3102
      %3104 = vmatmul.bf16.gmra.mxu0 %v3029
      %v3105 = vpop.f32.mrf.mxu0
      %v3106 = vadd.f32 0.0, %v3105
      %v3107 = vpop.f32.mrf.mxu0
      %v3108 = vadd.f32 0.0, %v3107
      %3109 = vmatmul.bf16.gmra.mxu0 %v3032
      %v3110 = vpop.f32.mrf.mxu0
      %v3111 = vadd.f32 0.0, %v3110
      %v3112 = vpop.f32.mrf.mxu0
      %v3113 = vadd.f32 0.0, %v3112
      %3114 = vmatmul.bf16.gmra.mxu0 %v3035
      %v3115 = vpop.f32.mrf.mxu0
      %v3116 = vadd.f32 0.0, %v3115
      %v3117 = vpop.f32.mrf.mxu0
      %v3118 = vadd.f32 0.0, %v3117
      %3119 = vmatmul.bf16.gmra.mxu0 %v3038
      %v3120 = vpop.f32.mrf.mxu0
      %v3121 = vadd.f32 0.0, %v3120
      %v3122 = vpop.f32.mrf.mxu0
      %v3123 = vadd.f32 0.0, %v3122
      %3124 = vmatmul.bf16.gmra.mxu0 %v3041
      %v3125 = vpop.f32.mrf.mxu0
      %v3126 = vadd.f32 0.0, %v3125
      %v3127 = vpop.f32.mrf.mxu0
      %v3128 = vadd.f32 0.0, %v3127
      %3129 = vmatmul.bf16.gmra.mxu0 %v3044
      %v3130 = vpop.f32.mrf.mxu0
      %v3131 = vadd.f32 0.0, %v3130
      %v3132 = vpop.f32.mrf.mxu0
      %v3133 = vadd.f32 0.0, %v3132
      %3134 = vmatmul.bf16.gmra.mxu0 %v3047
      %v3135 = vpop.f32.mrf.mxu0
      %v3136 = vadd.f32 0.0, %v3135
      %v3137 = vpop.f32.mrf.mxu0
      %v3138 = vadd.f32 0.0, %v3137
      %3139 = vmatmul.bf16.gmra.mxu0 %v3050
      %v3140 = vpop.f32.mrf.mxu0
      %v3141 = vadd.f32 0.0, %v3140
      %v3142 = vpop.f32.mrf.mxu0
      %v3143 = vadd.f32 0.0, %v3142
      %3144 = vmatmul.bf16.gmra.mxu0 %v3053
      %v3145 = vpop.f32.mrf.mxu0
      %v3146 = vadd.f32 0.0, %v3145
      %v3147 = vpop.f32.mrf.mxu0
      %v3148 = vadd.f32 0.0, %v3147
      %3149 = vmatmul.bf16.gmra.mxu0 %v3056
      %v3150 = vpop.f32.mrf.mxu0
      %v3151 = vadd.f32 0.0, %v3150
      %v3152 = vpop.f32.mrf.mxu0
      %v3153 = vadd.f32 0.0, %v3152
      %3154 = vmatmul.bf16.gmra.mxu0 %v3059
      %v3155 = vpop.f32.mrf.mxu0
      %v3156 = vadd.f32 0.0, %v3155
      %v3157 = vpop.f32.mrf.mxu0
      %v3158 = vadd.f32 0.0, %v3157
      %3159 = vdwg.mxu0
      %v3160 = vadd.f32 %v2896, %v3071
      %v3161 = vadd.f32 %v2897, %v3073
      %v3162 = vadd.f32 %v2898, %v3076
      %v3163 = vadd.f32 %v2899, %v3078
      %v3164 = vadd.f32 %v2900, %v3081
      %v3165 = vadd.f32 %v2901, %v3083
      %v3166 = vadd.f32 %v2902, %v3086
      %v3167 = vadd.f32 %v2903, %v3088
      %v3168 = vadd.f32 %v2904, %v3091
      %v3169 = vadd.f32 %v2905, %v3093
      %v3170 = vadd.f32 %v2906, %v3096
      %v3171 = vadd.f32 %v2907, %v3098
      %v3172 = vadd.f32 %v2908, %v3101
      %v3173 = vadd.f32 %v2909, %v3103
      %v3174 = vadd.f32 %v2910, %v3106
      %v3175 = vadd.f32 %v2911, %v3108
      %v3176 = vadd.f32 %v2912, %v3111
      %v3177 = vadd.f32 %v2913, %v3113
      %v3178 = vadd.f32 %v2914, %v3116
      %v3179 = vadd.f32 %v2915, %v3118
      %v3180 = vadd.f32 %v2916, %v3121
      %v3181 = vadd.f32 %v2917, %v3123
      %v3182 = vadd.f32 %v2918, %v3126
      %v3183 = vadd.f32 %v2919, %v3128
      %v3184 = vadd.f32 %v2920, %v3131
      %v3185 = vadd.f32 %v2921, %v3133
      %v3186 = vadd.f32 %v2922, %v3136
      %v3187 = vadd.f32 %v2923, %v3138
      %v3188 = vadd.f32 %v2924, %v3141
      %v3189 = vadd.f32 %v2925, %v3143
      %v3190 = vadd.f32 %v2926, %v3146
      %v3191 = vadd.f32 %v2927, %v3148
      %v3192 = vadd.f32 %v2928, %v3151
      %v3193 = vadd.f32 %v2929, %v3153
      %v3194 = vadd.f32 %v2930, %v3156
      %v3195 = vadd.f32 %v2931, %v3158
      %v3196 = vld [vmem:[%s2] sm:$0x1]
      %v3198 = vperm.slane %v3196, 0
      %v3200 = vadd.f32 %v3160, %v3198
      %v3201 = vadd.f32 %v3161, %v3198
      %v3202 = vadd.f32 %v3162, %v3198
      %v3203 = vadd.f32 %v3163, %v3198
      %v3204 = vadd.f32 %v3164, %v3198
      %v3205 = vadd.f32 %v3165, %v3198
      %v3206 = vadd.f32 %v3166, %v3198
      %v3207 = vadd.f32 %v3167, %v3198
      %v3208 = vadd.f32 %v3168, %v3198
      %v3209 = vadd.f32 %v3169, %v3198
      %v3210 = vadd.f32 %v3170, %v3198
      %v3211 = vadd.f32 %v3171, %v3198
      %v3212 = vadd.f32 %v3172, %v3198
      %v3213 = vadd.f32 %v3173, %v3198
      %v3214 = vadd.f32 %v3174, %v3198
      %v3215 = vadd.f32 %v3175, %v3198
      %v3216 = vadd.f32 %v3176, %v3198
      %v3217 = vadd.f32 %v3177, %v3198
      %v3218 = vadd.f32 %v3178, %v3198
      %v3219 = vadd.f32 %v3179, %v3198
      %v3220 = vadd.f32 %v3180, %v3198
      %v3221 = vadd.f32 %v3181, %v3198
      %v3222 = vadd.f32 %v3182, %v3198
      %v3223 = vadd.f32 %v3183, %v3198
      %v3224 = vadd.f32 %v3184, %v3198
      %v3225 = vadd.f32 %v3185, %v3198
      %v3226 = vadd.f32 %v3186, %v3198
      %v3227 = vadd.f32 %v3187, %v3198
      %v3228 = vadd.f32 %v3188, %v3198
      %v3229 = vadd.f32 %v3189, %v3198
      %v3230 = vadd.f32 %v3190, %v3198
      %v3231 = vadd.f32 %v3191, %v3198
      %v3232 = vadd.f32 %v3192, %v3198
      %v3233 = vadd.f32 %v3193, %v3198
      %v3234 = vadd.f32 %v3194, %v3198
      %v3235 = vadd.f32 %v3195, %v3198
      %v3236 = vmax.f32 %v3200, 0.0
      %v3237 = vmax.f32 %v3201, 0.0
      %v3238 = vmax.f32 %v3202, 0.0
      %v3239 = vmax.f32 %v3203, 0.0
      %v3240 = vmax.f32 %v3204, 0.0
      %v3241 = vmax.f32 %v3205, 0.0
      %v3242 = vmax.f32 %v3206, 0.0
      %v3243 = vmax.f32 %v3207, 0.0
      %v3244 = vmax.f32 %v3208, 0.0
      %v3245 = vmax.f32 %v3209, 0.0
      %v3246 = vmax.f32 %v3210, 0.0
      %v3247 = vmax.f32 %v3211, 0.0
      %v3248 = vmax.f32 %v3212, 0.0
      %v3249 = vmax.f32 %v3213, 0.0
      %v3250 = vmax.f32 %v3214, 0.0
      %v3251 = vmax.f32 %v3215, 0.0
      %v3252 = vmax.f32 %v3216, 0.0
      %v3253 = vmax.f32 %v3217, 0.0
      %v3254 = vmax.f32 %v3218, 0.0
      %v3255 = vmax.f32 %v3219, 0.0
      %v3256 = vmax.f32 %v3220, 0.0
      %v3257 = vmax.f32 %v3221, 0.0
      %v3258 = vmax.f32 %v3222, 0.0
      %v3259 = vmax.f32 %v3223, 0.0
      %v3260 = vmax.f32 %v3224, 0.0
      %v3261 = vmax.f32 %v3225, 0.0
      %v3262 = vmax.f32 %v3226, 0.0
      %v3263 = vmax.f32 %v3227, 0.0
      %v3264 = vmax.f32 %v3228, 0.0
      %v3265 = vmax.f32 %v3229, 0.0
      %v3266 = vmax.f32 %v3230, 0.0
      %v3267 = vmax.f32 %v3231, 0.0
      %v3268 = vmax.f32 %v3232, 0.0
      %v3269 = vmax.f32 %v3233, 0.0
      %v3270 = vmax.f32 %v3234, 0.0
      %v3271 = vmax.f32 %v3235, 0.0
      %v3272 = vld [vmem:[%s3] sm:$0xff]
      %v3273 = vld [vmem:[%s3 + $0x8] sm:$0xff]
      %v3274 = vld [vmem:[%s3 + $0x10] sm:$0xff]
      %v3275 = vld [vmem:[%s3 + $0x18] sm:$0xff]
      %v3276 = vld [vmem:[%s3 + $0x20] sm:$0xff]
      %v3277 = vld [vmem:[%s3 + $0x28] sm:$0xff]
      %v3278 = vld [vmem:[%s3 + $0x30] sm:$0xff]
      %v3279 = vld [vmem:[%s3 + $0x38] sm:$0xff]
      %v3280 = vld [vmem:[%s3 + $0x40] sm:$0xff]
      %v3281 = vld [vmem:[%s3 + $0x48] sm:$0xff]
      %v3282 = vld [vmem:[%s3 + $0x50] sm:$0xff]
      %v3283 = vld [vmem:[%s3 + $0x58] sm:$0xff]
      %v3284 = vld [vmem:[%s3 + $0x60] sm:$0xff]
      %v3285 = vld [vmem:[%s3 + $0x68] sm:$0xff]
      %v3286 = vld [vmem:[%s3 + $0x70] sm:$0xff]
      %v3287 = vld [vmem:[%s3 + $0x78] sm:$0xff]
      %v3288 = vld [vmem:[%s3 + $0x80] sm:$0xff]
      %v3289 = vld [vmem:[%s3 + $0x88] sm:$0xff]
      %v3290 = vld [vmem:[%s3 + $0x90] sm:$0xff]
      %v3291 = vld [vmem:[%s3 + $0x98] sm:$0xff]
      %v3292 = vld [vmem:[%s3 + $0xa0] sm:$0xff]
      %v3293 = vld [vmem:[%s3 + $0xa8] sm:$0xff]
      %v3294 = vld [vmem:[%s3 + $0xb0] sm:$0xff]
      %v3295 = vld [vmem:[%s3 + $0xb8] sm:$0xff]
      %v3296 = vld [vmem:[%s3 + $0xc0] sm:$0xff]
      %v3297 = vld [vmem:[%s3 + $0xc8] sm:$0xff]
      %v3298 = vld [vmem:[%s3 + $0xd0] sm:$0xff]
      %v3299 = vld [vmem:[%s3 + $0xd8] sm:$0xff]
      %v3300 = vld [vmem:[%s3 + $0xe0] sm:$0xff]
      %v3301 = vld [vmem:[%s3 + $0xe8] sm:$0xff]
      %v3302 = vld [vmem:[%s3 + $0xf0] sm:$0xff]
      %v3303 = vld [vmem:[%s3 + $0xf8] sm:$0xff]
      %v3304 = vld [vmem:[%s3 + $0x100] sm:$0xff]
      %v3305 = vld [vmem:[%s3 + $0x108] sm:$0xff]
      %v3306 = vld [vmem:[%s3 + $0x110] sm:$0xff]
      %v3307 = vld [vmem:[%s3 + $0x118] sm:$0xff]
      %3309 = vset.pattern.permute.xlu0 0
      %3310 = vperm.xlu0 %3309, %v3272
      %v3311 = vpop.permute.xlu0 %3310
      %3314 = vset.pattern.permute.xlu0 0
      %3315 = vperm.xlu0 %3314, %v3273
      %v3316 = vpop.permute.xlu0 %3315
      %3319 = vset.pattern.permute.xlu0 0
      %3320 = vperm.xlu0 %3319, %v3274
      %v3321 = vpop.permute.xlu0 %3320
      %3324 = vset.pattern.permute.xlu0 0
      %3325 = vperm.xlu0 %3324, %v3275
      %v3326 = vpop.permute.xlu0 %3325
      %3329 = vset.pattern.permute.xlu0 0
      %3330 = vperm.xlu0 %3329, %v3276
      %v3331 = vpop.permute.xlu0 %3330
      %3334 = vset.pattern.permute.xlu0 0
      %3335 = vperm.xlu0 %3334, %v3277
      %v3336 = vpop.permute.xlu0 %3335
      %3339 = vset.pattern.permute.xlu0 0
      %3340 = vperm.xlu0 %3339, %v3278
      %v3341 = vpop.permute.xlu0 %3340
      %3344 = vset.pattern.permute.xlu0 0
      %3345 = vperm.xlu0 %3344, %v3279
      %v3346 = vpop.permute.xlu0 %3345
      %3349 = vset.pattern.permute.xlu0 0
      %3350 = vperm.xlu0 %3349, %v3280
      %v3351 = vpop.permute.xlu0 %3350
      %3354 = vset.pattern.permute.xlu0 0
      %3355 = vperm.xlu0 %3354, %v3281
      %v3356 = vpop.permute.xlu0 %3355
      %3359 = vset.pattern.permute.xlu0 0
      %3360 = vperm.xlu0 %3359, %v3282
      %v3361 = vpop.permute.xlu0 %3360
      %3364 = vset.pattern.permute.xlu0 0
      %3365 = vperm.xlu0 %3364, %v3283
      %v3366 = vpop.permute.xlu0 %3365
      %3369 = vset.pattern.permute.xlu0 0
      %3370 = vperm.xlu0 %3369, %v3284
      %v3371 = vpop.permute.xlu0 %3370
      %3374 = vset.pattern.permute.xlu0 0
      %3375 = vperm.xlu0 %3374, %v3285
      %v3376 = vpop.permute.xlu0 %3375
      %3379 = vset.pattern.permute.xlu0 0
      %3380 = vperm.xlu0 %3379, %v3286
      %v3381 = vpop.permute.xlu0 %3380
      %3384 = vset.pattern.permute.xlu0 0
      %3385 = vperm.xlu0 %3384, %v3287
      %v3386 = vpop.permute.xlu0 %3385
      %3389 = vset.pattern.permute.xlu0 0
      %3390 = vperm.xlu0 %3389, %v3288
      %v3391 = vpop.permute.xlu0 %3390
      %3394 = vset.pattern.permute.xlu0 0
      %3395 = vperm.xlu0 %3394, %v3289
      %v3396 = vpop.permute.xlu0 %3395
      %3399 = vset.pattern.permute.xlu0 0
      %3400 = vperm.xlu0 %3399, %v3290
      %v3401 = vpop.permute.xlu0 %3400
      %3404 = vset.pattern.permute.xlu0 0
      %3405 = vperm.xlu0 %3404, %v3291
      %v3406 = vpop.permute.xlu0 %3405
      %3409 = vset.pattern.permute.xlu0 0
      %3410 = vperm.xlu0 %3409, %v3292
      %v3411 = vpop.permute.xlu0 %3410
      %3414 = vset.pattern.permute.xlu0 0
      %3415 = vperm.xlu0 %3414, %v3293
      %v3416 = vpop.permute.xlu0 %3415
      %3419 = vset.pattern.permute.xlu0 0
      %3420 = vperm.xlu0 %3419, %v3294
      %v3421 = vpop.permute.xlu0 %3420
      %3424 = vset.pattern.permute.xlu0 0
      %3425 = vperm.xlu0 %3424, %v3295
      %v3426 = vpop.permute.xlu0 %3425
      %3429 = vset.pattern.permute.xlu0 0
      %3430 = vperm.xlu0 %3429, %v3296
      %v3431 = vpop.permute.xlu0 %3430
      %3434 = vset.pattern.permute.xlu0 0
      %3435 = vperm.xlu0 %3434, %v3297
      %v3436 = vpop.permute.xlu0 %3435
      %3439 = vset.pattern.permute.xlu0 0
      %3440 = vperm.xlu0 %3439, %v3298
      %v3441 = vpop.permute.xlu0 %3440
      %3444 = vset.pattern.permute.xlu0 0
      %3445 = vperm.xlu0 %3444, %v3299
      %v3446 = vpop.permute.xlu0 %3445
      %3449 = vset.pattern.permute.xlu0 0
      %3450 = vperm.xlu0 %3449, %v3300
      %v3451 = vpop.permute.xlu0 %3450
      %3454 = vset.pattern.permute.xlu0 0
      %3455 = vperm.xlu0 %3454, %v3301
      %v3456 = vpop.permute.xlu0 %3455
      %3459 = vset.pattern.permute.xlu0 0
      %3460 = vperm.xlu0 %3459, %v3302
      %v3461 = vpop.permute.xlu0 %3460
      %3464 = vset.pattern.permute.xlu0 0
      %3465 = vperm.xlu0 %3464, %v3303
      %v3466 = vpop.permute.xlu0 %3465
      %3469 = vset.pattern.permute.xlu0 0
      %3470 = vperm.xlu0 %3469, %v3304
      %v3471 = vpop.permute.xlu0 %3470
      %3474 = vset.pattern.permute.xlu0 0
      %3475 = vperm.xlu0 %3474, %v3305
      %v3476 = vpop.permute.xlu0 %3475
      %3479 = vset.pattern.permute.xlu0 0
      %3480 = vperm.xlu0 %3479, %v3306
      %v3481 = vpop.permute.xlu0 %3480
      %3484 = vset.pattern.permute.xlu0 0
      %3485 = vperm.xlu0 %3484, %v3307
      %v3486 = vpop.permute.xlu0 %3485
      %v3488 = vmul.f32 %v3236, %v3311
      %v3489 = vmul.f32 %v3237, %v3316
      %v3490 = vmul.f32 %v3238, %v3321
      %v3491 = vmul.f32 %v3239, %v3326
      %v3492 = vmul.f32 %v3240, %v3331
      %v3493 = vmul.f32 %v3241, %v3336
      %v3494 = vmul.f32 %v3242, %v3341
      %v3495 = vmul.f32 %v3243, %v3346
      %v3496 = vmul.f32 %v3244, %v3351
      %v3497 = vmul.f32 %v3245, %v3356
      %v3498 = vmul.f32 %v3246, %v3361
      %v3499 = vmul.f32 %v3247, %v3366
      %v3500 = vmul.f32 %v3248, %v3371
      %v3501 = vmul.f32 %v3249, %v3376
      %v3502 = vmul.f32 %v3250, %v3381
      %v3503 = vmul.f32 %v3251, %v3386
      %v3504 = vmul.f32 %v3252, %v3391
      %v3505 = vmul.f32 %v3253, %v3396
      %v3506 = vmul.f32 %v3254, %v3401
      %v3507 = vmul.f32 %v3255, %v3406
      %v3508 = vmul.f32 %v3256, %v3411
      %v3509 = vmul.f32 %v3257, %v3416
      %v3510 = vmul.f32 %v3258, %v3421
      %v3511 = vmul.f32 %v3259, %v3426
      %v3512 = vmul.f32 %v3260, %v3431
      %v3513 = vmul.f32 %v3261, %v3436
      %v3514 = vmul.f32 %v3262, %v3441
      %v3515 = vmul.f32 %v3263, %v3446
      %v3516 = vmul.f32 %v3264, %v3451
      %v3517 = vmul.f32 %v3265, %v3456
      %v3518 = vmul.f32 %v3266, %v3461
      %v3519 = vmul.f32 %v3267, %v3466
      %v3520 = vmul.f32 %v3268, %v3471
      %v3521 = vmul.f32 %v3269, %v3476
      %v3522 = vmul.f32 %v3270, %v3481
      %v3523 = vmul.f32 %v3271, %v3486
      %vm3524 = vcmask 125952
      %3525 = vst.msk [vmem:[%s197] sm:$0xf] %vm3524, 0
      %3526 = vst.msk [vmem:[%s197 + $0x4] sm:$0xf] %vm3524, 0
      %3527 = vst.msk [vmem:[%s197 + $0x8] sm:$0xf] %vm3524, 0
      %3528 = vst.msk [vmem:[%s197 + $0xc] sm:$0xf] %vm3524, 0
      %3529 = vst.msk [vmem:[%s197 + $0x10] sm:$0xf] %vm3524, 0
      %3530 = vst.msk [vmem:[%s197 + $0x14] sm:$0xf] %vm3524, 0
      %3531 = vst.msk [vmem:[%s197 + $0x18] sm:$0xf] %vm3524, 0
      %3532 = vst.msk [vmem:[%s197 + $0x1c] sm:$0xf] %vm3524, 0
      %3533 = vst.msk [vmem:[%s197 + $0x20] sm:$0xf] %vm3524, 0
      %3534 = vst.msk [vmem:[%s197 + $0x24] sm:$0xf] %vm3524, 0
      %3535 = vst.msk [vmem:[%s197 + $0x28] sm:$0xf] %vm3524, 0
      %3536 = vst.msk [vmem:[%s197 + $0x2c] sm:$0xf] %vm3524, 0
      %3537 = vst.msk [vmem:[%s197 + $0x30] sm:$0xf] %vm3524, 0
      %3538 = vst.msk [vmem:[%s197 + $0x34] sm:$0xf] %vm3524, 0
      %3539 = vst.msk [vmem:[%s197 + $0x38] sm:$0xf] %vm3524, 0
      %3540 = vst.msk [vmem:[%s197 + $0x3c] sm:$0xf] %vm3524, 0
      %3541 = vst.msk [vmem:[%s197 + $0x40] sm:$0xf] %vm3524, 0
      %3542 = vst.msk [vmem:[%s197 + $0x44] sm:$0xf] %vm3524, 0
      %3543 = vst.msk [vmem:[%s197 + $0x48] sm:$0xf] %vm3524, 0
      %3544 = vst.msk [vmem:[%s197 + $0x4c] sm:$0xf] %vm3524, 0
      %3545 = vst.msk [vmem:[%s197 + $0x50] sm:$0xf] %vm3524, 0
      %3546 = vst.msk [vmem:[%s197 + $0x54] sm:$0xf] %vm3524, 0
      %3547 = vst.msk [vmem:[%s197 + $0x58] sm:$0xf] %vm3524, 0
      %3548 = vst.msk [vmem:[%s197 + $0x5c] sm:$0xf] %vm3524, 0
      %3549 = vst.msk [vmem:[%s197 + $0x60] sm:$0xf] %vm3524, 0
      %3550 = vst.msk [vmem:[%s197 + $0x64] sm:$0xf] %vm3524, 0
      %3551 = vst.msk [vmem:[%s197 + $0x68] sm:$0xf] %vm3524, 0
      %3552 = vst.msk [vmem:[%s197 + $0x6c] sm:$0xf] %vm3524, 0
      %3553 = vst.msk [vmem:[%s197 + $0x70] sm:$0xf] %vm3524, 0
      %3554 = vst.msk [vmem:[%s197 + $0x74] sm:$0xf] %vm3524, 0
      %3555 = vst.msk [vmem:[%s197 + $0x78] sm:$0xf] %vm3524, 0
      %3556 = vst.msk [vmem:[%s197 + $0x7c] sm:$0xf] %vm3524, 0
      %3557 = vst.msk [vmem:[%s197 + $0x80] sm:$0xf] %vm3524, 0
      %3558 = vst.msk [vmem:[%s197 + $0x84] sm:$0xf] %vm3524, 0
      %3559 = vst.msk [vmem:[%s197 + $0x88] sm:$0xf] %vm3524, 0
      %3560 = vst.msk [vmem:[%s197 + $0x8c] sm:$0xf] %vm3524, 0
      %3561 = vst.msk [vmem:[%s197 + $0x90] sm:$0xf] %vm3524, 0
      %3562 = vst.msk [vmem:[%s197 + $0x94] sm:$0xf] %vm3524, 0
      %3563 = vst.msk [vmem:[%s197 + $0x98] sm:$0xf] %vm3524, 0
      %3564 = vst.msk [vmem:[%s197 + $0x9c] sm:$0xf] %vm3524, 0
      %3565 = vst.msk [vmem:[%s197 + $0xa0] sm:$0xf] %vm3524, 0
      %3566 = vst.msk [vmem:[%s197 + $0xa4] sm:$0xf] %vm3524, 0
      %vm3567 = vcmask 124928
      %3568 = vst.msk [vmem:[%s197 + $0xa8] sm:$0x7] %vm3567, 0
      %v3569 = vpack.c.bf16 %v3488, %v3488
      %v3570 = vpack.c.bf16 %v3489, %v3489
      %v3571 = vpack.c.bf16 %v3490, %v3490
      %v3572 = vpack.c.bf16 %v3491, %v3491
      %v3573 = vpack.c.bf16 %v3492, %v3492
      %v3574 = vpack.c.bf16 %v3493, %v3493
      %v3575 = vpack.c.bf16 %v3494, %v3494
      %v3576 = vpack.c.bf16 %v3495, %v3495
      %v3577 = vpack.c.bf16 %v3496, %v3496
      %v3578 = vpack.c.bf16 %v3497, %v3497
      %v3579 = vpack.c.bf16 %v3498, %v3498
      %v3580 = vpack.c.bf16 %v3499, %v3499
      %v3581 = vpack.c.bf16 %v3500, %v3500
      %v3582 = vpack.c.bf16 %v3501, %v3501
      %v3583 = vpack.c.bf16 %v3502, %v3502
      %v3584 = vpack.c.bf16 %v3503, %v3503
      %v3585 = vpack.c.bf16 %v3504, %v3504
      %v3586 = vpack.c.bf16 %v3505, %v3505
      %v3587 = vpack.c.bf16 %v3506, %v3506
      %v3588 = vpack.c.bf16 %v3507, %v3507
      %v3589 = vpack.c.bf16 %v3508, %v3508
      %v3590 = vpack.c.bf16 %v3509, %v3509
      %v3591 = vpack.c.bf16 %v3510, %v3510
      %v3592 = vpack.c.bf16 %v3511, %v3511
      %v3593 = vpack.c.bf16 %v3512, %v3512
      %v3594 = vpack.c.bf16 %v3513, %v3513
      %v3595 = vpack.c.bf16 %v3514, %v3514
      %v3596 = vpack.c.bf16 %v3515, %v3515
      %v3597 = vpack.c.bf16 %v3516, %v3516
      %v3598 = vpack.c.bf16 %v3517, %v3517
      %v3599 = vpack.c.bf16 %v3518, %v3518
      %v3600 = vpack.c.bf16 %v3519, %v3519
      %v3601 = vpack.c.bf16 %v3520, %v3520
      %v3602 = vpack.c.bf16 %v3521, %v3521
      %v3603 = vpack.c.bf16 %v3522, %v3522
      %v3604 = vpack.c.bf16 %v3523, %v3523
      %vm3605 = vsmask.f32 1280
      %vm3606 = vsmask.f32 5392
      %vm3607 = vmor %vm3605, %vm3606
      %v3609 = vshrl.u32 %v3569, 16
      %v3611 = vrot.slane %v3609, 6
      %v3612 = vshll.u32 %v3569, 16
      %v3614 = vrot.slane %v3612, 7
      %v3615 = vor.u32 %v3611, %v3614
      %v3616 = vrot.slane %v3615, 4
      %v3618 = vshrl.u32 %v3570, 16
      %v3620 = vrot.slane %v3618, 6
      %v3621 = vshll.u32 %v3570, 16
      %v3623 = vrot.slane %v3621, 7
      %v3624 = vor.u32 %v3620, %v3623
      %v3625 = vsel %vm3607, %v3616, %v3624
      %v3626 = vrot.slane %v3624, 4
      %v3628 = vshrl.u32 %v3571, 16
      %v3630 = vrot.slane %v3628, 6
      %v3631 = vshll.u32 %v3571, 16
      %v3633 = vrot.slane %v3631, 7
      %v3634 = vor.u32 %v3630, %v3633
      %v3635 = vsel %vm3607, %v3626, %v3634
      %v3636 = vrot.slane %v3634, 4
      %v3638 = vshrl.u32 %v3572, 16
      %v3640 = vrot.slane %v3638, 6
      %v3641 = vshll.u32 %v3572, 16
      %v3643 = vrot.slane %v3641, 7
      %v3644 = vor.u32 %v3640, %v3643
      %v3645 = vsel %vm3607, %v3636, %v3644
      %v3646 = vrot.slane %v3644, 4
      %v3648 = vshrl.u32 %v3573, 16
      %v3650 = vrot.slane %v3648, 6
      %v3651 = vshll.u32 %v3573, 16
      %v3653 = vrot.slane %v3651, 7
      %v3654 = vor.u32 %v3650, %v3653
      %v3655 = vsel %vm3607, %v3646, %v3654
      %v3656 = vrot.slane %v3654, 4
      %v3658 = vshrl.u32 %v3574, 16
      %v3660 = vrot.slane %v3658, 6
      %v3661 = vshll.u32 %v3574, 16
      %v3663 = vrot.slane %v3661, 7
      %v3664 = vor.u32 %v3660, %v3663
      %v3665 = vsel %vm3607, %v3656, %v3664
      %v3666 = vrot.slane %v3664, 4
      %v3668 = vshrl.u32 %v3575, 16
      %v3670 = vrot.slane %v3668, 6
      %v3671 = vshll.u32 %v3575, 16
      %v3673 = vrot.slane %v3671, 7
      %v3674 = vor.u32 %v3670, %v3673
      %v3675 = vsel %vm3607, %v3666, %v3674
      %v3676 = vrot.slane %v3674, 4
      %v3678 = vshrl.u32 %v3576, 16
      %v3680 = vrot.slane %v3678, 6
      %v3681 = vshll.u32 %v3576, 16
      %v3683 = vrot.slane %v3681, 7
      %v3684 = vor.u32 %v3680, %v3683
      %v3685 = vsel %vm3607, %v3676, %v3684
      %v3686 = vrot.slane %v3684, 4
      %v3688 = vshrl.u32 %v3577, 16
      %v3690 = vrot.slane %v3688, 6
      %v3691 = vshll.u32 %v3577, 16
      %v3693 = vrot.slane %v3691, 7
      %v3694 = vor.u32 %v3690, %v3693
      %v3695 = vsel %vm3607, %v3686, %v3694
      %v3696 = vrot.slane %v3694, 4
      %v3698 = vshrl.u32 %v3578, 16
      %v3700 = vrot.slane %v3698, 6
      %v3701 = vshll.u32 %v3578, 16
      %v3703 = vrot.slane %v3701, 7
      %v3704 = vor.u32 %v3700, %v3703
      %v3705 = vsel %vm3607, %v3696, %v3704
      %v3706 = vrot.slane %v3704, 4
      %v3708 = vshrl.u32 %v3579, 16
      %v3710 = vrot.slane %v3708, 6
      %v3711 = vshll.u32 %v3579, 16
      %v3713 = vrot.slane %v3711, 7
      %v3714 = vor.u32 %v3710, %v3713
      %v3715 = vsel %vm3607, %v3706, %v3714
      %v3716 = vrot.slane %v3714, 4
      %v3718 = vshrl.u32 %v3580, 16
      %v3720 = vrot.slane %v3718, 6
      %v3721 = vshll.u32 %v3580, 16
      %v3723 = vrot.slane %v3721, 7
      %v3724 = vor.u32 %v3720, %v3723
      %v3725 = vsel %vm3607, %v3716, %v3724
      %v3726 = vrot.slane %v3724, 4
      %v3728 = vshrl.u32 %v3581, 16
      %v3730 = vrot.slane %v3728, 6
      %v3731 = vshll.u32 %v3581, 16
      %v3733 = vrot.slane %v3731, 7
      %v3734 = vor.u32 %v3730, %v3733
      %v3735 = vsel %vm3607, %v3726, %v3734
      %v3736 = vrot.slane %v3734, 4
      %v3738 = vshrl.u32 %v3582, 16
      %v3740 = vrot.slane %v3738, 6
      %v3741 = vshll.u32 %v3582, 16
      %v3743 = vrot.slane %v3741, 7
      %v3744 = vor.u32 %v3740, %v3743
      %v3745 = vsel %vm3607, %v3736, %v3744
      %v3746 = vrot.slane %v3744, 4
      %v3748 = vshrl.u32 %v3583, 16
      %v3750 = vrot.slane %v3748, 6
      %v3751 = vshll.u32 %v3583, 16
      %v3753 = vrot.slane %v3751, 7
      %v3754 = vor.u32 %v3750, %v3753
      %v3755 = vsel %vm3607, %v3746, %v3754
      %v3756 = vrot.slane %v3754, 4
      %v3758 = vshrl.u32 %v3584, 16
      %v3760 = vrot.slane %v3758, 6
      %v3761 = vshll.u32 %v3584, 16
      %v3763 = vrot.slane %v3761, 7
      %v3764 = vor.u32 %v3760, %v3763
      %v3765 = vsel %vm3607, %v3756, %v3764
      %v3766 = vrot.slane %v3764, 4
      %v3768 = vshrl.u32 %v3585, 16
      %v3770 = vrot.slane %v3768, 6
      %v3771 = vshll.u32 %v3585, 16
      %v3773 = vrot.slane %v3771, 7
      %v3774 = vor.u32 %v3770, %v3773
      %v3775 = vsel %vm3607, %v3766, %v3774
      %v3776 = vrot.slane %v3774, 4
      %v3778 = vshrl.u32 %v3586, 16
      %v3780 = vrot.slane %v3778, 6
      %v3781 = vshll.u32 %v3586, 16
      %v3783 = vrot.slane %v3781, 7
      %v3784 = vor.u32 %v3780, %v3783
      %v3785 = vsel %vm3607, %v3776, %v3784
      %v3786 = vrot.slane %v3784, 4
      %v3788 = vshrl.u32 %v3587, 16
      %v3790 = vrot.slane %v3788, 6
      %v3791 = vshll.u32 %v3587, 16
      %v3793 = vrot.slane %v3791, 7
      %v3794 = vor.u32 %v3790, %v3793
      %v3795 = vsel %vm3607, %v3786, %v3794
      %v3796 = vrot.slane %v3794, 4
      %v3798 = vshrl.u32 %v3588, 16
      %v3800 = vrot.slane %v3798, 6
      %v3801 = vshll.u32 %v3588, 16
      %v3803 = vrot.slane %v3801, 7
      %v3804 = vor.u32 %v3800, %v3803
      %v3805 = vsel %vm3607, %v3796, %v3804
      %v3806 = vrot.slane %v3804, 4
      %v3808 = vshrl.u32 %v3589, 16
      %v3810 = vrot.slane %v3808, 6
      %v3811 = vshll.u32 %v3589, 16
      %v3813 = vrot.slane %v3811, 7
      %v3814 = vor.u32 %v3810, %v3813
      %v3815 = vsel %vm3607, %v3806, %v3814
      %v3816 = vrot.slane %v3814, 4
      %v3818 = vshrl.u32 %v3590, 16
      %v3820 = vrot.slane %v3818, 6
      %v3821 = vshll.u32 %v3590, 16
      %v3823 = vrot.slane %v3821, 7
      %v3824 = vor.u32 %v3820, %v3823
      %v3825 = vsel %vm3607, %v3816, %v3824
      %v3826 = vrot.slane %v3824, 4
      %v3828 = vshrl.u32 %v3591, 16
      %v3830 = vrot.slane %v3828, 6
      %v3831 = vshll.u32 %v3591, 16
      %v3833 = vrot.slane %v3831, 7
      %v3834 = vor.u32 %v3830, %v3833
      %v3835 = vsel %vm3607, %v3826, %v3834
      %v3836 = vrot.slane %v3834, 4
      %v3838 = vshrl.u32 %v3592, 16
      %v3840 = vrot.slane %v3838, 6
      %v3841 = vshll.u32 %v3592, 16
      %v3843 = vrot.slane %v3841, 7
      %v3844 = vor.u32 %v3840, %v3843
      %v3845 = vsel %vm3607, %v3836, %v3844
      %v3846 = vrot.slane %v3844, 4
      %v3848 = vshrl.u32 %v3593, 16
      %v3850 = vrot.slane %v3848, 6
      %v3851 = vshll.u32 %v3593, 16
      %v3853 = vrot.slane %v3851, 7
      %v3854 = vor.u32 %v3850, %v3853
      %v3855 = vsel %vm3607, %v3846, %v3854
      %v3856 = vrot.slane %v3854, 4
      %v3858 = vshrl.u32 %v3594, 16
      %v3860 = vrot.slane %v3858, 6
      %v3861 = vshll.u32 %v3594, 16
      %v3863 = vrot.slane %v3861, 7
      %v3864 = vor.u32 %v3860, %v3863
      %v3865 = vsel %vm3607, %v3856, %v3864
      %v3866 = vrot.slane %v3864, 4
      %v3868 = vshrl.u32 %v3595, 16
      %v3870 = vrot.slane %v3868, 6
      %v3871 = vshll.u32 %v3595, 16
      %v3873 = vrot.slane %v3871, 7
      %v3874 = vor.u32 %v3870, %v3873
      %v3875 = vsel %vm3607, %v3866, %v3874
      %v3876 = vrot.slane %v3874, 4
      %v3878 = vshrl.u32 %v3596, 16
      %v3880 = vrot.slane %v3878, 6
      %v3881 = vshll.u32 %v3596, 16
      %v3883 = vrot.slane %v3881, 7
      %v3884 = vor.u32 %v3880, %v3883
      %v3885 = vsel %vm3607, %v3876, %v3884
      %v3886 = vrot.slane %v3884, 4
      %v3888 = vshrl.u32 %v3597, 16
      %v3890 = vrot.slane %v3888, 6
      %v3891 = vshll.u32 %v3597, 16
      %v3893 = vrot.slane %v3891, 7
      %v3894 = vor.u32 %v3890, %v3893
      %v3895 = vsel %vm3607, %v3886, %v3894
      %v3896 = vrot.slane %v3894, 4
      %v3898 = vshrl.u32 %v3598, 16
      %v3900 = vrot.slane %v3898, 6
      %v3901 = vshll.u32 %v3598, 16
      %v3903 = vrot.slane %v3901, 7
      %v3904 = vor.u32 %v3900, %v3903
      %v3905 = vsel %vm3607, %v3896, %v3904
      %v3906 = vrot.slane %v3904, 4
      %v3908 = vshrl.u32 %v3599, 16
      %v3910 = vrot.slane %v3908, 6
      %v3911 = vshll.u32 %v3599, 16
      %v3913 = vrot.slane %v3911, 7
      %v3914 = vor.u32 %v3910, %v3913
      %v3915 = vsel %vm3607, %v3906, %v3914
      %v3916 = vrot.slane %v3914, 4
      %v3918 = vshrl.u32 %v3600, 16
      %v3920 = vrot.slane %v3918, 6
      %v3921 = vshll.u32 %v3600, 16
      %v3923 = vrot.slane %v3921, 7
      %v3924 = vor.u32 %v3920, %v3923
      %v3925 = vsel %vm3607, %v3916, %v3924
      %v3926 = vrot.slane %v3924, 4
      %v3928 = vshrl.u32 %v3601, 16
      %v3930 = vrot.slane %v3928, 6
      %v3931 = vshll.u32 %v3601, 16
      %v3933 = vrot.slane %v3931, 7
      %v3934 = vor.u32 %v3930, %v3933
      %v3935 = vsel %vm3607, %v3926, %v3934
      %v3936 = vrot.slane %v3934, 4
      %v3938 = vshrl.u32 %v3602, 16
      %v3940 = vrot.slane %v3938, 6
      %v3941 = vshll.u32 %v3602, 16
      %v3943 = vrot.slane %v3941, 7
      %v3944 = vor.u32 %v3940, %v3943
      %v3945 = vsel %vm3607, %v3936, %v3944
      %v3946 = vrot.slane %v3944, 4
      %v3948 = vshrl.u32 %v3603, 16
      %v3950 = vrot.slane %v3948, 6
      %v3951 = vshll.u32 %v3603, 16
      %v3953 = vrot.slane %v3951, 7
      %v3954 = vor.u32 %v3950, %v3953
      %v3955 = vsel %vm3607, %v3946, %v3954
      %v3956 = vrot.slane %v3954, 4
      %v3958 = vshrl.u32 %v3604, 16
      %v3960 = vrot.slane %v3958, 6
      %v3961 = vshll.u32 %v3604, 16
      %v3963 = vrot.slane %v3961, 7
      %v3964 = vor.u32 %v3960, %v3963
      %v3965 = vsel %vm3607, %v3956, %v3964
      %v3966 = vrot.slane %v3964, 4
      %vm4004 = vcmask 125953
      %vm4005 = vsmask.f32 7942
      %vm4006 = vmand %vm4004, %vm4005
      %v4007 = vld [vmem:[%s197 + $0x8] sm:$0xe]
      %v4008 = vsel %vm4006, %v3615, %v4007
      %4009 = vst [vmem:[%s197 + $0x8] sm:$0xe] %v4008
      %4010 = vst.msk [vmem:[%s197 + $0xc] sm:$0xf] %vm3524, %v3625
      %4011 = vst.msk [vmem:[%s197 + $0x10] sm:$0xf] %vm3524, %v3635
      %4012 = vst.msk [vmem:[%s197 + $0x14] sm:$0xf] %vm3524, %v3645
      %4013 = vst.msk [vmem:[%s197 + $0x18] sm:$0xf] %vm3524, %v3655
      %4014 = vst.msk [vmem:[%s197 + $0x1c] sm:$0xf] %vm3524, %v3665
      %4015 = vst.msk [vmem:[%s197 + $0x20] sm:$0xf] %vm3524, %v3675
      %4016 = vst.msk [vmem:[%s197 + $0x24] sm:$0xf] %vm3524, %v3685
      %4017 = vst.msk [vmem:[%s197 + $0x28] sm:$0xf] %vm3524, %v3695
      %4018 = vst.msk [vmem:[%s197 + $0x2c] sm:$0xf] %vm3524, %v3705
      %4019 = vst.msk [vmem:[%s197 + $0x30] sm:$0xf] %vm3524, %v3715
      %4020 = vst.msk [vmem:[%s197 + $0x34] sm:$0xf] %vm3524, %v3725
      %4021 = vst.msk [vmem:[%s197 + $0x38] sm:$0xf] %vm3524, %v3735
      %4022 = vst.msk [vmem:[%s197 + $0x3c] sm:$0xf] %vm3524, %v3745
      %4023 = vst.msk [vmem:[%s197 + $0x40] sm:$0xf] %vm3524, %v3755
      %4024 = vst.msk [vmem:[%s197 + $0x44] sm:$0xf] %vm3524, %v3765
      %4025 = vst.msk [vmem:[%s197 + $0x48] sm:$0xf] %vm3524, %v3775
      %4026 = vst.msk [vmem:[%s197 + $0x4c] sm:$0xf] %vm3524, %v3785
      %4027 = vst.msk [vmem:[%s197 + $0x50] sm:$0xf] %vm3524, %v3795
      %4028 = vst.msk [vmem:[%s197 + $0x54] sm:$0xf] %vm3524, %v3805
      %4029 = vst.msk [vmem:[%s197 + $0x58] sm:$0xf] %vm3524, %v3815
      %4030 = vst.msk [vmem:[%s197 + $0x5c] sm:$0xf] %vm3524, %v3825
      %4031 = vst.msk [vmem:[%s197 + $0x60] sm:$0xf] %vm3524, %v3835
      %4032 = vst.msk [vmem:[%s197 + $0x64] sm:$0xf] %vm3524, %v3845
      %4033 = vst.msk [vmem:[%s197 + $0x68] sm:$0xf] %vm3524, %v3855
      %4034 = vst.msk [vmem:[%s197 + $0x6c] sm:$0xf] %vm3524, %v3865
      %4035 = vst.msk [vmem:[%s197 + $0x70] sm:$0xf] %vm3524, %v3875
      %4036 = vst.msk [vmem:[%s197 + $0x74] sm:$0xf] %vm3524, %v3885
      %4037 = vst.msk [vmem:[%s197 + $0x78] sm:$0xf] %vm3524, %v3895
      %4038 = vst.msk [vmem:[%s197 + $0x7c] sm:$0xf] %vm3524, %v3905
      %4039 = vst.msk [vmem:[%s197 + $0x80] sm:$0xf] %vm3524, %v3915
      %4040 = vst.msk [vmem:[%s197 + $0x84] sm:$0xf] %vm3524, %v3925
      %4041 = vst.msk [vmem:[%s197 + $0x88] sm:$0xf] %vm3524, %v3935
      %4042 = vst.msk [vmem:[%s197 + $0x8c] sm:$0xf] %vm3524, %v3945
      %4043 = vst.msk [vmem:[%s197 + $0x90] sm:$0xf] %vm3524, %v3955
      %4044 = vst.msk [vmem:[%s197 + $0x94] sm:$0xf] %vm3524, %v3965
      %vm4045 = vcmask 123904
      %vm4046 = vmand %vm4045, %vm3605
      %v4047 = vld [vmem:[%s197 + $0x98] sm:$0x3]
      %v4048 = vsel %vm4046, %v3966, %v4047
      %4049 = vst [vmem:[%s197 + $0x98] sm:$0x3] %v4048
      %p4050 = scmp.lt.s32.totalorder %s15, 1
      %s4051 = scalar_select %p4050, %s15, 1
      %s4052 = smul.addr %s4051, 43
      %s4053 = smul.addr %s4052, 4
      %s4054 = scalar_lea.vmem %s4, %s4053
      // Predicated region
      $region37: #{_lambda_.3} parent=35 // pred_check
        %p4055 = pneg %p122
      $region38: #{_lambda_.3} parent=35 // pred_check_branch
        %4057 = sbr.rel (%p4055) target = $region40
      $region39: #{_lambda_.3} parent=35 // pred_region
        _
      $region40: #{_lambda_.3} parent=35 // pred_fallthru
        _
    $region36: #{_lambda_.3} parent=5 // pred_fallthru
      _
    %p4058 = scmp.le.s32.totalorder 2, %s10
    // Predicated region
    $region41: #{_lambda_.3} parent=5 // pred_check
      %p4059 = pneg %p4058
    $region42: #{_lambda_.3} parent=5 // pred_check_branch
      %4061 = sbr.rel (%p4059) target = $region44
    $region43: #{_lambda_.3} parent=5 // pred_region
      %s4062 = ssub.s32 %s10, 2
      // Predicated region
      $region45: #{_lambda_.3} parent=43 // pred_check
        %p4063 = pneg %p128
      $region46: #{_lambda_.3} parent=43 // pred_check_branch
        %4065 = sbr.rel (%p4063) target = $region48
      $region47: #{_lambda_.3} parent=43 // pred_region
        %p4066 = scmp.lt.s32.totalorder %s16, 1
        %s4067 = scalar_select %p4066, %s16, 1
        %s4068 = smul.addr %s4067, 43
        %s4069 = smul.addr %s4068, 4
        %s4070 = scalar_lea.vmem %s4, %s4069
      $region48: #{_lambda_.3} parent=43 // pred_fallthru
        _
    $region44: #{_lambda_.3} parent=5 // pred_fallthru
      _
  $region6: #{_lambda_.3} parent=0 // loop_footer
    %s14 = sadd.s32 1, %s10
  $region7: #{_lambda_.3} parent=0 // loop_footer_branch
    %9 = sbr.rel target = $region3
  $region8: #{_lambda_.3} parent=0 // loop_exit
    _

</llo_original>
